<compile_context>
chip_gen: v5e
topology: v5e:2x2
jax: 0.10.0
libtpu: 0.0.40
codegen_flags: <defaults>
</compile_context>

<pallas_src>
import functools
import math

import jax
import jax.numpy as jnp
from jax import lax
from jax.experimental import pallas as pl
from jax.experimental.pallas import tpu as pltpu

EPS = 1e-5
LANE = 128


def _round_up(x, m):
    return (x + m - 1) // m * m


def _pad_channels(c):
    # Lane-dense (multiple of 128) only when the channel count is already large; tiny channel
    # counts keep (almost) their true size and rely on full-extent channel blocks instead.
    return _round_up(c, LANE) if c >= LANE else _round_up(c, 8)


@functools.lru_cache(maxsize=1)
def _vmem_limit():
    # ~3/4 of physical VMEM: ~48 MiB on v7x (64 MiB), ~96 MiB on v5e/v6e (128 MiB).
    try:
        cap = pltpu.get_tpu_info().vmem_capacity_bytes
    except Exception:
        cap = 64 * 1024 * 1024
    return int(min(100 * 1024 * 1024, max(32 * 1024 * 1024, cap * 3 // 4)))


# ------------- conv3x3 core: pad into VMEM scratch, 9 taps, MXU matmul(s) -------------

def _conv3x3(h, w, act, w_ref, xpad_ref):
    """act: (h, w, cp) bf16 activation tile.  Returns f32 (h*w, cp) conv output."""
    cp = act.shape[-1]
    # Zero halo + interior store.  The scratch is re-zeroed every grid step so the kernel is
    # safe under megacore ("parallel") grid sharding; the cost is negligible vs. the matmuls.
    xpad_ref[...] = jnp.zeros_like(xpad_ref)
    xpad_ref[1:h + 1, 1:w + 1, :] = act.astype(xpad_ref.dtype)

    # Pre-extract the 3 dx-shifted slabs once (only these slices are sublane-unaligned).
    # dy slices below hit the contiguous leading dim, so reshape to (h*w, cp) is layout-trivial.
    slabs = [xpad_ref[:, dx:dx + w, :] for dx in range(3)]

    def tap(dy, dx):
        return slabs[dx][dy:dy + h, :, :].reshape(h * w, cp)

    if cp >= LANE:
        # Single long-K matmul (K = 9*cp) keeps the 256-wide MXUs (v6e/v7x) filled; the
        # per-tile im2col lives only in VMEM/vregs, never in HBM.
        col = jnp.concatenate([tap(dy, dx) for dy in range(3) for dx in range(3)], axis=-1)
        return jnp.dot(col, w_ref[...].reshape(9 * cp, cp),
                       preferred_element_type=jnp.float32)

    # Small-channel path: 9 accumulated dots (no lane-offset concat needed).
    acc = jnp.zeros((h * w, cp), jnp.float32)
    for dy in range(3):
        for dx in range(3):
            acc = acc + jnp.dot(tap(dy, dx), w_ref[dy * 3 + dx],
                                preferred_element_type=jnp.float32)
    return acc


def _stats_and_store(y_f32, y_ref, s_ref, ss_ref):
    # Per-image channel sum / sum-of-squares from the f32 accumulator, then bf16 downcast.
    s_ref[0] = jnp.sum(y_f32, axis=0, keepdims=True)
    ss_ref[0] = jnp.sum(y_f32 * y_f32, axis=0, keepdims=True)
    y_ref[0] = y_f32.astype(y_ref.dtype)


def _conv_stats_kernel(h, w, x_ref, w_ref, y_ref, s_ref, ss_ref, xpad_ref):
    y = _conv3x3(h, w, x_ref[0], w_ref, xpad_ref)
    _stats_and_store(y, y_ref, s_ref, ss_ref)


def _bnrelu_conv_stats_kernel(h, w, x_ref, w_ref, sc_ref, sh_ref,
                              y_ref, s_ref, ss_ref, xpad_ref):
    # Fused stage-1 BatchNorm affine + ReLU on the raw conv1 output tile, then conv2.
    a = x_ref[0].astype(jnp.float32) * sc_ref[0] + sh_ref[0]
    act = jnp.maximum(a, 0.0).astype(jnp.bfloat16)
    y = _conv3x3(h, w, act, w_ref, xpad_ref)
    _stats_and_store(y, y_ref, s_ref, ss_ref)


def _conv_bn_stats(x, w9, scale=None, shift=None):
    """3x3 conv (stride 1, pad 1, no bias) of x — optionally pre-activated in-kernel with
    max(x*scale+shift, 0) — plus per-image channel sum / sum-of-squares of the conv output."""
    n, h, w, cp = x.shape
    hw = h * w
    inputs = [x, w9]
    in_specs = [pl.BlockSpec((1, h, w, cp), lambda i: (i, 0, 0, 0)),
                pl.BlockSpec((9, cp, cp), lambda i: (0, 0, 0))]
    if scale is None:
        kernel = functools.partial(_conv_stats_kernel, h, w)
    else:
        inputs += [scale, shift]
        in_specs += [pl.BlockSpec((1, cp), lambda i: (0, 0)),
                     pl.BlockSpec((1, cp), lambda i: (0, 0))]
        kernel = functools.partial(_bnrelu_conv_stats_kernel, h, w)

    flops = 2 * n * hw * 9 * cp * cp
    bytes_accessed = (sum(a.size * a.dtype.itemsize for a in inputs)
                      + n * hw * cp * 2 + 2 * n * cp * 4)
    return pl.pallas_call(
        kernel,
        out_shape=(jax.ShapeDtypeStruct((n, hw, cp), jnp.bfloat16),   # pre-BN conv out (bf16)
                   jax.ShapeDtypeStruct((n, 1, cp), jnp.float32),      # per-image sum
                   jax.ShapeDtypeStruct((n, 1, cp), jnp.float32)),     # per-image sum of squares
        grid=(n,),
        in_specs=in_specs,
        out_specs=(pl.BlockSpec((1, hw, cp), lambda i: (i, 0, 0)),
                   pl.BlockSpec((1, 1, cp), lambda i: (i, 0, 0)),
                   pl.BlockSpec((1, 1, cp), lambda i: (i, 0, 0))),
        scratch_shapes=[pltpu.VMEM((h + 2, w + 2, cp), jnp.bfloat16)],
        compiler_params=pltpu.CompilerParams(
            dimension_semantics=("parallel",),
            vmem_limit_bytes=_vmem_limit()),
        cost_estimate=pl.CostEstimate(flops=flops, transcendentals=0,
                                      bytes_accessed=bytes_accessed),
    )(*inputs)


# ------------- final pass: normalize + residual + ReLU, tiled over rows -------------

def _norm_add_relu_kernel(y_ref, sc_ref, sh_ref, id_ref, o_ref):
    v = (y_ref[...].astype(jnp.float32) * sc_ref[...] + sh_ref[...]
         + id_ref[...].astype(jnp.float32))
    o_ref[...] = jnp.maximum(v, 0.0).astype(o_ref.dtype)


def _norm_add_relu(y, scale, shift, identity, out_dtype=jnp.float32, tm=1024):
    m, cp = y.shape
    tm = min(tm, m)   # multiple of 8 when tiled, full extent otherwise
    bytes_accessed = (y.size * y.dtype.itemsize + identity.size * identity.dtype.itemsize
                      + 2 * cp * 4 + m * cp * jnp.dtype(out_dtype).itemsize)
    return pl.pallas_call(
        _norm_add_relu_kernel,
        out_shape=jax.ShapeDtypeStruct((m, cp), out_dtype),
        grid=(pl.cdiv(m, tm),),
        in_specs=[pl.BlockSpec((tm, cp), lambda i: (i, 0)),
                  pl.BlockSpec((1, cp), lambda i: (0, 0)),
                  pl.BlockSpec((1, cp), lambda i: (0, 0)),
                  pl.BlockSpec((tm, cp), lambda i: (i, 0))],
        out_specs=pl.BlockSpec((tm, cp), lambda i: (i, 0)),
        compiler_params=pltpu.CompilerParams(
            dimension_semantics=("parallel",),
            vmem_limit_bytes=_vmem_limit()),
        cost_estimate=pl.CostEstimate(flops=5 * m * cp, transcendentals=0,
                                      bytes_accessed=bytes_accessed),
    )(y, scale, shift, identity)


# --------------------------------- module port ---------------------------------

class ResnetBlockPallas:
    """JAX/Pallas port of the PyTorch ResnetBlock (shared conv + shared bn, training-mode BN)."""

    def __init__(self, in_ch, out_ch, key):
        # The PyTorch forward only works when in_ch == out_ch (residual add).
        assert in_ch == out_ch, "ResnetBlock residual add requires in_ch == out_ch"
        k1, k2 = jax.random.split(key)
        bound = 1.0 / math.sqrt(in_ch * 9)
        self.w = jax.random.uniform(k1, (out_ch, in_ch, 3, 3), jnp.float32, -bound, bound)
        # Conv bias exists in the PyTorch module, but both conv outputs feed straight into
        # training-mode BN whose mean subtraction cancels a per-channel constant exactly,
        # so the bias is never applied (exact no-op for the forward output).
        self.b = jax.random.uniform(k2, (out_ch,), jnp.float32, -bound, bound)
        self.gamma = jnp.ones((out_ch,), jnp.float32)   # BN weight init
        self.beta = jnp.zeros((out_ch,), jnp.float32)   # BN bias init
        self.in_ch, self.out_ch = in_ch, out_ch

    def __call__(self, x_nchw):
        n, c, h, w = x_nchw.shape
        cp = _pad_channels(c)
        m_total = n * h * w

        # Weights: (Cout, Cin, 3, 3) -> (9, Cin_p, Cout_p) tap-major, zero-padded, bf16 for MXU.
        w9 = jnp.transpose(self.w, (2, 3, 1, 0)).reshape(9, c, self.out_ch)
        w9 = jnp.pad(w9, ((0, 0), (0, cp - c), (0, cp - self.out_ch))).astype(jnp.bfloat16)
        gamma = jnp.pad(self.gamma, (0, cp - self.out_ch), constant_values=1.0)
        beta = jnp.pad(self.beta, (0, cp - self.out_ch))

        # NCHW -> NHWC bf16, channel-padded once; reused as conv1 input AND as the bf16
        # residual stream (upcast to f32 inside the final kernel).
        xb = jnp.transpose(x_nchw, (0, 2, 3, 1))
        xb = jnp.pad(xb, ((0, 0), (0, 0), (0, 0), (0, cp - c))).astype(jnp.bfloat16)

        def bn_affine(s_parts, ss_parts):
            # TODO(synk): one-pass var = E[y^2]-E[y]^2 can cancel badly for huge N*H*W;
            # switch to a mean-shifted / Welford merge of the per-image partials if needed.
            s = jnp.sum(s_parts, axis=0).reshape(-1)
            ss = jnp.sum(ss_parts, axis=0).reshape(-1)
            mean = s / m_total
            var = jnp.maximum(ss / m_total - mean * mean, 0.0)     # biased variance
            inv = lax.rsqrt(var + EPS)
            scale = gamma * inv
            shift = beta - mean * scale
            return scale.reshape(1, -1), shift.reshape(1, -1)

        # ---- pass 1: y1 = conv(x); per-image stats -> BN1 affine ----
        y1, s1, ss1 = _conv_bn_stats(xb, w9)
        sc1, sh1 = bn_affine(s1, ss1)

        # ---- pass 2: h1 = relu(bn1(y1)) fused in-kernel; y2 = conv(h1); stats -> BN2 affine ----
        y2, s2, ss2 = _conv_bn_stats(y1.reshape(n, h, w, cp), w9, sc1, sh1)
        sc2, sh2 = bn_affine(s2, ss2)

        # ---- pass 3: out = relu(bn2(y2) + identity) ----
        out = _norm_add_relu(y2.reshape(m_total, cp), sc2, sh2,
                             xb.reshape(m_total, cp), out_dtype=jnp.float32)

        out = out.reshape(n, h, w, cp)[..., :self.out_ch]          # drop channel padding
        return jnp.transpose(out, (0, 3, 1, 2))                    # NHWC -> NCHW


# ------------------------------------- main -------------------------------------

if __name__ == "__main__":
    key = jax.random.PRNGKey(0)
    kx, kp = jax.random.split(key)

    x = jax.random.normal(kx, (2, 4, 16, 16), jnp.float32)   # NCHW, like PyTorch

    block = ResnetBlockPallas(in_ch=4, out_ch=4, key=kp)
    fwd = jax.jit(block.__call__)
    y = fwd(x)
    jax.block_until_ready(y)

    assert y.shape == x.shape and y.dtype == jnp.float32
    assert bool(jnp.all(y >= 0.0))  # final ReLU
    print("KERNEL_OK")
</pallas_src>

<mosaic_0001>
module attributes {stable_mosaic.version = 11 : i64} {
  func.func @_conv_stats_kernel(%arg0: i32, %arg1: memref<1x16x16x8xbf16, #tpu.memory_space<vmem>>, %arg2: memref<9x8x8xbf16, #tpu.memory_space<vmem>>, %arg3: memref<1x256x8xbf16, #tpu.memory_space<vmem>>, %arg4: memref<1x1x8xf32, #tpu.memory_space<vmem>>, %arg5: memref<1x1x8xf32, #tpu.memory_space<vmem>>, %arg6: memref<18x18x8xbf16, #tpu.memory_space<vmem>>) attributes {dimension_semantics = [#tpu.dimension_semantics<parallel>], iteration_bounds = array<i64: 2>, scalar_prefetch = 0 : i64, scratch_operands = 1 : i64, tpu.core_type = #tpu.core_type<tc>, window_params = [{transform_indices = @transform_0, window_bounds = array<i64: 1, 16, 16, 8>}, {pipeline_mode = #tpu.pipeline_mode<synchronous>, transform_indices = @transform_1, window_bounds = array<i64: 9, 8, 8>}, {transform_indices = @transform_2, window_bounds = array<i64: 1, 256, 8>}, {transform_indices = @transform_3, window_bounds = array<i64: 1, 1, 8>}, {transform_indices = @transform_4, window_bounds = array<i64: 1, 1, 8>}]} {
    %c0 = arith.constant 0 : index
    %c0_0 = arith.constant 0 : index
    %c0_1 = arith.constant 0 : index
    %c0_2 = arith.constant 0 : index
    %0 = vector.load %arg1[%c0, %c0_0, %c0_1, %c0_2] : memref<1x16x16x8xbf16, #tpu.memory_space<vmem>>, vector<1x16x16x8xbf16>
    %1 = vector.shape_cast %0 : vector<1x16x16x8xbf16> to vector<16x16x8xbf16>
    %cst = arith.constant 0.000000e+00 : bf16
    %2 = vector.broadcast %cst : bf16 to vector<18x18x8xbf16>
    %c0_3 = arith.constant 0 : index
    %c0_4 = arith.constant 0 : index
    %c0_5 = arith.constant 0 : index
    %3 = vector.load %arg6[%c0_3, %c0_4, %c0_5] : memref<18x18x8xbf16, #tpu.memory_space<vmem>>, vector<18x18x8xbf16>
    tpu.vector_store %arg6[%c0_3, %c0_4, %c0_5], %2 {strides = array<i32>} : memref<18x18x8xbf16, #tpu.memory_space<vmem>>, vector<18x18x8xbf16>,
    %c1 = arith.constant 1 : index
    %c1_6 = arith.constant 1 : index
    %c0_7 = arith.constant 0 : index
    %4 = vector.load %arg6[%c1, %c1_6, %c0_7] : memref<18x18x8xbf16, #tpu.memory_space<vmem>>, vector<16x16x8xbf16>
    tpu.vector_store %arg6[%c1, %c1_6, %c0_7], %1 {strides = array<i32>} : memref<18x18x8xbf16, #tpu.memory_space<vmem>>, vector<16x16x8xbf16>,
    %c0_8 = arith.constant 0 : index
    %c0_9 = arith.constant 0 : index
    %c0_10 = arith.constant 0 : index
    %5 = vector.load %arg6[%c0_8, %c0_9, %c0_10] : memref<18x18x8xbf16, #tpu.memory_space<vmem>>, vector<18x16x8xbf16>
    %c0_11 = arith.constant 0 : index
    %c1_12 = arith.constant 1 : index
    %c0_13 = arith.constant 0 : index
    %6 = vector.load %arg6[%c0_11, %c1_12, %c0_13] : memref<18x18x8xbf16, #tpu.memory_space<vmem>>, vector<18x16x8xbf16>
    %c0_14 = arith.constant 0 : index
    %c2 = arith.constant 2 : index
    %c0_15 = arith.constant 0 : index
    %7 = vector.load %arg6[%c0_14, %c2, %c0_15] : memref<18x18x8xbf16, #tpu.memory_space<vmem>>, vector<18x16x8xbf16>
    %cst_16 = arith.constant 0.000000e+00 : f32
    %8 = vector.broadcast %cst_16 : f32 to vector<256x8xf32>
    %9 = vector.extract_strided_slice %5 {offsets = [0, 0, 0], sizes = [16, 16, 8], strides = [1, 1, 1]} : vector<18x16x8xbf16> to vector<16x16x8xbf16>
    %10 = vector.shape_cast %9 : vector<16x16x8xbf16> to vector<256x8xbf16>
    %c0_17 = arith.constant 0 : index
    %c0_18 = arith.constant 0 : index
    %c0_19 = arith.constant 0 : index
    %11 = vector.load %arg2[%c0_17, %c0_18, %c0_19] : memref<9x8x8xbf16, #tpu.memory_space<vmem>>, vector<1x8x8xbf16>
    %12 = vector.shape_cast %11 : vector<1x8x8xbf16> to vector<8x8xbf16>
    %cst_20 = arith.constant dense<0.000000e+00> : vector<256x8xf32>
    %13 = tpu.matmul %10, %12, %cst_20 {dimension_numbers = #tpu.dot_dimension_numbers<[1], [0], [0], [1], [0, 0, 1, 1], [], []>} : vector<256x8xbf16>, vector<8x8xbf16>, vector<256x8xf32> -> vector<256x8xf32>
    %14 = arith.addf %8, %13 : vector<256x8xf32>
    %15 = vector.extract_strided_slice %6 {offsets = [0, 0, 0], sizes = [16, 16, 8], strides = [1, 1, 1]} : vector<18x16x8xbf16> to vector<16x16x8xbf16>
    %16 = vector.shape_cast %15 : vector<16x16x8xbf16> to vector<256x8xbf16>
    %c1_21 = arith.constant 1 : index
    %c0_22 = arith.constant 0 : index
    %c0_23 = arith.constant 0 : index
    %17 = vector.load %arg2[%c1_21, %c0_22, %c0_23] : memref<9x8x8xbf16, #tpu.memory_space<vmem>>, vector<1x8x8xbf16>
    %18 = vector.shape_cast %17 : vector<1x8x8xbf16> to vector<8x8xbf16>
    %cst_24 = arith.constant dense<0.000000e+00> : vector<256x8xf32>
    %19 = tpu.matmul %16, %18, %cst_24 {dimension_numbers = #tpu.dot_dimension_numbers<[1], [0], [0], [1], [0, 0, 1, 1], [], []>} : vector<256x8xbf16>, vector<8x8xbf16>, vector<256x8xf32> -> vector<256x8xf32>
    %20 = arith.addf %14, %19 : vector<256x8xf32>
    %21 = vector.extract_strided_slice %7 {offsets = [0, 0, 0], sizes = [16, 16, 8], strides = [1, 1, 1]} : vector<18x16x8xbf16> to vector<16x16x8xbf16>
    %22 = vector.shape_cast %21 : vector<16x16x8xbf16> to vector<256x8xbf16>
    %c2_25 = arith.constant 2 : index
    %c0_26 = arith.constant 0 : index
    %c0_27 = arith.constant 0 : index
    %23 = vector.load %arg2[%c2_25, %c0_26, %c0_27] : memref<9x8x8xbf16, #tpu.memory_space<vmem>>, vector<1x8x8xbf16>
    %24 = vector.shape_cast %23 : vector<1x8x8xbf16> to vector<8x8xbf16>
    %cst_28 = arith.constant dense<0.000000e+00> : vector<256x8xf32>
    %25 = tpu.matmul %22, %24, %cst_28 {dimension_numbers = #tpu.dot_dimension_numbers<[1], [0], [0], [1], [0, 0, 1, 1], [], []>} : vector<256x8xbf16>, vector<8x8xbf16>, vector<256x8xf32> -> vector<256x8xf32>
    %26 = arith.addf %20, %25 : vector<256x8xf32>
    %27 = vector.extract_strided_slice %5 {offsets = [1, 0, 0], sizes = [16, 16, 8], strides = [1, 1, 1]} : vector<18x16x8xbf16> to vector<16x16x8xbf16>
    %28 = vector.shape_cast %27 : vector<16x16x8xbf16> to vector<256x8xbf16>
    %c3 = arith.constant 3 : index
    %c0_29 = arith.constant 0 : index
    %c0_30 = arith.constant 0 : index
    %29 = vector.load %arg2[%c3, %c0_29, %c0_30] : memref<9x8x8xbf16, #tpu.memory_space<vmem>>, vector<1x8x8xbf16>
    %30 = vector.shape_cast %29 : vector<1x8x8xbf16> to vector<8x8xbf16>
    %cst_31 = arith.constant dense<0.000000e+00> : vector<256x8xf32>
    %31 = tpu.matmul %28, %30, %cst_31 {dimension_numbers = #tpu.dot_dimension_numbers<[1], [0], [0], [1], [0, 0, 1, 1], [], []>} : vector<256x8xbf16>, vector<8x8xbf16>, vector<256x8xf32> -> vector<256x8xf32>
    %32 = arith.addf %26, %31 : vector<256x8xf32>
    %33 = vector.extract_strided_slice %6 {offsets = [1, 0, 0], sizes = [16, 16, 8], strides = [1, 1, 1]} : vector<18x16x8xbf16> to vector<16x16x8xbf16>
    %34 = vector.shape_cast %33 : vector<16x16x8xbf16> to vector<256x8xbf16>
    %c4 = arith.constant 4 : index
    %c0_32 = arith.constant 0 : index
    %c0_33 = arith.constant 0 : index
    %35 = vector.load %arg2[%c4, %c0_32, %c0_33] : memref<9x8x8xbf16, #tpu.memory_space<vmem>>, vector<1x8x8xbf16>
    %36 = vector.shape_cast %35 : vector<1x8x8xbf16> to vector<8x8xbf16>
    %cst_34 = arith.constant dense<0.000000e+00> : vector<256x8xf32>
    %37 = tpu.matmul %34, %36, %cst_34 {dimension_numbers = #tpu.dot_dimension_numbers<[1], [0], [0], [1], [0, 0, 1, 1], [], []>} : vector<256x8xbf16>, vector<8x8xbf16>, vector<256x8xf32> -> vector<256x8xf32>
    %38 = arith.addf %32, %37 : vector<256x8xf32>
    %39 = vector.extract_strided_slice %7 {offsets = [1, 0, 0], sizes = [16, 16, 8], strides = [1, 1, 1]} : vector<18x16x8xbf16> to vector<16x16x8xbf16>
    %40 = vector.shape_cast %39 : vector<16x16x8xbf16> to vector<256x8xbf16>
    %c5 = arith.constant 5 : index
    %c0_35 = arith.constant 0 : index
    %c0_36 = arith.constant 0 : index
    %41 = vector.load %arg2[%c5, %c0_35, %c0_36] : memref<9x8x8xbf16, #tpu.memory_space<vmem>>, vector<1x8x8xbf16>
    %42 = vector.shape_cast %41 : vector<1x8x8xbf16> to vector<8x8xbf16>
    %cst_37 = arith.constant dense<0.000000e+00> : vector<256x8xf32>
    %43 = tpu.matmul %40, %42, %cst_37 {dimension_numbers = #tpu.dot_dimension_numbers<[1], [0], [0], [1], [0, 0, 1, 1], [], []>} : vector<256x8xbf16>, vector<8x8xbf16>, vector<256x8xf32> -> vector<256x8xf32>
    %44 = arith.addf %38, %43 : vector<256x8xf32>
    %45 = vector.extract_strided_slice %5 {offsets = [2, 0, 0], sizes = [16, 16, 8], strides = [1, 1, 1]} : vector<18x16x8xbf16> to vector<16x16x8xbf16>
    %46 = vector.shape_cast %45 : vector<16x16x8xbf16> to vector<256x8xbf16>
    %c6 = arith.constant 6 : index
    %c0_38 = arith.constant 0 : index
    %c0_39 = arith.constant 0 : index
    %47 = vector.load %arg2[%c6, %c0_38, %c0_39] : memref<9x8x8xbf16, #tpu.memory_space<vmem>>, vector<1x8x8xbf16>
    %48 = vector.shape_cast %47 : vector<1x8x8xbf16> to vector<8x8xbf16>
    %cst_40 = arith.constant dense<0.000000e+00> : vector<256x8xf32>
    %49 = tpu.matmul %46, %48, %cst_40 {dimension_numbers = #tpu.dot_dimension_numbers<[1], [0], [0], [1], [0, 0, 1, 1], [], []>} : vector<256x8xbf16>, vector<8x8xbf16>, vector<256x8xf32> -> vector<256x8xf32>
    %50 = arith.addf %44, %49 : vector<256x8xf32>
    %51 = vector.extract_strided_slice %6 {offsets = [2, 0, 0], sizes = [16, 16, 8], strides = [1, 1, 1]} : vector<18x16x8xbf16> to vector<16x16x8xbf16>
    %52 = vector.shape_cast %51 : vector<16x16x8xbf16> to vector<256x8xbf16>
    %c7 = arith.constant 7 : index
    %c0_41 = arith.constant 0 : index
    %c0_42 = arith.constant 0 : index
    %53 = vector.load %arg2[%c7, %c0_41, %c0_42] : memref<9x8x8xbf16, #tpu.memory_space<vmem>>, vector<1x8x8xbf16>
    %54 = vector.shape_cast %53 : vector<1x8x8xbf16> to vector<8x8xbf16>
    %cst_43 = arith.constant dense<0.000000e+00> : vector<256x8xf32>
    %55 = tpu.matmul %52, %54, %cst_43 {dimension_numbers = #tpu.dot_dimension_numbers<[1], [0], [0], [1], [0, 0, 1, 1], [], []>} : vector<256x8xbf16>, vector<8x8xbf16>, vector<256x8xf32> -> vector<256x8xf32>
    %56 = arith.addf %50, %55 : vector<256x8xf32>
    %57 = vector.extract_strided_slice %7 {offsets = [2, 0, 0], sizes = [16, 16, 8], strides = [1, 1, 1]} : vector<18x16x8xbf16> to vector<16x16x8xbf16>
    %58 = vector.shape_cast %57 : vector<16x16x8xbf16> to vector<256x8xbf16>
    %c8 = arith.constant 8 : index
    %c0_44 = arith.constant 0 : index
    %c0_45 = arith.constant 0 : index
    %59 = vector.load %arg2[%c8, %c0_44, %c0_45] : memref<9x8x8xbf16, #tpu.memory_space<vmem>>, vector<1x8x8xbf16>
    %60 = vector.shape_cast %59 : vector<1x8x8xbf16> to vector<8x8xbf16>
    %cst_46 = arith.constant dense<0.000000e+00> : vector<256x8xf32>
    %61 = tpu.matmul %58, %60, %cst_46 {dimension_numbers = #tpu.dot_dimension_numbers<[1], [0], [0], [1], [0, 0, 1, 1], [], []>} : vector<256x8xbf16>, vector<8x8xbf16>, vector<256x8xf32> -> vector<256x8xf32>
    %62 = arith.addf %56, %61 : vector<256x8xf32>
    %cst_47 = arith.constant dense<0.000000e+00> : vector<8xf32>
    %63 = vector.multi_reduction <add>, %62, %cst_47 [0] : vector<256x8xf32> to vector<8xf32>
    %64 = vector.shape_cast %63 : vector<8xf32> to vector<1x8xf32>
    %c0_48 = arith.constant 0 : index
    %c0_49 = arith.constant 0 : index
    %c0_50 = arith.constant 0 : index
    %65 = vector.load %arg4[%c0_48, %c0_49, %c0_50] : memref<1x1x8xf32, #tpu.memory_space<vmem>>, vector<1x1x8xf32>
    %66 = vector.shape_cast %65 : vector<1x1x8xf32> to vector<1x8xf32>
    %67 = vector.shape_cast %64 : vector<1x8xf32> to vector<1x1x8xf32>
    tpu.vector_store %arg4[%c0_48, %c0_49, %c0_50], %67 {strides = array<i32>} : memref<1x1x8xf32, #tpu.memory_space<vmem>>, vector<1x1x8xf32>,
    %68 = arith.mulf %62, %62 : vector<256x8xf32>
    %cst_51 = arith.constant dense<0.000000e+00> : vector<8xf32>
    %69 = vector.multi_reduction <add>, %68, %cst_51 [0] : vector<256x8xf32> to vector<8xf32>
    %70 = vector.shape_cast %69 : vector<8xf32> to vector<1x8xf32>
    %c0_52 = arith.constant 0 : index
    %c0_53 = arith.constant 0 : index
    %c0_54 = arith.constant 0 : index
    %71 = vector.load %arg5[%c0_52, %c0_53, %c0_54] : memref<1x1x8xf32, #tpu.memory_space<vmem>>, vector<1x1x8xf32>
    %72 = vector.shape_cast %71 : vector<1x1x8xf32> to vector<1x8xf32>
    %73 = vector.shape_cast %70 : vector<1x8xf32> to vector<1x1x8xf32>
    tpu.vector_store %arg5[%c0_52, %c0_53, %c0_54], %73 {strides = array<i32>} : memref<1x1x8xf32, #tpu.memory_space<vmem>>, vector<1x1x8xf32>,
    %74 = arith.truncf %62 : vector<256x8xf32> to vector<256x8xbf16>
    %c0_55 = arith.constant 0 : index
    %c0_56 = arith.constant 0 : index
    %c0_57 = arith.constant 0 : index
    %75 = vector.load %arg3[%c0_55, %c0_56, %c0_57] : memref<1x256x8xbf16, #tpu.memory_space<vmem>>, vector<1x256x8xbf16>
    %76 = vector.shape_cast %75 : vector<1x256x8xbf16> to vector<256x8xbf16>
    %77 = vector.shape_cast %74 : vector<256x8xbf16> to vector<1x256x8xbf16>
    tpu.vector_store %arg3[%c0_55, %c0_56, %c0_57], %77 {strides = array<i32>} : memref<1x256x8xbf16, #tpu.memory_space<vmem>>, vector<1x256x8xbf16>,
    return
  }
  func.func @transform_0(%arg0: i32) -> (i32, i32, i32, i32) {
    %c0_i32 = arith.constant 0 : i32
    %c0_i32_0 = arith.constant 0 : i32
    %c0_i32_1 = arith.constant 0 : i32
    %c0_i32_2 = arith.constant 0 : i32
    return %arg0, %c0_i32, %c0_i32_0, %c0_i32_1 : i32, i32, i32, i32
  }
  func.func @transform_1(%arg0: i32) -> (i32, i32, i32) {
    %c0_i32 = arith.constant 0 : i32
    %c0_i32_0 = arith.constant 0 : i32
    %c0_i32_1 = arith.constant 0 : i32
    %c0_i32_2 = arith.constant 0 : i32
    return %c0_i32, %c0_i32_0, %c0_i32_1 : i32, i32, i32
  }
  func.func @transform_2(%arg0: i32) -> (i32, i32, i32) {
    %c0_i32 = arith.constant 0 : i32
    %c0_i32_0 = arith.constant 0 : i32
    %c0_i32_1 = arith.constant 0 : i32
    return %arg0, %c0_i32, %c0_i32_0 : i32, i32, i32
  }
  func.func @transform_3(%arg0: i32) -> (i32, i32, i32) {
    %c0_i32 = arith.constant 0 : i32
    %c0_i32_0 = arith.constant 0 : i32
    %c0_i32_1 = arith.constant 0 : i32
    return %arg0, %c0_i32, %c0_i32_0 : i32, i32, i32
  }
  func.func @transform_4(%arg0: i32) -> (i32, i32, i32) {
    %c0_i32 = arith.constant 0 : i32
    %c0_i32_0 = arith.constant 0 : i32
    %c0_i32_1 = arith.constant 0 : i32
    return %arg0, %c0_i32, %c0_i32_0 : i32, i32, i32
  }
}

module attributes {stable_mosaic.version = 11 : i64} {
  func.func @_norm_add_relu_kernel(%arg0: i32, %arg1: memref<512x8xbf16, #tpu.memory_space<vmem>>, %arg2: memref<1x8xf32, #tpu.memory_space<vmem>>, %arg3: memref<1x8xf32, #tpu.memory_space<vmem>>, %arg4: memref<512x8xbf16, #tpu.memory_space<vmem>>, %arg5: memref<512x8xf32, #tpu.memory_space<vmem>>) attributes {dimension_semantics = [#tpu.dimension_semantics<parallel>], iteration_bounds = array<i64: 1>, scalar_prefetch = 0 : i64, scratch_operands = 0 : i64, tpu.core_type = #tpu.core_type<tc>, window_params = [{transform_indices = @transform_0, window_bounds = array<i64: 512, 8>}, {pipeline_mode = #tpu.pipeline_mode<synchronous>, transform_indices = @transform_1, window_bounds = array<i64: 1, 8>}, {pipeline_mode = #tpu.pipeline_mode<synchronous>, transform_indices = @transform_2, window_bounds = array<i64: 1, 8>}, {transform_indices = @transform_3, window_bounds = array<i64: 512, 8>}, {transform_indices = @transform_4, window_bounds = array<i64: 512, 8>}]} {
    %c0 = arith.constant 0 : index
    %c0_0 = arith.constant 0 : index
    %0 = vector.load %arg1[%c0, %c0_0] : memref<512x8xbf16, #tpu.memory_space<vmem>>, vector<512x8xbf16>
    %1 = arith.extf %0 : vector<512x8xbf16> to vector<512x8xf32>
    %c0_1 = arith.constant 0 : index
    %c0_2 = arith.constant 0 : index
    %2 = vector.load %arg2[%c0_1, %c0_2] : memref<1x8xf32, #tpu.memory_space<vmem>>, vector<1x8xf32>
    %3 = vector.broadcast %2 : vector<1x8xf32> to vector<512x8xf32>
    %4 = arith.mulf %1, %3 : vector<512x8xf32>
    %c0_3 = arith.constant 0 : index
    %c0_4 = arith.constant 0 : index
    %5 = vector.load %arg3[%c0_3, %c0_4] : memref<1x8xf32, #tpu.memory_space<vmem>>, vector<1x8xf32>
    %6 = vector.broadcast %5 : vector<1x8xf32> to vector<512x8xf32>
    %7 = arith.addf %4, %6 : vector<512x8xf32>
    %c0_5 = arith.constant 0 : index
    %c0_6 = arith.constant 0 : index
    %8 = vector.load %arg4[%c0_5, %c0_6] : memref<512x8xbf16, #tpu.memory_space<vmem>>, vector<512x8xbf16>
    %9 = arith.extf %8 : vector<512x8xbf16> to vector<512x8xf32>
    %10 = arith.addf %7, %9 : vector<512x8xf32>
    %cst = arith.constant 0.000000e+00 : f32
    %11 = vector.broadcast %cst : f32 to vector<512x8xf32>
    %12 = arith.maximumf %10, %11 : vector<512x8xf32>
    %c0_7 = arith.constant 0 : index
    %c0_8 = arith.constant 0 : index
    %13 = vector.load %arg5[%c0_7, %c0_8] : memref<512x8xf32, #tpu.memory_space<vmem>>, vector<512x8xf32>
    tpu.vector_store %arg5[%c0_7, %c0_8], %12 {strides = array<i32>} : memref<512x8xf32, #tpu.memory_space<vmem>>, vector<512x8xf32>,
    return
  }
  func.func @transform_0(%arg0: i32) -> (i32, i32) {
    %c0_i32 = arith.constant 0 : i32
    %c0_i32_0 = arith.constant 0 : i32
    return %arg0, %c0_i32 : i32, i32
  }
  func.func @transform_1(%arg0: i32) -> (i32, i32) {
    %c0_i32 = arith.constant 0 : i32
    %c0_i32_0 = arith.constant 0 : i32
    %c0_i32_1 = arith.constant 0 : i32
    return %c0_i32, %c0_i32_0 : i32, i32
  }
  func.func @transform_2(%arg0: i32) -> (i32, i32) {
    %c0_i32 = arith.constant 0 : i32
    %c0_i32_0 = arith.constant 0 : i32
    %c0_i32_1 = arith.constant 0 : i32
    return %c0_i32, %c0_i32_0 : i32, i32
  }
  func.func @transform_3(%arg0: i32) -> (i32, i32) {
    %c0_i32 = arith.constant 0 : i32
    %c0_i32_0 = arith.constant 0 : i32
    return %arg0, %c0_i32 : i32, i32
  }
  func.func @transform_4(%arg0: i32) -> (i32, i32) {
    %c0_i32 = arith.constant 0 : i32
    %c0_i32_0 = arith.constant 0 : i32
    return %arg0, %c0_i32 : i32, i32
  }
}

module attributes {stable_mosaic.version = 11 : i64} {
  func.func @_bnrelu_conv_stats_kernel(%arg0: i32, %arg1: memref<1x16x16x8xbf16, #tpu.memory_space<vmem>>, %arg2: memref<9x8x8xbf16, #tpu.memory_space<vmem>>, %arg3: memref<1x8xf32, #tpu.memory_space<vmem>>, %arg4: memref<1x8xf32, #tpu.memory_space<vmem>>, %arg5: memref<1x256x8xbf16, #tpu.memory_space<vmem>>, %arg6: memref<1x1x8xf32, #tpu.memory_space<vmem>>, %arg7: memref<1x1x8xf32, #tpu.memory_space<vmem>>, %arg8: memref<18x18x8xbf16, #tpu.memory_space<vmem>>) attributes {dimension_semantics = [#tpu.dimension_semantics<parallel>], iteration_bounds = array<i64: 2>, scalar_prefetch = 0 : i64, scratch_operands = 1 : i64, tpu.core_type = #tpu.core_type<tc>, window_params = [{transform_indices = @transform_0, window_bounds = array<i64: 1, 16, 16, 8>}, {pipeline_mode = #tpu.pipeline_mode<synchronous>, transform_indices = @transform_1, window_bounds = array<i64: 9, 8, 8>}, {pipeline_mode = #tpu.pipeline_mode<synchronous>, transform_indices = @transform_2, window_bounds = array<i64: 1, 8>}, {pipeline_mode = #tpu.pipeline_mode<synchronous>, transform_indices = @transform_3, window_bounds = array<i64: 1, 8>}, {transform_indices = @transform_4, window_bounds = array<i64: 1, 256, 8>}, {transform_indices = @transform_5, window_bounds = array<i64: 1, 1, 8>}, {transform_indices = @transform_6, window_bounds = array<i64: 1, 1, 8>}]} {
    %c0 = arith.constant 0 : index
    %c0_0 = arith.constant 0 : index
    %c0_1 = arith.constant 0 : index
    %c0_2 = arith.constant 0 : index
    %0 = vector.load %arg1[%c0, %c0_0, %c0_1, %c0_2] : memref<1x16x16x8xbf16, #tpu.memory_space<vmem>>, vector<1x16x16x8xbf16>
    %1 = vector.shape_cast %0 : vector<1x16x16x8xbf16> to vector<16x16x8xbf16>
    %2 = arith.extf %1 : vector<16x16x8xbf16> to vector<16x16x8xf32>
    %c0_3 = arith.constant 0 : index
    %c0_4 = arith.constant 0 : index
    %3 = vector.load %arg3[%c0_3, %c0_4] : memref<1x8xf32, #tpu.memory_space<vmem>>, vector<1x8xf32>
    %4 = vector.shape_cast %3 : vector<1x8xf32> to vector<8xf32>
    %5 = vector.shape_cast %4 : vector<8xf32> to vector<1x1x8xf32>
    %6 = vector.broadcast %5 : vector<1x1x8xf32> to vector<16x16x8xf32>
    %7 = arith.mulf %2, %6 : vector<16x16x8xf32>
    %c0_5 = arith.constant 0 : index
    %c0_6 = arith.constant 0 : index
    %8 = vector.load %arg4[%c0_5, %c0_6] : memref<1x8xf32, #tpu.memory_space<vmem>>, vector<1x8xf32>
    %9 = vector.shape_cast %8 : vector<1x8xf32> to vector<8xf32>
    %10 = vector.shape_cast %9 : vector<8xf32> to vector<1x1x8xf32>
    %11 = vector.broadcast %10 : vector<1x1x8xf32> to vector<16x16x8xf32>
    %12 = arith.addf %7, %11 : vector<16x16x8xf32>
    %cst = arith.constant 0.000000e+00 : f32
    %13 = vector.broadcast %cst : f32 to vector<16x16x8xf32>
    %14 = arith.maximumf %12, %13 : vector<16x16x8xf32>
    %15 = arith.truncf %14 : vector<16x16x8xf32> to vector<16x16x8xbf16>
    %cst_7 = arith.constant 0.000000e+00 : bf16
    %16 = vector.broadcast %cst_7 : bf16 to vector<18x18x8xbf16>
    %c0_8 = arith.constant 0 : index
    %c0_9 = arith.constant 0 : index
    %c0_10 = arith.constant 0 : index
    %17 = vector.load %arg8[%c0_8, %c0_9, %c0_10] : memref<18x18x8xbf16, #tpu.memory_space<vmem>>, vector<18x18x8xbf16>
    tpu.vector_store %arg8[%c0_8, %c0_9, %c0_10], %16 {strides = array<i32>} : memref<18x18x8xbf16, #tpu.memory_space<vmem>>, vector<18x18x8xbf16>,
    %c1 = arith.constant 1 : index
    %c1_11 = arith.constant 1 : index
    %c0_12 = arith.constant 0 : index
    %18 = vector.load %arg8[%c1, %c1_11, %c0_12] : memref<18x18x8xbf16, #tpu.memory_space<vmem>>, vector<16x16x8xbf16>
    tpu.vector_store %arg8[%c1, %c1_11, %c0_12], %15 {strides = array<i32>} : memref<18x18x8xbf16, #tpu.memory_space<vmem>>, vector<16x16x8xbf16>,
    %c0_13 = arith.constant 0 : index
    %c0_14 = arith.constant 0 : index
    %c0_15 = arith.constant 0 : index
    %19 = vector.load %arg8[%c0_13, %c0_14, %c0_15] : memref<18x18x8xbf16, #tpu.memory_space<vmem>>, vector<18x16x8xbf16>
    %c0_16 = arith.constant 0 : index
    %c1_17 = arith.constant 1 : index
    %c0_18 = arith.constant 0 : index
    %20 = vector.load %arg8[%c0_16, %c1_17, %c0_18] : memref<18x18x8xbf16, #tpu.memory_space<vmem>>, vector<18x16x8xbf16>
    %c0_19 = arith.constant 0 : index
    %c2 = arith.constant 2 : index
    %c0_20 = arith.constant 0 : index
    %21 = vector.load %arg8[%c0_19, %c2, %c0_20] : memref<18x18x8xbf16, #tpu.memory_space<vmem>>, vector<18x16x8xbf16>
    %cst_21 = arith.constant 0.000000e+00 : f32
    %22 = vector.broadcast %cst_21 : f32 to vector<256x8xf32>
    %23 = vector.extract_strided_slice %19 {offsets = [0, 0, 0], sizes = [16, 16, 8], strides = [1, 1, 1]} : vector<18x16x8xbf16> to vector<16x16x8xbf16>
    %24 = vector.shape_cast %23 : vector<16x16x8xbf16> to vector<256x8xbf16>
    %c0_22 = arith.constant 0 : index
    %c0_23 = arith.constant 0 : index
    %c0_24 = arith.constant 0 : index
    %25 = vector.load %arg2[%c0_22, %c0_23, %c0_24] : memref<9x8x8xbf16, #tpu.memory_space<vmem>>, vector<1x8x8xbf16>
    %26 = vector.shape_cast %25 : vector<1x8x8xbf16> to vector<8x8xbf16>
    %cst_25 = arith.constant dense<0.000000e+00> : vector<256x8xf32>
    %27 = tpu.matmul %24, %26, %cst_25 {dimension_numbers = #tpu.dot_dimension_numbers<[1], [0], [0], [1], [0, 0, 1, 1], [], []>} : vector<256x8xbf16>, vector<8x8xbf16>, vector<256x8xf32> -> vector<256x8xf32>
    %28 = arith.addf %22, %27 : vector<256x8xf32>
    %29 = vector.extract_strided_slice %20 {offsets = [0, 0, 0], sizes = [16, 16, 8], strides = [1, 1, 1]} : vector<18x16x8xbf16> to vector<16x16x8xbf16>
    %30 = vector.shape_cast %29 : vector<16x16x8xbf16> to vector<256x8xbf16>
    %c1_26 = arith.constant 1 : index
    %c0_27 = arith.constant 0 : index
    %c0_28 = arith.constant 0 : index
    %31 = vector.load %arg2[%c1_26, %c0_27, %c0_28] : memref<9x8x8xbf16, #tpu.memory_space<vmem>>, vector<1x8x8xbf16>
    %32 = vector.shape_cast %31 : vector<1x8x8xbf16> to vector<8x8xbf16>
    %cst_29 = arith.constant dense<0.000000e+00> : vector<256x8xf32>
    %33 = tpu.matmul %30, %32, %cst_29 {dimension_numbers = #tpu.dot_dimension_numbers<[1], [0], [0], [1], [0, 0, 1, 1], [], []>} : vector<256x8xbf16>, vector<8x8xbf16>, vector<256x8xf32> -> vector<256x8xf32>
    %34 = arith.addf %28, %33 : vector<256x8xf32>
    %35 = vector.extract_strided_slice %21 {offsets = [0, 0, 0], sizes = [16, 16, 8], strides = [1, 1, 1]} : vector<18x16x8xbf16> to vector<16x16x8xbf16>
    %36 = vector.shape_cast %35 : vector<16x16x8xbf16> to vector<256x8xbf16>
    %c2_30 = arith.constant 2 : index
    %c0_31 = arith.constant 0 : index
    %c0_32 = arith.constant 0 : index
    %37 = vector.load %arg2[%c2_30, %c0_31, %c0_32] : memref<9x8x8xbf16, #tpu.memory_space<vmem>>, vector<1x8x8xbf16>
    %38 = vector.shape_cast %37 : vector<1x8x8xbf16> to vector<8x8xbf16>
    %cst_33 = arith.constant dense<0.000000e+00> : vector<256x8xf32>
    %39 = tpu.matmul %36, %38, %cst_33 {dimension_numbers = #tpu.dot_dimension_numbers<[1], [0], [0], [1], [0, 0, 1, 1], [], []>} : vector<256x8xbf16>, vector<8x8xbf16>, vector<256x8xf32> -> vector<256x8xf32>
    %40 = arith.addf %34, %39 : vector<256x8xf32>
    %41 = vector.extract_strided_slice %19 {offsets = [1, 0, 0], sizes = [16, 16, 8], strides = [1, 1, 1]} : vector<18x16x8xbf16> to vector<16x16x8xbf16>
    %42 = vector.shape_cast %41 : vector<16x16x8xbf16> to vector<256x8xbf16>
    %c3 = arith.constant 3 : index
    %c0_34 = arith.constant 0 : index
    %c0_35 = arith.constant 0 : index
    %43 = vector.load %arg2[%c3, %c0_34, %c0_35] : memref<9x8x8xbf16, #tpu.memory_space<vmem>>, vector<1x8x8xbf16>
    %44 = vector.shape_cast %43 : vector<1x8x8xbf16> to vector<8x8xbf16>
    %cst_36 = arith.constant dense<0.000000e+00> : vector<256x8xf32>
    %45 = tpu.matmul %42, %44, %cst_36 {dimension_numbers = #tpu.dot_dimension_numbers<[1], [0], [0], [1], [0, 0, 1, 1], [], []>} : vector<256x8xbf16>, vector<8x8xbf16>, vector<256x8xf32> -> vector<256x8xf32>
    %46 = arith.addf %40, %45 : vector<256x8xf32>
    %47 = vector.extract_strided_slice %20 {offsets = [1, 0, 0], sizes = [16, 16, 8], strides = [1, 1, 1]} : vector<18x16x8xbf16> to vector<16x16x8xbf16>
    %48 = vector.shape_cast %47 : vector<16x16x8xbf16> to vector<256x8xbf16>
    %c4 = arith.constant 4 : index
    %c0_37 = arith.constant 0 : index
    %c0_38 = arith.constant 0 : index
    %49 = vector.load %arg2[%c4, %c0_37, %c0_38] : memref<9x8x8xbf16, #tpu.memory_space<vmem>>, vector<1x8x8xbf16>
    %50 = vector.shape_cast %49 : vector<1x8x8xbf16> to vector<8x8xbf16>
    %cst_39 = arith.constant dense<0.000000e+00> : vector<256x8xf32>
    %51 = tpu.matmul %48, %50, %cst_39 {dimension_numbers = #tpu.dot_dimension_numbers<[1], [0], [0], [1], [0, 0, 1, 1], [], []>} : vector<256x8xbf16>, vector<8x8xbf16>, vector<256x8xf32> -> vector<256x8xf32>
    %52 = arith.addf %46, %51 : vector<256x8xf32>
    %53 = vector.extract_strided_slice %21 {offsets = [1, 0, 0], sizes = [16, 16, 8], strides = [1, 1, 1]} : vector<18x16x8xbf16> to vector<16x16x8xbf16>
    %54 = vector.shape_cast %53 : vector<16x16x8xbf16> to vector<256x8xbf16>
    %c5 = arith.constant 5 : index
    %c0_40 = arith.constant 0 : index
    %c0_41 = arith.constant 0 : index
    %55 = vector.load %arg2[%c5, %c0_40, %c0_41] : memref<9x8x8xbf16, #tpu.memory_space<vmem>>, vector<1x8x8xbf16>
    %56 = vector.shape_cast %55 : vector<1x8x8xbf16> to vector<8x8xbf16>
    %cst_42 = arith.constant dense<0.000000e+00> : vector<256x8xf32>
    %57 = tpu.matmul %54, %56, %cst_42 {dimension_numbers = #tpu.dot_dimension_numbers<[1], [0], [0], [1], [0, 0, 1, 1], [], []>} : vector<256x8xbf16>, vector<8x8xbf16>, vector<256x8xf32> -> vector<256x8xf32>
    %58 = arith.addf %52, %57 : vector<256x8xf32>
    %59 = vector.extract_strided_slice %19 {offsets = [2, 0, 0], sizes = [16, 16, 8], strides = [1, 1, 1]} : vector<18x16x8xbf16> to vector<16x16x8xbf16>
    %60 = vector.shape_cast %59 : vector<16x16x8xbf16> to vector<256x8xbf16>
    %c6 = arith.constant 6 : index
    %c0_43 = arith.constant 0 : index
    %c0_44 = arith.constant 0 : index
    %61 = vector.load %arg2[%c6, %c0_43, %c0_44] : memref<9x8x8xbf16, #tpu.memory_space<vmem>>, vector<1x8x8xbf16>
    %62 = vector.shape_cast %61 : vector<1x8x8xbf16> to vector<8x8xbf16>
    %cst_45 = arith.constant dense<0.000000e+00> : vector<256x8xf32>
    %63 = tpu.matmul %60, %62, %cst_45 {dimension_numbers = #tpu.dot_dimension_numbers<[1], [0], [0], [1], [0, 0, 1, 1], [], []>} : vector<256x8xbf16>, vector<8x8xbf16>, vector<256x8xf32> -> vector<256x8xf32>
    %64 = arith.addf %58, %63 : vector<256x8xf32>
    %65 = vector.extract_strided_slice %20 {offsets = [2, 0, 0], sizes = [16, 16, 8], strides = [1, 1, 1]} : vector<18x16x8xbf16> to vector<16x16x8xbf16>
    %66 = vector.shape_cast %65 : vector<16x16x8xbf16> to vector<256x8xbf16>
    %c7 = arith.constant 7 : index
    %c0_46 = arith.constant 0 : index
    %c0_47 = arith.constant 0 : index
    %67 = vector.load %arg2[%c7, %c0_46, %c0_47] : memref<9x8x8xbf16, #tpu.memory_space<vmem>>, vector<1x8x8xbf16>
    %68 = vector.shape_cast %67 : vector<1x8x8xbf16> to vector<8x8xbf16>
    %cst_48 = arith.constant dense<0.000000e+00> : vector<256x8xf32>
    %69 = tpu.matmul %66, %68, %cst_48 {dimension_numbers = #tpu.dot_dimension_numbers<[1], [0], [0], [1], [0, 0, 1, 1], [], []>} : vector<256x8xbf16>, vector<8x8xbf16>, vector<256x8xf32> -> vector<256x8xf32>
    %70 = arith.addf %64, %69 : vector<256x8xf32>
    %71 = vector.extract_strided_slice %21 {offsets = [2, 0, 0], sizes = [16, 16, 8], strides = [1, 1, 1]} : vector<18x16x8xbf16> to vector<16x16x8xbf16>
    %72 = vector.shape_cast %71 : vector<16x16x8xbf16> to vector<256x8xbf16>
    %c8 = arith.constant 8 : index
    %c0_49 = arith.constant 0 : index
    %c0_50 = arith.constant 0 : index
    %73 = vector.load %arg2[%c8, %c0_49, %c0_50] : memref<9x8x8xbf16, #tpu.memory_space<vmem>>, vector<1x8x8xbf16>
    %74 = vector.shape_cast %73 : vector<1x8x8xbf16> to vector<8x8xbf16>
    %cst_51 = arith.constant dense<0.000000e+00> : vector<256x8xf32>
    %75 = tpu.matmul %72, %74, %cst_51 {dimension_numbers = #tpu.dot_dimension_numbers<[1], [0], [0], [1], [0, 0, 1, 1], [], []>} : vector<256x8xbf16>, vector<8x8xbf16>, vector<256x8xf32> -> vector<256x8xf32>
    %76 = arith.addf %70, %75 : vector<256x8xf32>
    %cst_52 = arith.constant dense<0.000000e+00> : vector<8xf32>
    %77 = vector.multi_reduction <add>, %76, %cst_52 [0] : vector<256x8xf32> to vector<8xf32>
    %78 = vector.shape_cast %77 : vector<8xf32> to vector<1x8xf32>
    %c0_53 = arith.constant 0 : index
    %c0_54 = arith.constant 0 : index
    %c0_55 = arith.constant 0 : index
    %79 = vector.load %arg6[%c0_53, %c0_54, %c0_55] : memref<1x1x8xf32, #tpu.memory_space<vmem>>, vector<1x1x8xf32>
    %80 = vector.shape_cast %79 : vector<1x1x8xf32> to vector<1x8xf32>
    %81 = vector.shape_cast %78 : vector<1x8xf32> to vector<1x1x8xf32>
    tpu.vector_store %arg6[%c0_53, %c0_54, %c0_55], %81 {strides = array<i32>} : memref<1x1x8xf32, #tpu.memory_space<vmem>>, vector<1x1x8xf32>,
    %82 = arith.mulf %76, %76 : vector<256x8xf32>
    %cst_56 = arith.constant dense<0.000000e+00> : vector<8xf32>
    %83 = vector.multi_reduction <add>, %82, %cst_56 [0] : vector<256x8xf32> to vector<8xf32>
    %84 = vector.shape_cast %83 : vector<8xf32> to vector<1x8xf32>
    %c0_57 = arith.constant 0 : index
    %c0_58 = arith.constant 0 : index
    %c0_59 = arith.constant 0 : index
    %85 = vector.load %arg7[%c0_57, %c0_58, %c0_59] : memref<1x1x8xf32, #tpu.memory_space<vmem>>, vector<1x1x8xf32>
    %86 = vector.shape_cast %85 : vector<1x1x8xf32> to vector<1x8xf32>
    %87 = vector.shape_cast %84 : vector<1x8xf32> to vector<1x1x8xf32>
    tpu.vector_store %arg7[%c0_57, %c0_58, %c0_59], %87 {strides = array<i32>} : memref<1x1x8xf32, #tpu.memory_space<vmem>>, vector<1x1x8xf32>,
    %88 = arith.truncf %76 : vector<256x8xf32> to vector<256x8xbf16>
    %c0_60 = arith.constant 0 : index
    %c0_61 = arith.constant 0 : index
    %c0_62 = arith.constant 0 : index
    %89 = vector.load %arg5[%c0_60, %c0_61, %c0_62] : memref<1x256x8xbf16, #tpu.memory_space<vmem>>, vector<1x256x8xbf16>
    %90 = vector.shape_cast %89 : vector<1x256x8xbf16> to vector<256x8xbf16>
    %91 = vector.shape_cast %88 : vector<256x8xbf16> to vector<1x256x8xbf16>
    tpu.vector_store %arg5[%c0_60, %c0_61, %c0_62], %91 {strides = array<i32>} : memref<1x256x8xbf16, #tpu.memory_space<vmem>>, vector<1x256x8xbf16>,
    return
  }
  func.func @transform_0(%arg0: i32) -> (i32, i32, i32, i32) {
    %c0_i32 = arith.constant 0 : i32
    %c0_i32_0 = arith.constant 0 : i32
    %c0_i32_1 = arith.constant 0 : i32
    %c0_i32_2 = arith.constant 0 : i32
    return %arg0, %c0_i32, %c0_i32_0, %c0_i32_1 : i32, i32, i32, i32
  }
  func.func @transform_1(%arg0: i32) -> (i32, i32, i32) {
    %c0_i32 = arith.constant 0 : i32
    %c0_i32_0 = arith.constant 0 : i32
    %c0_i32_1 = arith.constant 0 : i32
    %c0_i32_2 = arith.constant 0 : i32
    return %c0_i32, %c0_i32_0, %c0_i32_1 : i32, i32, i32
  }
  func.func @transform_2(%arg0: i32) -> (i32, i32) {
    %c0_i32 = arith.constant 0 : i32
    %c0_i32_0 = arith.constant 0 : i32
    %c0_i32_1 = arith.constant 0 : i32
    return %c0_i32, %c0_i32_0 : i32, i32
  }
  func.func @transform_3(%arg0: i32) -> (i32, i32) {
    %c0_i32 = arith.constant 0 : i32
    %c0_i32_0 = arith.constant 0 : i32
    %c0_i32_1 = arith.constant 0 : i32
    return %c0_i32, %c0_i32_0 : i32, i32
  }
  func.func @transform_4(%arg0: i32) -> (i32, i32, i32) {
    %c0_i32 = arith.constant 0 : i32
    %c0_i32_0 = arith.constant 0 : i32
    %c0_i32_1 = arith.constant 0 : i32
    return %arg0, %c0_i32, %c0_i32_0 : i32, i32, i32
  }
  func.func @transform_5(%arg0: i32) -> (i32, i32, i32) {
    %c0_i32 = arith.constant 0 : i32
    %c0_i32_0 = arith.constant 0 : i32
    %c0_i32_1 = arith.constant 0 : i32
    return %arg0, %c0_i32, %c0_i32_0 : i32, i32, i32
  }
  func.func @transform_6(%arg0: i32) -> (i32, i32, i32) {
    %c0_i32 = arith.constant 0 : i32
    %c0_i32_0 = arith.constant 0 : i32
    %c0_i32_1 = arith.constant 0 : i32
    return %arg0, %c0_i32, %c0_i32_0 : i32, i32, i32
  }
}

</mosaic_0001>

<llo_original>
// kernel: a_call__.5
$region0: #{a_call__.5}
  #allocation0 [shape = 'u32[]', space=smem, size = 0x4, offset = 0x4, fixed_abs, tag = 'smem constant byte address 0x4 - core index']
  #allocation1 [shape = 'u32[72,128]{1,0:T(1,128)}', space=vmem, size = 0x9000, scoped, tag = 'internal scratch']
  %s0 = inlined_call_operand.vmem [shape: bf16[512,8], index: 0, kind: input, shape index: {}]
  %s1 = inlined_call_operand.vmem [shape: f32[1,8], index: 1, kind: input, shape index: {}]
  %s2 = inlined_call_operand.vmem [shape: f32[1,8], index: 2, kind: input, shape index: {}]
  %s3 = inlined_call_operand.vmem [shape: bf16[512,8], index: 3, kind: input, shape index: {}]
  %s4 = inlined_call_operand.vmem [shape: f32[512,8], index: 4, kind: output, shape index: {}]
  %s5 = sld [smem:[#allocation0]]
  $region26: #{a_call__.5} parent=0
    _
  %s7 = ssub.s32 1, %s5
  %s8 = scalar_select 0, %s7, %s5
  // Predicated region
  $region2: #{a_call__.5} parent=0 // pred_check
    _
  $region3: #{a_call__.5} parent=0 // pred_check_branch
    %10 = sbr.rel (0) target = $region5
  $region4: #{a_call__.5} parent=0 // pred_region
    _
  $region5: #{a_call__.5} parent=0 // pred_fallthru
    _
  // Predicated region
  $region6: #{a_call__.5} parent=0 // pred_check
    _
  $region7: #{a_call__.5} parent=0 // pred_check_branch
    %12 = sbr.rel (0) target = $region9
  $region8: #{a_call__.5} parent=0 // pred_region
    _
  $region9: #{a_call__.5} parent=0 // pred_fallthru
    _
  // Predicated region
  $region10: #{a_call__.5} parent=0 // pred_check
    _
  $region11: #{a_call__.5} parent=0 // pred_check_branch
    %14 = sbr.rel (0) target = $region13
  $region12: #{a_call__.5} parent=0 // pred_region
    _
  $region13: #{a_call__.5} parent=0 // pred_fallthru
    _
  // Predicated region
  $region14: #{a_call__.5} parent=0 // pred_check
    _
  $region15: #{a_call__.5} parent=0 // pred_check_branch
    %16 = sbr.rel (0) target = $region17
  $region16: #{a_call__.5} parent=0 // pred_region
    _
  $region17: #{a_call__.5} parent=0 // pred_fallthru
    _
  %v17 = vld [vmem:[%s0] sm:$0xf]
  %v18 = vld [vmem:[%s0 + $0x4] sm:$0xf]
  %v19 = vld [vmem:[%s0 + $0x8] sm:$0xf]
  %v20 = vld [vmem:[%s0 + $0xc] sm:$0xf]
  %v21 = vld [vmem:[%s0 + $0x10] sm:$0xf]
  %v22 = vld [vmem:[%s0 + $0x14] sm:$0xf]
  %v23 = vld [vmem:[%s0 + $0x18] sm:$0xf]
  %v24 = vld [vmem:[%s0 + $0x1c] sm:$0xf]
  %v25 = vld [vmem:[%s0 + $0x20] sm:$0xf]
  %v26 = vld [vmem:[%s0 + $0x24] sm:$0xf]
  %v27 = vld [vmem:[%s0 + $0x28] sm:$0xf]
  %v28 = vld [vmem:[%s0 + $0x2c] sm:$0xf]
  %v29 = vld [vmem:[%s0 + $0x30] sm:$0xf]
  %v30 = vld [vmem:[%s0 + $0x34] sm:$0xf]
  %v31 = vld [vmem:[%s0 + $0x38] sm:$0xf]
  %v32 = vld [vmem:[%s0 + $0x3c] sm:$0xf]
  %v33 = vld [vmem:[%s0 + $0x40] sm:$0xf]
  %v34 = vld [vmem:[%s0 + $0x44] sm:$0xf]
  %v35 = vld [vmem:[%s0 + $0x48] sm:$0xf]
  %v36 = vld [vmem:[%s0 + $0x4c] sm:$0xf]
  %v37 = vld [vmem:[%s0 + $0x50] sm:$0xf]
  %v38 = vld [vmem:[%s0 + $0x54] sm:$0xf]
  %v39 = vld [vmem:[%s0 + $0x58] sm:$0xf]
  %v40 = vld [vmem:[%s0 + $0x5c] sm:$0xf]
  %v41 = vld [vmem:[%s0 + $0x60] sm:$0xf]
  %v42 = vld [vmem:[%s0 + $0x64] sm:$0xf]
  %v43 = vld [vmem:[%s0 + $0x68] sm:$0xf]
  %v44 = vld [vmem:[%s0 + $0x6c] sm:$0xf]
  %v45 = vld [vmem:[%s0 + $0x70] sm:$0xf]
  %v46 = vld [vmem:[%s0 + $0x74] sm:$0xf]
  %v47 = vld [vmem:[%s0 + $0x78] sm:$0xf]
  %v48 = vld [vmem:[%s0 + $0x7c] sm:$0xf]
  %v49 = vld [vmem:[%s0 + $0x80] sm:$0xf]
  %v50 = vld [vmem:[%s0 + $0x84] sm:$0xf]
  %v51 = vld [vmem:[%s0 + $0x88] sm:$0xf]
  %v52 = vld [vmem:[%s0 + $0x8c] sm:$0xf]
  %v53 = vld [vmem:[%s0 + $0x90] sm:$0xf]
  %v54 = vld [vmem:[%s0 + $0x94] sm:$0xf]
  %v55 = vld [vmem:[%s0 + $0x98] sm:$0xf]
  %v56 = vld [vmem:[%s0 + $0x9c] sm:$0xf]
  %v57 = vld [vmem:[%s0 + $0xa0] sm:$0xf]
  %v58 = vld [vmem:[%s0 + $0xa4] sm:$0xf]
  %v59 = vld [vmem:[%s0 + $0xa8] sm:$0xf]
  %v60 = vld [vmem:[%s0 + $0xac] sm:$0xf]
  %v61 = vld [vmem:[%s0 + $0xb0] sm:$0xf]
  %v62 = vld [vmem:[%s0 + $0xb4] sm:$0xf]
  %v63 = vld [vmem:[%s0 + $0xb8] sm:$0xf]
  %v64 = vld [vmem:[%s0 + $0xbc] sm:$0xf]
  %v65 = vld [vmem:[%s0 + $0xc0] sm:$0xf]
  %v66 = vld [vmem:[%s0 + $0xc4] sm:$0xf]
  %v67 = vld [vmem:[%s0 + $0xc8] sm:$0xf]
  %v68 = vld [vmem:[%s0 + $0xcc] sm:$0xf]
  %v69 = vld [vmem:[%s0 + $0xd0] sm:$0xf]
  %v70 = vld [vmem:[%s0 + $0xd4] sm:$0xf]
  %v71 = vld [vmem:[%s0 + $0xd8] sm:$0xf]
  %v72 = vld [vmem:[%s0 + $0xdc] sm:$0xf]
  %v73 = vld [vmem:[%s0 + $0xe0] sm:$0xf]
  %v74 = vld [vmem:[%s0 + $0xe4] sm:$0xf]
  %v75 = vld [vmem:[%s0 + $0xe8] sm:$0xf]
  %v76 = vld [vmem:[%s0 + $0xec] sm:$0xf]
  %v77 = vld [vmem:[%s0 + $0xf0] sm:$0xf]
  %v78 = vld [vmem:[%s0 + $0xf4] sm:$0xf]
  %v79 = vld [vmem:[%s0 + $0xf8] sm:$0xf]
  %v80 = vld [vmem:[%s0 + $0xfc] sm:$0xf]
  %v81 = vunpack.c.l.bf16 %v17
  %v82 = vunpack.c.l.bf16 %v18
  %v83 = vunpack.c.l.bf16 %v19
  %v84 = vunpack.c.l.bf16 %v20
  %v85 = vunpack.c.l.bf16 %v21
  %v86 = vunpack.c.l.bf16 %v22
  %v87 = vunpack.c.l.bf16 %v23
  %v88 = vunpack.c.l.bf16 %v24
  %v89 = vunpack.c.l.bf16 %v25
  %v90 = vunpack.c.l.bf16 %v26
  %v91 = vunpack.c.l.bf16 %v27
  %v92 = vunpack.c.l.bf16 %v28
  %v93 = vunpack.c.l.bf16 %v29
  %v94 = vunpack.c.l.bf16 %v30
  %v95 = vunpack.c.l.bf16 %v31
  %v96 = vunpack.c.l.bf16 %v32
  %v97 = vunpack.c.l.bf16 %v33
  %v98 = vunpack.c.l.bf16 %v34
  %v99 = vunpack.c.l.bf16 %v35
  %v100 = vunpack.c.l.bf16 %v36
  %v101 = vunpack.c.l.bf16 %v37
  %v102 = vunpack.c.l.bf16 %v38
  %v103 = vunpack.c.l.bf16 %v39
  %v104 = vunpack.c.l.bf16 %v40
  %v105 = vunpack.c.l.bf16 %v41
  %v106 = vunpack.c.l.bf16 %v42
  %v107 = vunpack.c.l.bf16 %v43
  %v108 = vunpack.c.l.bf16 %v44
  %v109 = vunpack.c.l.bf16 %v45
  %v110 = vunpack.c.l.bf16 %v46
  %v111 = vunpack.c.l.bf16 %v47
  %v112 = vunpack.c.l.bf16 %v48
  %v113 = vunpack.c.l.bf16 %v49
  %v114 = vunpack.c.l.bf16 %v50
  %v115 = vunpack.c.l.bf16 %v51
  %v116 = vunpack.c.l.bf16 %v52
  %v117 = vunpack.c.l.bf16 %v53
  %v118 = vunpack.c.l.bf16 %v54
  %v119 = vunpack.c.l.bf16 %v55
  %v120 = vunpack.c.l.bf16 %v56
  %v121 = vunpack.c.l.bf16 %v57
  %v122 = vunpack.c.l.bf16 %v58
  %v123 = vunpack.c.l.bf16 %v59
  %v124 = vunpack.c.l.bf16 %v60
  %v125 = vunpack.c.l.bf16 %v61
  %v126 = vunpack.c.l.bf16 %v62
  %v127 = vunpack.c.l.bf16 %v63
  %v128 = vunpack.c.l.bf16 %v64
  %v129 = vunpack.c.l.bf16 %v65
  %v130 = vunpack.c.l.bf16 %v66
  %v131 = vunpack.c.l.bf16 %v67
  %v132 = vunpack.c.l.bf16 %v68
  %v133 = vunpack.c.l.bf16 %v69
  %v134 = vunpack.c.l.bf16 %v70
  %v135 = vunpack.c.l.bf16 %v71
  %v136 = vunpack.c.l.bf16 %v72
  %v137 = vunpack.c.l.bf16 %v73
  %v138 = vunpack.c.l.bf16 %v74
  %v139 = vunpack.c.l.bf16 %v75
  %v140 = vunpack.c.l.bf16 %v76
  %v141 = vunpack.c.l.bf16 %v77
  %v142 = vunpack.c.l.bf16 %v78
  %v143 = vunpack.c.l.bf16 %v79
  %v144 = vunpack.c.l.bf16 %v80
  %v145 = vld [vmem:[%s1] sm:$0x1]
  %v147 = vperm.slane %v145, 0
  %v149 = vmul.f32 %v81, %v147
  %v150 = vmul.f32 %v82, %v147
  %v151 = vmul.f32 %v83, %v147
  %v152 = vmul.f32 %v84, %v147
  %v153 = vmul.f32 %v85, %v147
  %v154 = vmul.f32 %v86, %v147
  %v155 = vmul.f32 %v87, %v147
  %v156 = vmul.f32 %v88, %v147
  %v157 = vmul.f32 %v89, %v147
  %v158 = vmul.f32 %v90, %v147
  %v159 = vmul.f32 %v91, %v147
  %v160 = vmul.f32 %v92, %v147
  %v161 = vmul.f32 %v93, %v147
  %v162 = vmul.f32 %v94, %v147
  %v163 = vmul.f32 %v95, %v147
  %v164 = vmul.f32 %v96, %v147
  %v165 = vmul.f32 %v97, %v147
  %v166 = vmul.f32 %v98, %v147
  %v167 = vmul.f32 %v99, %v147
  %v168 = vmul.f32 %v100, %v147
  %v169 = vmul.f32 %v101, %v147
  %v170 = vmul.f32 %v102, %v147
  %v171 = vmul.f32 %v103, %v147
  %v172 = vmul.f32 %v104, %v147
  %v173 = vmul.f32 %v105, %v147
  %v174 = vmul.f32 %v106, %v147
  %v175 = vmul.f32 %v107, %v147
  %v176 = vmul.f32 %v108, %v147
  %v177 = vmul.f32 %v109, %v147
  %v178 = vmul.f32 %v110, %v147
  %v179 = vmul.f32 %v111, %v147
  %v180 = vmul.f32 %v112, %v147
  %v181 = vmul.f32 %v113, %v147
  %v182 = vmul.f32 %v114, %v147
  %v183 = vmul.f32 %v115, %v147
  %v184 = vmul.f32 %v116, %v147
  %v185 = vmul.f32 %v117, %v147
  %v186 = vmul.f32 %v118, %v147
  %v187 = vmul.f32 %v119, %v147
  %v188 = vmul.f32 %v120, %v147
  %v189 = vmul.f32 %v121, %v147
  %v190 = vmul.f32 %v122, %v147
  %v191 = vmul.f32 %v123, %v147
  %v192 = vmul.f32 %v124, %v147
  %v193 = vmul.f32 %v125, %v147
  %v194 = vmul.f32 %v126, %v147
  %v195 = vmul.f32 %v127, %v147
  %v196 = vmul.f32 %v128, %v147
  %v197 = vmul.f32 %v129, %v147
  %v198 = vmul.f32 %v130, %v147
  %v199 = vmul.f32 %v131, %v147
  %v200 = vmul.f32 %v132, %v147
  %v201 = vmul.f32 %v133, %v147
  %v202 = vmul.f32 %v134, %v147
  %v203 = vmul.f32 %v135, %v147
  %v204 = vmul.f32 %v136, %v147
  %v205 = vmul.f32 %v137, %v147
  %v206 = vmul.f32 %v138, %v147
  %v207 = vmul.f32 %v139, %v147
  %v208 = vmul.f32 %v140, %v147
  %v209 = vmul.f32 %v141, %v147
  %v210 = vmul.f32 %v142, %v147
  %v211 = vmul.f32 %v143, %v147
  %v212 = vmul.f32 %v144, %v147
  %v213 = vld [vmem:[%s2] sm:$0x1]
  %v215 = vperm.slane %v213, 0
  %v217 = vadd.f32 %v149, %v215
  %v218 = vadd.f32 %v150, %v215
  %v219 = vadd.f32 %v151, %v215
  %v220 = vadd.f32 %v152, %v215
  %v221 = vadd.f32 %v153, %v215
  %v222 = vadd.f32 %v154, %v215
  %v223 = vadd.f32 %v155, %v215
  %v224 = vadd.f32 %v156, %v215
  %v225 = vadd.f32 %v157, %v215
  %v226 = vadd.f32 %v158, %v215
  %v227 = vadd.f32 %v159, %v215
  %v228 = vadd.f32 %v160, %v215
  %v229 = vadd.f32 %v161, %v215
  %v230 = vadd.f32 %v162, %v215
  %v231 = vadd.f32 %v163, %v215
  %v232 = vadd.f32 %v164, %v215
  %v233 = vadd.f32 %v165, %v215
  %v234 = vadd.f32 %v166, %v215
  %v235 = vadd.f32 %v167, %v215
  %v236 = vadd.f32 %v168, %v215
  %v237 = vadd.f32 %v169, %v215
  %v238 = vadd.f32 %v170, %v215
  %v239 = vadd.f32 %v171, %v215
  %v240 = vadd.f32 %v172, %v215
  %v241 = vadd.f32 %v173, %v215
  %v242 = vadd.f32 %v174, %v215
  %v243 = vadd.f32 %v175, %v215
  %v244 = vadd.f32 %v176, %v215
  %v245 = vadd.f32 %v177, %v215
  %v246 = vadd.f32 %v178, %v215
  %v247 = vadd.f32 %v179, %v215
  %v248 = vadd.f32 %v180, %v215
  %v249 = vadd.f32 %v181, %v215
  %v250 = vadd.f32 %v182, %v215
  %v251 = vadd.f32 %v183, %v215
  %v252 = vadd.f32 %v184, %v215
  %v253 = vadd.f32 %v185, %v215
  %v254 = vadd.f32 %v186, %v215
  %v255 = vadd.f32 %v187, %v215
  %v256 = vadd.f32 %v188, %v215
  %v257 = vadd.f32 %v189, %v215
  %v258 = vadd.f32 %v190, %v215
  %v259 = vadd.f32 %v191, %v215
  %v260 = vadd.f32 %v192, %v215
  %v261 = vadd.f32 %v193, %v215
  %v262 = vadd.f32 %v194, %v215
  %v263 = vadd.f32 %v195, %v215
  %v264 = vadd.f32 %v196, %v215
  %v265 = vadd.f32 %v197, %v215
  %v266 = vadd.f32 %v198, %v215
  %v267 = vadd.f32 %v199, %v215
  %v268 = vadd.f32 %v200, %v215
  %v269 = vadd.f32 %v201, %v215
  %v270 = vadd.f32 %v202, %v215
  %v271 = vadd.f32 %v203, %v215
  %v272 = vadd.f32 %v204, %v215
  %v273 = vadd.f32 %v205, %v215
  %v274 = vadd.f32 %v206, %v215
  %v275 = vadd.f32 %v207, %v215
  %v276 = vadd.f32 %v208, %v215
  %v277 = vadd.f32 %v209, %v215
  %v278 = vadd.f32 %v210, %v215
  %v279 = vadd.f32 %v211, %v215
  %v280 = vadd.f32 %v212, %v215
  %v281 = vld [vmem:[%s3] sm:$0xf]
  %v282 = vld [vmem:[%s3 + $0x4] sm:$0xf]
  %v283 = vld [vmem:[%s3 + $0x8] sm:$0xf]
  %v284 = vld [vmem:[%s3 + $0xc] sm:$0xf]
  %v285 = vld [vmem:[%s3 + $0x10] sm:$0xf]
  %v286 = vld [vmem:[%s3 + $0x14] sm:$0xf]
  %v287 = vld [vmem:[%s3 + $0x18] sm:$0xf]
  %v288 = vld [vmem:[%s3 + $0x1c] sm:$0xf]
  %v289 = vld [vmem:[%s3 + $0x20] sm:$0xf]
  %v290 = vld [vmem:[%s3 + $0x24] sm:$0xf]
  %v291 = vld [vmem:[%s3 + $0x28] sm:$0xf]
  %v292 = vld [vmem:[%s3 + $0x2c] sm:$0xf]
  %v293 = vld [vmem:[%s3 + $0x30] sm:$0xf]
  %v294 = vld [vmem:[%s3 + $0x34] sm:$0xf]
  %v295 = vld [vmem:[%s3 + $0x38] sm:$0xf]
  %v296 = vld [vmem:[%s3 + $0x3c] sm:$0xf]
  %v297 = vld [vmem:[%s3 + $0x40] sm:$0xf]
  %v298 = vld [vmem:[%s3 + $0x44] sm:$0xf]
  %v299 = vld [vmem:[%s3 + $0x48] sm:$0xf]
  %v300 = vld [vmem:[%s3 + $0x4c] sm:$0xf]
  %v301 = vld [vmem:[%s3 + $0x50] sm:$0xf]
  %v302 = vld [vmem:[%s3 + $0x54] sm:$0xf]
  %v303 = vld [vmem:[%s3 + $0x58] sm:$0xf]
  %v304 = vld [vmem:[%s3 + $0x5c] sm:$0xf]
  %v305 = vld [vmem:[%s3 + $0x60] sm:$0xf]
  %v306 = vld [vmem:[%s3 + $0x64] sm:$0xf]
  %v307 = vld [vmem:[%s3 + $0x68] sm:$0xf]
  %v308 = vld [vmem:[%s3 + $0x6c] sm:$0xf]
  %v309 = vld [vmem:[%s3 + $0x70] sm:$0xf]
  %v310 = vld [vmem:[%s3 + $0x74] sm:$0xf]
  %v311 = vld [vmem:[%s3 + $0x78] sm:$0xf]
  %v312 = vld [vmem:[%s3 + $0x7c] sm:$0xf]
  %v313 = vld [vmem:[%s3 + $0x80] sm:$0xf]
  %v314 = vld [vmem:[%s3 + $0x84] sm:$0xf]
  %v315 = vld [vmem:[%s3 + $0x88] sm:$0xf]
  %v316 = vld [vmem:[%s3 + $0x8c] sm:$0xf]
  %v317 = vld [vmem:[%s3 + $0x90] sm:$0xf]
  %v318 = vld [vmem:[%s3 + $0x94] sm:$0xf]
  %v319 = vld [vmem:[%s3 + $0x98] sm:$0xf]
  %v320 = vld [vmem:[%s3 + $0x9c] sm:$0xf]
  %v321 = vld [vmem:[%s3 + $0xa0] sm:$0xf]
  %v322 = vld [vmem:[%s3 + $0xa4] sm:$0xf]
  %v323 = vld [vmem:[%s3 + $0xa8] sm:$0xf]
  %v324 = vld [vmem:[%s3 + $0xac] sm:$0xf]
  %v325 = vld [vmem:[%s3 + $0xb0] sm:$0xf]
  %v326 = vld [vmem:[%s3 + $0xb4] sm:$0xf]
  %v327 = vld [vmem:[%s3 + $0xb8] sm:$0xf]
  %v328 = vld [vmem:[%s3 + $0xbc] sm:$0xf]
  %v329 = vld [vmem:[%s3 + $0xc0] sm:$0xf]
  %v330 = vld [vmem:[%s3 + $0xc4] sm:$0xf]
  %v331 = vld [vmem:[%s3 + $0xc8] sm:$0xf]
  %v332 = vld [vmem:[%s3 + $0xcc] sm:$0xf]
  %v333 = vld [vmem:[%s3 + $0xd0] sm:$0xf]
  %v334 = vld [vmem:[%s3 + $0xd4] sm:$0xf]
  %v335 = vld [vmem:[%s3 + $0xd8] sm:$0xf]
  %v336 = vld [vmem:[%s3 + $0xdc] sm:$0xf]
  %v337 = vld [vmem:[%s3 + $0xe0] sm:$0xf]
  %v338 = vld [vmem:[%s3 + $0xe4] sm:$0xf]
  %v339 = vld [vmem:[%s3 + $0xe8] sm:$0xf]
  %v340 = vld [vmem:[%s3 + $0xec] sm:$0xf]
  %v341 = vld [vmem:[%s3 + $0xf0] sm:$0xf]
  %v342 = vld [vmem:[%s3 + $0xf4] sm:$0xf]
  %v343 = vld [vmem:[%s3 + $0xf8] sm:$0xf]
  %v344 = vld [vmem:[%s3 + $0xfc] sm:$0xf]
  %v345 = vunpack.c.l.bf16 %v281
  %v346 = vunpack.c.l.bf16 %v282
  %v347 = vunpack.c.l.bf16 %v283
  %v348 = vunpack.c.l.bf16 %v284
  %v349 = vunpack.c.l.bf16 %v285
  %v350 = vunpack.c.l.bf16 %v286
  %v351 = vunpack.c.l.bf16 %v287
  %v352 = vunpack.c.l.bf16 %v288
  %v353 = vunpack.c.l.bf16 %v289
  %v354 = vunpack.c.l.bf16 %v290
  %v355 = vunpack.c.l.bf16 %v291
  %v356 = vunpack.c.l.bf16 %v292
  %v357 = vunpack.c.l.bf16 %v293
  %v358 = vunpack.c.l.bf16 %v294
  %v359 = vunpack.c.l.bf16 %v295
  %v360 = vunpack.c.l.bf16 %v296
  %v361 = vunpack.c.l.bf16 %v297
  %v362 = vunpack.c.l.bf16 %v298
  %v363 = vunpack.c.l.bf16 %v299
  %v364 = vunpack.c.l.bf16 %v300
  %v365 = vunpack.c.l.bf16 %v301
  %v366 = vunpack.c.l.bf16 %v302
  %v367 = vunpack.c.l.bf16 %v303
  %v368 = vunpack.c.l.bf16 %v304
  %v369 = vunpack.c.l.bf16 %v305
  %v370 = vunpack.c.l.bf16 %v306
  %v371 = vunpack.c.l.bf16 %v307
  %v372 = vunpack.c.l.bf16 %v308
  %v373 = vunpack.c.l.bf16 %v309
  %v374 = vunpack.c.l.bf16 %v310
  %v375 = vunpack.c.l.bf16 %v311
  %v376 = vunpack.c.l.bf16 %v312
  %v377 = vunpack.c.l.bf16 %v313
  %v378 = vunpack.c.l.bf16 %v314
  %v379 = vunpack.c.l.bf16 %v315
  %v380 = vunpack.c.l.bf16 %v316
  %v381 = vunpack.c.l.bf16 %v317
  %v382 = vunpack.c.l.bf16 %v318
  %v383 = vunpack.c.l.bf16 %v319
  %v384 = vunpack.c.l.bf16 %v320
  %v385 = vunpack.c.l.bf16 %v321
  %v386 = vunpack.c.l.bf16 %v322
  %v387 = vunpack.c.l.bf16 %v323
  %v388 = vunpack.c.l.bf16 %v324
  %v389 = vunpack.c.l.bf16 %v325
  %v390 = vunpack.c.l.bf16 %v326
  %v391 = vunpack.c.l.bf16 %v327
  %v392 = vunpack.c.l.bf16 %v328
  %v393 = vunpack.c.l.bf16 %v329
  %v394 = vunpack.c.l.bf16 %v330
  %v395 = vunpack.c.l.bf16 %v331
  %v396 = vunpack.c.l.bf16 %v332
  %v397 = vunpack.c.l.bf16 %v333
  %v398 = vunpack.c.l.bf16 %v334
  %v399 = vunpack.c.l.bf16 %v335
  %v400 = vunpack.c.l.bf16 %v336
  %v401 = vunpack.c.l.bf16 %v337
  %v402 = vunpack.c.l.bf16 %v338
  %v403 = vunpack.c.l.bf16 %v339
  %v404 = vunpack.c.l.bf16 %v340
  %v405 = vunpack.c.l.bf16 %v341
  %v406 = vunpack.c.l.bf16 %v342
  %v407 = vunpack.c.l.bf16 %v343
  %v408 = vunpack.c.l.bf16 %v344
  %v409 = vadd.f32 %v217, %v345
  %v410 = vadd.f32 %v218, %v346
  %v411 = vadd.f32 %v219, %v347
  %v412 = vadd.f32 %v220, %v348
  %v413 = vadd.f32 %v221, %v349
  %v414 = vadd.f32 %v222, %v350
  %v415 = vadd.f32 %v223, %v351
  %v416 = vadd.f32 %v224, %v352
  %v417 = vadd.f32 %v225, %v353
  %v418 = vadd.f32 %v226, %v354
  %v419 = vadd.f32 %v227, %v355
  %v420 = vadd.f32 %v228, %v356
  %v421 = vadd.f32 %v229, %v357
  %v422 = vadd.f32 %v230, %v358
  %v423 = vadd.f32 %v231, %v359
  %v424 = vadd.f32 %v232, %v360
  %v425 = vadd.f32 %v233, %v361
  %v426 = vadd.f32 %v234, %v362
  %v427 = vadd.f32 %v235, %v363
  %v428 = vadd.f32 %v236, %v364
  %v429 = vadd.f32 %v237, %v365
  %v430 = vadd.f32 %v238, %v366
  %v431 = vadd.f32 %v239, %v367
  %v432 = vadd.f32 %v240, %v368
  %v433 = vadd.f32 %v241, %v369
  %v434 = vadd.f32 %v242, %v370
  %v435 = vadd.f32 %v243, %v371
  %v436 = vadd.f32 %v244, %v372
  %v437 = vadd.f32 %v245, %v373
  %v438 = vadd.f32 %v246, %v374
  %v439 = vadd.f32 %v247, %v375
  %v440 = vadd.f32 %v248, %v376
  %v441 = vadd.f32 %v249, %v377
  %v442 = vadd.f32 %v250, %v378
  %v443 = vadd.f32 %v251, %v379
  %v444 = vadd.f32 %v252, %v380
  %v445 = vadd.f32 %v253, %v381
  %v446 = vadd.f32 %v254, %v382
  %v447 = vadd.f32 %v255, %v383
  %v448 = vadd.f32 %v256, %v384
  %v449 = vadd.f32 %v257, %v385
  %v450 = vadd.f32 %v258, %v386
  %v451 = vadd.f32 %v259, %v387
  %v452 = vadd.f32 %v260, %v388
  %v453 = vadd.f32 %v261, %v389
  %v454 = vadd.f32 %v262, %v390
  %v455 = vadd.f32 %v263, %v391
  %v456 = vadd.f32 %v264, %v392
  %v457 = vadd.f32 %v265, %v393
  %v458 = vadd.f32 %v266, %v394
  %v459 = vadd.f32 %v267, %v395
  %v460 = vadd.f32 %v268, %v396
  %v461 = vadd.f32 %v269, %v397
  %v462 = vadd.f32 %v270, %v398
  %v463 = vadd.f32 %v271, %v399
  %v464 = vadd.f32 %v272, %v400
  %v465 = vadd.f32 %v273, %v401
  %v466 = vadd.f32 %v274, %v402
  %v467 = vadd.f32 %v275, %v403
  %v468 = vadd.f32 %v276, %v404
  %v469 = vadd.f32 %v277, %v405
  %v470 = vadd.f32 %v278, %v406
  %v471 = vadd.f32 %v279, %v407
  %v472 = vadd.f32 %v280, %v408
  %v473 = vmax.f32 %v409, 0.0
  %v474 = vmax.f32 %v410, 0.0
  %v475 = vmax.f32 %v411, 0.0
  %v476 = vmax.f32 %v412, 0.0
  %v477 = vmax.f32 %v413, 0.0
  %v478 = vmax.f32 %v414, 0.0
  %v479 = vmax.f32 %v415, 0.0
  %v480 = vmax.f32 %v416, 0.0
  %v481 = vmax.f32 %v417, 0.0
  %v482 = vmax.f32 %v418, 0.0
  %v483 = vmax.f32 %v419, 0.0
  %v484 = vmax.f32 %v420, 0.0
  %v485 = vmax.f32 %v421, 0.0
  %v486 = vmax.f32 %v422, 0.0
  %v487 = vmax.f32 %v423, 0.0
  %v488 = vmax.f32 %v424, 0.0
  %v489 = vmax.f32 %v425, 0.0
  %v490 = vmax.f32 %v426, 0.0
  %v491 = vmax.f32 %v427, 0.0
  %v492 = vmax.f32 %v428, 0.0
  %v493 = vmax.f32 %v429, 0.0
  %v494 = vmax.f32 %v430, 0.0
  %v495 = vmax.f32 %v431, 0.0
  %v496 = vmax.f32 %v432, 0.0
  %v497 = vmax.f32 %v433, 0.0
  %v498 = vmax.f32 %v434, 0.0
  %v499 = vmax.f32 %v435, 0.0
  %v500 = vmax.f32 %v436, 0.0
  %v501 = vmax.f32 %v437, 0.0
  %v502 = vmax.f32 %v438, 0.0
  %v503 = vmax.f32 %v439, 0.0
  %v504 = vmax.f32 %v440, 0.0
  %v505 = vmax.f32 %v441, 0.0
  %v506 = vmax.f32 %v442, 0.0
  %v507 = vmax.f32 %v443, 0.0
  %v508 = vmax.f32 %v444, 0.0
  %v509 = vmax.f32 %v445, 0.0
  %v510 = vmax.f32 %v446, 0.0
  %v511 = vmax.f32 %v447, 0.0
  %v512 = vmax.f32 %v448, 0.0
  %v513 = vmax.f32 %v449, 0.0
  %v514 = vmax.f32 %v450, 0.0
  %v515 = vmax.f32 %v451, 0.0
  %v516 = vmax.f32 %v452, 0.0
  %v517 = vmax.f32 %v453, 0.0
  %v518 = vmax.f32 %v454, 0.0
  %v519 = vmax.f32 %v455, 0.0
  %v520 = vmax.f32 %v456, 0.0
  %v521 = vmax.f32 %v457, 0.0
  %v522 = vmax.f32 %v458, 0.0
  %v523 = vmax.f32 %v459, 0.0
  %v524 = vmax.f32 %v460, 0.0
  %v525 = vmax.f32 %v461, 0.0
  %v526 = vmax.f32 %v462, 0.0
  %v527 = vmax.f32 %v463, 0.0
  %v528 = vmax.f32 %v464, 0.0
  %v529 = vmax.f32 %v465, 0.0
  %v530 = vmax.f32 %v466, 0.0
  %v531 = vmax.f32 %v467, 0.0
  %v532 = vmax.f32 %v468, 0.0
  %v533 = vmax.f32 %v469, 0.0
  %v534 = vmax.f32 %v470, 0.0
  %v535 = vmax.f32 %v471, 0.0
  %v536 = vmax.f32 %v472, 0.0
  %vm537 = vcmask 64512
  %538 = vst.msk [vmem:[%s4] sm:$0xff] %vm537, %v473
  %539 = vst.msk [vmem:[%s4 + $0x8] sm:$0xff] %vm537, %v474
  %540 = vst.msk [vmem:[%s4 + $0x10] sm:$0xff] %vm537, %v475
  %541 = vst.msk [vmem:[%s4 + $0x18] sm:$0xff] %vm537, %v476
  %542 = vst.msk [vmem:[%s4 + $0x20] sm:$0xff] %vm537, %v477
  %543 = vst.msk [vmem:[%s4 + $0x28] sm:$0xff] %vm537, %v478
  %544 = vst.msk [vmem:[%s4 + $0x30] sm:$0xff] %vm537, %v479
  %545 = vst.msk [vmem:[%s4 + $0x38] sm:$0xff] %vm537, %v480
  %546 = vst.msk [vmem:[%s4 + $0x40] sm:$0xff] %vm537, %v481
  %547 = vst.msk [vmem:[%s4 + $0x48] sm:$0xff] %vm537, %v482
  %548 = vst.msk [vmem:[%s4 + $0x50] sm:$0xff] %vm537, %v483
  %549 = vst.msk [vmem:[%s4 + $0x58] sm:$0xff] %vm537, %v484
  %550 = vst.msk [vmem:[%s4 + $0x60] sm:$0xff] %vm537, %v485
  %551 = vst.msk [vmem:[%s4 + $0x68] sm:$0xff] %vm537, %v486
  %552 = vst.msk [vmem:[%s4 + $0x70] sm:$0xff] %vm537, %v487
  %553 = vst.msk [vmem:[%s4 + $0x78] sm:$0xff] %vm537, %v488
  %554 = vst.msk [vmem:[%s4 + $0x80] sm:$0xff] %vm537, %v489
  %555 = vst.msk [vmem:[%s4 + $0x88] sm:$0xff] %vm537, %v490
  %556 = vst.msk [vmem:[%s4 + $0x90] sm:$0xff] %vm537, %v491
  %557 = vst.msk [vmem:[%s4 + $0x98] sm:$0xff] %vm537, %v492
  %558 = vst.msk [vmem:[%s4 + $0xa0] sm:$0xff] %vm537, %v493
  %559 = vst.msk [vmem:[%s4 + $0xa8] sm:$0xff] %vm537, %v494
  %560 = vst.msk [vmem:[%s4 + $0xb0] sm:$0xff] %vm537, %v495
  %561 = vst.msk [vmem:[%s4 + $0xb8] sm:$0xff] %vm537, %v496
  %562 = vst.msk [vmem:[%s4 + $0xc0] sm:$0xff] %vm537, %v497
  %563 = vst.msk [vmem:[%s4 + $0xc8] sm:$0xff] %vm537, %v498
  %564 = vst.msk [vmem:[%s4 + $0xd0] sm:$0xff] %vm537, %v499
  %565 = vst.msk [vmem:[%s4 + $0xd8] sm:$0xff] %vm537, %v500
  %566 = vst.msk [vmem:[%s4 + $0xe0] sm:$0xff] %vm537, %v501
  %567 = vst.msk [vmem:[%s4 + $0xe8] sm:$0xff] %vm537, %v502
  %568 = vst.msk [vmem:[%s4 + $0xf0] sm:$0xff] %vm537, %v503
  %569 = vst.msk [vmem:[%s4 + $0xf8] sm:$0xff] %vm537, %v504
  %570 = vst.msk [vmem:[%s4 + $0x100] sm:$0xff] %vm537, %v505
  %571 = vst.msk [vmem:[%s4 + $0x108] sm:$0xff] %vm537, %v506
  %572 = vst.msk [vmem:[%s4 + $0x110] sm:$0xff] %vm537, %v507
  %573 = vst.msk [vmem:[%s4 + $0x118] sm:$0xff] %vm537, %v508
  %574 = vst.msk [vmem:[%s4 + $0x120] sm:$0xff] %vm537, %v509
  %575 = vst.msk [vmem:[%s4 + $0x128] sm:$0xff] %vm537, %v510
  %576 = vst.msk [vmem:[%s4 + $0x130] sm:$0xff] %vm537, %v511
  %577 = vst.msk [vmem:[%s4 + $0x138] sm:$0xff] %vm537, %v512
  %578 = vst.msk [vmem:[%s4 + $0x140] sm:$0xff] %vm537, %v513
  %579 = vst.msk [vmem:[%s4 + $0x148] sm:$0xff] %vm537, %v514
  %580 = vst.msk [vmem:[%s4 + $0x150] sm:$0xff] %vm537, %v515
  %581 = vst.msk [vmem:[%s4 + $0x158] sm:$0xff] %vm537, %v516
  %582 = vst.msk [vmem:[%s4 + $0x160] sm:$0xff] %vm537, %v517
  %583 = vst.msk [vmem:[%s4 + $0x168] sm:$0xff] %vm537, %v518
  %584 = vst.msk [vmem:[%s4 + $0x170] sm:$0xff] %vm537, %v519
  %585 = vst.msk [vmem:[%s4 + $0x178] sm:$0xff] %vm537, %v520
  %586 = vst.msk [vmem:[%s4 + $0x180] sm:$0xff] %vm537, %v521
  %587 = vst.msk [vmem:[%s4 + $0x188] sm:$0xff] %vm537, %v522
  %588 = vst.msk [vmem:[%s4 + $0x190] sm:$0xff] %vm537, %v523
  %589 = vst.msk [vmem:[%s4 + $0x198] sm:$0xff] %vm537, %v524
  %590 = vst.msk [vmem:[%s4 + $0x1a0] sm:$0xff] %vm537, %v525
  %591 = vst.msk [vmem:[%s4 + $0x1a8] sm:$0xff] %vm537, %v526
  %592 = vst.msk [vmem:[%s4 + $0x1b0] sm:$0xff] %vm537, %v527
  %593 = vst.msk [vmem:[%s4 + $0x1b8] sm:$0xff] %vm537, %v528
  %594 = vst.msk [vmem:[%s4 + $0x1c0] sm:$0xff] %vm537, %v529
  %595 = vst.msk [vmem:[%s4 + $0x1c8] sm:$0xff] %vm537, %v530
  %596 = vst.msk [vmem:[%s4 + $0x1d0] sm:$0xff] %vm537, %v531
  %597 = vst.msk [vmem:[%s4 + $0x1d8] sm:$0xff] %vm537, %v532
  %598 = vst.msk [vmem:[%s4 + $0x1e0] sm:$0xff] %vm537, %v533
  %599 = vst.msk [vmem:[%s4 + $0x1e8] sm:$0xff] %vm537, %v534
  %600 = vst.msk [vmem:[%s4 + $0x1f0] sm:$0xff] %vm537, %v535
  %601 = vst.msk [vmem:[%s4 + $0x1f8] sm:$0xff] %vm537, %v536
  // Predicated region
  $region18: #{a_call__.5} parent=0 // pred_check
    _
  $region19: #{a_call__.5} parent=0 // pred_check_branch
    %603 = sbr.rel (0) target = $region21
  $region20: #{a_call__.5} parent=0 // pred_region
    _
  $region21: #{a_call__.5} parent=0 // pred_fallthru
    _
  // Predicated region
  $region22: #{a_call__.5} parent=0 // pred_check
    _
  $region23: #{a_call__.5} parent=0 // pred_check_branch
    %605 = sbr.rel (0) target = $region25
  $region24: #{a_call__.5} parent=0 // pred_region
    _
  $region25: #{a_call__.5} parent=0 // pred_fallthru
    _

// kernel: a_call__.3
$region0: #{a_call__.3}
  #allocation0 [shape = 'u32[]', space=smem, size = 0x4, offset = 0x4, fixed_abs, tag = 'smem constant byte address 0x4 - core index']
  #allocation1 [shape = 'u32[72,128]{1,0:T(1,128)}', space=vmem, size = 0x9000, scoped, tag = 'internal scratch']
  #allocation2 [shape = 'bf16[18,18,8]{2,1,0:T(8,128)(2,1)}', space=vmem, size = 0x1b000, scoped, tag = 'scratch operand']
  %s0 = inlined_call_operand.vmem [shape: bf16[2,16,16,8], index: 0, kind: input, shape index: {}]
  %s1 = inlined_call_operand.vmem [shape: bf16[9,8,8], index: 1, kind: input, shape index: {}]
  %s2 = inlined_call_operand.vmem [shape: bf16[2,256,8], index: 2, kind: output, shape index: {0}]
  %s3 = inlined_call_operand.vmem [shape: f32[2,1,8], index: 3, kind: output, shape index: {1}]
  %s4 = inlined_call_operand.vmem [shape: f32[2,1,8], index: 4, kind: output, shape index: {2}]
  %5 = xla_tuple %s2, %s3, %s4
  %s6 = sld [smem:[#allocation0]]
  $region57: #{a_call__.3} parent=0
    _
  %s8 = ssub.s32 1, %s6
  %s9 = scalar_select 0, %s8, %s6
  loop: start=0, step=1, limit=4
  $region2: #{a_call__.3} parent=0 // loop_pre_header
    _
  $region3: #{a_call__.3} parent=0 // loop_header
    %s11 = sphi 0, %s15
    %p12 = scmp.ge.s32.totalorder %s11, 4
    %s21 = sphi 0, %s23
    %s24 = sphi 0, %s21
    %s25 = sphi 0, %s24
    %s41 = sphi 0, %s25
    %s45 = sphi 0, %s45
    %s47 = sphi 0, %s45
    %s48 = sphi 0, %s47
    %s62 = sphi 0, %s48
    %s68 = sphi 0, %s70
    %s71 = sphi 0, %s68
    %s72 = sphi 0, %s71
    %s88 = sphi 0, %s72
    %s94 = sphi 0, %s96
    %s97 = sphi 0, %s94
    %s98 = sphi 0, %s97
    %s114 = sphi 0, %s98
    %s120 = sphi 0, %s122
    %s123 = sphi 0, %s120
    %s124 = sphi 0, %s123
    %s140 = sphi 0, %s124
  $region4: #{a_call__.3} parent=0 // loop_header_branch
    %14 = sbr.rel (%p12) target = $region8
  $region5: #{a_call__.3} parent=0 // loop_body
    %s16 = ssub.s32 %s11, 1
    %s17 = ssub.s32 %s11, 2
    %s18 = sadd.s32 %s11, 1
    %s19 = ssub.s32 %s11, %s18
    %p20 = scmp.eq.s32.totalorder %s19, 0
    %s22 = sadd.s32 %s21, 1
    %s23 = scalar_select %p20, %s21, %s22
    %p26 = pneg %p20
    %p27 = scmp.eq.s32.totalorder %s11, 1
    %p28 = por %p26, %p27
    %p29 = scmp.ne.s32.totalorder %s21, %s24
    %p30 = scmp.eq.s32.totalorder %s11, 0
    %p31 = por %p29, %p30
    %p32 = scmp.ne.s32.totalorder %s21, %s24
    %p33 = scmp.eq.s32.totalorder %s16, 1
    %p34 = por %p32, %p33
    %p35 = scmp.ne.s32.totalorder %s24, %s25
    %p36 = scmp.eq.s32.totalorder %s16, 0
    %p37 = por %p35, %p36
    %p38 = scmp.ne.s32.totalorder %s24, %s25
    %p39 = scmp.eq.s32.totalorder %s17, 1
    %p40 = por %p38, %p39
    %p42 = scmp.ne.s32.totalorder %s25, %s41
    %p43 = scmp.eq.s32.totalorder %s17, 0
    %p44 = por %p42, %p43
    %s46 = sadd.s32 %s45, 1
    %p49 = scmp.eq.s32.totalorder %s11, 1
    %p50 = scmp.ne.s32.totalorder %s45, %s47
    %p51 = scmp.eq.s32.totalorder %s11, 0
    %p52 = por %p50, %p51
    %p53 = scmp.ne.s32.totalorder %s45, %s47
    %p54 = scmp.eq.s32.totalorder %s16, 1
    %p55 = por %p53, %p54
    %p56 = scmp.ne.s32.totalorder %s47, %s48
    %p57 = scmp.eq.s32.totalorder %s16, 0
    %p58 = por %p56, %p57
    %p59 = scmp.ne.s32.totalorder %s47, %s48
    %p60 = scmp.eq.s32.totalorder %s17, 1
    %p61 = por %p59, %p60
    %p63 = scmp.ne.s32.totalorder %s48, %s62
    %p64 = scmp.eq.s32.totalorder %s17, 0
    %p65 = por %p63, %p64
    %s66 = ssub.s32 %s11, %s18
    %p67 = scmp.eq.s32.totalorder %s66, 0
    %s69 = sadd.s32 %s68, 1
    %s70 = scalar_select %p67, %s68, %s69
    %p73 = pneg %p67
    %p74 = scmp.eq.s32.totalorder %s11, 1
    %p75 = por %p73, %p74
    %p76 = scmp.ne.s32.totalorder %s68, %s71
    %p77 = scmp.eq.s32.totalorder %s11, 0
    %p78 = por %p76, %p77
    %p79 = scmp.ne.s32.totalorder %s68, %s71
    %p80 = scmp.eq.s32.totalorder %s16, 1
    %p81 = por %p79, %p80
    %p82 = scmp.ne.s32.totalorder %s71, %s72
    %p83 = scmp.eq.s32.totalorder %s16, 0
    %p84 = por %p82, %p83
    %p85 = scmp.ne.s32.totalorder %s71, %s72
    %p86 = scmp.eq.s32.totalorder %s17, 1
    %p87 = por %p85, %p86
    %p89 = scmp.ne.s32.totalorder %s72, %s88
    %p90 = scmp.eq.s32.totalorder %s17, 0
    %p91 = por %p89, %p90
    %s92 = ssub.s32 %s11, %s18
    %p93 = scmp.eq.s32.totalorder %s92, 0
    %s95 = sadd.s32 %s94, 1
    %s96 = scalar_select %p93, %s94, %s95
    %p99 = pneg %p93
    %p100 = scmp.eq.s32.totalorder %s11, 1
    %p101 = por %p99, %p100
    %p102 = scmp.ne.s32.totalorder %s94, %s97
    %p103 = scmp.eq.s32.totalorder %s11, 0
    %p104 = por %p102, %p103
    %p105 = scmp.ne.s32.totalorder %s94, %s97
    %p106 = scmp.eq.s32.totalorder %s16, 1
    %p107 = por %p105, %p106
    %p108 = scmp.ne.s32.totalorder %s97, %s98
    %p109 = scmp.eq.s32.totalorder %s16, 0
    %p110 = por %p108, %p109
    %p111 = scmp.ne.s32.totalorder %s97, %s98
    %p112 = scmp.eq.s32.totalorder %s17, 1
    %p113 = por %p111, %p112
    %p115 = scmp.ne.s32.totalorder %s98, %s114
    %p116 = scmp.eq.s32.totalorder %s17, 0
    %p117 = por %p115, %p116
    %s118 = ssub.s32 %s11, %s18
    %p119 = scmp.eq.s32.totalorder %s118, 0
    %s121 = sadd.s32 %s120, 1
    %s122 = scalar_select %p119, %s120, %s121
    %p125 = pneg %p119
    %p126 = scmp.eq.s32.totalorder %s11, 1
    %p127 = por %p125, %p126
    %p128 = scmp.ne.s32.totalorder %s120, %s123
    %p129 = scmp.eq.s32.totalorder %s11, 0
    %p130 = por %p128, %p129
    %p131 = scmp.ne.s32.totalorder %s120, %s123
    %p132 = scmp.eq.s32.totalorder %s16, 1
    %p133 = por %p131, %p132
    %p134 = scmp.ne.s32.totalorder %s123, %s124
    %p135 = scmp.eq.s32.totalorder %s16, 0
    %p136 = por %p134, %p135
    %p137 = scmp.ne.s32.totalorder %s123, %s124
    %p138 = scmp.eq.s32.totalorder %s17, 1
    %p139 = por %p137, %p138
    %p141 = scmp.ne.s32.totalorder %s124, %s140
    %p142 = scmp.eq.s32.totalorder %s17, 0
    %p143 = por %p141, %p142
    %p144 = scmp.le.s32.totalorder 1, %s11
    %p145 = scmp.lt.s32.totalorder %s11, 3
    %p146 = pnand %p144, %p145
    %p147 = pneg %p146
    // Predicated region
    $region9: #{a_call__.3} parent=5 // pred_check
      _
    $region10: #{a_call__.3} parent=5 // pred_check_branch
      %149 = sbr.rel (%p146) target = $region12
    $region11: #{a_call__.3} parent=5 // pred_region
      %s150 = ssub.s32 %s11, 1
      // Predicated region
      $region13: #{a_call__.3} parent=11 // pred_check
        %p151 = pneg %p58
      $region14: #{a_call__.3} parent=11 // pred_check_branch
        %153 = sbr.rel (%p151) target = $region16
      $region15: #{a_call__.3} parent=11 // pred_region
        _
      $region16: #{a_call__.3} parent=11 // pred_fallthru
        _
    $region12: #{a_call__.3} parent=5 // pred_fallthru
      _
    %p154 = scmp.lt.s32.totalorder %s11, 2
    // Predicated region
    $region17: #{a_call__.3} parent=5 // pred_check
      %p155 = pneg %p154
    $region18: #{a_call__.3} parent=5 // pred_check_branch
      %157 = sbr.rel (%p155) target = $region20
    $region19: #{a_call__.3} parent=5 // pred_region
      // Predicated region
      $region21: #{a_call__.3} parent=19 // pred_check
        %p158 = pneg %p31
      $region22: #{a_call__.3} parent=19 // pred_check_branch
        %160 = sbr.rel (%p158) target = $region24
      $region23: #{a_call__.3} parent=19 // pred_region
        %p161 = scmp.lt.s32.totalorder %s11, 1
        %s162 = scalar_select %p161, %s11, 1
        %s163 = smul.addr %s162, 32
        %s164 = smul.addr %s163, 4
        %s165 = scalar_lea.vmem %s0, %s164
      $region24: #{a_call__.3} parent=19 // pred_fallthru
        _
    $region20: #{a_call__.3} parent=5 // pred_fallthru
      _
    %p166 = scmp.le.s32.totalorder 1, %s11
    %p167 = scmp.lt.s32.totalorder %s11, 3
    %p168 = pnand %p166, %p167
    %p169 = pneg %p168
    // Predicated region
    $region25: #{a_call__.3} parent=5 // pred_check
      _
    $region26: #{a_call__.3} parent=5 // pred_check_branch
      %171 = sbr.rel (%p168) target = $region28
    $region27: #{a_call__.3} parent=5 // pred_region
      %s172 = ssub.s32 %s11, 1
      %p173 = scmp.lt.s32.totalorder %s16, 1
      %s174 = scalar_select %p173, %s16, 1
      %s175 = smul.addr %s174, 32
      %s176 = smul.addr %s175, 4
      %s177 = scalar_lea.vmem %s0, %s176
      %p178 = pneg %p37
      %p179 = pneg %p34
      %p180 = pneg %p58
      %p181 = pneg %p55
      %p182 = pneg %p84
      %p183 = pneg %p81
      %p184 = scmp.lt.s32.totalorder %s16, 1
      %s185 = scalar_select %p184, %s16, 1
      %s186 = smul.addr %s185, 32
      %s187 = smul.addr %s186, 4
      %s188 = scalar_lea.vmem %s2, %s187
      %p189 = pneg %p110
      %p190 = pneg %p107
      %p191 = scmp.lt.s32.totalorder %s16, 1
      %s192 = scalar_select %p191, %s16, 1
      %s193 = scalar_lea.vmem %s3, %s192
      %p194 = pneg %p136
      %p195 = pneg %p133
      %p196 = scmp.lt.s32.totalorder %s16, 1
      %s197 = scalar_select %p196, %s16, 1
      %s198 = scalar_lea.vmem %s4, %s197
      %p199 = scmp.lt.s32.totalorder %s16, 1
      %s200 = scalar_select %p199, %s16, 1
      %s201 = smul.addr %s200, 32
      %s202 = smul.addr %s201, 4
      %s203 = scalar_lea.vmem %s0, %s202
      %p204 = scmp.lt.s32.totalorder %s16, 1
      %s205 = scalar_select %p204, %s16, 1
      %s206 = smul.addr %s205, 32
      %s207 = smul.addr %s206, 4
      %s208 = scalar_lea.vmem %s2, %s207
      %p209 = scmp.lt.s32.totalorder %s16, 1
      %s210 = scalar_select %p209, %s16, 1
      %s211 = scalar_lea.vmem %s3, %s210
      %p212 = scmp.lt.s32.totalorder %s16, 1
      %s213 = scalar_select %p212, %s16, 1
      %s214 = scalar_lea.vmem %s4, %s213
      %v216 = vld [vmem:[%s203] sm:$0xf]
      %v217 = vld [vmem:[%s203 + $0x4] sm:$0xf]
      %v218 = vld [vmem:[%s203 + $0x8] sm:$0xf]
      %v219 = vld [vmem:[%s203 + $0xc] sm:$0xf]
      %v220 = vld [vmem:[%s203 + $0x10] sm:$0xf]
      %v221 = vld [vmem:[%s203 + $0x14] sm:$0xf]
      %v222 = vld [vmem:[%s203 + $0x18] sm:$0xf]
      %v223 = vld [vmem:[%s203 + $0x1c] sm:$0xf]
      %v224 = vld [vmem:[%s203 + $0x20] sm:$0xf]
      %v225 = vld [vmem:[%s203 + $0x24] sm:$0xf]
      %v226 = vld [vmem:[%s203 + $0x28] sm:$0xf]
      %v227 = vld [vmem:[%s203 + $0x2c] sm:$0xf]
      %v228 = vld [vmem:[%s203 + $0x30] sm:$0xf]
      %v229 = vld [vmem:[%s203 + $0x34] sm:$0xf]
      %v230 = vld [vmem:[%s203 + $0x38] sm:$0xf]
      %v231 = vld [vmem:[%s203 + $0x3c] sm:$0xf]
      %v232 = vld [vmem:[%s203 + $0x40] sm:$0xf]
      %v233 = vld [vmem:[%s203 + $0x44] sm:$0xf]
      %v234 = vld [vmem:[%s203 + $0x48] sm:$0xf]
      %v235 = vld [vmem:[%s203 + $0x4c] sm:$0xf]
      %v236 = vld [vmem:[%s203 + $0x50] sm:$0xf]
      %v237 = vld [vmem:[%s203 + $0x54] sm:$0xf]
      %v238 = vld [vmem:[%s203 + $0x58] sm:$0xf]
      %v239 = vld [vmem:[%s203 + $0x5c] sm:$0xf]
      %v240 = vld [vmem:[%s203 + $0x60] sm:$0xf]
      %v241 = vld [vmem:[%s203 + $0x64] sm:$0xf]
      %v242 = vld [vmem:[%s203 + $0x68] sm:$0xf]
      %v243 = vld [vmem:[%s203 + $0x6c] sm:$0xf]
      %v244 = vld [vmem:[%s203 + $0x70] sm:$0xf]
      %v245 = vld [vmem:[%s203 + $0x74] sm:$0xf]
      %v246 = vld [vmem:[%s203 + $0x78] sm:$0xf]
      %v247 = vld [vmem:[%s203 + $0x7c] sm:$0xf]
      %vm248 = vcmask 60416
      %249 = vst.msk [vmem:[#allocation2] sm:$0xf] %vm248, 0
      %250 = vst.msk [vmem:[#allocation2 + $0x4] sm:$0xf] %vm248, 0
      %vm251 = vcmask 57344
      %252 = vst.msk [vmem:[#allocation2 + $0x8] sm:$0x1] %vm251, 0
      %253 = vst.msk [vmem:[#allocation2 + $0xc] sm:$0xf] %vm248, 0
      %254 = vst.msk [vmem:[#allocation2 + $0x10] sm:$0xf] %vm248, 0
      %255 = vst.msk [vmem:[#allocation2 + $0x14] sm:$0x1] %vm251, 0
      %256 = vst.msk [vmem:[#allocation2 + $0x18] sm:$0xf] %vm248, 0
      %257 = vst.msk [vmem:[#allocation2 + $0x1c] sm:$0xf] %vm248, 0
      %258 = vst.msk [vmem:[#allocation2 + $0x20] sm:$0x1] %vm251, 0
      %259 = vst.msk [vmem:[#allocation2 + $0x24] sm:$0xf] %vm248, 0
      %260 = vst.msk [vmem:[#allocation2 + $0x28] sm:$0xf] %vm248, 0
      %261 = vst.msk [vmem:[#allocation2 + $0x2c] sm:$0x1] %vm251, 0
      %262 = vst.msk [vmem:[#allocation2 + $0x30] sm:$0xf] %vm248, 0
      %263 = vst.msk [vmem:[#allocation2 + $0x34] sm:$0xf] %vm248, 0
      %264 = vst.msk [vmem:[#allocation2 + $0x38] sm:$0x1] %vm251, 0
      %265 = vst.msk [vmem:[#allocation2 + $0x3c] sm:$0xf] %vm248, 0
      %266 = vst.msk [vmem:[#allocation2 + $0x40] sm:$0xf] %vm248, 0
      %267 = vst.msk [vmem:[#allocation2 + $0x44] sm:$0x1] %vm251, 0
      %268 = vst.msk [vmem:[#allocation2 + $0x48] sm:$0xf] %vm248, 0
      %269 = vst.msk [vmem:[#allocation2 + $0x4c] sm:$0xf] %vm248, 0
      %270 = vst.msk [vmem:[#allocation2 + $0x50] sm:$0x1] %vm251, 0
      %271 = vst.msk [vmem:[#allocation2 + $0x54] sm:$0xf] %vm248, 0
      %272 = vst.msk [vmem:[#allocation2 + $0x58] sm:$0xf] %vm248, 0
      %273 = vst.msk [vmem:[#allocation2 + $0x5c] sm:$0x1] %vm251, 0
      %274 = vst.msk [vmem:[#allocation2 + $0x60] sm:$0xf] %vm248, 0
      %275 = vst.msk [vmem:[#allocation2 + $0x64] sm:$0xf] %vm248, 0
      %276 = vst.msk [vmem:[#allocation2 + $0x68] sm:$0x1] %vm251, 0
      %277 = vst.msk [vmem:[#allocation2 + $0x6c] sm:$0xf] %vm248, 0
      %278 = vst.msk [vmem:[#allocation2 + $0x70] sm:$0xf] %vm248, 0
      %279 = vst.msk [vmem:[#allocation2 + $0x74] sm:$0x1] %vm251, 0
      %280 = vst.msk [vmem:[#allocation2 + $0x78] sm:$0xf] %vm248, 0
      %281 = vst.msk [vmem:[#allocation2 + $0x7c] sm:$0xf] %vm248, 0
      %282 = vst.msk [vmem:[#allocation2 + $0x80] sm:$0x1] %vm251, 0
      %283 = vst.msk [vmem:[#allocation2 + $0x84] sm:$0xf] %vm248, 0
      %284 = vst.msk [vmem:[#allocation2 + $0x88] sm:$0xf] %vm248, 0
      %285 = vst.msk [vmem:[#allocation2 + $0x8c] sm:$0x1] %vm251, 0
      %286 = vst.msk [vmem:[#allocation2 + $0x90] sm:$0xf] %vm248, 0
      %287 = vst.msk [vmem:[#allocation2 + $0x94] sm:$0xf] %vm248, 0
      %288 = vst.msk [vmem:[#allocation2 + $0x98] sm:$0x1] %vm251, 0
      %289 = vst.msk [vmem:[#allocation2 + $0x9c] sm:$0xf] %vm248, 0
      %290 = vst.msk [vmem:[#allocation2 + $0xa0] sm:$0xf] %vm248, 0
      %291 = vst.msk [vmem:[#allocation2 + $0xa4] sm:$0x1] %vm251, 0
      %292 = vst.msk [vmem:[#allocation2 + $0xa8] sm:$0xf] %vm248, 0
      %293 = vst.msk [vmem:[#allocation2 + $0xac] sm:$0xf] %vm248, 0
      %294 = vst.msk [vmem:[#allocation2 + $0xb0] sm:$0x1] %vm251, 0
      %295 = vst.msk [vmem:[#allocation2 + $0xb4] sm:$0xf] %vm248, 0
      %296 = vst.msk [vmem:[#allocation2 + $0xb8] sm:$0xf] %vm248, 0
      %297 = vst.msk [vmem:[#allocation2 + $0xbc] sm:$0x1] %vm251, 0
      %298 = vst.msk [vmem:[#allocation2 + $0xc0] sm:$0xf] %vm248, 0
      %299 = vst.msk [vmem:[#allocation2 + $0xc4] sm:$0xf] %vm248, 0
      %300 = vst.msk [vmem:[#allocation2 + $0xc8] sm:$0x1] %vm251, 0
      %301 = vst.msk [vmem:[#allocation2 + $0xcc] sm:$0xf] %vm248, 0
      %302 = vst.msk [vmem:[#allocation2 + $0xd0] sm:$0xf] %vm248, 0
      %303 = vst.msk [vmem:[#allocation2 + $0xd4] sm:$0x1] %vm251, 0
      %vm304 = vsmask.f32 256
      %vm305 = vsmask.f32 4368
      %vm306 = vmor %vm304, %vm305
      %v308 = vshrl.u32 %v216, 16
      %v310 = vrot.slane %v308, 7
      %v311 = vshll.u32 %v216, 16
      %v313 = vor.u32 %v310, %v311
      %v314 = vrot.slane %v310, 4
      %v316 = vshrl.u32 %v217, 16
      %v318 = vrot.slane %v316, 7
      %v319 = vshll.u32 %v217, 16
      %v321 = vor.u32 %v318, %v319
      %v322 = vsel %vm306, %v314, %v321
      %v323 = vrot.slane %v318, 4
      %v325 = vshrl.u32 %v218, 16
      %v327 = vrot.slane %v325, 7
      %v328 = vshll.u32 %v218, 16
      %v330 = vor.u32 %v327, %v328
      %v331 = vrot.slane %v327, 4
      %v333 = vshrl.u32 %v219, 16
      %v335 = vrot.slane %v333, 7
      %v336 = vshll.u32 %v219, 16
      %v338 = vor.u32 %v335, %v336
      %v339 = vsel %vm306, %v331, %v338
      %v340 = vrot.slane %v335, 4
      %v342 = vshrl.u32 %v220, 16
      %v344 = vrot.slane %v342, 7
      %v345 = vshll.u32 %v220, 16
      %v347 = vor.u32 %v344, %v345
      %v348 = vrot.slane %v344, 4
      %v350 = vshrl.u32 %v221, 16
      %v352 = vrot.slane %v350, 7
      %v353 = vshll.u32 %v221, 16
      %v355 = vor.u32 %v352, %v353
      %v356 = vsel %vm306, %v348, %v355
      %v357 = vrot.slane %v352, 4
      %v359 = vshrl.u32 %v222, 16
      %v361 = vrot.slane %v359, 7
      %v362 = vshll.u32 %v222, 16
      %v364 = vor.u32 %v361, %v362
      %v365 = vrot.slane %v361, 4
      %v367 = vshrl.u32 %v223, 16
      %v369 = vrot.slane %v367, 7
      %v370 = vshll.u32 %v223, 16
      %v372 = vor.u32 %v369, %v370
      %v373 = vsel %vm306, %v365, %v372
      %v374 = vrot.slane %v369, 4
      %v376 = vshrl.u32 %v224, 16
      %v378 = vrot.slane %v376, 7
      %v379 = vshll.u32 %v224, 16
      %v381 = vor.u32 %v378, %v379
      %v382 = vrot.slane %v378, 4
      %v384 = vshrl.u32 %v225, 16
      %v386 = vrot.slane %v384, 7
      %v387 = vshll.u32 %v225, 16
      %v389 = vor.u32 %v386, %v387
      %v390 = vsel %vm306, %v382, %v389
      %v391 = vrot.slane %v386, 4
      %v393 = vshrl.u32 %v226, 16
      %v395 = vrot.slane %v393, 7
      %v396 = vshll.u32 %v226, 16
      %v398 = vor.u32 %v395, %v396
      %v399 = vrot.slane %v395, 4
      %v401 = vshrl.u32 %v227, 16
      %v403 = vrot.slane %v401, 7
      %v404 = vshll.u32 %v227, 16
      %v406 = vor.u32 %v403, %v404
      %v407 = vsel %vm306, %v399, %v406
      %v408 = vrot.slane %v403, 4
      %v410 = vshrl.u32 %v228, 16
      %v412 = vrot.slane %v410, 7
      %v413 = vshll.u32 %v228, 16
      %v415 = vor.u32 %v412, %v413
      %v416 = vrot.slane %v412, 4
      %v418 = vshrl.u32 %v229, 16
      %v420 = vrot.slane %v418, 7
      %v421 = vshll.u32 %v229, 16
      %v423 = vor.u32 %v420, %v421
      %v424 = vsel %vm306, %v416, %v423
      %v425 = vrot.slane %v420, 4
      %v427 = vshrl.u32 %v230, 16
      %v429 = vrot.slane %v427, 7
      %v430 = vshll.u32 %v230, 16
      %v432 = vor.u32 %v429, %v430
      %v433 = vrot.slane %v429, 4
      %v435 = vshrl.u32 %v231, 16
      %v437 = vrot.slane %v435, 7
      %v438 = vshll.u32 %v231, 16
      %v440 = vor.u32 %v437, %v438
      %v441 = vsel %vm306, %v433, %v440
      %v442 = vrot.slane %v437, 4
      %v444 = vshrl.u32 %v232, 16
      %v446 = vrot.slane %v444, 7
      %v447 = vshll.u32 %v232, 16
      %v449 = vor.u32 %v446, %v447
      %v450 = vrot.slane %v446, 4
      %v452 = vshrl.u32 %v233, 16
      %v454 = vrot.slane %v452, 7
      %v455 = vshll.u32 %v233, 16
      %v457 = vor.u32 %v454, %v455
      %v458 = vsel %vm306, %v450, %v457
      %v459 = vrot.slane %v454, 4
      %v461 = vshrl.u32 %v234, 16
      %v463 = vrot.slane %v461, 7
      %v464 = vshll.u32 %v234, 16
      %v466 = vor.u32 %v463, %v464
      %v467 = vrot.slane %v463, 4
      %v469 = vshrl.u32 %v235, 16
      %v471 = vrot.slane %v469, 7
      %v472 = vshll.u32 %v235, 16
      %v474 = vor.u32 %v471, %v472
      %v475 = vsel %vm306, %v467, %v474
      %v476 = vrot.slane %v471, 4
      %v478 = vshrl.u32 %v236, 16
      %v480 = vrot.slane %v478, 7
      %v481 = vshll.u32 %v236, 16
      %v483 = vor.u32 %v480, %v481
      %v484 = vrot.slane %v480, 4
      %v486 = vshrl.u32 %v237, 16
      %v488 = vrot.slane %v486, 7
      %v489 = vshll.u32 %v237, 16
      %v491 = vor.u32 %v488, %v489
      %v492 = vsel %vm306, %v484, %v491
      %v493 = vrot.slane %v488, 4
      %v495 = vshrl.u32 %v238, 16
      %v497 = vrot.slane %v495, 7
      %v498 = vshll.u32 %v238, 16
      %v500 = vor.u32 %v497, %v498
      %v501 = vrot.slane %v497, 4
      %v503 = vshrl.u32 %v239, 16
      %v505 = vrot.slane %v503, 7
      %v506 = vshll.u32 %v239, 16
      %v508 = vor.u32 %v505, %v506
      %v509 = vsel %vm306, %v501, %v508
      %v510 = vrot.slane %v505, 4
      %v512 = vshrl.u32 %v240, 16
      %v514 = vrot.slane %v512, 7
      %v515 = vshll.u32 %v240, 16
      %v517 = vor.u32 %v514, %v515
      %v518 = vrot.slane %v514, 4
      %v520 = vshrl.u32 %v241, 16
      %v522 = vrot.slane %v520, 7
      %v523 = vshll.u32 %v241, 16
      %v525 = vor.u32 %v522, %v523
      %v526 = vsel %vm306, %v518, %v525
      %v527 = vrot.slane %v522, 4
      %v529 = vshrl.u32 %v242, 16
      %v531 = vrot.slane %v529, 7
      %v532 = vshll.u32 %v242, 16
      %v534 = vor.u32 %v531, %v532
      %v535 = vrot.slane %v531, 4
      %v537 = vshrl.u32 %v243, 16
      %v539 = vrot.slane %v537, 7
      %v540 = vshll.u32 %v243, 16
      %v542 = vor.u32 %v539, %v540
      %v543 = vsel %vm306, %v535, %v542
      %v544 = vrot.slane %v539, 4
      %v546 = vshrl.u32 %v244, 16
      %v548 = vrot.slane %v546, 7
      %v549 = vshll.u32 %v244, 16
      %v551 = vor.u32 %v548, %v549
      %v552 = vrot.slane %v548, 4
      %v554 = vshrl.u32 %v245, 16
      %v556 = vrot.slane %v554, 7
      %v557 = vshll.u32 %v245, 16
      %v559 = vor.u32 %v556, %v557
      %v560 = vsel %vm306, %v552, %v559
      %v561 = vrot.slane %v556, 4
      %v563 = vshrl.u32 %v246, 16
      %v565 = vrot.slane %v563, 7
      %v566 = vshll.u32 %v246, 16
      %v568 = vor.u32 %v565, %v566
      %v569 = vrot.slane %v565, 4
      %v571 = vshrl.u32 %v247, 16
      %v573 = vrot.slane %v571, 7
      %v574 = vshll.u32 %v247, 16
      %v576 = vor.u32 %v573, %v574
      %v577 = vsel %vm306, %v569, %v576
      %v578 = vrot.slane %v573, 4
      %s627 = scalar_lea.vmem [#allocation2], 12
      %vm628 = vcmask 60416
      %vm629 = vsmask.f32 7938
      %vm630 = vmand %vm628, %vm629
      %v631 = vld [vmem:[%s627] sm:$0xf]
      %v632 = vsel %vm630, %v313, %v631
      %633 = vst [vmem:[%s627] sm:$0xf] %v632
      %634 = vst.msk [vmem:[%s627 + $0x4] sm:$0xf] %vm248, %v322
      %vm635 = vcmask 57344
      %vm636 = vmand %vm635, %vm304
      %v637 = vld [vmem:[%s627 + $0x8] sm:$0x1]
      %v638 = vsel %vm636, %v323, %v637
      %639 = vst [vmem:[%s627 + $0x8] sm:$0x1] %v638
      %v640 = vld [vmem:[%s627 + $0xc] sm:$0xf]
      %v641 = vsel %vm630, %v330, %v640
      %642 = vst [vmem:[%s627 + $0xc] sm:$0xf] %v641
      %643 = vst.msk [vmem:[%s627 + $0x10] sm:$0xf] %vm248, %v339
      %v644 = vld [vmem:[%s627 + $0x14] sm:$0x1]
      %v645 = vsel %vm636, %v340, %v644
      %646 = vst [vmem:[%s627 + $0x14] sm:$0x1] %v645
      %v647 = vld [vmem:[%s627 + $0x18] sm:$0xf]
      %v648 = vsel %vm630, %v347, %v647
      %649 = vst [vmem:[%s627 + $0x18] sm:$0xf] %v648
      %650 = vst.msk [vmem:[%s627 + $0x1c] sm:$0xf] %vm248, %v356
      %v651 = vld [vmem:[%s627 + $0x20] sm:$0x1]
      %v652 = vsel %vm636, %v357, %v651
      %653 = vst [vmem:[%s627 + $0x20] sm:$0x1] %v652
      %v654 = vld [vmem:[%s627 + $0x24] sm:$0xf]
      %v655 = vsel %vm630, %v364, %v654
      %656 = vst [vmem:[%s627 + $0x24] sm:$0xf] %v655
      %657 = vst.msk [vmem:[%s627 + $0x28] sm:$0xf] %vm248, %v373
      %v658 = vld [vmem:[%s627 + $0x2c] sm:$0x1]
      %v659 = vsel %vm636, %v374, %v658
      %660 = vst [vmem:[%s627 + $0x2c] sm:$0x1] %v659
      %v661 = vld [vmem:[%s627 + $0x30] sm:$0xf]
      %v662 = vsel %vm630, %v381, %v661
      %663 = vst [vmem:[%s627 + $0x30] sm:$0xf] %v662
      %664 = vst.msk [vmem:[%s627 + $0x34] sm:$0xf] %vm248, %v390
      %v665 = vld [vmem:[%s627 + $0x38] sm:$0x1]
      %v666 = vsel %vm636, %v391, %v665
      %667 = vst [vmem:[%s627 + $0x38] sm:$0x1] %v666
      %v668 = vld [vmem:[%s627 + $0x3c] sm:$0xf]
      %v669 = vsel %vm630, %v398, %v668
      %670 = vst [vmem:[%s627 + $0x3c] sm:$0xf] %v669
      %671 = vst.msk [vmem:[%s627 + $0x40] sm:$0xf] %vm248, %v407
      %v672 = vld [vmem:[%s627 + $0x44] sm:$0x1]
      %v673 = vsel %vm636, %v408, %v672
      %674 = vst [vmem:[%s627 + $0x44] sm:$0x1] %v673
      %v675 = vld [vmem:[%s627 + $0x48] sm:$0xf]
      %v676 = vsel %vm630, %v415, %v675
      %677 = vst [vmem:[%s627 + $0x48] sm:$0xf] %v676
      %678 = vst.msk [vmem:[%s627 + $0x4c] sm:$0xf] %vm248, %v424
      %v679 = vld [vmem:[%s627 + $0x50] sm:$0x1]
      %v680 = vsel %vm636, %v425, %v679
      %681 = vst [vmem:[%s627 + $0x50] sm:$0x1] %v680
      %v682 = vld [vmem:[%s627 + $0x54] sm:$0xf]
      %v683 = vsel %vm630, %v432, %v682
      %684 = vst [vmem:[%s627 + $0x54] sm:$0xf] %v683
      %685 = vst.msk [vmem:[%s627 + $0x58] sm:$0xf] %vm248, %v441
      %v686 = vld [vmem:[%s627 + $0x5c] sm:$0x1]
      %v687 = vsel %vm636, %v442, %v686
      %688 = vst [vmem:[%s627 + $0x5c] sm:$0x1] %v687
      %v689 = vld [vmem:[%s627 + $0x60] sm:$0xf]
      %v690 = vsel %vm630, %v449, %v689
      %691 = vst [vmem:[%s627 + $0x60] sm:$0xf] %v690
      %692 = vst.msk [vmem:[%s627 + $0x64] sm:$0xf] %vm248, %v458
      %v693 = vld [vmem:[%s627 + $0x68] sm:$0x1]
      %v694 = vsel %vm636, %v459, %v693
      %695 = vst [vmem:[%s627 + $0x68] sm:$0x1] %v694
      %v696 = vld [vmem:[%s627 + $0x6c] sm:$0xf]
      %v697 = vsel %vm630, %v466, %v696
      %698 = vst [vmem:[%s627 + $0x6c] sm:$0xf] %v697
      %699 = vst.msk [vmem:[%s627 + $0x70] sm:$0xf] %vm248, %v475
      %v700 = vld [vmem:[%s627 + $0x74] sm:$0x1]
      %v701 = vsel %vm636, %v476, %v700
      %702 = vst [vmem:[%s627 + $0x74] sm:$0x1] %v701
      %v703 = vld [vmem:[%s627 + $0x78] sm:$0xf]
      %v704 = vsel %vm630, %v483, %v703
      %705 = vst [vmem:[%s627 + $0x78] sm:$0xf] %v704
      %706 = vst.msk [vmem:[%s627 + $0x7c] sm:$0xf] %vm248, %v492
      %v707 = vld [vmem:[%s627 + $0x80] sm:$0x1]
      %v708 = vsel %vm636, %v493, %v707
      %709 = vst [vmem:[%s627 + $0x80] sm:$0x1] %v708
      %v710 = vld [vmem:[%s627 + $0x84] sm:$0xf]
      %v711 = vsel %vm630, %v500, %v710
      %712 = vst [vmem:[%s627 + $0x84] sm:$0xf] %v711
      %713 = vst.msk [vmem:[%s627 + $0x88] sm:$0xf] %vm248, %v509
      %v714 = vld [vmem:[%s627 + $0x8c] sm:$0x1]
      %v715 = vsel %vm636, %v510, %v714
      %716 = vst [vmem:[%s627 + $0x8c] sm:$0x1] %v715
      %v717 = vld [vmem:[%s627 + $0x90] sm:$0xf]
      %v718 = vsel %vm630, %v517, %v717
      %719 = vst [vmem:[%s627 + $0x90] sm:$0xf] %v718
      %720 = vst.msk [vmem:[%s627 + $0x94] sm:$0xf] %vm248, %v526
      %v721 = vld [vmem:[%s627 + $0x98] sm:$0x1]
      %v722 = vsel %vm636, %v527, %v721
      %723 = vst [vmem:[%s627 + $0x98] sm:$0x1] %v722
      %v724 = vld [vmem:[%s627 + $0x9c] sm:$0xf]
      %v725 = vsel %vm630, %v534, %v724
      %726 = vst [vmem:[%s627 + $0x9c] sm:$0xf] %v725
      %727 = vst.msk [vmem:[%s627 + $0xa0] sm:$0xf] %vm248, %v543
      %v728 = vld [vmem:[%s627 + $0xa4] sm:$0x1]
      %v729 = vsel %vm636, %v544, %v728
      %730 = vst [vmem:[%s627 + $0xa4] sm:$0x1] %v729
      %v731 = vld [vmem:[%s627 + $0xa8] sm:$0xf]
      %v732 = vsel %vm630, %v551, %v731
      %733 = vst [vmem:[%s627 + $0xa8] sm:$0xf] %v732
      %734 = vst.msk [vmem:[%s627 + $0xac] sm:$0xf] %vm248, %v560
      %v735 = vld [vmem:[%s627 + $0xb0] sm:$0x1]
      %v736 = vsel %vm636, %v561, %v735
      %737 = vst [vmem:[%s627 + $0xb0] sm:$0x1] %v736
      %v738 = vld [vmem:[%s627 + $0xb4] sm:$0xf]
      %v739 = vsel %vm630, %v568, %v738
      %740 = vst [vmem:[%s627 + $0xb4] sm:$0xf] %v739
      %741 = vst.msk [vmem:[%s627 + $0xb8] sm:$0xf] %vm248, %v577
      %v742 = vld [vmem:[%s627 + $0xbc] sm:$0x1]
      %v743 = vsel %vm636, %v578, %v742
      %744 = vst [vmem:[%s627 + $0xbc] sm:$0x1] %v743
      %v745 = vld [vmem:[#allocation2] sm:$0xf]
      %v746 = vld [vmem:[#allocation2 + $0x4] sm:$0xf]
      %v747 = vld [vmem:[#allocation2 + $0xc] sm:$0xf]
      %v748 = vld [vmem:[#allocation2 + $0x10] sm:$0xf]
      %v749 = vld [vmem:[#allocation2 + $0x18] sm:$0xf]
      %v750 = vld [vmem:[#allocation2 + $0x1c] sm:$0xf]
      %v751 = vld [vmem:[#allocation2 + $0x24] sm:$0xf]
      %v752 = vld [vmem:[#allocation2 + $0x28] sm:$0xf]
      %v753 = vld [vmem:[#allocation2 + $0x30] sm:$0xf]
      %v754 = vld [vmem:[#allocation2 + $0x34] sm:$0xf]
      %v755 = vld [vmem:[#allocation2 + $0x3c] sm:$0xf]
      %v756 = vld [vmem:[#allocation2 + $0x40] sm:$0xf]
      %v757 = vld [vmem:[#allocation2 + $0x48] sm:$0xf]
      %v758 = vld [vmem:[#allocation2 + $0x4c] sm:$0xf]
      %v759 = vld [vmem:[#allocation2 + $0x54] sm:$0xf]
      %v760 = vld [vmem:[#allocation2 + $0x58] sm:$0xf]
      %v761 = vld [vmem:[#allocation2 + $0x60] sm:$0xf]
      %v762 = vld [vmem:[#allocation2 + $0x64] sm:$0xf]
      %v763 = vld [vmem:[#allocation2 + $0x6c] sm:$0xf]
      %v764 = vld [vmem:[#allocation2 + $0x70] sm:$0xf]
      %v765 = vld [vmem:[#allocation2 + $0x78] sm:$0xf]
      %v766 = vld [vmem:[#allocation2 + $0x7c] sm:$0xf]
      %v767 = vld [vmem:[#allocation2 + $0x84] sm:$0xf]
      %v768 = vld [vmem:[#allocation2 + $0x88] sm:$0xf]
      %v769 = vld [vmem:[#allocation2 + $0x90] sm:$0xf]
      %v770 = vld [vmem:[#allocation2 + $0x94] sm:$0xf]
      %v771 = vld [vmem:[#allocation2 + $0x9c] sm:$0xf]
      %v772 = vld [vmem:[#allocation2 + $0xa0] sm:$0xf]
      %v773 = vld [vmem:[#allocation2 + $0xa8] sm:$0xf]
      %v774 = vld [vmem:[#allocation2 + $0xac] sm:$0xf]
      %v775 = vld [vmem:[#allocation2 + $0xb4] sm:$0xf]
      %v776 = vld [vmem:[#allocation2 + $0xb8] sm:$0xf]
      %v777 = vld [vmem:[#allocation2 + $0xc0] sm:$0xf]
      %v778 = vld [vmem:[#allocation2 + $0xc4] sm:$0xf]
      %v779 = vld [vmem:[#allocation2 + $0xcc] sm:$0xf]
      %v780 = vld [vmem:[#allocation2 + $0xd0] sm:$0xf]
      %v781 = vld [vmem:[#allocation2 + $0x8] sm:$0x1]
      %v782 = vld [vmem:[#allocation2 + $0x14] sm:$0x1]
      %v783 = vld [vmem:[#allocation2 + $0x20] sm:$0x1]
      %v784 = vld [vmem:[#allocation2 + $0x2c] sm:$0x1]
      %v785 = vld [vmem:[#allocation2 + $0x38] sm:$0x1]
      %v786 = vld [vmem:[#allocation2 + $0x44] sm:$0x1]
      %v787 = vld [vmem:[#allocation2 + $0x50] sm:$0x1]
      %v788 = vld [vmem:[#allocation2 + $0x5c] sm:$0x1]
      %v789 = vld [vmem:[#allocation2 + $0x68] sm:$0x1]
      %v790 = vld [vmem:[#allocation2 + $0x74] sm:$0x1]
      %v791 = vld [vmem:[#allocation2 + $0x80] sm:$0x1]
      %v792 = vld [vmem:[#allocation2 + $0x8c] sm:$0x1]
      %v793 = vld [vmem:[#allocation2 + $0x98] sm:$0x1]
      %v794 = vld [vmem:[#allocation2 + $0xa4] sm:$0x1]
      %v795 = vld [vmem:[#allocation2 + $0xb0] sm:$0x1]
      %v796 = vld [vmem:[#allocation2 + $0xbc] sm:$0x1]
      %v797 = vld [vmem:[#allocation2 + $0xc8] sm:$0x1]
      %v798 = vld [vmem:[#allocation2 + $0xd4] sm:$0x1]
      %v799 = vld [vmem:[#allocation2] sm:$0xe]
      %v800 = vld [vmem:[#allocation2 + $0xc] sm:$0xe]
      %v801 = vld [vmem:[#allocation2 + $0x18] sm:$0xe]
      %v802 = vld [vmem:[#allocation2 + $0x24] sm:$0xe]
      %v803 = vld [vmem:[#allocation2 + $0x30] sm:$0xe]
      %v804 = vld [vmem:[#allocation2 + $0x3c] sm:$0xe]
      %v805 = vld [vmem:[#allocation2 + $0x48] sm:$0xe]
      %v806 = vld [vmem:[#allocation2 + $0x54] sm:$0xe]
      %v807 = vld [vmem:[#allocation2 + $0x60] sm:$0xe]
      %v808 = vld [vmem:[#allocation2 + $0x6c] sm:$0xe]
      %v809 = vld [vmem:[#allocation2 + $0x78] sm:$0xe]
      %v810 = vld [vmem:[#allocation2 + $0x84] sm:$0xe]
      %v811 = vld [vmem:[#allocation2 + $0x90] sm:$0xe]
      %v812 = vld [vmem:[#allocation2 + $0x9c] sm:$0xe]
      %v813 = vld [vmem:[#allocation2 + $0xa8] sm:$0xe]
      %v814 = vld [vmem:[#allocation2 + $0xb4] sm:$0xe]
      %v815 = vld [vmem:[#allocation2 + $0xc0] sm:$0xe]
      %v816 = vld [vmem:[#allocation2 + $0xcc] sm:$0xe]
      %v817 = vld [vmem:[%s1] sm:$0xf]
      %vm818 = vsmask.f32 3328
      %vm819 = vsmask.f32 7440
      %vm820 = vmor %vm818, %vm819
      %v822 = vshrl.u32 %v745, 16
      %v824 = vrot.slane %v822, 4
      %v825 = vshll.u32 %v745, 16
      %v827 = vrot.slane %v825, 5
      %v828 = vor.u32 %v824, %v827
      %v829 = vrot.slane %v828, 4
      %v831 = vshll.u32 %v746, 16
      %v833 = vrot.slane %v831, 5
      %v834 = vsel %vm820, %v829, %v833
      %v835 = vshrl.u32 %v746, 16
      %v837 = vrot.slane %v835, 4
      %v838 = vor.u32 %v837, %v833
      %v839 = vrot.slane %v838, 4
      %v841 = vshll.u32 %v781, 16
      %v843 = vrot.slane %v841, 5
      %v844 = vsel %vm820, %v839, %v843
      %v846 = vshrl.u32 %v747, 16
      %v848 = vrot.slane %v846, 4
      %v849 = vshll.u32 %v747, 16
      %v851 = vrot.slane %v849, 5
      %v852 = vor.u32 %v848, %v851
      %v853 = vrot.slane %v852, 4
      %v855 = vshll.u32 %v748, 16
      %v857 = vrot.slane %v855, 5
      %v858 = vsel %vm820, %v853, %v857
      %v859 = vshrl.u32 %v748, 16
      %v861 = vrot.slane %v859, 4
      %v862 = vor.u32 %v861, %v857
      %v863 = vrot.slane %v862, 4
      %v865 = vshll.u32 %v782, 16
      %v867 = vrot.slane %v865, 5
      %v868 = vsel %vm820, %v863, %v867
      %v870 = vshrl.u32 %v749, 16
      %v872 = vrot.slane %v870, 4
      %v873 = vshll.u32 %v749, 16
      %v875 = vrot.slane %v873, 5
      %v876 = vor.u32 %v872, %v875
      %v877 = vrot.slane %v876, 4
      %v879 = vshll.u32 %v750, 16
      %v881 = vrot.slane %v879, 5
      %v882 = vsel %vm820, %v877, %v881
      %v883 = vshrl.u32 %v750, 16
      %v885 = vrot.slane %v883, 4
      %v886 = vor.u32 %v885, %v881
      %v887 = vrot.slane %v886, 4
      %v889 = vshll.u32 %v783, 16
      %v891 = vrot.slane %v889, 5
      %v892 = vsel %vm820, %v887, %v891
      %v894 = vshrl.u32 %v751, 16
      %v896 = vrot.slane %v894, 4
      %v897 = vshll.u32 %v751, 16
      %v899 = vrot.slane %v897, 5
      %v900 = vor.u32 %v896, %v899
      %v901 = vrot.slane %v900, 4
      %v903 = vshll.u32 %v752, 16
      %v905 = vrot.slane %v903, 5
      %v906 = vsel %vm820, %v901, %v905
      %v907 = vshrl.u32 %v752, 16
      %v909 = vrot.slane %v907, 4
      %v910 = vor.u32 %v909, %v905
      %v911 = vrot.slane %v910, 4
      %v913 = vshll.u32 %v784, 16
      %v915 = vrot.slane %v913, 5
      %v916 = vsel %vm820, %v911, %v915
      %v918 = vshrl.u32 %v753, 16
      %v920 = vrot.slane %v918, 4
      %v921 = vshll.u32 %v753, 16
      %v923 = vrot.slane %v921, 5
      %v924 = vor.u32 %v920, %v923
      %v925 = vrot.slane %v924, 4
      %v927 = vshll.u32 %v754, 16
      %v929 = vrot.slane %v927, 5
      %v930 = vsel %vm820, %v925, %v929
      %v931 = vshrl.u32 %v754, 16
      %v933 = vrot.slane %v931, 4
      %v934 = vor.u32 %v933, %v929
      %v935 = vrot.slane %v934, 4
      %v937 = vshll.u32 %v785, 16
      %v939 = vrot.slane %v937, 5
      %v940 = vsel %vm820, %v935, %v939
      %v942 = vshrl.u32 %v755, 16
      %v944 = vrot.slane %v942, 4
      %v945 = vshll.u32 %v755, 16
      %v947 = vrot.slane %v945, 5
      %v948 = vor.u32 %v944, %v947
      %v949 = vrot.slane %v948, 4
      %v951 = vshll.u32 %v756, 16
      %v953 = vrot.slane %v951, 5
      %v954 = vsel %vm820, %v949, %v953
      %v955 = vshrl.u32 %v756, 16
      %v957 = vrot.slane %v955, 4
      %v958 = vor.u32 %v957, %v953
      %v959 = vrot.slane %v958, 4
      %v961 = vshll.u32 %v786, 16
      %v963 = vrot.slane %v961, 5
      %v964 = vsel %vm820, %v959, %v963
      %v966 = vshrl.u32 %v757, 16
      %v968 = vrot.slane %v966, 4
      %v969 = vshll.u32 %v757, 16
      %v971 = vrot.slane %v969, 5
      %v972 = vor.u32 %v968, %v971
      %v973 = vrot.slane %v972, 4
      %v975 = vshll.u32 %v758, 16
      %v977 = vrot.slane %v975, 5
      %v978 = vsel %vm820, %v973, %v977
      %v979 = vshrl.u32 %v758, 16
      %v981 = vrot.slane %v979, 4
      %v982 = vor.u32 %v981, %v977
      %v983 = vrot.slane %v982, 4
      %v985 = vshll.u32 %v787, 16
      %v987 = vrot.slane %v985, 5
      %v988 = vsel %vm820, %v983, %v987
      %v990 = vshrl.u32 %v759, 16
      %v992 = vrot.slane %v990, 4
      %v993 = vshll.u32 %v759, 16
      %v995 = vrot.slane %v993, 5
      %v996 = vor.u32 %v992, %v995
      %v997 = vrot.slane %v996, 4
      %v999 = vshll.u32 %v760, 16
      %v1001 = vrot.slane %v999, 5
      %v1002 = vsel %vm820, %v997, %v1001
      %v1003 = vshrl.u32 %v760, 16
      %v1005 = vrot.slane %v1003, 4
      %v1006 = vor.u32 %v1005, %v1001
      %v1007 = vrot.slane %v1006, 4
      %v1009 = vshll.u32 %v788, 16
      %v1011 = vrot.slane %v1009, 5
      %v1012 = vsel %vm820, %v1007, %v1011
      %v1014 = vshrl.u32 %v761, 16
      %v1016 = vrot.slane %v1014, 4
      %v1017 = vshll.u32 %v761, 16
      %v1019 = vrot.slane %v1017, 5
      %v1020 = vor.u32 %v1016, %v1019
      %v1021 = vrot.slane %v1020, 4
      %v1023 = vshll.u32 %v762, 16
      %v1025 = vrot.slane %v1023, 5
      %v1026 = vsel %vm820, %v1021, %v1025
      %v1027 = vshrl.u32 %v762, 16
      %v1029 = vrot.slane %v1027, 4
      %v1030 = vor.u32 %v1029, %v1025
      %v1031 = vrot.slane %v1030, 4
      %v1033 = vshll.u32 %v789, 16
      %v1035 = vrot.slane %v1033, 5
      %v1036 = vsel %vm820, %v1031, %v1035
      %v1038 = vshrl.u32 %v763, 16
      %v1040 = vrot.slane %v1038, 4
      %v1041 = vshll.u32 %v763, 16
      %v1043 = vrot.slane %v1041, 5
      %v1044 = vor.u32 %v1040, %v1043
      %v1045 = vrot.slane %v1044, 4
      %v1047 = vshll.u32 %v764, 16
      %v1049 = vrot.slane %v1047, 5
      %v1050 = vsel %vm820, %v1045, %v1049
      %v1051 = vshrl.u32 %v764, 16
      %v1053 = vrot.slane %v1051, 4
      %v1054 = vor.u32 %v1053, %v1049
      %v1055 = vrot.slane %v1054, 4
      %v1057 = vshll.u32 %v790, 16
      %v1059 = vrot.slane %v1057, 5
      %v1060 = vsel %vm820, %v1055, %v1059
      %v1062 = vshrl.u32 %v765, 16
      %v1064 = vrot.slane %v1062, 4
      %v1065 = vshll.u32 %v765, 16
      %v1067 = vrot.slane %v1065, 5
      %v1068 = vor.u32 %v1064, %v1067
      %v1069 = vrot.slane %v1068, 4
      %v1071 = vshll.u32 %v766, 16
      %v1073 = vrot.slane %v1071, 5
      %v1074 = vsel %vm820, %v1069, %v1073
      %v1075 = vshrl.u32 %v766, 16
      %v1077 = vrot.slane %v1075, 4
      %v1078 = vor.u32 %v1077, %v1073
      %v1079 = vrot.slane %v1078, 4
      %v1081 = vshll.u32 %v791, 16
      %v1083 = vrot.slane %v1081, 5
      %v1084 = vsel %vm820, %v1079, %v1083
      %v1086 = vshrl.u32 %v767, 16
      %v1088 = vrot.slane %v1086, 4
      %v1089 = vshll.u32 %v767, 16
      %v1091 = vrot.slane %v1089, 5
      %v1092 = vor.u32 %v1088, %v1091
      %v1093 = vrot.slane %v1092, 4
      %v1095 = vshll.u32 %v768, 16
      %v1097 = vrot.slane %v1095, 5
      %v1098 = vsel %vm820, %v1093, %v1097
      %v1099 = vshrl.u32 %v768, 16
      %v1101 = vrot.slane %v1099, 4
      %v1102 = vor.u32 %v1101, %v1097
      %v1103 = vrot.slane %v1102, 4
      %v1105 = vshll.u32 %v792, 16
      %v1107 = vrot.slane %v1105, 5
      %v1108 = vsel %vm820, %v1103, %v1107
      %v1110 = vshrl.u32 %v769, 16
      %v1112 = vrot.slane %v1110, 4
      %v1113 = vshll.u32 %v769, 16
      %v1115 = vrot.slane %v1113, 5
      %v1116 = vor.u32 %v1112, %v1115
      %v1117 = vrot.slane %v1116, 4
      %v1119 = vshll.u32 %v770, 16
      %v1121 = vrot.slane %v1119, 5
      %v1122 = vsel %vm820, %v1117, %v1121
      %v1123 = vshrl.u32 %v770, 16
      %v1125 = vrot.slane %v1123, 4
      %v1126 = vor.u32 %v1125, %v1121
      %v1127 = vrot.slane %v1126, 4
      %v1129 = vshll.u32 %v793, 16
      %v1131 = vrot.slane %v1129, 5
      %v1132 = vsel %vm820, %v1127, %v1131
      %v1134 = vshrl.u32 %v771, 16
      %v1136 = vrot.slane %v1134, 4
      %v1137 = vshll.u32 %v771, 16
      %v1139 = vrot.slane %v1137, 5
      %v1140 = vor.u32 %v1136, %v1139
      %v1141 = vrot.slane %v1140, 4
      %v1143 = vshll.u32 %v772, 16
      %v1145 = vrot.slane %v1143, 5
      %v1146 = vsel %vm820, %v1141, %v1145
      %v1147 = vshrl.u32 %v772, 16
      %v1149 = vrot.slane %v1147, 4
      %v1150 = vor.u32 %v1149, %v1145
      %v1151 = vrot.slane %v1150, 4
      %v1153 = vshll.u32 %v794, 16
      %v1155 = vrot.slane %v1153, 5
      %v1156 = vsel %vm820, %v1151, %v1155
      %v1158 = vshrl.u32 %v773, 16
      %v1160 = vrot.slane %v1158, 4
      %v1161 = vshll.u32 %v773, 16
      %v1163 = vrot.slane %v1161, 5
      %v1164 = vor.u32 %v1160, %v1163
      %v1165 = vrot.slane %v1164, 4
      %v1167 = vshll.u32 %v774, 16
      %v1169 = vrot.slane %v1167, 5
      %v1170 = vsel %vm820, %v1165, %v1169
      %v1171 = vshrl.u32 %v774, 16
      %v1173 = vrot.slane %v1171, 4
      %v1174 = vor.u32 %v1173, %v1169
      %v1175 = vrot.slane %v1174, 4
      %v1177 = vshll.u32 %v795, 16
      %v1179 = vrot.slane %v1177, 5
      %v1180 = vsel %vm820, %v1175, %v1179
      %v1182 = vshrl.u32 %v775, 16
      %v1184 = vrot.slane %v1182, 4
      %v1185 = vshll.u32 %v775, 16
      %v1187 = vrot.slane %v1185, 5
      %v1188 = vor.u32 %v1184, %v1187
      %v1189 = vrot.slane %v1188, 4
      %v1191 = vshll.u32 %v776, 16
      %v1193 = vrot.slane %v1191, 5
      %v1194 = vsel %vm820, %v1189, %v1193
      %v1195 = vshrl.u32 %v776, 16
      %v1197 = vrot.slane %v1195, 4
      %v1198 = vor.u32 %v1197, %v1193
      %v1199 = vrot.slane %v1198, 4
      %v1201 = vshll.u32 %v796, 16
      %v1203 = vrot.slane %v1201, 5
      %v1204 = vsel %vm820, %v1199, %v1203
      %s1205 = scalar_lea.vmem %s1, 4
      %v1206 = vld [vmem:[%s1205] sm:$0xf]
      %v1207 = vunpack.c.l.b16 %v834
      %v1208 = vunpack.c.l.b16 %v844
      %v1209 = vunpack.c.l.b16 %v858
      %v1210 = vunpack.c.l.b16 %v868
      %v1211 = vunpack.c.l.b16 %v882
      %v1212 = vunpack.c.l.b16 %v892
      %v1213 = vunpack.c.l.b16 %v906
      %v1214 = vunpack.c.l.b16 %v916
      %v1215 = vunpack.c.l.b16 %v930
      %v1216 = vunpack.c.l.b16 %v940
      %v1217 = vunpack.c.l.b16 %v954
      %v1218 = vunpack.c.l.b16 %v964
      %v1219 = vunpack.c.l.b16 %v978
      %v1220 = vunpack.c.l.b16 %v988
      %v1221 = vunpack.c.l.b16 %v1002
      %v1222 = vunpack.c.l.b16 %v1012
      %v1223 = vunpack.c.l.b16 %v1026
      %v1224 = vunpack.c.l.b16 %v1036
      %v1225 = vunpack.c.l.b16 %v1050
      %v1226 = vunpack.c.l.b16 %v1060
      %v1227 = vunpack.c.l.b16 %v1074
      %v1228 = vunpack.c.l.b16 %v1084
      %v1229 = vunpack.c.l.b16 %v1098
      %v1230 = vunpack.c.l.b16 %v1108
      %v1231 = vunpack.c.l.b16 %v1122
      %v1232 = vunpack.c.l.b16 %v1132
      %v1233 = vunpack.c.l.b16 %v1146
      %v1234 = vunpack.c.l.b16 %v1156
      %v1235 = vunpack.c.l.b16 %v1170
      %v1236 = vunpack.c.l.b16 %v1180
      %v1237 = vunpack.c.l.b16 %v1194
      %v1238 = vunpack.c.l.b16 %v1204
      %v1239 = vpack.c.b16 %v1208, %v1207
      %v1240 = vpack.c.b16 %v1210, %v1209
      %v1241 = vpack.c.b16 %v1212, %v1211
      %v1242 = vpack.c.b16 %v1214, %v1213
      %v1243 = vpack.c.b16 %v1216, %v1215
      %v1244 = vpack.c.b16 %v1218, %v1217
      %v1245 = vpack.c.b16 %v1220, %v1219
      %v1246 = vpack.c.b16 %v1222, %v1221
      %v1247 = vpack.c.b16 %v1224, %v1223
      %v1248 = vpack.c.b16 %v1226, %v1225
      %v1249 = vpack.c.b16 %v1228, %v1227
      %v1250 = vpack.c.b16 %v1230, %v1229
      %v1251 = vpack.c.b16 %v1232, %v1231
      %v1252 = vpack.c.b16 %v1234, %v1233
      %v1253 = vpack.c.b16 %v1236, %v1235
      %v1254 = vpack.c.b16 %v1238, %v1237
      %vm1255 = vcmask 64512
      %v1257 = vsel %vm1255, %v1239, 0
      %v1260 = vsel %vm1255, %v1240, 0
      %v1263 = vsel %vm1255, %v1241, 0
      %v1266 = vsel %vm1255, %v1242, 0
      %v1269 = vsel %vm1255, %v1243, 0
      %v1272 = vsel %vm1255, %v1244, 0
      %v1275 = vsel %vm1255, %v1245, 0
      %v1278 = vsel %vm1255, %v1246, 0
      %v1281 = vsel %vm1255, %v1247, 0
      %v1284 = vsel %vm1255, %v1248, 0
      %v1287 = vsel %vm1255, %v1249, 0
      %v1290 = vsel %vm1255, %v1250, 0
      %v1293 = vsel %vm1255, %v1251, 0
      %v1296 = vsel %vm1255, %v1252, 0
      %v1299 = vsel %vm1255, %v1253, 0
      %v1302 = vsel %vm1255, %v1254, 0
      %vm1304 = vcmask 1043456
      %v1306 = vsel %vm1304, %v1206, 0
      %1308 = vmatpush.bf16.msra.mxu0 0
      %1309 = vmatpush.bf16.msra.mxu0 0
      %1310 = vmatpush.bf16.msra.mxu0 0
      %1311 = vmatpush.bf16.msra.mxu0 0
      %1312 = vmatpush.bf16.msra.mxu0 0
      %1313 = vmatpush.bf16.msra.mxu0 0
      %1314 = vmatpush.bf16.msra.mxu0 0
      %1315 = vmatpush.bf16.msra.mxu0 %v1306
      %1316 = vmatmul.bf16.gmra.mxu0 %v1257
      %v1317 = vpop.f32.mrf.mxu0
      %v1318 = vadd.f32 0.0, %v1317
      %v1319 = vpop.f32.mrf.mxu0
      %v1320 = vadd.f32 0.0, %v1319
      %1321 = vmatmul.bf16.gmra.mxu0 %v1260
      %v1322 = vpop.f32.mrf.mxu0
      %v1323 = vadd.f32 0.0, %v1322
      %v1324 = vpop.f32.mrf.mxu0
      %v1325 = vadd.f32 0.0, %v1324
      %1326 = vmatmul.bf16.gmra.mxu0 %v1263
      %v1327 = vpop.f32.mrf.mxu0
      %v1328 = vadd.f32 0.0, %v1327
      %v1329 = vpop.f32.mrf.mxu0
      %v1330 = vadd.f32 0.0, %v1329
      %1331 = vmatmul.bf16.gmra.mxu0 %v1266
      %v1332 = vpop.f32.mrf.mxu0
      %v1333 = vadd.f32 0.0, %v1332
      %v1334 = vpop.f32.mrf.mxu0
      %v1335 = vadd.f32 0.0, %v1334
      %1336 = vmatmul.bf16.gmra.mxu0 %v1269
      %v1337 = vpop.f32.mrf.mxu0
      %v1338 = vadd.f32 0.0, %v1337
      %v1339 = vpop.f32.mrf.mxu0
      %v1340 = vadd.f32 0.0, %v1339
      %1341 = vmatmul.bf16.gmra.mxu0 %v1272
      %v1342 = vpop.f32.mrf.mxu0
      %v1343 = vadd.f32 0.0, %v1342
      %v1344 = vpop.f32.mrf.mxu0
      %v1345 = vadd.f32 0.0, %v1344
      %1346 = vmatmul.bf16.gmra.mxu0 %v1275
      %v1347 = vpop.f32.mrf.mxu0
      %v1348 = vadd.f32 0.0, %v1347
      %v1349 = vpop.f32.mrf.mxu0
      %v1350 = vadd.f32 0.0, %v1349
      %1351 = vmatmul.bf16.gmra.mxu0 %v1278
      %v1352 = vpop.f32.mrf.mxu0
      %v1353 = vadd.f32 0.0, %v1352
      %v1354 = vpop.f32.mrf.mxu0
      %v1355 = vadd.f32 0.0, %v1354
      %1356 = vmatmul.bf16.gmra.mxu0 %v1281
      %v1357 = vpop.f32.mrf.mxu0
      %v1358 = vadd.f32 0.0, %v1357
      %v1359 = vpop.f32.mrf.mxu0
      %v1360 = vadd.f32 0.0, %v1359
      %1361 = vmatmul.bf16.gmra.mxu0 %v1284
      %v1362 = vpop.f32.mrf.mxu0
      %v1363 = vadd.f32 0.0, %v1362
      %v1364 = vpop.f32.mrf.mxu0
      %v1365 = vadd.f32 0.0, %v1364
      %1366 = vmatmul.bf16.gmra.mxu0 %v1287
      %v1367 = vpop.f32.mrf.mxu0
      %v1368 = vadd.f32 0.0, %v1367
      %v1369 = vpop.f32.mrf.mxu0
      %v1370 = vadd.f32 0.0, %v1369
      %1371 = vmatmul.bf16.gmra.mxu0 %v1290
      %v1372 = vpop.f32.mrf.mxu0
      %v1373 = vadd.f32 0.0, %v1372
      %v1374 = vpop.f32.mrf.mxu0
      %v1375 = vadd.f32 0.0, %v1374
      %1376 = vmatmul.bf16.gmra.mxu0 %v1293
      %v1377 = vpop.f32.mrf.mxu0
      %v1378 = vadd.f32 0.0, %v1377
      %v1379 = vpop.f32.mrf.mxu0
      %v1380 = vadd.f32 0.0, %v1379
      %1381 = vmatmul.bf16.gmra.mxu0 %v1296
      %v1382 = vpop.f32.mrf.mxu0
      %v1383 = vadd.f32 0.0, %v1382
      %v1384 = vpop.f32.mrf.mxu0
      %v1385 = vadd.f32 0.0, %v1384
      %1386 = vmatmul.bf16.gmra.mxu0 %v1299
      %v1387 = vpop.f32.mrf.mxu0
      %v1388 = vadd.f32 0.0, %v1387
      %v1389 = vpop.f32.mrf.mxu0
      %v1390 = vadd.f32 0.0, %v1389
      %1391 = vmatmul.bf16.gmra.mxu0 %v1302
      %v1392 = vpop.f32.mrf.mxu0
      %v1393 = vadd.f32 0.0, %v1392
      %v1394 = vpop.f32.mrf.mxu0
      %v1395 = vadd.f32 0.0, %v1394
      %1396 = vdwg.mxu0
      %v1429 = vunpack.c.l.b16 %v745
      %v1430 = vunpack.c.l.b16 %v746
      %v1431 = vunpack.c.l.b16 %v747
      %v1432 = vunpack.c.l.b16 %v748
      %v1433 = vunpack.c.l.b16 %v749
      %v1434 = vunpack.c.l.b16 %v750
      %v1435 = vunpack.c.l.b16 %v751
      %v1436 = vunpack.c.l.b16 %v752
      %v1437 = vunpack.c.l.b16 %v753
      %v1438 = vunpack.c.l.b16 %v754
      %v1439 = vunpack.c.l.b16 %v755
      %v1440 = vunpack.c.l.b16 %v756
      %v1441 = vunpack.c.l.b16 %v757
      %v1442 = vunpack.c.l.b16 %v758
      %v1443 = vunpack.c.l.b16 %v759
      %v1444 = vunpack.c.l.b16 %v760
      %v1445 = vunpack.c.l.b16 %v761
      %v1446 = vunpack.c.l.b16 %v762
      %v1447 = vunpack.c.l.b16 %v763
      %v1448 = vunpack.c.l.b16 %v764
      %v1449 = vunpack.c.l.b16 %v765
      %v1450 = vunpack.c.l.b16 %v766
      %v1451 = vunpack.c.l.b16 %v767
      %v1452 = vunpack.c.l.b16 %v768
      %v1453 = vunpack.c.l.b16 %v769
      %v1454 = vunpack.c.l.b16 %v770
      %v1455 = vunpack.c.l.b16 %v771
      %v1456 = vunpack.c.l.b16 %v772
      %v1457 = vunpack.c.l.b16 %v773
      %v1458 = vunpack.c.l.b16 %v774
      %v1459 = vunpack.c.l.b16 %v775
      %v1460 = vunpack.c.l.b16 %v776
      %v1461 = vpack.c.b16 %v1430, %v1429
      %v1462 = vpack.c.b16 %v1432, %v1431
      %v1463 = vpack.c.b16 %v1434, %v1433
      %v1464 = vpack.c.b16 %v1436, %v1435
      %v1465 = vpack.c.b16 %v1438, %v1437
      %v1466 = vpack.c.b16 %v1440, %v1439
      %v1467 = vpack.c.b16 %v1442, %v1441
      %v1468 = vpack.c.b16 %v1444, %v1443
      %v1469 = vpack.c.b16 %v1446, %v1445
      %v1470 = vpack.c.b16 %v1448, %v1447
      %v1471 = vpack.c.b16 %v1450, %v1449
      %v1472 = vpack.c.b16 %v1452, %v1451
      %v1473 = vpack.c.b16 %v1454, %v1453
      %v1474 = vpack.c.b16 %v1456, %v1455
      %v1475 = vpack.c.b16 %v1458, %v1457
      %v1476 = vpack.c.b16 %v1460, %v1459
      %v1478 = vsel %vm1255, %v1461, 0
      %v1481 = vsel %vm1255, %v1462, 0
      %v1484 = vsel %vm1255, %v1463, 0
      %v1487 = vsel %vm1255, %v1464, 0
      %v1490 = vsel %vm1255, %v1465, 0
      %v1493 = vsel %vm1255, %v1466, 0
      %v1496 = vsel %vm1255, %v1467, 0
      %v1499 = vsel %vm1255, %v1468, 0
      %v1502 = vsel %vm1255, %v1469, 0
      %v1505 = vsel %vm1255, %v1470, 0
      %v1508 = vsel %vm1255, %v1471, 0
      %v1511 = vsel %vm1255, %v1472, 0
      %v1514 = vsel %vm1255, %v1473, 0
      %v1517 = vsel %vm1255, %v1474, 0
      %v1520 = vsel %vm1255, %v1475, 0
      %v1523 = vsel %vm1255, %v1476, 0
      %v1526 = vsel %vm1304, %v817, 0
      %1528 = vmatpush.bf16.msra.mxu0 0
      %1529 = vmatpush.bf16.msra.mxu0 0
      %1530 = vmatpush.bf16.msra.mxu0 0
      %1531 = vmatpush.bf16.msra.mxu0 0
      %1532 = vmatpush.bf16.msra.mxu0 0
      %1533 = vmatpush.bf16.msra.mxu0 0
      %1534 = vmatpush.bf16.msra.mxu0 0
      %1535 = vmatpush.bf16.msra.mxu0 %v1526
      %1536 = vmatmul.bf16.gmra.mxu0 %v1478
      %v1537 = vpop.f32.mrf.mxu0
      %v1538 = vadd.f32 %v1318, %v1537
      %v1539 = vpop.f32.mrf.mxu0
      %v1540 = vadd.f32 %v1320, %v1539
      %1541 = vmatmul.bf16.gmra.mxu0 %v1481
      %v1542 = vpop.f32.mrf.mxu0
      %v1543 = vadd.f32 %v1323, %v1542
      %v1544 = vpop.f32.mrf.mxu0
      %v1545 = vadd.f32 %v1325, %v1544
      %1546 = vmatmul.bf16.gmra.mxu0 %v1484
      %v1547 = vpop.f32.mrf.mxu0
      %v1548 = vadd.f32 %v1328, %v1547
      %v1549 = vpop.f32.mrf.mxu0
      %v1550 = vadd.f32 %v1330, %v1549
      %1551 = vmatmul.bf16.gmra.mxu0 %v1487
      %v1552 = vpop.f32.mrf.mxu0
      %v1553 = vadd.f32 %v1333, %v1552
      %v1554 = vpop.f32.mrf.mxu0
      %v1555 = vadd.f32 %v1335, %v1554
      %1556 = vmatmul.bf16.gmra.mxu0 %v1490
      %v1557 = vpop.f32.mrf.mxu0
      %v1558 = vadd.f32 %v1338, %v1557
      %v1559 = vpop.f32.mrf.mxu0
      %v1560 = vadd.f32 %v1340, %v1559
      %1561 = vmatmul.bf16.gmra.mxu0 %v1493
      %v1562 = vpop.f32.mrf.mxu0
      %v1563 = vadd.f32 %v1343, %v1562
      %v1564 = vpop.f32.mrf.mxu0
      %v1565 = vadd.f32 %v1345, %v1564
      %1566 = vmatmul.bf16.gmra.mxu0 %v1496
      %v1567 = vpop.f32.mrf.mxu0
      %v1568 = vadd.f32 %v1348, %v1567
      %v1569 = vpop.f32.mrf.mxu0
      %v1570 = vadd.f32 %v1350, %v1569
      %1571 = vmatmul.bf16.gmra.mxu0 %v1499
      %v1572 = vpop.f32.mrf.mxu0
      %v1573 = vadd.f32 %v1353, %v1572
      %v1574 = vpop.f32.mrf.mxu0
      %v1575 = vadd.f32 %v1355, %v1574
      %1576 = vmatmul.bf16.gmra.mxu0 %v1502
      %v1577 = vpop.f32.mrf.mxu0
      %v1578 = vadd.f32 %v1358, %v1577
      %v1579 = vpop.f32.mrf.mxu0
      %v1580 = vadd.f32 %v1360, %v1579
      %1581 = vmatmul.bf16.gmra.mxu0 %v1505
      %v1582 = vpop.f32.mrf.mxu0
      %v1583 = vadd.f32 %v1363, %v1582
      %v1584 = vpop.f32.mrf.mxu0
      %v1585 = vadd.f32 %v1365, %v1584
      %1586 = vmatmul.bf16.gmra.mxu0 %v1508
      %v1587 = vpop.f32.mrf.mxu0
      %v1588 = vadd.f32 %v1368, %v1587
      %v1589 = vpop.f32.mrf.mxu0
      %v1590 = vadd.f32 %v1370, %v1589
      %1591 = vmatmul.bf16.gmra.mxu0 %v1511
      %v1592 = vpop.f32.mrf.mxu0
      %v1593 = vadd.f32 %v1373, %v1592
      %v1594 = vpop.f32.mrf.mxu0
      %v1595 = vadd.f32 %v1375, %v1594
      %1596 = vmatmul.bf16.gmra.mxu0 %v1514
      %v1597 = vpop.f32.mrf.mxu0
      %v1598 = vadd.f32 %v1378, %v1597
      %v1599 = vpop.f32.mrf.mxu0
      %v1600 = vadd.f32 %v1380, %v1599
      %1601 = vmatmul.bf16.gmra.mxu0 %v1517
      %v1602 = vpop.f32.mrf.mxu0
      %v1603 = vadd.f32 %v1383, %v1602
      %v1604 = vpop.f32.mrf.mxu0
      %v1605 = vadd.f32 %v1385, %v1604
      %1606 = vmatmul.bf16.gmra.mxu0 %v1520
      %v1607 = vpop.f32.mrf.mxu0
      %v1608 = vadd.f32 %v1388, %v1607
      %v1609 = vpop.f32.mrf.mxu0
      %v1610 = vadd.f32 %v1390, %v1609
      %1611 = vmatmul.bf16.gmra.mxu0 %v1523
      %v1612 = vpop.f32.mrf.mxu0
      %v1613 = vadd.f32 %v1393, %v1612
      %v1614 = vpop.f32.mrf.mxu0
      %v1615 = vadd.f32 %v1395, %v1614
      %1616 = vdwg.mxu0
      %vm1649 = vcmask 1042432
      %vm1650 = vcmask 1046532
      %vm1651 = vmor %vm1649, %vm1650
      %v1652 = vrot.slane %v799, 5
      %v1653 = vrot.slane %v1652, 4
      %v1654 = vrot.slane %v746, 5
      %v1655 = vsel %vm1651, %v1653, %v1654
      %v1656 = vrot.slane %v1654, 4
      %v1657 = vrot.slane %v781, 5
      %v1658 = vsel %vm1651, %v1656, %v1657
      %v1659 = vrot.slane %v800, 5
      %v1660 = vrot.slane %v1659, 4
      %v1661 = vrot.slane %v748, 5
      %v1662 = vsel %vm1651, %v1660, %v1661
      %v1663 = vrot.slane %v1661, 4
      %v1664 = vrot.slane %v782, 5
      %v1665 = vsel %vm1651, %v1663, %v1664
      %v1666 = vrot.slane %v801, 5
      %v1667 = vrot.slane %v1666, 4
      %v1668 = vrot.slane %v750, 5
      %v1669 = vsel %vm1651, %v1667, %v1668
      %v1670 = vrot.slane %v1668, 4
      %v1671 = vrot.slane %v783, 5
      %v1672 = vsel %vm1651, %v1670, %v1671
      %v1673 = vrot.slane %v802, 5
      %v1674 = vrot.slane %v1673, 4
      %v1675 = vrot.slane %v752, 5
      %v1676 = vsel %vm1651, %v1674, %v1675
      %v1677 = vrot.slane %v1675, 4
      %v1678 = vrot.slane %v784, 5
      %v1679 = vsel %vm1651, %v1677, %v1678
      %v1680 = vrot.slane %v803, 5
      %v1681 = vrot.slane %v1680, 4
      %v1682 = vrot.slane %v754, 5
      %v1683 = vsel %vm1651, %v1681, %v1682
      %v1684 = vrot.slane %v1682, 4
      %v1685 = vrot.slane %v785, 5
      %v1686 = vsel %vm1651, %v1684, %v1685
      %v1687 = vrot.slane %v804, 5
      %v1688 = vrot.slane %v1687, 4
      %v1689 = vrot.slane %v756, 5
      %v1690 = vsel %vm1651, %v1688, %v1689
      %v1691 = vrot.slane %v1689, 4
      %v1692 = vrot.slane %v786, 5
      %v1693 = vsel %vm1651, %v1691, %v1692
      %v1694 = vrot.slane %v805, 5
      %v1695 = vrot.slane %v1694, 4
      %v1696 = vrot.slane %v758, 5
      %v1697 = vsel %vm1651, %v1695, %v1696
      %v1698 = vrot.slane %v1696, 4
      %v1699 = vrot.slane %v787, 5
      %v1700 = vsel %vm1651, %v1698, %v1699
      %v1701 = vrot.slane %v806, 5
      %v1702 = vrot.slane %v1701, 4
      %v1703 = vrot.slane %v760, 5
      %v1704 = vsel %vm1651, %v1702, %v1703
      %v1705 = vrot.slane %v1703, 4
      %v1706 = vrot.slane %v788, 5
      %v1707 = vsel %vm1651, %v1705, %v1706
      %v1708 = vrot.slane %v807, 5
      %v1709 = vrot.slane %v1708, 4
      %v1710 = vrot.slane %v762, 5
      %v1711 = vsel %vm1651, %v1709, %v1710
      %v1712 = vrot.slane %v1710, 4
      %v1713 = vrot.slane %v789, 5
      %v1714 = vsel %vm1651, %v1712, %v1713
      %v1715 = vrot.slane %v808, 5
      %v1716 = vrot.slane %v1715, 4
      %v1717 = vrot.slane %v764, 5
      %v1718 = vsel %vm1651, %v1716, %v1717
      %v1719 = vrot.slane %v1717, 4
      %v1720 = vrot.slane %v790, 5
      %v1721 = vsel %vm1651, %v1719, %v1720
      %v1722 = vrot.slane %v809, 5
      %v1723 = vrot.slane %v1722, 4
      %v1724 = vrot.slane %v766, 5
      %v1725 = vsel %vm1651, %v1723, %v1724
      %v1726 = vrot.slane %v1724, 4
      %v1727 = vrot.slane %v791, 5
      %v1728 = vsel %vm1651, %v1726, %v1727
      %v1729 = vrot.slane %v810, 5
      %v1730 = vrot.slane %v1729, 4
      %v1731 = vrot.slane %v768, 5
      %v1732 = vsel %vm1651, %v1730, %v1731
      %v1733 = vrot.slane %v1731, 4
      %v1734 = vrot.slane %v792, 5
      %v1735 = vsel %vm1651, %v1733, %v1734
      %v1736 = vrot.slane %v811, 5
      %v1737 = vrot.slane %v1736, 4
      %v1738 = vrot.slane %v770, 5
      %v1739 = vsel %vm1651, %v1737, %v1738
      %v1740 = vrot.slane %v1738, 4
      %v1741 = vrot.slane %v793, 5
      %v1742 = vsel %vm1651, %v1740, %v1741
      %v1743 = vrot.slane %v812, 5
      %v1744 = vrot.slane %v1743, 4
      %v1745 = vrot.slane %v772, 5
      %v1746 = vsel %vm1651, %v1744, %v1745
      %v1747 = vrot.slane %v1745, 4
      %v1748 = vrot.slane %v794, 5
      %v1749 = vsel %vm1651, %v1747, %v1748
      %v1750 = vrot.slane %v813, 5
      %v1751 = vrot.slane %v1750, 4
      %v1752 = vrot.slane %v774, 5
      %v1753 = vsel %vm1651, %v1751, %v1752
      %v1754 = vrot.slane %v1752, 4
      %v1755 = vrot.slane %v795, 5
      %v1756 = vsel %vm1651, %v1754, %v1755
      %v1757 = vrot.slane %v814, 5
      %v1758 = vrot.slane %v1757, 4
      %v1759 = vrot.slane %v776, 5
      %v1760 = vsel %vm1651, %v1758, %v1759
      %v1761 = vrot.slane %v1759, 4
      %v1762 = vrot.slane %v796, 5
      %v1763 = vsel %vm1651, %v1761, %v1762
      %s1764 = scalar_lea.vmem %s1, 8
      %v1765 = vld [vmem:[%s1764] sm:$0xf]
      %v1766 = vunpack.c.l.b16 %v1655
      %v1767 = vunpack.c.l.b16 %v1658
      %v1768 = vunpack.c.l.b16 %v1662
      %v1769 = vunpack.c.l.b16 %v1665
      %v1770 = vunpack.c.l.b16 %v1669
      %v1771 = vunpack.c.l.b16 %v1672
      %v1772 = vunpack.c.l.b16 %v1676
      %v1773 = vunpack.c.l.b16 %v1679
      %v1774 = vunpack.c.l.b16 %v1683
      %v1775 = vunpack.c.l.b16 %v1686
      %v1776 = vunpack.c.l.b16 %v1690
      %v1777 = vunpack.c.l.b16 %v1693
      %v1778 = vunpack.c.l.b16 %v1697
      %v1779 = vunpack.c.l.b16 %v1700
      %v1780 = vunpack.c.l.b16 %v1704
      %v1781 = vunpack.c.l.b16 %v1707
      %v1782 = vunpack.c.l.b16 %v1711
      %v1783 = vunpack.c.l.b16 %v1714
      %v1784 = vunpack.c.l.b16 %v1718
      %v1785 = vunpack.c.l.b16 %v1721
      %v1786 = vunpack.c.l.b16 %v1725
      %v1787 = vunpack.c.l.b16 %v1728
      %v1788 = vunpack.c.l.b16 %v1732
      %v1789 = vunpack.c.l.b16 %v1735
      %v1790 = vunpack.c.l.b16 %v1739
      %v1791 = vunpack.c.l.b16 %v1742
      %v1792 = vunpack.c.l.b16 %v1746
      %v1793 = vunpack.c.l.b16 %v1749
      %v1794 = vunpack.c.l.b16 %v1753
      %v1795 = vunpack.c.l.b16 %v1756
      %v1796 = vunpack.c.l.b16 %v1760
      %v1797 = vunpack.c.l.b16 %v1763
      %v1798 = vpack.c.b16 %v1767, %v1766
      %v1799 = vpack.c.b16 %v1769, %v1768
      %v1800 = vpack.c.b16 %v1771, %v1770
      %v1801 = vpack.c.b16 %v1773, %v1772
      %v1802 = vpack.c.b16 %v1775, %v1774
      %v1803 = vpack.c.b16 %v1777, %v1776
      %v1804 = vpack.c.b16 %v1779, %v1778
      %v1805 = vpack.c.b16 %v1781, %v1780
      %v1806 = vpack.c.b16 %v1783, %v1782
      %v1807 = vpack.c.b16 %v1785, %v1784
      %v1808 = vpack.c.b16 %v1787, %v1786
      %v1809 = vpack.c.b16 %v1789, %v1788
      %v1810 = vpack.c.b16 %v1791, %v1790
      %v1811 = vpack.c.b16 %v1793, %v1792
      %v1812 = vpack.c.b16 %v1795, %v1794
      %v1813 = vpack.c.b16 %v1797, %v1796
      %v1815 = vsel %vm1255, %v1798, 0
      %v1818 = vsel %vm1255, %v1799, 0
      %v1821 = vsel %vm1255, %v1800, 0
      %v1824 = vsel %vm1255, %v1801, 0
      %v1827 = vsel %vm1255, %v1802, 0
      %v1830 = vsel %vm1255, %v1803, 0
      %v1833 = vsel %vm1255, %v1804, 0
      %v1836 = vsel %vm1255, %v1805, 0
      %v1839 = vsel %vm1255, %v1806, 0
      %v1842 = vsel %vm1255, %v1807, 0
      %v1845 = vsel %vm1255, %v1808, 0
      %v1848 = vsel %vm1255, %v1809, 0
      %v1851 = vsel %vm1255, %v1810, 0
      %v1854 = vsel %vm1255, %v1811, 0
      %v1857 = vsel %vm1255, %v1812, 0
      %v1860 = vsel %vm1255, %v1813, 0
      %v1863 = vsel %vm1304, %v1765, 0
      %1865 = vmatpush.bf16.msra.mxu0 0
      %1866 = vmatpush.bf16.msra.mxu0 0
      %1867 = vmatpush.bf16.msra.mxu0 0
      %1868 = vmatpush.bf16.msra.mxu0 0
      %1869 = vmatpush.bf16.msra.mxu0 0
      %1870 = vmatpush.bf16.msra.mxu0 0
      %1871 = vmatpush.bf16.msra.mxu0 0
      %1872 = vmatpush.bf16.msra.mxu0 %v1863
      %1873 = vmatmul.bf16.gmra.mxu0 %v1815
      %v1874 = vpop.f32.mrf.mxu0
      %v1875 = vadd.f32 0.0, %v1874
      %v1876 = vpop.f32.mrf.mxu0
      %v1877 = vadd.f32 0.0, %v1876
      %1878 = vmatmul.bf16.gmra.mxu0 %v1818
      %v1879 = vpop.f32.mrf.mxu0
      %v1880 = vadd.f32 0.0, %v1879
      %v1881 = vpop.f32.mrf.mxu0
      %v1882 = vadd.f32 0.0, %v1881
      %1883 = vmatmul.bf16.gmra.mxu0 %v1821
      %v1884 = vpop.f32.mrf.mxu0
      %v1885 = vadd.f32 0.0, %v1884
      %v1886 = vpop.f32.mrf.mxu0
      %v1887 = vadd.f32 0.0, %v1886
      %1888 = vmatmul.bf16.gmra.mxu0 %v1824
      %v1889 = vpop.f32.mrf.mxu0
      %v1890 = vadd.f32 0.0, %v1889
      %v1891 = vpop.f32.mrf.mxu0
      %v1892 = vadd.f32 0.0, %v1891
      %1893 = vmatmul.bf16.gmra.mxu0 %v1827
      %v1894 = vpop.f32.mrf.mxu0
      %v1895 = vadd.f32 0.0, %v1894
      %v1896 = vpop.f32.mrf.mxu0
      %v1897 = vadd.f32 0.0, %v1896
      %1898 = vmatmul.bf16.gmra.mxu0 %v1830
      %v1899 = vpop.f32.mrf.mxu0
      %v1900 = vadd.f32 0.0, %v1899
      %v1901 = vpop.f32.mrf.mxu0
      %v1902 = vadd.f32 0.0, %v1901
      %1903 = vmatmul.bf16.gmra.mxu0 %v1833
      %v1904 = vpop.f32.mrf.mxu0
      %v1905 = vadd.f32 0.0, %v1904
      %v1906 = vpop.f32.mrf.mxu0
      %v1907 = vadd.f32 0.0, %v1906
      %1908 = vmatmul.bf16.gmra.mxu0 %v1836
      %v1909 = vpop.f32.mrf.mxu0
      %v1910 = vadd.f32 0.0, %v1909
      %v1911 = vpop.f32.mrf.mxu0
      %v1912 = vadd.f32 0.0, %v1911
      %1913 = vmatmul.bf16.gmra.mxu0 %v1839
      %v1914 = vpop.f32.mrf.mxu0
      %v1915 = vadd.f32 0.0, %v1914
      %v1916 = vpop.f32.mrf.mxu0
      %v1917 = vadd.f32 0.0, %v1916
      %1918 = vmatmul.bf16.gmra.mxu0 %v1842
      %v1919 = vpop.f32.mrf.mxu0
      %v1920 = vadd.f32 0.0, %v1919
      %v1921 = vpop.f32.mrf.mxu0
      %v1922 = vadd.f32 0.0, %v1921
      %1923 = vmatmul.bf16.gmra.mxu0 %v1845
      %v1924 = vpop.f32.mrf.mxu0
      %v1925 = vadd.f32 0.0, %v1924
      %v1926 = vpop.f32.mrf.mxu0
      %v1927 = vadd.f32 0.0, %v1926
      %1928 = vmatmul.bf16.gmra.mxu0 %v1848
      %v1929 = vpop.f32.mrf.mxu0
      %v1930 = vadd.f32 0.0, %v1929
      %v1931 = vpop.f32.mrf.mxu0
      %v1932 = vadd.f32 0.0, %v1931
      %1933 = vmatmul.bf16.gmra.mxu0 %v1851
      %v1934 = vpop.f32.mrf.mxu0
      %v1935 = vadd.f32 0.0, %v1934
      %v1936 = vpop.f32.mrf.mxu0
      %v1937 = vadd.f32 0.0, %v1936
      %1938 = vmatmul.bf16.gmra.mxu0 %v1854
      %v1939 = vpop.f32.mrf.mxu0
      %v1940 = vadd.f32 0.0, %v1939
      %v1941 = vpop.f32.mrf.mxu0
      %v1942 = vadd.f32 0.0, %v1941
      %1943 = vmatmul.bf16.gmra.mxu0 %v1857
      %v1944 = vpop.f32.mrf.mxu0
      %v1945 = vadd.f32 0.0, %v1944
      %v1946 = vpop.f32.mrf.mxu0
      %v1947 = vadd.f32 0.0, %v1946
      %1948 = vmatmul.bf16.gmra.mxu0 %v1860
      %v1949 = vpop.f32.mrf.mxu0
      %v1950 = vadd.f32 0.0, %v1949
      %v1951 = vpop.f32.mrf.mxu0
      %v1952 = vadd.f32 0.0, %v1951
      %1953 = vdwg.mxu0
      %v1954 = vadd.f32 %v1538, %v1875
      %v1955 = vadd.f32 %v1540, %v1877
      %v1956 = vadd.f32 %v1543, %v1880
      %v1957 = vadd.f32 %v1545, %v1882
      %v1958 = vadd.f32 %v1548, %v1885
      %v1959 = vadd.f32 %v1550, %v1887
      %v1960 = vadd.f32 %v1553, %v1890
      %v1961 = vadd.f32 %v1555, %v1892
      %v1962 = vadd.f32 %v1558, %v1895
      %v1963 = vadd.f32 %v1560, %v1897
      %v1964 = vadd.f32 %v1563, %v1900
      %v1965 = vadd.f32 %v1565, %v1902
      %v1966 = vadd.f32 %v1568, %v1905
      %v1967 = vadd.f32 %v1570, %v1907
      %v1968 = vadd.f32 %v1573, %v1910
      %v1969 = vadd.f32 %v1575, %v1912
      %v1970 = vadd.f32 %v1578, %v1915
      %v1971 = vadd.f32 %v1580, %v1917
      %v1972 = vadd.f32 %v1583, %v1920
      %v1973 = vadd.f32 %v1585, %v1922
      %v1974 = vadd.f32 %v1588, %v1925
      %v1975 = vadd.f32 %v1590, %v1927
      %v1976 = vadd.f32 %v1593, %v1930
      %v1977 = vadd.f32 %v1595, %v1932
      %v1978 = vadd.f32 %v1598, %v1935
      %v1979 = vadd.f32 %v1600, %v1937
      %v1980 = vadd.f32 %v1603, %v1940
      %v1981 = vadd.f32 %v1605, %v1942
      %v1982 = vadd.f32 %v1608, %v1945
      %v1983 = vadd.f32 %v1610, %v1947
      %v1984 = vadd.f32 %v1613, %v1950
      %v1985 = vadd.f32 %v1615, %v1952
      %s1986 = scalar_lea.vmem %s1, 12
      %v1987 = vld [vmem:[%s1986] sm:$0xf]
      %v1990 = vunpack.c.l.b16 %v777
      %v1991 = vunpack.c.l.b16 %v778
      %v1992 = vpack.c.b16 %v1991, %v1990
      %v1994 = vsel %vm1255, %v1992, 0
      %v1997 = vsel %vm1304, %v1987, 0
      %1999 = vmatpush.bf16.msra.mxu0 0
      %2000 = vmatpush.bf16.msra.mxu0 0
      %2001 = vmatpush.bf16.msra.mxu0 0
      %2002 = vmatpush.bf16.msra.mxu0 0
      %2003 = vmatpush.bf16.msra.mxu0 0
      %2004 = vmatpush.bf16.msra.mxu0 0
      %2005 = vmatpush.bf16.msra.mxu0 0
      %2006 = vmatpush.bf16.msra.mxu0 %v1997
      %2007 = vmatmul.bf16.gmra.mxu0 %v1481
      %v2008 = vpop.f32.mrf.mxu0
      %v2009 = vadd.f32 0.0, %v2008
      %v2010 = vpop.f32.mrf.mxu0
      %v2011 = vadd.f32 0.0, %v2010
      %2012 = vmatmul.bf16.gmra.mxu0 %v1484
      %v2013 = vpop.f32.mrf.mxu0
      %v2014 = vadd.f32 0.0, %v2013
      %v2015 = vpop.f32.mrf.mxu0
      %v2016 = vadd.f32 0.0, %v2015
      %2017 = vmatmul.bf16.gmra.mxu0 %v1487
      %v2018 = vpop.f32.mrf.mxu0
      %v2019 = vadd.f32 0.0, %v2018
      %v2020 = vpop.f32.mrf.mxu0
      %v2021 = vadd.f32 0.0, %v2020
      %2022 = vmatmul.bf16.gmra.mxu0 %v1490
      %v2023 = vpop.f32.mrf.mxu0
      %v2024 = vadd.f32 0.0, %v2023
      %v2025 = vpop.f32.mrf.mxu0
      %v2026 = vadd.f32 0.0, %v2025
      %2027 = vmatmul.bf16.gmra.mxu0 %v1493
      %v2028 = vpop.f32.mrf.mxu0
      %v2029 = vadd.f32 0.0, %v2028
      %v2030 = vpop.f32.mrf.mxu0
      %v2031 = vadd.f32 0.0, %v2030
      %2032 = vmatmul.bf16.gmra.mxu0 %v1496
      %v2033 = vpop.f32.mrf.mxu0
      %v2034 = vadd.f32 0.0, %v2033
      %v2035 = vpop.f32.mrf.mxu0
      %v2036 = vadd.f32 0.0, %v2035
      %2037 = vmatmul.bf16.gmra.mxu0 %v1499
      %v2038 = vpop.f32.mrf.mxu0
      %v2039 = vadd.f32 0.0, %v2038
      %v2040 = vpop.f32.mrf.mxu0
      %v2041 = vadd.f32 0.0, %v2040
      %2042 = vmatmul.bf16.gmra.mxu0 %v1502
      %v2043 = vpop.f32.mrf.mxu0
      %v2044 = vadd.f32 0.0, %v2043
      %v2045 = vpop.f32.mrf.mxu0
      %v2046 = vadd.f32 0.0, %v2045
      %2047 = vmatmul.bf16.gmra.mxu0 %v1505
      %v2048 = vpop.f32.mrf.mxu0
      %v2049 = vadd.f32 0.0, %v2048
      %v2050 = vpop.f32.mrf.mxu0
      %v2051 = vadd.f32 0.0, %v2050
      %2052 = vmatmul.bf16.gmra.mxu0 %v1508
      %v2053 = vpop.f32.mrf.mxu0
      %v2054 = vadd.f32 0.0, %v2053
      %v2055 = vpop.f32.mrf.mxu0
      %v2056 = vadd.f32 0.0, %v2055
      %2057 = vmatmul.bf16.gmra.mxu0 %v1511
      %v2058 = vpop.f32.mrf.mxu0
      %v2059 = vadd.f32 0.0, %v2058
      %v2060 = vpop.f32.mrf.mxu0
      %v2061 = vadd.f32 0.0, %v2060
      %2062 = vmatmul.bf16.gmra.mxu0 %v1514
      %v2063 = vpop.f32.mrf.mxu0
      %v2064 = vadd.f32 0.0, %v2063
      %v2065 = vpop.f32.mrf.mxu0
      %v2066 = vadd.f32 0.0, %v2065
      %2067 = vmatmul.bf16.gmra.mxu0 %v1517
      %v2068 = vpop.f32.mrf.mxu0
      %v2069 = vadd.f32 0.0, %v2068
      %v2070 = vpop.f32.mrf.mxu0
      %v2071 = vadd.f32 0.0, %v2070
      %2072 = vmatmul.bf16.gmra.mxu0 %v1520
      %v2073 = vpop.f32.mrf.mxu0
      %v2074 = vadd.f32 0.0, %v2073
      %v2075 = vpop.f32.mrf.mxu0
      %v2076 = vadd.f32 0.0, %v2075
      %2077 = vmatmul.bf16.gmra.mxu0 %v1523
      %v2078 = vpop.f32.mrf.mxu0
      %v2079 = vadd.f32 0.0, %v2078
      %v2080 = vpop.f32.mrf.mxu0
      %v2081 = vadd.f32 0.0, %v2080
      %2082 = vmatmul.bf16.gmra.mxu0 %v1994
      %v2083 = vpop.f32.mrf.mxu0
      %v2084 = vadd.f32 0.0, %v2083
      %v2085 = vpop.f32.mrf.mxu0
      %v2086 = vadd.f32 0.0, %v2085
      %2087 = vdwg.mxu0
      %v2088 = vadd.f32 %v1954, %v2009
      %v2089 = vadd.f32 %v1955, %v2011
      %v2090 = vadd.f32 %v1956, %v2014
      %v2091 = vadd.f32 %v1957, %v2016
      %v2092 = vadd.f32 %v1958, %v2019
      %v2093 = vadd.f32 %v1959, %v2021
      %v2094 = vadd.f32 %v1960, %v2024
      %v2095 = vadd.f32 %v1961, %v2026
      %v2096 = vadd.f32 %v1962, %v2029
      %v2097 = vadd.f32 %v1963, %v2031
      %v2098 = vadd.f32 %v1964, %v2034
      %v2099 = vadd.f32 %v1965, %v2036
      %v2100 = vadd.f32 %v1966, %v2039
      %v2101 = vadd.f32 %v1967, %v2041
      %v2102 = vadd.f32 %v1968, %v2044
      %v2103 = vadd.f32 %v1969, %v2046
      %v2104 = vadd.f32 %v1970, %v2049
      %v2105 = vadd.f32 %v1971, %v2051
      %v2106 = vadd.f32 %v1972, %v2054
      %v2107 = vadd.f32 %v1973, %v2056
      %v2108 = vadd.f32 %v1974, %v2059
      %v2109 = vadd.f32 %v1975, %v2061
      %v2110 = vadd.f32 %v1976, %v2064
      %v2111 = vadd.f32 %v1977, %v2066
      %v2112 = vadd.f32 %v1978, %v2069
      %v2113 = vadd.f32 %v1979, %v2071
      %v2114 = vadd.f32 %v1980, %v2074
      %v2115 = vadd.f32 %v1981, %v2076
      %v2116 = vadd.f32 %v1982, %v2079
      %v2117 = vadd.f32 %v1983, %v2081
      %v2118 = vadd.f32 %v1984, %v2084
      %v2119 = vadd.f32 %v1985, %v2086
      %v2121 = vshrl.u32 %v777, 16
      %v2123 = vrot.slane %v2121, 4
      %v2124 = vshll.u32 %v777, 16
      %v2126 = vrot.slane %v2124, 5
      %v2127 = vor.u32 %v2123, %v2126
      %v2128 = vrot.slane %v2127, 4
      %v2130 = vshll.u32 %v778, 16
      %v2132 = vrot.slane %v2130, 5
      %v2133 = vsel %vm820, %v2128, %v2132
      %v2134 = vshrl.u32 %v778, 16
      %v2136 = vrot.slane %v2134, 4
      %v2137 = vor.u32 %v2136, %v2132
      %v2138 = vrot.slane %v2137, 4
      %v2140 = vshll.u32 %v797, 16
      %v2142 = vrot.slane %v2140, 5
      %v2143 = vsel %vm820, %v2138, %v2142
      %s2144 = scalar_lea.vmem %s1, 16
      %v2145 = vld [vmem:[%s2144] sm:$0xf]
      %v2146 = vunpack.c.l.b16 %v2133
      %v2147 = vunpack.c.l.b16 %v2143
      %v2148 = vpack.c.b16 %v2147, %v2146
      %v2150 = vsel %vm1255, %v2148, 0
      %v2153 = vsel %vm1304, %v2145, 0
      %2155 = vmatpush.bf16.msra.mxu0 0
      %2156 = vmatpush.bf16.msra.mxu0 0
      %2157 = vmatpush.bf16.msra.mxu0 0
      %2158 = vmatpush.bf16.msra.mxu0 0
      %2159 = vmatpush.bf16.msra.mxu0 0
      %2160 = vmatpush.bf16.msra.mxu0 0
      %2161 = vmatpush.bf16.msra.mxu0 0
      %2162 = vmatpush.bf16.msra.mxu0 %v2153
      %2163 = vmatmul.bf16.gmra.mxu0 %v1260
      %v2164 = vpop.f32.mrf.mxu0
      %v2165 = vadd.f32 0.0, %v2164
      %v2166 = vpop.f32.mrf.mxu0
      %v2167 = vadd.f32 0.0, %v2166
      %2168 = vmatmul.bf16.gmra.mxu0 %v1263
      %v2169 = vpop.f32.mrf.mxu0
      %v2170 = vadd.f32 0.0, %v2169
      %v2171 = vpop.f32.mrf.mxu0
      %v2172 = vadd.f32 0.0, %v2171
      %2173 = vmatmul.bf16.gmra.mxu0 %v1266
      %v2174 = vpop.f32.mrf.mxu0
      %v2175 = vadd.f32 0.0, %v2174
      %v2176 = vpop.f32.mrf.mxu0
      %v2177 = vadd.f32 0.0, %v2176
      %2178 = vmatmul.bf16.gmra.mxu0 %v1269
      %v2179 = vpop.f32.mrf.mxu0
      %v2180 = vadd.f32 0.0, %v2179
      %v2181 = vpop.f32.mrf.mxu0
      %v2182 = vadd.f32 0.0, %v2181
      %2183 = vmatmul.bf16.gmra.mxu0 %v1272
      %v2184 = vpop.f32.mrf.mxu0
      %v2185 = vadd.f32 0.0, %v2184
      %v2186 = vpop.f32.mrf.mxu0
      %v2187 = vadd.f32 0.0, %v2186
      %2188 = vmatmul.bf16.gmra.mxu0 %v1275
      %v2189 = vpop.f32.mrf.mxu0
      %v2190 = vadd.f32 0.0, %v2189
      %v2191 = vpop.f32.mrf.mxu0
      %v2192 = vadd.f32 0.0, %v2191
      %2193 = vmatmul.bf16.gmra.mxu0 %v1278
      %v2194 = vpop.f32.mrf.mxu0
      %v2195 = vadd.f32 0.0, %v2194
      %v2196 = vpop.f32.mrf.mxu0
      %v2197 = vadd.f32 0.0, %v2196
      %2198 = vmatmul.bf16.gmra.mxu0 %v1281
      %v2199 = vpop.f32.mrf.mxu0
      %v2200 = vadd.f32 0.0, %v2199
      %v2201 = vpop.f32.mrf.mxu0
      %v2202 = vadd.f32 0.0, %v2201
      %2203 = vmatmul.bf16.gmra.mxu0 %v1284
      %v2204 = vpop.f32.mrf.mxu0
      %v2205 = vadd.f32 0.0, %v2204
      %v2206 = vpop.f32.mrf.mxu0
      %v2207 = vadd.f32 0.0, %v2206
      %2208 = vmatmul.bf16.gmra.mxu0 %v1287
      %v2209 = vpop.f32.mrf.mxu0
      %v2210 = vadd.f32 0.0, %v2209
      %v2211 = vpop.f32.mrf.mxu0
      %v2212 = vadd.f32 0.0, %v2211
      %2213 = vmatmul.bf16.gmra.mxu0 %v1290
      %v2214 = vpop.f32.mrf.mxu0
      %v2215 = vadd.f32 0.0, %v2214
      %v2216 = vpop.f32.mrf.mxu0
      %v2217 = vadd.f32 0.0, %v2216
      %2218 = vmatmul.bf16.gmra.mxu0 %v1293
      %v2219 = vpop.f32.mrf.mxu0
      %v2220 = vadd.f32 0.0, %v2219
      %v2221 = vpop.f32.mrf.mxu0
      %v2222 = vadd.f32 0.0, %v2221
      %2223 = vmatmul.bf16.gmra.mxu0 %v1296
      %v2224 = vpop.f32.mrf.mxu0
      %v2225 = vadd.f32 0.0, %v2224
      %v2226 = vpop.f32.mrf.mxu0
      %v2227 = vadd.f32 0.0, %v2226
      %2228 = vmatmul.bf16.gmra.mxu0 %v1299
      %v2229 = vpop.f32.mrf.mxu0
      %v2230 = vadd.f32 0.0, %v2229
      %v2231 = vpop.f32.mrf.mxu0
      %v2232 = vadd.f32 0.0, %v2231
      %2233 = vmatmul.bf16.gmra.mxu0 %v1302
      %v2234 = vpop.f32.mrf.mxu0
      %v2235 = vadd.f32 0.0, %v2234
      %v2236 = vpop.f32.mrf.mxu0
      %v2237 = vadd.f32 0.0, %v2236
      %2238 = vmatmul.bf16.gmra.mxu0 %v2150
      %v2239 = vpop.f32.mrf.mxu0
      %v2240 = vadd.f32 0.0, %v2239
      %v2241 = vpop.f32.mrf.mxu0
      %v2242 = vadd.f32 0.0, %v2241
      %2243 = vdwg.mxu0
      %v2244 = vadd.f32 %v2088, %v2165
      %v2245 = vadd.f32 %v2089, %v2167
      %v2246 = vadd.f32 %v2090, %v2170
      %v2247 = vadd.f32 %v2091, %v2172
      %v2248 = vadd.f32 %v2092, %v2175
      %v2249 = vadd.f32 %v2093, %v2177
      %v2250 = vadd.f32 %v2094, %v2180
      %v2251 = vadd.f32 %v2095, %v2182
      %v2252 = vadd.f32 %v2096, %v2185
      %v2253 = vadd.f32 %v2097, %v2187
      %v2254 = vadd.f32 %v2098, %v2190
      %v2255 = vadd.f32 %v2099, %v2192
      %v2256 = vadd.f32 %v2100, %v2195
      %v2257 = vadd.f32 %v2101, %v2197
      %v2258 = vadd.f32 %v2102, %v2200
      %v2259 = vadd.f32 %v2103, %v2202
      %v2260 = vadd.f32 %v2104, %v2205
      %v2261 = vadd.f32 %v2105, %v2207
      %v2262 = vadd.f32 %v2106, %v2210
      %v2263 = vadd.f32 %v2107, %v2212
      %v2264 = vadd.f32 %v2108, %v2215
      %v2265 = vadd.f32 %v2109, %v2217
      %v2266 = vadd.f32 %v2110, %v2220
      %v2267 = vadd.f32 %v2111, %v2222
      %v2268 = vadd.f32 %v2112, %v2225
      %v2269 = vadd.f32 %v2113, %v2227
      %v2270 = vadd.f32 %v2114, %v2230
      %v2271 = vadd.f32 %v2115, %v2232
      %v2272 = vadd.f32 %v2116, %v2235
      %v2273 = vadd.f32 %v2117, %v2237
      %v2274 = vadd.f32 %v2118, %v2240
      %v2275 = vadd.f32 %v2119, %v2242
      %v2278 = vrot.slane %v815, 5
      %v2279 = vrot.slane %v2278, 4
      %v2280 = vrot.slane %v778, 5
      %v2281 = vsel %vm1651, %v2279, %v2280
      %v2282 = vrot.slane %v2280, 4
      %v2283 = vrot.slane %v797, 5
      %v2284 = vsel %vm1651, %v2282, %v2283
      %s2285 = scalar_lea.vmem %s1, 20
      %v2286 = vld [vmem:[%s2285] sm:$0xf]
      %v2287 = vunpack.c.l.b16 %v2281
      %v2288 = vunpack.c.l.b16 %v2284
      %v2289 = vpack.c.b16 %v2288, %v2287
      %v2291 = vsel %vm1255, %v2289, 0
      %v2294 = vsel %vm1304, %v2286, 0
      %2296 = vmatpush.bf16.msra.mxu0 0
      %2297 = vmatpush.bf16.msra.mxu0 0
      %2298 = vmatpush.bf16.msra.mxu0 0
      %2299 = vmatpush.bf16.msra.mxu0 0
      %2300 = vmatpush.bf16.msra.mxu0 0
      %2301 = vmatpush.bf16.msra.mxu0 0
      %2302 = vmatpush.bf16.msra.mxu0 0
      %2303 = vmatpush.bf16.msra.mxu0 %v2294
      %2304 = vmatmul.bf16.gmra.mxu0 %v1818
      %v2305 = vpop.f32.mrf.mxu0
      %v2306 = vadd.f32 0.0, %v2305
      %v2307 = vpop.f32.mrf.mxu0
      %v2308 = vadd.f32 0.0, %v2307
      %2309 = vmatmul.bf16.gmra.mxu0 %v1821
      %v2310 = vpop.f32.mrf.mxu0
      %v2311 = vadd.f32 0.0, %v2310
      %v2312 = vpop.f32.mrf.mxu0
      %v2313 = vadd.f32 0.0, %v2312
      %2314 = vmatmul.bf16.gmra.mxu0 %v1824
      %v2315 = vpop.f32.mrf.mxu0
      %v2316 = vadd.f32 0.0, %v2315
      %v2317 = vpop.f32.mrf.mxu0
      %v2318 = vadd.f32 0.0, %v2317
      %2319 = vmatmul.bf16.gmra.mxu0 %v1827
      %v2320 = vpop.f32.mrf.mxu0
      %v2321 = vadd.f32 0.0, %v2320
      %v2322 = vpop.f32.mrf.mxu0
      %v2323 = vadd.f32 0.0, %v2322
      %2324 = vmatmul.bf16.gmra.mxu0 %v1830
      %v2325 = vpop.f32.mrf.mxu0
      %v2326 = vadd.f32 0.0, %v2325
      %v2327 = vpop.f32.mrf.mxu0
      %v2328 = vadd.f32 0.0, %v2327
      %2329 = vmatmul.bf16.gmra.mxu0 %v1833
      %v2330 = vpop.f32.mrf.mxu0
      %v2331 = vadd.f32 0.0, %v2330
      %v2332 = vpop.f32.mrf.mxu0
      %v2333 = vadd.f32 0.0, %v2332
      %2334 = vmatmul.bf16.gmra.mxu0 %v1836
      %v2335 = vpop.f32.mrf.mxu0
      %v2336 = vadd.f32 0.0, %v2335
      %v2337 = vpop.f32.mrf.mxu0
      %v2338 = vadd.f32 0.0, %v2337
      %2339 = vmatmul.bf16.gmra.mxu0 %v1839
      %v2340 = vpop.f32.mrf.mxu0
      %v2341 = vadd.f32 0.0, %v2340
      %v2342 = vpop.f32.mrf.mxu0
      %v2343 = vadd.f32 0.0, %v2342
      %2344 = vmatmul.bf16.gmra.mxu0 %v1842
      %v2345 = vpop.f32.mrf.mxu0
      %v2346 = vadd.f32 0.0, %v2345
      %v2347 = vpop.f32.mrf.mxu0
      %v2348 = vadd.f32 0.0, %v2347
      %2349 = vmatmul.bf16.gmra.mxu0 %v1845
      %v2350 = vpop.f32.mrf.mxu0
      %v2351 = vadd.f32 0.0, %v2350
      %v2352 = vpop.f32.mrf.mxu0
      %v2353 = vadd.f32 0.0, %v2352
      %2354 = vmatmul.bf16.gmra.mxu0 %v1848
      %v2355 = vpop.f32.mrf.mxu0
      %v2356 = vadd.f32 0.0, %v2355
      %v2357 = vpop.f32.mrf.mxu0
      %v2358 = vadd.f32 0.0, %v2357
      %2359 = vmatmul.bf16.gmra.mxu0 %v1851
      %v2360 = vpop.f32.mrf.mxu0
      %v2361 = vadd.f32 0.0, %v2360
      %v2362 = vpop.f32.mrf.mxu0
      %v2363 = vadd.f32 0.0, %v2362
      %2364 = vmatmul.bf16.gmra.mxu0 %v1854
      %v2365 = vpop.f32.mrf.mxu0
      %v2366 = vadd.f32 0.0, %v2365
      %v2367 = vpop.f32.mrf.mxu0
      %v2368 = vadd.f32 0.0, %v2367
      %2369 = vmatmul.bf16.gmra.mxu0 %v1857
      %v2370 = vpop.f32.mrf.mxu0
      %v2371 = vadd.f32 0.0, %v2370
      %v2372 = vpop.f32.mrf.mxu0
      %v2373 = vadd.f32 0.0, %v2372
      %2374 = vmatmul.bf16.gmra.mxu0 %v1860
      %v2375 = vpop.f32.mrf.mxu0
      %v2376 = vadd.f32 0.0, %v2375
      %v2377 = vpop.f32.mrf.mxu0
      %v2378 = vadd.f32 0.0, %v2377
      %2379 = vmatmul.bf16.gmra.mxu0 %v2291
      %v2380 = vpop.f32.mrf.mxu0
      %v2381 = vadd.f32 0.0, %v2380
      %v2382 = vpop.f32.mrf.mxu0
      %v2383 = vadd.f32 0.0, %v2382
      %2384 = vdwg.mxu0
      %v2385 = vadd.f32 %v2244, %v2306
      %v2386 = vadd.f32 %v2245, %v2308
      %v2387 = vadd.f32 %v2246, %v2311
      %v2388 = vadd.f32 %v2247, %v2313
      %v2389 = vadd.f32 %v2248, %v2316
      %v2390 = vadd.f32 %v2249, %v2318
      %v2391 = vadd.f32 %v2250, %v2321
      %v2392 = vadd.f32 %v2251, %v2323
      %v2393 = vadd.f32 %v2252, %v2326
      %v2394 = vadd.f32 %v2253, %v2328
      %v2395 = vadd.f32 %v2254, %v2331
      %v2396 = vadd.f32 %v2255, %v2333
      %v2397 = vadd.f32 %v2256, %v2336
      %v2398 = vadd.f32 %v2257, %v2338
      %v2399 = vadd.f32 %v2258, %v2341
      %v2400 = vadd.f32 %v2259, %v2343
      %v2401 = vadd.f32 %v2260, %v2346
      %v2402 = vadd.f32 %v2261, %v2348
      %v2403 = vadd.f32 %v2262, %v2351
      %v2404 = vadd.f32 %v2263, %v2353
      %v2405 = vadd.f32 %v2264, %v2356
      %v2406 = vadd.f32 %v2265, %v2358
      %v2407 = vadd.f32 %v2266, %v2361
      %v2408 = vadd.f32 %v2267, %v2363
      %v2409 = vadd.f32 %v2268, %v2366
      %v2410 = vadd.f32 %v2269, %v2368
      %v2411 = vadd.f32 %v2270, %v2371
      %v2412 = vadd.f32 %v2271, %v2373
      %v2413 = vadd.f32 %v2272, %v2376
      %v2414 = vadd.f32 %v2273, %v2378
      %v2415 = vadd.f32 %v2274, %v2381
      %v2416 = vadd.f32 %v2275, %v2383
      %s2417 = scalar_lea.vmem %s1, 24
      %v2418 = vld [vmem:[%s2417] sm:$0xf]
      %v2421 = vunpack.c.l.b16 %v779
      %v2422 = vunpack.c.l.b16 %v780
      %v2423 = vpack.c.b16 %v2422, %v2421
      %v2425 = vsel %vm1255, %v2423, 0
      %v2428 = vsel %vm1304, %v2418, 0
      %2430 = vmatpush.bf16.msra.mxu0 0
      %2431 = vmatpush.bf16.msra.mxu0 0
      %2432 = vmatpush.bf16.msra.mxu0 0
      %2433 = vmatpush.bf16.msra.mxu0 0
      %2434 = vmatpush.bf16.msra.mxu0 0
      %2435 = vmatpush.bf16.msra.mxu0 0
      %2436 = vmatpush.bf16.msra.mxu0 0
      %2437 = vmatpush.bf16.msra.mxu0 %v2428
      %2438 = vmatmul.bf16.gmra.mxu0 %v1484
      %v2439 = vpop.f32.mrf.mxu0
      %v2440 = vadd.f32 0.0, %v2439
      %v2441 = vpop.f32.mrf.mxu0
      %v2442 = vadd.f32 0.0, %v2441
      %2443 = vmatmul.bf16.gmra.mxu0 %v1487
      %v2444 = vpop.f32.mrf.mxu0
      %v2445 = vadd.f32 0.0, %v2444
      %v2446 = vpop.f32.mrf.mxu0
      %v2447 = vadd.f32 0.0, %v2446
      %2448 = vmatmul.bf16.gmra.mxu0 %v1490
      %v2449 = vpop.f32.mrf.mxu0
      %v2450 = vadd.f32 0.0, %v2449
      %v2451 = vpop.f32.mrf.mxu0
      %v2452 = vadd.f32 0.0, %v2451
      %2453 = vmatmul.bf16.gmra.mxu0 %v1493
      %v2454 = vpop.f32.mrf.mxu0
      %v2455 = vadd.f32 0.0, %v2454
      %v2456 = vpop.f32.mrf.mxu0
      %v2457 = vadd.f32 0.0, %v2456
      %2458 = vmatmul.bf16.gmra.mxu0 %v1496
      %v2459 = vpop.f32.mrf.mxu0
      %v2460 = vadd.f32 0.0, %v2459
      %v2461 = vpop.f32.mrf.mxu0
      %v2462 = vadd.f32 0.0, %v2461
      %2463 = vmatmul.bf16.gmra.mxu0 %v1499
      %v2464 = vpop.f32.mrf.mxu0
      %v2465 = vadd.f32 0.0, %v2464
      %v2466 = vpop.f32.mrf.mxu0
      %v2467 = vadd.f32 0.0, %v2466
      %2468 = vmatmul.bf16.gmra.mxu0 %v1502
      %v2469 = vpop.f32.mrf.mxu0
      %v2470 = vadd.f32 0.0, %v2469
      %v2471 = vpop.f32.mrf.mxu0
      %v2472 = vadd.f32 0.0, %v2471
      %2473 = vmatmul.bf16.gmra.mxu0 %v1505
      %v2474 = vpop.f32.mrf.mxu0
      %v2475 = vadd.f32 0.0, %v2474
      %v2476 = vpop.f32.mrf.mxu0
      %v2477 = vadd.f32 0.0, %v2476
      %2478 = vmatmul.bf16.gmra.mxu0 %v1508
      %v2479 = vpop.f32.mrf.mxu0
      %v2480 = vadd.f32 0.0, %v2479
      %v2481 = vpop.f32.mrf.mxu0
      %v2482 = vadd.f32 0.0, %v2481
      %2483 = vmatmul.bf16.gmra.mxu0 %v1511
      %v2484 = vpop.f32.mrf.mxu0
      %v2485 = vadd.f32 0.0, %v2484
      %v2486 = vpop.f32.mrf.mxu0
      %v2487 = vadd.f32 0.0, %v2486
      %2488 = vmatmul.bf16.gmra.mxu0 %v1514
      %v2489 = vpop.f32.mrf.mxu0
      %v2490 = vadd.f32 0.0, %v2489
      %v2491 = vpop.f32.mrf.mxu0
      %v2492 = vadd.f32 0.0, %v2491
      %2493 = vmatmul.bf16.gmra.mxu0 %v1517
      %v2494 = vpop.f32.mrf.mxu0
      %v2495 = vadd.f32 0.0, %v2494
      %v2496 = vpop.f32.mrf.mxu0
      %v2497 = vadd.f32 0.0, %v2496
      %2498 = vmatmul.bf16.gmra.mxu0 %v1520
      %v2499 = vpop.f32.mrf.mxu0
      %v2500 = vadd.f32 0.0, %v2499
      %v2501 = vpop.f32.mrf.mxu0
      %v2502 = vadd.f32 0.0, %v2501
      %2503 = vmatmul.bf16.gmra.mxu0 %v1523
      %v2504 = vpop.f32.mrf.mxu0
      %v2505 = vadd.f32 0.0, %v2504
      %v2506 = vpop.f32.mrf.mxu0
      %v2507 = vadd.f32 0.0, %v2506
      %2508 = vmatmul.bf16.gmra.mxu0 %v1994
      %v2509 = vpop.f32.mrf.mxu0
      %v2510 = vadd.f32 0.0, %v2509
      %v2511 = vpop.f32.mrf.mxu0
      %v2512 = vadd.f32 0.0, %v2511
      %2513 = vmatmul.bf16.gmra.mxu0 %v2425
      %v2514 = vpop.f32.mrf.mxu0
      %v2515 = vadd.f32 0.0, %v2514
      %v2516 = vpop.f32.mrf.mxu0
      %v2517 = vadd.f32 0.0, %v2516
      %2518 = vdwg.mxu0
      %v2519 = vadd.f32 %v2385, %v2440
      %v2520 = vadd.f32 %v2386, %v2442
      %v2521 = vadd.f32 %v2387, %v2445
      %v2522 = vadd.f32 %v2388, %v2447
      %v2523 = vadd.f32 %v2389, %v2450
      %v2524 = vadd.f32 %v2390, %v2452
      %v2525 = vadd.f32 %v2391, %v2455
      %v2526 = vadd.f32 %v2392, %v2457
      %v2527 = vadd.f32 %v2393, %v2460
      %v2528 = vadd.f32 %v2394, %v2462
      %v2529 = vadd.f32 %v2395, %v2465
      %v2530 = vadd.f32 %v2396, %v2467
      %v2531 = vadd.f32 %v2397, %v2470
      %v2532 = vadd.f32 %v2398, %v2472
      %v2533 = vadd.f32 %v2399, %v2475
      %v2534 = vadd.f32 %v2400, %v2477
      %v2535 = vadd.f32 %v2401, %v2480
      %v2536 = vadd.f32 %v2402, %v2482
      %v2537 = vadd.f32 %v2403, %v2485
      %v2538 = vadd.f32 %v2404, %v2487
      %v2539 = vadd.f32 %v2405, %v2490
      %v2540 = vadd.f32 %v2406, %v2492
      %v2541 = vadd.f32 %v2407, %v2495
      %v2542 = vadd.f32 %v2408, %v2497
      %v2543 = vadd.f32 %v2409, %v2500
      %v2544 = vadd.f32 %v2410, %v2502
      %v2545 = vadd.f32 %v2411, %v2505
      %v2546 = vadd.f32 %v2412, %v2507
      %v2547 = vadd.f32 %v2413, %v2510
      %v2548 = vadd.f32 %v2414, %v2512
      %v2549 = vadd.f32 %v2415, %v2515
      %v2550 = vadd.f32 %v2416, %v2517
      %v2552 = vshrl.u32 %v779, 16
      %v2554 = vrot.slane %v2552, 4
      %v2555 = vshll.u32 %v779, 16
      %v2557 = vrot.slane %v2555, 5
      %v2558 = vor.u32 %v2554, %v2557
      %v2559 = vrot.slane %v2558, 4
      %v2561 = vshll.u32 %v780, 16
      %v2563 = vrot.slane %v2561, 5
      %v2564 = vsel %vm820, %v2559, %v2563
      %v2565 = vshrl.u32 %v780, 16
      %v2567 = vrot.slane %v2565, 4
      %v2568 = vor.u32 %v2567, %v2563
      %v2569 = vrot.slane %v2568, 4
      %v2571 = vshll.u32 %v798, 16
      %v2573 = vrot.slane %v2571, 5
      %v2574 = vsel %vm820, %v2569, %v2573
      %s2575 = scalar_lea.vmem %s1, 28
      %v2576 = vld [vmem:[%s2575] sm:$0xf]
      %v2577 = vunpack.c.l.b16 %v2564
      %v2578 = vunpack.c.l.b16 %v2574
      %v2579 = vpack.c.b16 %v2578, %v2577
      %v2581 = vsel %vm1255, %v2579, 0
      %v2584 = vsel %vm1304, %v2576, 0
      %2586 = vmatpush.bf16.msra.mxu0 0
      %2587 = vmatpush.bf16.msra.mxu0 0
      %2588 = vmatpush.bf16.msra.mxu0 0
      %2589 = vmatpush.bf16.msra.mxu0 0
      %2590 = vmatpush.bf16.msra.mxu0 0
      %2591 = vmatpush.bf16.msra.mxu0 0
      %2592 = vmatpush.bf16.msra.mxu0 0
      %2593 = vmatpush.bf16.msra.mxu0 %v2584
      %2594 = vmatmul.bf16.gmra.mxu0 %v1263
      %v2595 = vpop.f32.mrf.mxu0
      %v2596 = vadd.f32 0.0, %v2595
      %v2597 = vpop.f32.mrf.mxu0
      %v2598 = vadd.f32 0.0, %v2597
      %2599 = vmatmul.bf16.gmra.mxu0 %v1266
      %v2600 = vpop.f32.mrf.mxu0
      %v2601 = vadd.f32 0.0, %v2600
      %v2602 = vpop.f32.mrf.mxu0
      %v2603 = vadd.f32 0.0, %v2602
      %2604 = vmatmul.bf16.gmra.mxu0 %v1269
      %v2605 = vpop.f32.mrf.mxu0
      %v2606 = vadd.f32 0.0, %v2605
      %v2607 = vpop.f32.mrf.mxu0
      %v2608 = vadd.f32 0.0, %v2607
      %2609 = vmatmul.bf16.gmra.mxu0 %v1272
      %v2610 = vpop.f32.mrf.mxu0
      %v2611 = vadd.f32 0.0, %v2610
      %v2612 = vpop.f32.mrf.mxu0
      %v2613 = vadd.f32 0.0, %v2612
      %2614 = vmatmul.bf16.gmra.mxu0 %v1275
      %v2615 = vpop.f32.mrf.mxu0
      %v2616 = vadd.f32 0.0, %v2615
      %v2617 = vpop.f32.mrf.mxu0
      %v2618 = vadd.f32 0.0, %v2617
      %2619 = vmatmul.bf16.gmra.mxu0 %v1278
      %v2620 = vpop.f32.mrf.mxu0
      %v2621 = vadd.f32 0.0, %v2620
      %v2622 = vpop.f32.mrf.mxu0
      %v2623 = vadd.f32 0.0, %v2622
      %2624 = vmatmul.bf16.gmra.mxu0 %v1281
      %v2625 = vpop.f32.mrf.mxu0
      %v2626 = vadd.f32 0.0, %v2625
      %v2627 = vpop.f32.mrf.mxu0
      %v2628 = vadd.f32 0.0, %v2627
      %2629 = vmatmul.bf16.gmra.mxu0 %v1284
      %v2630 = vpop.f32.mrf.mxu0
      %v2631 = vadd.f32 0.0, %v2630
      %v2632 = vpop.f32.mrf.mxu0
      %v2633 = vadd.f32 0.0, %v2632
      %2634 = vmatmul.bf16.gmra.mxu0 %v1287
      %v2635 = vpop.f32.mrf.mxu0
      %v2636 = vadd.f32 0.0, %v2635
      %v2637 = vpop.f32.mrf.mxu0
      %v2638 = vadd.f32 0.0, %v2637
      %2639 = vmatmul.bf16.gmra.mxu0 %v1290
      %v2640 = vpop.f32.mrf.mxu0
      %v2641 = vadd.f32 0.0, %v2640
      %v2642 = vpop.f32.mrf.mxu0
      %v2643 = vadd.f32 0.0, %v2642
      %2644 = vmatmul.bf16.gmra.mxu0 %v1293
      %v2645 = vpop.f32.mrf.mxu0
      %v2646 = vadd.f32 0.0, %v2645
      %v2647 = vpop.f32.mrf.mxu0
      %v2648 = vadd.f32 0.0, %v2647
      %2649 = vmatmul.bf16.gmra.mxu0 %v1296
      %v2650 = vpop.f32.mrf.mxu0
      %v2651 = vadd.f32 0.0, %v2650
      %v2652 = vpop.f32.mrf.mxu0
      %v2653 = vadd.f32 0.0, %v2652
      %2654 = vmatmul.bf16.gmra.mxu0 %v1299
      %v2655 = vpop.f32.mrf.mxu0
      %v2656 = vadd.f32 0.0, %v2655
      %v2657 = vpop.f32.mrf.mxu0
      %v2658 = vadd.f32 0.0, %v2657
      %2659 = vmatmul.bf16.gmra.mxu0 %v1302
      %v2660 = vpop.f32.mrf.mxu0
      %v2661 = vadd.f32 0.0, %v2660
      %v2662 = vpop.f32.mrf.mxu0
      %v2663 = vadd.f32 0.0, %v2662
      %2664 = vmatmul.bf16.gmra.mxu0 %v2150
      %v2665 = vpop.f32.mrf.mxu0
      %v2666 = vadd.f32 0.0, %v2665
      %v2667 = vpop.f32.mrf.mxu0
      %v2668 = vadd.f32 0.0, %v2667
      %2669 = vmatmul.bf16.gmra.mxu0 %v2581
      %v2670 = vpop.f32.mrf.mxu0
      %v2671 = vadd.f32 0.0, %v2670
      %v2672 = vpop.f32.mrf.mxu0
      %v2673 = vadd.f32 0.0, %v2672
      %2674 = vdwg.mxu0
      %v2675 = vadd.f32 %v2519, %v2596
      %v2676 = vadd.f32 %v2520, %v2598
      %v2677 = vadd.f32 %v2521, %v2601
      %v2678 = vadd.f32 %v2522, %v2603
      %v2679 = vadd.f32 %v2523, %v2606
      %v2680 = vadd.f32 %v2524, %v2608
      %v2681 = vadd.f32 %v2525, %v2611
      %v2682 = vadd.f32 %v2526, %v2613
      %v2683 = vadd.f32 %v2527, %v2616
      %v2684 = vadd.f32 %v2528, %v2618
      %v2685 = vadd.f32 %v2529, %v2621
      %v2686 = vadd.f32 %v2530, %v2623
      %v2687 = vadd.f32 %v2531, %v2626
      %v2688 = vadd.f32 %v2532, %v2628
      %v2689 = vadd.f32 %v2533, %v2631
      %v2690 = vadd.f32 %v2534, %v2633
      %v2691 = vadd.f32 %v2535, %v2636
      %v2692 = vadd.f32 %v2536, %v2638
      %v2693 = vadd.f32 %v2537, %v2641
      %v2694 = vadd.f32 %v2538, %v2643
      %v2695 = vadd.f32 %v2539, %v2646
      %v2696 = vadd.f32 %v2540, %v2648
      %v2697 = vadd.f32 %v2541, %v2651
      %v2698 = vadd.f32 %v2542, %v2653
      %v2699 = vadd.f32 %v2543, %v2656
      %v2700 = vadd.f32 %v2544, %v2658
      %v2701 = vadd.f32 %v2545, %v2661
      %v2702 = vadd.f32 %v2546, %v2663
      %v2703 = vadd.f32 %v2547, %v2666
      %v2704 = vadd.f32 %v2548, %v2668
      %v2705 = vadd.f32 %v2549, %v2671
      %v2706 = vadd.f32 %v2550, %v2673
      %v2709 = vrot.slane %v816, 5
      %v2710 = vrot.slane %v2709, 4
      %v2711 = vrot.slane %v780, 5
      %v2712 = vsel %vm1651, %v2710, %v2711
      %v2713 = vrot.slane %v2711, 4
      %v2714 = vrot.slane %v798, 5
      %v2715 = vsel %vm1651, %v2713, %v2714
      %s2716 = scalar_lea.vmem %s1, 32
      %v2717 = vld [vmem:[%s2716] sm:$0xf]
      %v2718 = vunpack.c.l.b16 %v2712
      %v2719 = vunpack.c.l.b16 %v2715
      %v2720 = vpack.c.b16 %v2719, %v2718
      %v2722 = vsel %vm1255, %v2720, 0
      %v2725 = vsel %vm1304, %v2717, 0
      %2727 = vmatpush.bf16.msra.mxu0 0
      %2728 = vmatpush.bf16.msra.mxu0 0
      %2729 = vmatpush.bf16.msra.mxu0 0
      %2730 = vmatpush.bf16.msra.mxu0 0
      %2731 = vmatpush.bf16.msra.mxu0 0
      %2732 = vmatpush.bf16.msra.mxu0 0
      %2733 = vmatpush.bf16.msra.mxu0 0
      %2734 = vmatpush.bf16.msra.mxu0 %v2725
      %2735 = vmatmul.bf16.gmra.mxu0 %v1821
      %v2736 = vpop.f32.mrf.mxu0
      %v2737 = vadd.f32 0.0, %v2736
      %v2738 = vpop.f32.mrf.mxu0
      %v2739 = vadd.f32 0.0, %v2738
      %2740 = vmatmul.bf16.gmra.mxu0 %v1824
      %v2741 = vpop.f32.mrf.mxu0
      %v2742 = vadd.f32 0.0, %v2741
      %v2743 = vpop.f32.mrf.mxu0
      %v2744 = vadd.f32 0.0, %v2743
      %2745 = vmatmul.bf16.gmra.mxu0 %v1827
      %v2746 = vpop.f32.mrf.mxu0
      %v2747 = vadd.f32 0.0, %v2746
      %v2748 = vpop.f32.mrf.mxu0
      %v2749 = vadd.f32 0.0, %v2748
      %2750 = vmatmul.bf16.gmra.mxu0 %v1830
      %v2751 = vpop.f32.mrf.mxu0
      %v2752 = vadd.f32 0.0, %v2751
      %v2753 = vpop.f32.mrf.mxu0
      %v2754 = vadd.f32 0.0, %v2753
      %2755 = vmatmul.bf16.gmra.mxu0 %v1833
      %v2756 = vpop.f32.mrf.mxu0
      %v2757 = vadd.f32 0.0, %v2756
      %v2758 = vpop.f32.mrf.mxu0
      %v2759 = vadd.f32 0.0, %v2758
      %2760 = vmatmul.bf16.gmra.mxu0 %v1836
      %v2761 = vpop.f32.mrf.mxu0
      %v2762 = vadd.f32 0.0, %v2761
      %v2763 = vpop.f32.mrf.mxu0
      %v2764 = vadd.f32 0.0, %v2763
      %2765 = vmatmul.bf16.gmra.mxu0 %v1839
      %v2766 = vpop.f32.mrf.mxu0
      %v2767 = vadd.f32 0.0, %v2766
      %v2768 = vpop.f32.mrf.mxu0
      %v2769 = vadd.f32 0.0, %v2768
      %2770 = vmatmul.bf16.gmra.mxu0 %v1842
      %v2771 = vpop.f32.mrf.mxu0
      %v2772 = vadd.f32 0.0, %v2771
      %v2773 = vpop.f32.mrf.mxu0
      %v2774 = vadd.f32 0.0, %v2773
      %2775 = vmatmul.bf16.gmra.mxu0 %v1845
      %v2776 = vpop.f32.mrf.mxu0
      %v2777 = vadd.f32 0.0, %v2776
      %v2778 = vpop.f32.mrf.mxu0
      %v2779 = vadd.f32 0.0, %v2778
      %2780 = vmatmul.bf16.gmra.mxu0 %v1848
      %v2781 = vpop.f32.mrf.mxu0
      %v2782 = vadd.f32 0.0, %v2781
      %v2783 = vpop.f32.mrf.mxu0
      %v2784 = vadd.f32 0.0, %v2783
      %2785 = vmatmul.bf16.gmra.mxu0 %v1851
      %v2786 = vpop.f32.mrf.mxu0
      %v2787 = vadd.f32 0.0, %v2786
      %v2788 = vpop.f32.mrf.mxu0
      %v2789 = vadd.f32 0.0, %v2788
      %2790 = vmatmul.bf16.gmra.mxu0 %v1854
      %v2791 = vpop.f32.mrf.mxu0
      %v2792 = vadd.f32 0.0, %v2791
      %v2793 = vpop.f32.mrf.mxu0
      %v2794 = vadd.f32 0.0, %v2793
      %2795 = vmatmul.bf16.gmra.mxu0 %v1857
      %v2796 = vpop.f32.mrf.mxu0
      %v2797 = vadd.f32 0.0, %v2796
      %v2798 = vpop.f32.mrf.mxu0
      %v2799 = vadd.f32 0.0, %v2798
      %2800 = vmatmul.bf16.gmra.mxu0 %v1860
      %v2801 = vpop.f32.mrf.mxu0
      %v2802 = vadd.f32 0.0, %v2801
      %v2803 = vpop.f32.mrf.mxu0
      %v2804 = vadd.f32 0.0, %v2803
      %2805 = vmatmul.bf16.gmra.mxu0 %v2291
      %v2806 = vpop.f32.mrf.mxu0
      %v2807 = vadd.f32 0.0, %v2806
      %v2808 = vpop.f32.mrf.mxu0
      %v2809 = vadd.f32 0.0, %v2808
      %2810 = vmatmul.bf16.gmra.mxu0 %v2722
      %v2811 = vpop.f32.mrf.mxu0
      %v2812 = vadd.f32 0.0, %v2811
      %v2813 = vpop.f32.mrf.mxu0
      %v2814 = vadd.f32 0.0, %v2813
      %2815 = vdwg.mxu0
      %v2816 = vadd.f32 %v2675, %v2737
      %v2817 = vadd.f32 %v2676, %v2739
      %v2818 = vadd.f32 %v2677, %v2742
      %v2819 = vadd.f32 %v2678, %v2744
      %v2820 = vadd.f32 %v2679, %v2747
      %v2821 = vadd.f32 %v2680, %v2749
      %v2822 = vadd.f32 %v2681, %v2752
      %v2823 = vadd.f32 %v2682, %v2754
      %v2824 = vadd.f32 %v2683, %v2757
      %v2825 = vadd.f32 %v2684, %v2759
      %v2826 = vadd.f32 %v2685, %v2762
      %v2827 = vadd.f32 %v2686, %v2764
      %v2828 = vadd.f32 %v2687, %v2767
      %v2829 = vadd.f32 %v2688, %v2769
      %v2830 = vadd.f32 %v2689, %v2772
      %v2831 = vadd.f32 %v2690, %v2774
      %v2832 = vadd.f32 %v2691, %v2777
      %v2833 = vadd.f32 %v2692, %v2779
      %v2834 = vadd.f32 %v2693, %v2782
      %v2835 = vadd.f32 %v2694, %v2784
      %v2836 = vadd.f32 %v2695, %v2787
      %v2837 = vadd.f32 %v2696, %v2789
      %v2838 = vadd.f32 %v2697, %v2792
      %v2839 = vadd.f32 %v2698, %v2794
      %v2840 = vadd.f32 %v2699, %v2797
      %v2841 = vadd.f32 %v2700, %v2799
      %v2842 = vadd.f32 %v2701, %v2802
      %v2843 = vadd.f32 %v2702, %v2804
      %v2844 = vadd.f32 %v2703, %v2807
      %v2845 = vadd.f32 %v2704, %v2809
      %v2846 = vadd.f32 %v2705, %v2812
      %v2847 = vadd.f32 %v2706, %v2814
      %v2848 = vsel %vm1255, %v2816, 0.0
      %v2849 = vsel %vm1255, %v2817, 0.0
      %v2850 = vadd.f32 %v2848, %v2849
      %v2851 = vsel %vm1255, %v2818, 0.0
      %v2852 = vadd.f32 %v2850, %v2851
      %v2853 = vsel %vm1255, %v2819, 0.0
      %v2854 = vadd.f32 %v2852, %v2853
      %v2855 = vsel %vm1255, %v2820, 0.0
      %v2856 = vadd.f32 %v2854, %v2855
      %v2857 = vsel %vm1255, %v2821, 0.0
      %v2858 = vadd.f32 %v2856, %v2857
      %v2859 = vsel %vm1255, %v2822, 0.0
      %v2860 = vadd.f32 %v2858, %v2859
      %v2861 = vsel %vm1255, %v2823, 0.0
      %v2862 = vadd.f32 %v2860, %v2861
      %v2863 = vsel %vm1255, %v2824, 0.0
      %v2864 = vadd.f32 %v2862, %v2863
      %v2865 = vsel %vm1255, %v2825, 0.0
      %v2866 = vadd.f32 %v2864, %v2865
      %v2867 = vsel %vm1255, %v2826, 0.0
      %v2868 = vadd.f32 %v2866, %v2867
      %v2869 = vsel %vm1255, %v2827, 0.0
      %v2870 = vadd.f32 %v2868, %v2869
      %v2871 = vsel %vm1255, %v2828, 0.0
      %v2872 = vadd.f32 %v2870, %v2871
      %v2873 = vsel %vm1255, %v2829, 0.0
      %v2874 = vadd.f32 %v2872, %v2873
      %v2875 = vsel %vm1255, %v2830, 0.0
      %v2876 = vadd.f32 %v2874, %v2875
      %v2877 = vsel %vm1255, %v2831, 0.0
      %v2878 = vadd.f32 %v2876, %v2877
      %v2879 = vsel %vm1255, %v2832, 0.0
      %v2880 = vadd.f32 %v2878, %v2879
      %v2881 = vsel %vm1255, %v2833, 0.0
      %v2882 = vadd.f32 %v2880, %v2881
      %v2883 = vsel %vm1255, %v2834, 0.0
      %v2884 = vadd.f32 %v2882, %v2883
      %v2885 = vsel %vm1255, %v2835, 0.0
      %v2886 = vadd.f32 %v2884, %v2885
      %v2887 = vsel %vm1255, %v2836, 0.0
      %v2888 = vadd.f32 %v2886, %v2887
      %v2889 = vsel %vm1255, %v2837, 0.0
      %v2890 = vadd.f32 %v2888, %v2889
      %v2891 = vsel %vm1255, %v2838, 0.0
      %v2892 = vadd.f32 %v2890, %v2891
      %v2893 = vsel %vm1255, %v2839, 0.0
      %v2894 = vadd.f32 %v2892, %v2893
      %v2895 = vsel %vm1255, %v2840, 0.0
      %v2896 = vadd.f32 %v2894, %v2895
      %v2897 = vsel %vm1255, %v2841, 0.0
      %v2898 = vadd.f32 %v2896, %v2897
      %v2899 = vsel %vm1255, %v2842, 0.0
      %v2900 = vadd.f32 %v2898, %v2899
      %v2901 = vsel %vm1255, %v2843, 0.0
      %v2902 = vadd.f32 %v2900, %v2901
      %v2903 = vsel %vm1255, %v2844, 0.0
      %v2904 = vadd.f32 %v2902, %v2903
      %v2905 = vsel %vm1255, %v2845, 0.0
      %v2906 = vadd.f32 %v2904, %v2905
      %v2907 = vsel %vm1255, %v2846, 0.0
      %v2908 = vadd.f32 %v2906, %v2907
      %v2909 = vsel %vm1255, %v2847, 0.0
      %v2910 = vadd.f32 %v2908, %v2909
      %v2911 = vrot.slane %v2910, 4
      %v2912 = vadd.f32 %v2910, %v2911
      %v2913 = vrot.slane %v2912, 2
      %v2914 = vadd.f32 %v2912, %v2913
      %v2915 = vrot.slane %v2914, 1
      %v2916 = vadd.f32 %v2914, %v2915
      %2917 = vst.msk [vmem:[%s211] sm:$0x1] %vm251, %v2916
      %v2918 = vmul.f32 %v2816, %v2816
      %v2919 = vmul.f32 %v2817, %v2817
      %v2920 = vmul.f32 %v2818, %v2818
      %v2921 = vmul.f32 %v2819, %v2819
      %v2922 = vmul.f32 %v2820, %v2820
      %v2923 = vmul.f32 %v2821, %v2821
      %v2924 = vmul.f32 %v2822, %v2822
      %v2925 = vmul.f32 %v2823, %v2823
      %v2926 = vmul.f32 %v2824, %v2824
      %v2927 = vmul.f32 %v2825, %v2825
      %v2928 = vmul.f32 %v2826, %v2826
      %v2929 = vmul.f32 %v2827, %v2827
      %v2930 = vmul.f32 %v2828, %v2828
      %v2931 = vmul.f32 %v2829, %v2829
      %v2932 = vmul.f32 %v2830, %v2830
      %v2933 = vmul.f32 %v2831, %v2831
      %v2934 = vmul.f32 %v2832, %v2832
      %v2935 = vmul.f32 %v2833, %v2833
      %v2936 = vmul.f32 %v2834, %v2834
      %v2937 = vmul.f32 %v2835, %v2835
      %v2938 = vmul.f32 %v2836, %v2836
      %v2939 = vmul.f32 %v2837, %v2837
      %v2940 = vmul.f32 %v2838, %v2838
      %v2941 = vmul.f32 %v2839, %v2839
      %v2942 = vmul.f32 %v2840, %v2840
      %v2943 = vmul.f32 %v2841, %v2841
      %v2944 = vmul.f32 %v2842, %v2842
      %v2945 = vmul.f32 %v2843, %v2843
      %v2946 = vmul.f32 %v2844, %v2844
      %v2947 = vmul.f32 %v2845, %v2845
      %v2948 = vmul.f32 %v2846, %v2846
      %v2949 = vmul.f32 %v2847, %v2847
      %v2950 = vsel %vm1255, %v2918, 0.0
      %v2951 = vsel %vm1255, %v2919, 0.0
      %v2952 = vadd.f32 %v2950, %v2951
      %v2953 = vsel %vm1255, %v2920, 0.0
      %v2954 = vadd.f32 %v2952, %v2953
      %v2955 = vsel %vm1255, %v2921, 0.0
      %v2956 = vadd.f32 %v2954, %v2955
      %v2957 = vsel %vm1255, %v2922, 0.0
      %v2958 = vadd.f32 %v2956, %v2957
      %v2959 = vsel %vm1255, %v2923, 0.0
      %v2960 = vadd.f32 %v2958, %v2959
      %v2961 = vsel %vm1255, %v2924, 0.0
      %v2962 = vadd.f32 %v2960, %v2961
      %v2963 = vsel %vm1255, %v2925, 0.0
      %v2964 = vadd.f32 %v2962, %v2963
      %v2965 = vsel %vm1255, %v2926, 0.0
      %v2966 = vadd.f32 %v2964, %v2965
      %v2967 = vsel %vm1255, %v2927, 0.0
      %v2968 = vadd.f32 %v2966, %v2967
      %v2969 = vsel %vm1255, %v2928, 0.0
      %v2970 = vadd.f32 %v2968, %v2969
      %v2971 = vsel %vm1255, %v2929, 0.0
      %v2972 = vadd.f32 %v2970, %v2971
      %v2973 = vsel %vm1255, %v2930, 0.0
      %v2974 = vadd.f32 %v2972, %v2973
      %v2975 = vsel %vm1255, %v2931, 0.0
      %v2976 = vadd.f32 %v2974, %v2975
      %v2977 = vsel %vm1255, %v2932, 0.0
      %v2978 = vadd.f32 %v2976, %v2977
      %v2979 = vsel %vm1255, %v2933, 0.0
      %v2980 = vadd.f32 %v2978, %v2979
      %v2981 = vsel %vm1255, %v2934, 0.0
      %v2982 = vadd.f32 %v2980, %v2981
      %v2983 = vsel %vm1255, %v2935, 0.0
      %v2984 = vadd.f32 %v2982, %v2983
      %v2985 = vsel %vm1255, %v2936, 0.0
      %v2986 = vadd.f32 %v2984, %v2985
      %v2987 = vsel %vm1255, %v2937, 0.0
      %v2988 = vadd.f32 %v2986, %v2987
      %v2989 = vsel %vm1255, %v2938, 0.0
      %v2990 = vadd.f32 %v2988, %v2989
      %v2991 = vsel %vm1255, %v2939, 0.0
      %v2992 = vadd.f32 %v2990, %v2991
      %v2993 = vsel %vm1255, %v2940, 0.0
      %v2994 = vadd.f32 %v2992, %v2993
      %v2995 = vsel %vm1255, %v2941, 0.0
      %v2996 = vadd.f32 %v2994, %v2995
      %v2997 = vsel %vm1255, %v2942, 0.0
      %v2998 = vadd.f32 %v2996, %v2997
      %v2999 = vsel %vm1255, %v2943, 0.0
      %v3000 = vadd.f32 %v2998, %v2999
      %v3001 = vsel %vm1255, %v2944, 0.0
      %v3002 = vadd.f32 %v3000, %v3001
      %v3003 = vsel %vm1255, %v2945, 0.0
      %v3004 = vadd.f32 %v3002, %v3003
      %v3005 = vsel %vm1255, %v2946, 0.0
      %v3006 = vadd.f32 %v3004, %v3005
      %v3007 = vsel %vm1255, %v2947, 0.0
      %v3008 = vadd.f32 %v3006, %v3007
      %v3009 = vsel %vm1255, %v2948, 0.0
      %v3010 = vadd.f32 %v3008, %v3009
      %v3011 = vsel %vm1255, %v2949, 0.0
      %v3012 = vadd.f32 %v3010, %v3011
      %v3013 = vrot.slane %v3012, 4
      %v3014 = vadd.f32 %v3012, %v3013
      %v3015 = vrot.slane %v3014, 2
      %v3016 = vadd.f32 %v3014, %v3015
      %v3017 = vrot.slane %v3016, 1
      %v3018 = vadd.f32 %v3016, %v3017
      %3019 = vst.msk [vmem:[%s214] sm:$0x1] %vm251, %v3018
      %v3020 = vpack.c.bf16 %v2816, %v2816
      %v3021 = vpack.c.bf16 %v2817, %v2817
      %v3022 = vpack.c.bf16 %v2818, %v2818
      %v3023 = vpack.c.bf16 %v2819, %v2819
      %v3024 = vpack.c.bf16 %v2820, %v2820
      %v3025 = vpack.c.bf16 %v2821, %v2821
      %v3026 = vpack.c.bf16 %v2822, %v2822
      %v3027 = vpack.c.bf16 %v2823, %v2823
      %v3028 = vpack.c.bf16 %v2824, %v2824
      %v3029 = vpack.c.bf16 %v2825, %v2825
      %v3030 = vpack.c.bf16 %v2826, %v2826
      %v3031 = vpack.c.bf16 %v2827, %v2827
      %v3032 = vpack.c.bf16 %v2828, %v2828
      %v3033 = vpack.c.bf16 %v2829, %v2829
      %v3034 = vpack.c.bf16 %v2830, %v2830
      %v3035 = vpack.c.bf16 %v2831, %v2831
      %v3036 = vpack.c.bf16 %v2832, %v2832
      %v3037 = vpack.c.bf16 %v2833, %v2833
      %v3038 = vpack.c.bf16 %v2834, %v2834
      %v3039 = vpack.c.bf16 %v2835, %v2835
      %v3040 = vpack.c.bf16 %v2836, %v2836
      %v3041 = vpack.c.bf16 %v2837, %v2837
      %v3042 = vpack.c.bf16 %v2838, %v2838
      %v3043 = vpack.c.bf16 %v2839, %v2839
      %v3044 = vpack.c.bf16 %v2840, %v2840
      %v3045 = vpack.c.bf16 %v2841, %v2841
      %v3046 = vpack.c.bf16 %v2842, %v2842
      %v3047 = vpack.c.bf16 %v2843, %v2843
      %v3048 = vpack.c.bf16 %v2844, %v2844
      %v3049 = vpack.c.bf16 %v2845, %v2845
      %v3050 = vpack.c.bf16 %v2846, %v2846
      %v3051 = vpack.c.bf16 %v2847, %v2847
      %3052 = vst.msk [vmem:[%s208] sm:$0xf] %vm248, %v3020
      %3053 = vst.msk [vmem:[%s208 + $0x4] sm:$0xf] %vm248, %v3021
      %3054 = vst.msk [vmem:[%s208 + $0x8] sm:$0xf] %vm248, %v3022
      %3055 = vst.msk [vmem:[%s208 + $0xc] sm:$0xf] %vm248, %v3023
      %3056 = vst.msk [vmem:[%s208 + $0x10] sm:$0xf] %vm248, %v3024
      %3057 = vst.msk [vmem:[%s208 + $0x14] sm:$0xf] %vm248, %v3025
      %3058 = vst.msk [vmem:[%s208 + $0x18] sm:$0xf] %vm248, %v3026
      %3059 = vst.msk [vmem:[%s208 + $0x1c] sm:$0xf] %vm248, %v3027
      %3060 = vst.msk [vmem:[%s208 + $0x20] sm:$0xf] %vm248, %v3028
      %3061 = vst.msk [vmem:[%s208 + $0x24] sm:$0xf] %vm248, %v3029
      %3062 = vst.msk [vmem:[%s208 + $0x28] sm:$0xf] %vm248, %v3030
      %3063 = vst.msk [vmem:[%s208 + $0x2c] sm:$0xf] %vm248, %v3031
      %3064 = vst.msk [vmem:[%s208 + $0x30] sm:$0xf] %vm248, %v3032
      %3065 = vst.msk [vmem:[%s208 + $0x34] sm:$0xf] %vm248, %v3033
      %3066 = vst.msk [vmem:[%s208 + $0x38] sm:$0xf] %vm248, %v3034
      %3067 = vst.msk [vmem:[%s208 + $0x3c] sm:$0xf] %vm248, %v3035
      %3068 = vst.msk [vmem:[%s208 + $0x40] sm:$0xf] %vm248, %v3036
      %3069 = vst.msk [vmem:[%s208 + $0x44] sm:$0xf] %vm248, %v3037
      %3070 = vst.msk [vmem:[%s208 + $0x48] sm:$0xf] %vm248, %v3038
      %3071 = vst.msk [vmem:[%s208 + $0x4c] sm:$0xf] %vm248, %v3039
      %3072 = vst.msk [vmem:[%s208 + $0x50] sm:$0xf] %vm248, %v3040
      %3073 = vst.msk [vmem:[%s208 + $0x54] sm:$0xf] %vm248, %v3041
      %3074 = vst.msk [vmem:[%s208 + $0x58] sm:$0xf] %vm248, %v3042
      %3075 = vst.msk [vmem:[%s208 + $0x5c] sm:$0xf] %vm248, %v3043
      %3076 = vst.msk [vmem:[%s208 + $0x60] sm:$0xf] %vm248, %v3044
      %3077 = vst.msk [vmem:[%s208 + $0x64] sm:$0xf] %vm248, %v3045
      %3078 = vst.msk [vmem:[%s208 + $0x68] sm:$0xf] %vm248, %v3046
      %3079 = vst.msk [vmem:[%s208 + $0x6c] sm:$0xf] %vm248, %v3047
      %3080 = vst.msk [vmem:[%s208 + $0x70] sm:$0xf] %vm248, %v3048
      %3081 = vst.msk [vmem:[%s208 + $0x74] sm:$0xf] %vm248, %v3049
      %3082 = vst.msk [vmem:[%s208 + $0x78] sm:$0xf] %vm248, %v3050
      %3083 = vst.msk [vmem:[%s208 + $0x7c] sm:$0xf] %vm248, %v3051
      %p3084 = scmp.lt.s32.totalorder %s16, 1
      %s3085 = scalar_select %p3084, %s16, 1
      %s3086 = smul.addr %s3085, 32
      %s3087 = smul.addr %s3086, 4
      %s3088 = scalar_lea.vmem %s2, %s3087
      %p3089 = scmp.lt.s32.totalorder %s16, 1
      %s3090 = scalar_select %p3089, %s16, 1
      %s3091 = scalar_lea.vmem %s3, %s3090
      %p3092 = scmp.lt.s32.totalorder %s16, 1
      %s3093 = scalar_select %p3092, %s16, 1
      %s3094 = scalar_lea.vmem %s4, %s3093
      // Predicated region
      $region29: #{a_call__.3} parent=27 // pred_check
        %p3095 = pneg %p81
      $region30: #{a_call__.3} parent=27 // pred_check_branch
        %3097 = sbr.rel (%p3095) target = $region32
      $region31: #{a_call__.3} parent=27 // pred_region
        _
      $region32: #{a_call__.3} parent=27 // pred_fallthru
        _
      // Predicated region
      $region33: #{a_call__.3} parent=27 // pred_check
        %p3098 = pneg %p107
      $region34: #{a_call__.3} parent=27 // pred_check_branch
        %3100 = sbr.rel (%p3098) target = $region36
      $region35: #{a_call__.3} parent=27 // pred_region
        _
      $region36: #{a_call__.3} parent=27 // pred_fallthru
        _
      // Predicated region
      $region37: #{a_call__.3} parent=27 // pred_check
        %p3101 = pneg %p133
      $region38: #{a_call__.3} parent=27 // pred_check_branch
        %3103 = sbr.rel (%p3101) target = $region40
      $region39: #{a_call__.3} parent=27 // pred_region
        _
      $region40: #{a_call__.3} parent=27 // pred_fallthru
        _
    $region28: #{a_call__.3} parent=5 // pred_fallthru
      _
    %p3104 = scmp.le.s32.totalorder 2, %s11
    // Predicated region
    $region41: #{a_call__.3} parent=5 // pred_check
      %p3105 = pneg %p3104
    $region42: #{a_call__.3} parent=5 // pred_check_branch
      %3107 = sbr.rel (%p3105) target = $region44
    $region43: #{a_call__.3} parent=5 // pred_region
      %s3108 = ssub.s32 %s11, 2
      // Predicated region
      $region45: #{a_call__.3} parent=43 // pred_check
        %p3109 = pneg %p87
      $region46: #{a_call__.3} parent=43 // pred_check_branch
        %3111 = sbr.rel (%p3109) target = $region48
      $region47: #{a_call__.3} parent=43 // pred_region
        %p3112 = scmp.lt.s32.totalorder %s17, 1
        %s3113 = scalar_select %p3112, %s17, 1
        %s3114 = smul.addr %s3113, 32
        %s3115 = smul.addr %s3114, 4
        %s3116 = scalar_lea.vmem %s2, %s3115
      $region48: #{a_call__.3} parent=43 // pred_fallthru
        _
      // Predicated region
      $region49: #{a_call__.3} parent=43 // pred_check
        %p3117 = pneg %p113
      $region50: #{a_call__.3} parent=43 // pred_check_branch
        %3119 = sbr.rel (%p3117) target = $region52
      $region51: #{a_call__.3} parent=43 // pred_region
        %p3120 = scmp.lt.s32.totalorder %s17, 1
        %s3121 = scalar_select %p3120, %s17, 1
        %s3122 = scalar_lea.vmem %s3, %s3121
      $region52: #{a_call__.3} parent=43 // pred_fallthru
        _
      // Predicated region
      $region53: #{a_call__.3} parent=43 // pred_check
        %p3123 = pneg %p139
      $region54: #{a_call__.3} parent=43 // pred_check_branch
        %3125 = sbr.rel (%p3123) target = $region56
      $region55: #{a_call__.3} parent=43 // pred_region
        %p3126 = scmp.lt.s32.totalorder %s17, 1
        %s3127 = scalar_select %p3126, %s17, 1
        %s3128 = scalar_lea.vmem %s4, %s3127
      $region56: #{a_call__.3} parent=43 // pred_fallthru
        _
    $region44: #{a_call__.3} parent=5 // pred_fallthru
      _
  $region6: #{a_call__.3} parent=0 // loop_footer
    %s15 = sadd.s32 1, %s11
  $region7: #{a_call__.3} parent=0 // loop_footer_branch
    %10 = sbr.rel target = $region3
  $region8: #{a_call__.3} parent=0 // loop_exit
    _

// kernel: a_call__.4
$region0: #{a_call__.4}
  #allocation0 [shape = 'u32[]', space=smem, size = 0x4, offset = 0x4, fixed_abs, tag = 'smem constant byte address 0x4 - core index']
  #allocation1 [shape = 'u32[72,128]{1,0:T(1,128)}', space=vmem, size = 0x9000, scoped, tag = 'internal scratch']
  #allocation2 [shape = 'bf16[18,18,8]{2,1,0:T(8,128)(2,1)}', space=vmem, size = 0x1b000, scoped, tag = 'scratch operand']
  %s0 = inlined_call_operand.vmem [shape: bf16[2,16,16,8], index: 0, kind: input, shape index: {}]
  %s1 = inlined_call_operand.vmem [shape: bf16[9,8,8], index: 1, kind: input, shape index: {}]
  %s2 = inlined_call_operand.vmem [shape: f32[1,8], index: 2, kind: input, shape index: {}]
  %s3 = inlined_call_operand.vmem [shape: f32[1,8], index: 3, kind: input, shape index: {}]
  %s4 = inlined_call_operand.vmem [shape: bf16[2,256,8], index: 4, kind: output, shape index: {0}]
  %s5 = inlined_call_operand.vmem [shape: f32[2,1,8], index: 5, kind: output, shape index: {1}]
  %s6 = inlined_call_operand.vmem [shape: f32[2,1,8], index: 6, kind: output, shape index: {2}]
  %7 = xla_tuple %s4, %s5, %s6
  %s8 = sld [smem:[#allocation0]]
  $region65: #{a_call__.4} parent=0
    _
  %s10 = ssub.s32 1, %s8
  %s11 = scalar_select 0, %s10, %s8
  loop: start=0, step=1, limit=4
  $region2: #{a_call__.4} parent=0 // loop_pre_header
    _
  $region3: #{a_call__.4} parent=0 // loop_header
    %s13 = sphi 0, %s17
    %p14 = scmp.ge.s32.totalorder %s13, 4
    %s23 = sphi 0, %s25
    %s26 = sphi 0, %s23
    %s27 = sphi 0, %s26
    %s43 = sphi 0, %s27
    %s47 = sphi 0, %s47
    %s49 = sphi 0, %s47
    %s50 = sphi 0, %s49
    %s64 = sphi 0, %s50
    %s68 = sphi 0, %s68
    %s70 = sphi 0, %s68
    %s71 = sphi 0, %s70
    %s85 = sphi 0, %s71
    %s89 = sphi 0, %s89
    %s91 = sphi 0, %s89
    %s92 = sphi 0, %s91
    %s106 = sphi 0, %s92
    %s112 = sphi 0, %s114
    %s115 = sphi 0, %s112
    %s116 = sphi 0, %s115
    %s132 = sphi 0, %s116
    %s138 = sphi 0, %s140
    %s141 = sphi 0, %s138
    %s142 = sphi 0, %s141
    %s158 = sphi 0, %s142
    %s164 = sphi 0, %s166
    %s167 = sphi 0, %s164
    %s168 = sphi 0, %s167
    %s184 = sphi 0, %s168
  $region4: #{a_call__.4} parent=0 // loop_header_branch
    %16 = sbr.rel (%p14) target = $region8
  $region5: #{a_call__.4} parent=0 // loop_body
    %s18 = ssub.s32 %s13, 1
    %s19 = ssub.s32 %s13, 2
    %s20 = sadd.s32 %s13, 1
    %s21 = ssub.s32 %s13, %s20
    %p22 = scmp.eq.s32.totalorder %s21, 0
    %s24 = sadd.s32 %s23, 1
    %s25 = scalar_select %p22, %s23, %s24
    %p28 = pneg %p22
    %p29 = scmp.eq.s32.totalorder %s13, 1
    %p30 = por %p28, %p29
    %p31 = scmp.ne.s32.totalorder %s23, %s26
    %p32 = scmp.eq.s32.totalorder %s13, 0
    %p33 = por %p31, %p32
    %p34 = scmp.ne.s32.totalorder %s23, %s26
    %p35 = scmp.eq.s32.totalorder %s18, 1
    %p36 = por %p34, %p35
    %p37 = scmp.ne.s32.totalorder %s26, %s27
    %p38 = scmp.eq.s32.totalorder %s18, 0
    %p39 = por %p37, %p38
    %p40 = scmp.ne.s32.totalorder %s26, %s27
    %p41 = scmp.eq.s32.totalorder %s19, 1
    %p42 = por %p40, %p41
    %p44 = scmp.ne.s32.totalorder %s27, %s43
    %p45 = scmp.eq.s32.totalorder %s19, 0
    %p46 = por %p44, %p45
    %s48 = sadd.s32 %s47, 1
    %p51 = scmp.eq.s32.totalorder %s13, 1
    %p52 = scmp.ne.s32.totalorder %s47, %s49
    %p53 = scmp.eq.s32.totalorder %s13, 0
    %p54 = por %p52, %p53
    %p55 = scmp.ne.s32.totalorder %s47, %s49
    %p56 = scmp.eq.s32.totalorder %s18, 1
    %p57 = por %p55, %p56
    %p58 = scmp.ne.s32.totalorder %s49, %s50
    %p59 = scmp.eq.s32.totalorder %s18, 0
    %p60 = por %p58, %p59
    %p61 = scmp.ne.s32.totalorder %s49, %s50
    %p62 = scmp.eq.s32.totalorder %s19, 1
    %p63 = por %p61, %p62
    %p65 = scmp.ne.s32.totalorder %s50, %s64
    %p66 = scmp.eq.s32.totalorder %s19, 0
    %p67 = por %p65, %p66
    %s69 = sadd.s32 %s68, 1
    %p72 = scmp.eq.s32.totalorder %s13, 1
    %p73 = scmp.ne.s32.totalorder %s68, %s70
    %p74 = scmp.eq.s32.totalorder %s13, 0
    %p75 = por %p73, %p74
    %p76 = scmp.ne.s32.totalorder %s68, %s70
    %p77 = scmp.eq.s32.totalorder %s18, 1
    %p78 = por %p76, %p77
    %p79 = scmp.ne.s32.totalorder %s70, %s71
    %p80 = scmp.eq.s32.totalorder %s18, 0
    %p81 = por %p79, %p80
    %p82 = scmp.ne.s32.totalorder %s70, %s71
    %p83 = scmp.eq.s32.totalorder %s19, 1
    %p84 = por %p82, %p83
    %p86 = scmp.ne.s32.totalorder %s71, %s85
    %p87 = scmp.eq.s32.totalorder %s19, 0
    %p88 = por %p86, %p87
    %s90 = sadd.s32 %s89, 1
    %p93 = scmp.eq.s32.totalorder %s13, 1
    %p94 = scmp.ne.s32.totalorder %s89, %s91
    %p95 = scmp.eq.s32.totalorder %s13, 0
    %p96 = por %p94, %p95
    %p97 = scmp.ne.s32.totalorder %s89, %s91
    %p98 = scmp.eq.s32.totalorder %s18, 1
    %p99 = por %p97, %p98
    %p100 = scmp.ne.s32.totalorder %s91, %s92
    %p101 = scmp.eq.s32.totalorder %s18, 0
    %p102 = por %p100, %p101
    %p103 = scmp.ne.s32.totalorder %s91, %s92
    %p104 = scmp.eq.s32.totalorder %s19, 1
    %p105 = por %p103, %p104
    %p107 = scmp.ne.s32.totalorder %s92, %s106
    %p108 = scmp.eq.s32.totalorder %s19, 0
    %p109 = por %p107, %p108
    %s110 = ssub.s32 %s13, %s20
    %p111 = scmp.eq.s32.totalorder %s110, 0
    %s113 = sadd.s32 %s112, 1
    %s114 = scalar_select %p111, %s112, %s113
    %p117 = pneg %p111
    %p118 = scmp.eq.s32.totalorder %s13, 1
    %p119 = por %p117, %p118
    %p120 = scmp.ne.s32.totalorder %s112, %s115
    %p121 = scmp.eq.s32.totalorder %s13, 0
    %p122 = por %p120, %p121
    %p123 = scmp.ne.s32.totalorder %s112, %s115
    %p124 = scmp.eq.s32.totalorder %s18, 1
    %p125 = por %p123, %p124
    %p126 = scmp.ne.s32.totalorder %s115, %s116
    %p127 = scmp.eq.s32.totalorder %s18, 0
    %p128 = por %p126, %p127
    %p129 = scmp.ne.s32.totalorder %s115, %s116
    %p130 = scmp.eq.s32.totalorder %s19, 1
    %p131 = por %p129, %p130
    %p133 = scmp.ne.s32.totalorder %s116, %s132
    %p134 = scmp.eq.s32.totalorder %s19, 0
    %p135 = por %p133, %p134
    %s136 = ssub.s32 %s13, %s20
    %p137 = scmp.eq.s32.totalorder %s136, 0
    %s139 = sadd.s32 %s138, 1
    %s140 = scalar_select %p137, %s138, %s139
    %p143 = pneg %p137
    %p144 = scmp.eq.s32.totalorder %s13, 1
    %p145 = por %p143, %p144
    %p146 = scmp.ne.s32.totalorder %s138, %s141
    %p147 = scmp.eq.s32.totalorder %s13, 0
    %p148 = por %p146, %p147
    %p149 = scmp.ne.s32.totalorder %s138, %s141
    %p150 = scmp.eq.s32.totalorder %s18, 1
    %p151 = por %p149, %p150
    %p152 = scmp.ne.s32.totalorder %s141, %s142
    %p153 = scmp.eq.s32.totalorder %s18, 0
    %p154 = por %p152, %p153
    %p155 = scmp.ne.s32.totalorder %s141, %s142
    %p156 = scmp.eq.s32.totalorder %s19, 1
    %p157 = por %p155, %p156
    %p159 = scmp.ne.s32.totalorder %s142, %s158
    %p160 = scmp.eq.s32.totalorder %s19, 0
    %p161 = por %p159, %p160
    %s162 = ssub.s32 %s13, %s20
    %p163 = scmp.eq.s32.totalorder %s162, 0
    %s165 = sadd.s32 %s164, 1
    %s166 = scalar_select %p163, %s164, %s165
    %p169 = pneg %p163
    %p170 = scmp.eq.s32.totalorder %s13, 1
    %p171 = por %p169, %p170
    %p172 = scmp.ne.s32.totalorder %s164, %s167
    %p173 = scmp.eq.s32.totalorder %s13, 0
    %p174 = por %p172, %p173
    %p175 = scmp.ne.s32.totalorder %s164, %s167
    %p176 = scmp.eq.s32.totalorder %s18, 1
    %p177 = por %p175, %p176
    %p178 = scmp.ne.s32.totalorder %s167, %s168
    %p179 = scmp.eq.s32.totalorder %s18, 0
    %p180 = por %p178, %p179
    %p181 = scmp.ne.s32.totalorder %s167, %s168
    %p182 = scmp.eq.s32.totalorder %s19, 1
    %p183 = por %p181, %p182
    %p185 = scmp.ne.s32.totalorder %s168, %s184
    %p186 = scmp.eq.s32.totalorder %s19, 0
    %p187 = por %p185, %p186
    %p188 = scmp.le.s32.totalorder 1, %s13
    %p189 = scmp.lt.s32.totalorder %s13, 3
    %p190 = pnand %p188, %p189
    %p191 = pneg %p190
    // Predicated region
    $region9: #{a_call__.4} parent=5 // pred_check
      _
    $region10: #{a_call__.4} parent=5 // pred_check_branch
      %193 = sbr.rel (%p190) target = $region12
    $region11: #{a_call__.4} parent=5 // pred_region
      %s194 = ssub.s32 %s13, 1
      // Predicated region
      $region13: #{a_call__.4} parent=11 // pred_check
        %p195 = pneg %p60
      $region14: #{a_call__.4} parent=11 // pred_check_branch
        %197 = sbr.rel (%p195) target = $region16
      $region15: #{a_call__.4} parent=11 // pred_region
        _
      $region16: #{a_call__.4} parent=11 // pred_fallthru
        _
      // Predicated region
      $region17: #{a_call__.4} parent=11 // pred_check
        %p198 = pneg %p81
      $region18: #{a_call__.4} parent=11 // pred_check_branch
        %200 = sbr.rel (%p198) target = $region20
      $region19: #{a_call__.4} parent=11 // pred_region
        _
      $region20: #{a_call__.4} parent=11 // pred_fallthru
        _
      // Predicated region
      $region21: #{a_call__.4} parent=11 // pred_check
        %p201 = pneg %p102
      $region22: #{a_call__.4} parent=11 // pred_check_branch
        %203 = sbr.rel (%p201) target = $region24
      $region23: #{a_call__.4} parent=11 // pred_region
        _
      $region24: #{a_call__.4} parent=11 // pred_fallthru
        _
    $region12: #{a_call__.4} parent=5 // pred_fallthru
      _
    %p204 = scmp.lt.s32.totalorder %s13, 2
    // Predicated region
    $region25: #{a_call__.4} parent=5 // pred_check
      %p205 = pneg %p204
    $region26: #{a_call__.4} parent=5 // pred_check_branch
      %207 = sbr.rel (%p205) target = $region28
    $region27: #{a_call__.4} parent=5 // pred_region
      // Predicated region
      $region29: #{a_call__.4} parent=27 // pred_check
        %p208 = pneg %p33
      $region30: #{a_call__.4} parent=27 // pred_check_branch
        %210 = sbr.rel (%p208) target = $region32
      $region31: #{a_call__.4} parent=27 // pred_region
        %p211 = scmp.lt.s32.totalorder %s13, 1
        %s212 = scalar_select %p211, %s13, 1
        %s213 = smul.addr %s212, 32
        %s214 = smul.addr %s213, 4
        %s215 = scalar_lea.vmem %s0, %s214
      $region32: #{a_call__.4} parent=27 // pred_fallthru
        _
    $region28: #{a_call__.4} parent=5 // pred_fallthru
      _
    %p216 = scmp.le.s32.totalorder 1, %s13
    %p217 = scmp.lt.s32.totalorder %s13, 3
    %p218 = pnand %p216, %p217
    %p219 = pneg %p218
    // Predicated region
    $region33: #{a_call__.4} parent=5 // pred_check
      _
    $region34: #{a_call__.4} parent=5 // pred_check_branch
      %221 = sbr.rel (%p218) target = $region36
    $region35: #{a_call__.4} parent=5 // pred_region
      %s222 = ssub.s32 %s13, 1
      %p223 = scmp.lt.s32.totalorder %s18, 1
      %s224 = scalar_select %p223, %s18, 1
      %s225 = smul.addr %s224, 32
      %s226 = smul.addr %s225, 4
      %s227 = scalar_lea.vmem %s0, %s226
      %p228 = pneg %p39
      %p229 = pneg %p36
      %p230 = pneg %p60
      %p231 = pneg %p57
      %p232 = pneg %p81
      %p233 = pneg %p78
      %p234 = pneg %p102
      %p235 = pneg %p99
      %p236 = pneg %p128
      %p237 = pneg %p125
      %p238 = scmp.lt.s32.totalorder %s18, 1
      %s239 = scalar_select %p238, %s18, 1
      %s240 = smul.addr %s239, 32
      %s241 = smul.addr %s240, 4
      %s242 = scalar_lea.vmem %s4, %s241
      %p243 = pneg %p154
      %p244 = pneg %p151
      %p245 = scmp.lt.s32.totalorder %s18, 1
      %s246 = scalar_select %p245, %s18, 1
      %s247 = scalar_lea.vmem %s5, %s246
      %p248 = pneg %p180
      %p249 = pneg %p177
      %p250 = scmp.lt.s32.totalorder %s18, 1
      %s251 = scalar_select %p250, %s18, 1
      %s252 = scalar_lea.vmem %s6, %s251
      %p253 = scmp.lt.s32.totalorder %s18, 1
      %s254 = scalar_select %p253, %s18, 1
      %s255 = smul.addr %s254, 32
      %s256 = smul.addr %s255, 4
      %s257 = scalar_lea.vmem %s0, %s256
      %p258 = scmp.lt.s32.totalorder %s18, 1
      %s259 = scalar_select %p258, %s18, 1
      %s260 = smul.addr %s259, 32
      %s261 = smul.addr %s260, 4
      %s262 = scalar_lea.vmem %s4, %s261
      %p263 = scmp.lt.s32.totalorder %s18, 1
      %s264 = scalar_select %p263, %s18, 1
      %s265 = scalar_lea.vmem %s5, %s264
      %p266 = scmp.lt.s32.totalorder %s18, 1
      %s267 = scalar_select %p266, %s18, 1
      %s268 = scalar_lea.vmem %s6, %s267
      %v270 = vld [vmem:[%s257] sm:$0xf]
      %v271 = vld [vmem:[%s257 + $0x4] sm:$0xf]
      %v272 = vld [vmem:[%s257 + $0x8] sm:$0xf]
      %v273 = vld [vmem:[%s257 + $0xc] sm:$0xf]
      %v274 = vld [vmem:[%s257 + $0x10] sm:$0xf]
      %v275 = vld [vmem:[%s257 + $0x14] sm:$0xf]
      %v276 = vld [vmem:[%s257 + $0x18] sm:$0xf]
      %v277 = vld [vmem:[%s257 + $0x1c] sm:$0xf]
      %v278 = vld [vmem:[%s257 + $0x20] sm:$0xf]
      %v279 = vld [vmem:[%s257 + $0x24] sm:$0xf]
      %v280 = vld [vmem:[%s257 + $0x28] sm:$0xf]
      %v281 = vld [vmem:[%s257 + $0x2c] sm:$0xf]
      %v282 = vld [vmem:[%s257 + $0x30] sm:$0xf]
      %v283 = vld [vmem:[%s257 + $0x34] sm:$0xf]
      %v284 = vld [vmem:[%s257 + $0x38] sm:$0xf]
      %v285 = vld [vmem:[%s257 + $0x3c] sm:$0xf]
      %v286 = vld [vmem:[%s257 + $0x40] sm:$0xf]
      %v287 = vld [vmem:[%s257 + $0x44] sm:$0xf]
      %v288 = vld [vmem:[%s257 + $0x48] sm:$0xf]
      %v289 = vld [vmem:[%s257 + $0x4c] sm:$0xf]
      %v290 = vld [vmem:[%s257 + $0x50] sm:$0xf]
      %v291 = vld [vmem:[%s257 + $0x54] sm:$0xf]
      %v292 = vld [vmem:[%s257 + $0x58] sm:$0xf]
      %v293 = vld [vmem:[%s257 + $0x5c] sm:$0xf]
      %v294 = vld [vmem:[%s257 + $0x60] sm:$0xf]
      %v295 = vld [vmem:[%s257 + $0x64] sm:$0xf]
      %v296 = vld [vmem:[%s257 + $0x68] sm:$0xf]
      %v297 = vld [vmem:[%s257 + $0x6c] sm:$0xf]
      %v298 = vld [vmem:[%s257 + $0x70] sm:$0xf]
      %v299 = vld [vmem:[%s257 + $0x74] sm:$0xf]
      %v300 = vld [vmem:[%s257 + $0x78] sm:$0xf]
      %v301 = vld [vmem:[%s257 + $0x7c] sm:$0xf]
      %v302 = vunpack.c.l.bf16 %v270
      %v303 = vunpack.c.l.bf16 %v271
      %v304 = vunpack.c.l.bf16 %v272
      %v305 = vunpack.c.l.bf16 %v273
      %v306 = vunpack.c.l.bf16 %v274
      %v307 = vunpack.c.l.bf16 %v275
      %v308 = vunpack.c.l.bf16 %v276
      %v309 = vunpack.c.l.bf16 %v277
      %v310 = vunpack.c.l.bf16 %v278
      %v311 = vunpack.c.l.bf16 %v279
      %v312 = vunpack.c.l.bf16 %v280
      %v313 = vunpack.c.l.bf16 %v281
      %v314 = vunpack.c.l.bf16 %v282
      %v315 = vunpack.c.l.bf16 %v283
      %v316 = vunpack.c.l.bf16 %v284
      %v317 = vunpack.c.l.bf16 %v285
      %v318 = vunpack.c.l.bf16 %v286
      %v319 = vunpack.c.l.bf16 %v287
      %v320 = vunpack.c.l.bf16 %v288
      %v321 = vunpack.c.l.bf16 %v289
      %v322 = vunpack.c.l.bf16 %v290
      %v323 = vunpack.c.l.bf16 %v291
      %v324 = vunpack.c.l.bf16 %v292
      %v325 = vunpack.c.l.bf16 %v293
      %v326 = vunpack.c.l.bf16 %v294
      %v327 = vunpack.c.l.bf16 %v295
      %v328 = vunpack.c.l.bf16 %v296
      %v329 = vunpack.c.l.bf16 %v297
      %v330 = vunpack.c.l.bf16 %v298
      %v331 = vunpack.c.l.bf16 %v299
      %v332 = vunpack.c.l.bf16 %v300
      %v333 = vunpack.c.l.bf16 %v301
      %v334 = vld [vmem:[%s2] sm:$0x1]
      %v336 = vperm.slane %v334, 0
      %v338 = vmul.f32 %v302, %v336
      %v339 = vmul.f32 %v303, %v336
      %v340 = vmul.f32 %v304, %v336
      %v341 = vmul.f32 %v305, %v336
      %v342 = vmul.f32 %v306, %v336
      %v343 = vmul.f32 %v307, %v336
      %v344 = vmul.f32 %v308, %v336
      %v345 = vmul.f32 %v309, %v336
      %v346 = vmul.f32 %v310, %v336
      %v347 = vmul.f32 %v311, %v336
      %v348 = vmul.f32 %v312, %v336
      %v349 = vmul.f32 %v313, %v336
      %v350 = vmul.f32 %v314, %v336
      %v351 = vmul.f32 %v315, %v336
      %v352 = vmul.f32 %v316, %v336
      %v353 = vmul.f32 %v317, %v336
      %v354 = vmul.f32 %v318, %v336
      %v355 = vmul.f32 %v319, %v336
      %v356 = vmul.f32 %v320, %v336
      %v357 = vmul.f32 %v321, %v336
      %v358 = vmul.f32 %v322, %v336
      %v359 = vmul.f32 %v323, %v336
      %v360 = vmul.f32 %v324, %v336
      %v361 = vmul.f32 %v325, %v336
      %v362 = vmul.f32 %v326, %v336
      %v363 = vmul.f32 %v327, %v336
      %v364 = vmul.f32 %v328, %v336
      %v365 = vmul.f32 %v329, %v336
      %v366 = vmul.f32 %v330, %v336
      %v367 = vmul.f32 %v331, %v336
      %v368 = vmul.f32 %v332, %v336
      %v369 = vmul.f32 %v333, %v336
      %v370 = vld [vmem:[%s3] sm:$0x1]
      %v372 = vperm.slane %v370, 0
      %v374 = vadd.f32 %v338, %v372
      %v375 = vadd.f32 %v339, %v372
      %v376 = vadd.f32 %v340, %v372
      %v377 = vadd.f32 %v341, %v372
      %v378 = vadd.f32 %v342, %v372
      %v379 = vadd.f32 %v343, %v372
      %v380 = vadd.f32 %v344, %v372
      %v381 = vadd.f32 %v345, %v372
      %v382 = vadd.f32 %v346, %v372
      %v383 = vadd.f32 %v347, %v372
      %v384 = vadd.f32 %v348, %v372
      %v385 = vadd.f32 %v349, %v372
      %v386 = vadd.f32 %v350, %v372
      %v387 = vadd.f32 %v351, %v372
      %v388 = vadd.f32 %v352, %v372
      %v389 = vadd.f32 %v353, %v372
      %v390 = vadd.f32 %v354, %v372
      %v391 = vadd.f32 %v355, %v372
      %v392 = vadd.f32 %v356, %v372
      %v393 = vadd.f32 %v357, %v372
      %v394 = vadd.f32 %v358, %v372
      %v395 = vadd.f32 %v359, %v372
      %v396 = vadd.f32 %v360, %v372
      %v397 = vadd.f32 %v361, %v372
      %v398 = vadd.f32 %v362, %v372
      %v399 = vadd.f32 %v363, %v372
      %v400 = vadd.f32 %v364, %v372
      %v401 = vadd.f32 %v365, %v372
      %v402 = vadd.f32 %v366, %v372
      %v403 = vadd.f32 %v367, %v372
      %v404 = vadd.f32 %v368, %v372
      %v405 = vadd.f32 %v369, %v372
      %v406 = vmax.f32 %v374, 0.0
      %v407 = vmax.f32 %v375, 0.0
      %v408 = vmax.f32 %v376, 0.0
      %v409 = vmax.f32 %v377, 0.0
      %v410 = vmax.f32 %v378, 0.0
      %v411 = vmax.f32 %v379, 0.0
      %v412 = vmax.f32 %v380, 0.0
      %v413 = vmax.f32 %v381, 0.0
      %v414 = vmax.f32 %v382, 0.0
      %v415 = vmax.f32 %v383, 0.0
      %v416 = vmax.f32 %v384, 0.0
      %v417 = vmax.f32 %v385, 0.0
      %v418 = vmax.f32 %v386, 0.0
      %v419 = vmax.f32 %v387, 0.0
      %v420 = vmax.f32 %v388, 0.0
      %v421 = vmax.f32 %v389, 0.0
      %v422 = vmax.f32 %v390, 0.0
      %v423 = vmax.f32 %v391, 0.0
      %v424 = vmax.f32 %v392, 0.0
      %v425 = vmax.f32 %v393, 0.0
      %v426 = vmax.f32 %v394, 0.0
      %v427 = vmax.f32 %v395, 0.0
      %v428 = vmax.f32 %v396, 0.0
      %v429 = vmax.f32 %v397, 0.0
      %v430 = vmax.f32 %v398, 0.0
      %v431 = vmax.f32 %v399, 0.0
      %v432 = vmax.f32 %v400, 0.0
      %v433 = vmax.f32 %v401, 0.0
      %v434 = vmax.f32 %v402, 0.0
      %v435 = vmax.f32 %v403, 0.0
      %v436 = vmax.f32 %v404, 0.0
      %v437 = vmax.f32 %v405, 0.0
      %v438 = vpack.c.bf16 %v406, %v406
      %v439 = vpack.c.bf16 %v407, %v407
      %v440 = vpack.c.bf16 %v408, %v408
      %v441 = vpack.c.bf16 %v409, %v409
      %v442 = vpack.c.bf16 %v410, %v410
      %v443 = vpack.c.bf16 %v411, %v411
      %v444 = vpack.c.bf16 %v412, %v412
      %v445 = vpack.c.bf16 %v413, %v413
      %v446 = vpack.c.bf16 %v414, %v414
      %v447 = vpack.c.bf16 %v415, %v415
      %v448 = vpack.c.bf16 %v416, %v416
      %v449 = vpack.c.bf16 %v417, %v417
      %v450 = vpack.c.bf16 %v418, %v418
      %v451 = vpack.c.bf16 %v419, %v419
      %v452 = vpack.c.bf16 %v420, %v420
      %v453 = vpack.c.bf16 %v421, %v421
      %v454 = vpack.c.bf16 %v422, %v422
      %v455 = vpack.c.bf16 %v423, %v423
      %v456 = vpack.c.bf16 %v424, %v424
      %v457 = vpack.c.bf16 %v425, %v425
      %v458 = vpack.c.bf16 %v426, %v426
      %v459 = vpack.c.bf16 %v427, %v427
      %v460 = vpack.c.bf16 %v428, %v428
      %v461 = vpack.c.bf16 %v429, %v429
      %v462 = vpack.c.bf16 %v430, %v430
      %v463 = vpack.c.bf16 %v431, %v431
      %v464 = vpack.c.bf16 %v432, %v432
      %v465 = vpack.c.bf16 %v433, %v433
      %v466 = vpack.c.bf16 %v434, %v434
      %v467 = vpack.c.bf16 %v435, %v435
      %v468 = vpack.c.bf16 %v436, %v436
      %v469 = vpack.c.bf16 %v437, %v437
      %vm470 = vcmask 60416
      %471 = vst.msk [vmem:[#allocation2] sm:$0xf] %vm470, 0
      %472 = vst.msk [vmem:[#allocation2 + $0x4] sm:$0xf] %vm470, 0
      %vm473 = vcmask 57344
      %474 = vst.msk [vmem:[#allocation2 + $0x8] sm:$0x1] %vm473, 0
      %475 = vst.msk [vmem:[#allocation2 + $0xc] sm:$0xf] %vm470, 0
      %476 = vst.msk [vmem:[#allocation2 + $0x10] sm:$0xf] %vm470, 0
      %477 = vst.msk [vmem:[#allocation2 + $0x14] sm:$0x1] %vm473, 0
      %478 = vst.msk [vmem:[#allocation2 + $0x18] sm:$0xf] %vm470, 0
      %479 = vst.msk [vmem:[#allocation2 + $0x1c] sm:$0xf] %vm470, 0
      %480 = vst.msk [vmem:[#allocation2 + $0x20] sm:$0x1] %vm473, 0
      %481 = vst.msk [vmem:[#allocation2 + $0x24] sm:$0xf] %vm470, 0
      %482 = vst.msk [vmem:[#allocation2 + $0x28] sm:$0xf] %vm470, 0
      %483 = vst.msk [vmem:[#allocation2 + $0x2c] sm:$0x1] %vm473, 0
      %484 = vst.msk [vmem:[#allocation2 + $0x30] sm:$0xf] %vm470, 0
      %485 = vst.msk [vmem:[#allocation2 + $0x34] sm:$0xf] %vm470, 0
      %486 = vst.msk [vmem:[#allocation2 + $0x38] sm:$0x1] %vm473, 0
      %487 = vst.msk [vmem:[#allocation2 + $0x3c] sm:$0xf] %vm470, 0
      %488 = vst.msk [vmem:[#allocation2 + $0x40] sm:$0xf] %vm470, 0
      %489 = vst.msk [vmem:[#allocation2 + $0x44] sm:$0x1] %vm473, 0
      %490 = vst.msk [vmem:[#allocation2 + $0x48] sm:$0xf] %vm470, 0
      %491 = vst.msk [vmem:[#allocation2 + $0x4c] sm:$0xf] %vm470, 0
      %492 = vst.msk [vmem:[#allocation2 + $0x50] sm:$0x1] %vm473, 0
      %493 = vst.msk [vmem:[#allocation2 + $0x54] sm:$0xf] %vm470, 0
      %494 = vst.msk [vmem:[#allocation2 + $0x58] sm:$0xf] %vm470, 0
      %495 = vst.msk [vmem:[#allocation2 + $0x5c] sm:$0x1] %vm473, 0
      %496 = vst.msk [vmem:[#allocation2 + $0x60] sm:$0xf] %vm470, 0
      %497 = vst.msk [vmem:[#allocation2 + $0x64] sm:$0xf] %vm470, 0
      %498 = vst.msk [vmem:[#allocation2 + $0x68] sm:$0x1] %vm473, 0
      %499 = vst.msk [vmem:[#allocation2 + $0x6c] sm:$0xf] %vm470, 0
      %500 = vst.msk [vmem:[#allocation2 + $0x70] sm:$0xf] %vm470, 0
      %501 = vst.msk [vmem:[#allocation2 + $0x74] sm:$0x1] %vm473, 0
      %502 = vst.msk [vmem:[#allocation2 + $0x78] sm:$0xf] %vm470, 0
      %503 = vst.msk [vmem:[#allocation2 + $0x7c] sm:$0xf] %vm470, 0
      %504 = vst.msk [vmem:[#allocation2 + $0x80] sm:$0x1] %vm473, 0
      %505 = vst.msk [vmem:[#allocation2 + $0x84] sm:$0xf] %vm470, 0
      %506 = vst.msk [vmem:[#allocation2 + $0x88] sm:$0xf] %vm470, 0
      %507 = vst.msk [vmem:[#allocation2 + $0x8c] sm:$0x1] %vm473, 0
      %508 = vst.msk [vmem:[#allocation2 + $0x90] sm:$0xf] %vm470, 0
      %509 = vst.msk [vmem:[#allocation2 + $0x94] sm:$0xf] %vm470, 0
      %510 = vst.msk [vmem:[#allocation2 + $0x98] sm:$0x1] %vm473, 0
      %511 = vst.msk [vmem:[#allocation2 + $0x9c] sm:$0xf] %vm470, 0
      %512 = vst.msk [vmem:[#allocation2 + $0xa0] sm:$0xf] %vm470, 0
      %513 = vst.msk [vmem:[#allocation2 + $0xa4] sm:$0x1] %vm473, 0
      %514 = vst.msk [vmem:[#allocation2 + $0xa8] sm:$0xf] %vm470, 0
      %515 = vst.msk [vmem:[#allocation2 + $0xac] sm:$0xf] %vm470, 0
      %516 = vst.msk [vmem:[#allocation2 + $0xb0] sm:$0x1] %vm473, 0
      %517 = vst.msk [vmem:[#allocation2 + $0xb4] sm:$0xf] %vm470, 0
      %518 = vst.msk [vmem:[#allocation2 + $0xb8] sm:$0xf] %vm470, 0
      %519 = vst.msk [vmem:[#allocation2 + $0xbc] sm:$0x1] %vm473, 0
      %520 = vst.msk [vmem:[#allocation2 + $0xc0] sm:$0xf] %vm470, 0
      %521 = vst.msk [vmem:[#allocation2 + $0xc4] sm:$0xf] %vm470, 0
      %522 = vst.msk [vmem:[#allocation2 + $0xc8] sm:$0x1] %vm473, 0
      %523 = vst.msk [vmem:[#allocation2 + $0xcc] sm:$0xf] %vm470, 0
      %524 = vst.msk [vmem:[#allocation2 + $0xd0] sm:$0xf] %vm470, 0
      %525 = vst.msk [vmem:[#allocation2 + $0xd4] sm:$0x1] %vm473, 0
      %vm526 = vsmask.f32 256
      %vm527 = vsmask.f32 4368
      %vm528 = vmor %vm526, %vm527
      %v530 = vshrl.u32 %v438, 16
      %v532 = vrot.slane %v530, 7
      %v533 = vshll.u32 %v438, 16
      %v535 = vor.u32 %v532, %v533
      %v536 = vrot.slane %v532, 4
      %v538 = vshrl.u32 %v439, 16
      %v540 = vrot.slane %v538, 7
      %v541 = vshll.u32 %v439, 16
      %v543 = vor.u32 %v540, %v541
      %v544 = vsel %vm528, %v536, %v543
      %v545 = vrot.slane %v540, 4
      %v547 = vshrl.u32 %v440, 16
      %v549 = vrot.slane %v547, 7
      %v550 = vshll.u32 %v440, 16
      %v552 = vor.u32 %v549, %v550
      %v553 = vrot.slane %v549, 4
      %v555 = vshrl.u32 %v441, 16
      %v557 = vrot.slane %v555, 7
      %v558 = vshll.u32 %v441, 16
      %v560 = vor.u32 %v557, %v558
      %v561 = vsel %vm528, %v553, %v560
      %v562 = vrot.slane %v557, 4
      %v564 = vshrl.u32 %v442, 16
      %v566 = vrot.slane %v564, 7
      %v567 = vshll.u32 %v442, 16
      %v569 = vor.u32 %v566, %v567
      %v570 = vrot.slane %v566, 4
      %v572 = vshrl.u32 %v443, 16
      %v574 = vrot.slane %v572, 7
      %v575 = vshll.u32 %v443, 16
      %v577 = vor.u32 %v574, %v575
      %v578 = vsel %vm528, %v570, %v577
      %v579 = vrot.slane %v574, 4
      %v581 = vshrl.u32 %v444, 16
      %v583 = vrot.slane %v581, 7
      %v584 = vshll.u32 %v444, 16
      %v586 = vor.u32 %v583, %v584
      %v587 = vrot.slane %v583, 4
      %v589 = vshrl.u32 %v445, 16
      %v591 = vrot.slane %v589, 7
      %v592 = vshll.u32 %v445, 16
      %v594 = vor.u32 %v591, %v592
      %v595 = vsel %vm528, %v587, %v594
      %v596 = vrot.slane %v591, 4
      %v598 = vshrl.u32 %v446, 16
      %v600 = vrot.slane %v598, 7
      %v601 = vshll.u32 %v446, 16
      %v603 = vor.u32 %v600, %v601
      %v604 = vrot.slane %v600, 4
      %v606 = vshrl.u32 %v447, 16
      %v608 = vrot.slane %v606, 7
      %v609 = vshll.u32 %v447, 16
      %v611 = vor.u32 %v608, %v609
      %v612 = vsel %vm528, %v604, %v611
      %v613 = vrot.slane %v608, 4
      %v615 = vshrl.u32 %v448, 16
      %v617 = vrot.slane %v615, 7
      %v618 = vshll.u32 %v448, 16
      %v620 = vor.u32 %v617, %v618
      %v621 = vrot.slane %v617, 4
      %v623 = vshrl.u32 %v449, 16
      %v625 = vrot.slane %v623, 7
      %v626 = vshll.u32 %v449, 16
      %v628 = vor.u32 %v625, %v626
      %v629 = vsel %vm528, %v621, %v628
      %v630 = vrot.slane %v625, 4
      %v632 = vshrl.u32 %v450, 16
      %v634 = vrot.slane %v632, 7
      %v635 = vshll.u32 %v450, 16
      %v637 = vor.u32 %v634, %v635
      %v638 = vrot.slane %v634, 4
      %v640 = vshrl.u32 %v451, 16
      %v642 = vrot.slane %v640, 7
      %v643 = vshll.u32 %v451, 16
      %v645 = vor.u32 %v642, %v643
      %v646 = vsel %vm528, %v638, %v645
      %v647 = vrot.slane %v642, 4
      %v649 = vshrl.u32 %v452, 16
      %v651 = vrot.slane %v649, 7
      %v652 = vshll.u32 %v452, 16
      %v654 = vor.u32 %v651, %v652
      %v655 = vrot.slane %v651, 4
      %v657 = vshrl.u32 %v453, 16
      %v659 = vrot.slane %v657, 7
      %v660 = vshll.u32 %v453, 16
      %v662 = vor.u32 %v659, %v660
      %v663 = vsel %vm528, %v655, %v662
      %v664 = vrot.slane %v659, 4
      %v666 = vshrl.u32 %v454, 16
      %v668 = vrot.slane %v666, 7
      %v669 = vshll.u32 %v454, 16
      %v671 = vor.u32 %v668, %v669
      %v672 = vrot.slane %v668, 4
      %v674 = vshrl.u32 %v455, 16
      %v676 = vrot.slane %v674, 7
      %v677 = vshll.u32 %v455, 16
      %v679 = vor.u32 %v676, %v677
      %v680 = vsel %vm528, %v672, %v679
      %v681 = vrot.slane %v676, 4
      %v683 = vshrl.u32 %v456, 16
      %v685 = vrot.slane %v683, 7
      %v686 = vshll.u32 %v456, 16
      %v688 = vor.u32 %v685, %v686
      %v689 = vrot.slane %v685, 4
      %v691 = vshrl.u32 %v457, 16
      %v693 = vrot.slane %v691, 7
      %v694 = vshll.u32 %v457, 16
      %v696 = vor.u32 %v693, %v694
      %v697 = vsel %vm528, %v689, %v696
      %v698 = vrot.slane %v693, 4
      %v700 = vshrl.u32 %v458, 16
      %v702 = vrot.slane %v700, 7
      %v703 = vshll.u32 %v458, 16
      %v705 = vor.u32 %v702, %v703
      %v706 = vrot.slane %v702, 4
      %v708 = vshrl.u32 %v459, 16
      %v710 = vrot.slane %v708, 7
      %v711 = vshll.u32 %v459, 16
      %v713 = vor.u32 %v710, %v711
      %v714 = vsel %vm528, %v706, %v713
      %v715 = vrot.slane %v710, 4
      %v717 = vshrl.u32 %v460, 16
      %v719 = vrot.slane %v717, 7
      %v720 = vshll.u32 %v460, 16
      %v722 = vor.u32 %v719, %v720
      %v723 = vrot.slane %v719, 4
      %v725 = vshrl.u32 %v461, 16
      %v727 = vrot.slane %v725, 7
      %v728 = vshll.u32 %v461, 16
      %v730 = vor.u32 %v727, %v728
      %v731 = vsel %vm528, %v723, %v730
      %v732 = vrot.slane %v727, 4
      %v734 = vshrl.u32 %v462, 16
      %v736 = vrot.slane %v734, 7
      %v737 = vshll.u32 %v462, 16
      %v739 = vor.u32 %v736, %v737
      %v740 = vrot.slane %v736, 4
      %v742 = vshrl.u32 %v463, 16
      %v744 = vrot.slane %v742, 7
      %v745 = vshll.u32 %v463, 16
      %v747 = vor.u32 %v744, %v745
      %v748 = vsel %vm528, %v740, %v747
      %v749 = vrot.slane %v744, 4
      %v751 = vshrl.u32 %v464, 16
      %v753 = vrot.slane %v751, 7
      %v754 = vshll.u32 %v464, 16
      %v756 = vor.u32 %v753, %v754
      %v757 = vrot.slane %v753, 4
      %v759 = vshrl.u32 %v465, 16
      %v761 = vrot.slane %v759, 7
      %v762 = vshll.u32 %v465, 16
      %v764 = vor.u32 %v761, %v762
      %v765 = vsel %vm528, %v757, %v764
      %v766 = vrot.slane %v761, 4
      %v768 = vshrl.u32 %v466, 16
      %v770 = vrot.slane %v768, 7
      %v771 = vshll.u32 %v466, 16
      %v773 = vor.u32 %v770, %v771
      %v774 = vrot.slane %v770, 4
      %v776 = vshrl.u32 %v467, 16
      %v778 = vrot.slane %v776, 7
      %v779 = vshll.u32 %v467, 16
      %v781 = vor.u32 %v778, %v779
      %v782 = vsel %vm528, %v774, %v781
      %v783 = vrot.slane %v778, 4
      %v785 = vshrl.u32 %v468, 16
      %v787 = vrot.slane %v785, 7
      %v788 = vshll.u32 %v468, 16
      %v790 = vor.u32 %v787, %v788
      %v791 = vrot.slane %v787, 4
      %v793 = vshrl.u32 %v469, 16
      %v795 = vrot.slane %v793, 7
      %v796 = vshll.u32 %v469, 16
      %v798 = vor.u32 %v795, %v796
      %v799 = vsel %vm528, %v791, %v798
      %v800 = vrot.slane %v795, 4
      %s849 = scalar_lea.vmem [#allocation2], 12
      %vm850 = vcmask 60416
      %vm851 = vsmask.f32 7938
      %vm852 = vmand %vm850, %vm851
      %v853 = vld [vmem:[%s849] sm:$0xf]
      %v854 = vsel %vm852, %v535, %v853
      %855 = vst [vmem:[%s849] sm:$0xf] %v854
      %856 = vst.msk [vmem:[%s849 + $0x4] sm:$0xf] %vm470, %v544
      %vm857 = vcmask 57344
      %vm858 = vmand %vm857, %vm526
      %v859 = vld [vmem:[%s849 + $0x8] sm:$0x1]
      %v860 = vsel %vm858, %v545, %v859
      %861 = vst [vmem:[%s849 + $0x8] sm:$0x1] %v860
      %v862 = vld [vmem:[%s849 + $0xc] sm:$0xf]
      %v863 = vsel %vm852, %v552, %v862
      %864 = vst [vmem:[%s849 + $0xc] sm:$0xf] %v863
      %865 = vst.msk [vmem:[%s849 + $0x10] sm:$0xf] %vm470, %v561
      %v866 = vld [vmem:[%s849 + $0x14] sm:$0x1]
      %v867 = vsel %vm858, %v562, %v866
      %868 = vst [vmem:[%s849 + $0x14] sm:$0x1] %v867
      %v869 = vld [vmem:[%s849 + $0x18] sm:$0xf]
      %v870 = vsel %vm852, %v569, %v869
      %871 = vst [vmem:[%s849 + $0x18] sm:$0xf] %v870
      %872 = vst.msk [vmem:[%s849 + $0x1c] sm:$0xf] %vm470, %v578
      %v873 = vld [vmem:[%s849 + $0x20] sm:$0x1]
      %v874 = vsel %vm858, %v579, %v873
      %875 = vst [vmem:[%s849 + $0x20] sm:$0x1] %v874
      %v876 = vld [vmem:[%s849 + $0x24] sm:$0xf]
      %v877 = vsel %vm852, %v586, %v876
      %878 = vst [vmem:[%s849 + $0x24] sm:$0xf] %v877
      %879 = vst.msk [vmem:[%s849 + $0x28] sm:$0xf] %vm470, %v595
      %v880 = vld [vmem:[%s849 + $0x2c] sm:$0x1]
      %v881 = vsel %vm858, %v596, %v880
      %882 = vst [vmem:[%s849 + $0x2c] sm:$0x1] %v881
      %v883 = vld [vmem:[%s849 + $0x30] sm:$0xf]
      %v884 = vsel %vm852, %v603, %v883
      %885 = vst [vmem:[%s849 + $0x30] sm:$0xf] %v884
      %886 = vst.msk [vmem:[%s849 + $0x34] sm:$0xf] %vm470, %v612
      %v887 = vld [vmem:[%s849 + $0x38] sm:$0x1]
      %v888 = vsel %vm858, %v613, %v887
      %889 = vst [vmem:[%s849 + $0x38] sm:$0x1] %v888
      %v890 = vld [vmem:[%s849 + $0x3c] sm:$0xf]
      %v891 = vsel %vm852, %v620, %v890
      %892 = vst [vmem:[%s849 + $0x3c] sm:$0xf] %v891
      %893 = vst.msk [vmem:[%s849 + $0x40] sm:$0xf] %vm470, %v629
      %v894 = vld [vmem:[%s849 + $0x44] sm:$0x1]
      %v895 = vsel %vm858, %v630, %v894
      %896 = vst [vmem:[%s849 + $0x44] sm:$0x1] %v895
      %v897 = vld [vmem:[%s849 + $0x48] sm:$0xf]
      %v898 = vsel %vm852, %v637, %v897
      %899 = vst [vmem:[%s849 + $0x48] sm:$0xf] %v898
      %900 = vst.msk [vmem:[%s849 + $0x4c] sm:$0xf] %vm470, %v646
      %v901 = vld [vmem:[%s849 + $0x50] sm:$0x1]
      %v902 = vsel %vm858, %v647, %v901
      %903 = vst [vmem:[%s849 + $0x50] sm:$0x1] %v902
      %v904 = vld [vmem:[%s849 + $0x54] sm:$0xf]
      %v905 = vsel %vm852, %v654, %v904
      %906 = vst [vmem:[%s849 + $0x54] sm:$0xf] %v905
      %907 = vst.msk [vmem:[%s849 + $0x58] sm:$0xf] %vm470, %v663
      %v908 = vld [vmem:[%s849 + $0x5c] sm:$0x1]
      %v909 = vsel %vm858, %v664, %v908
      %910 = vst [vmem:[%s849 + $0x5c] sm:$0x1] %v909
      %v911 = vld [vmem:[%s849 + $0x60] sm:$0xf]
      %v912 = vsel %vm852, %v671, %v911
      %913 = vst [vmem:[%s849 + $0x60] sm:$0xf] %v912
      %914 = vst.msk [vmem:[%s849 + $0x64] sm:$0xf] %vm470, %v680
      %v915 = vld [vmem:[%s849 + $0x68] sm:$0x1]
      %v916 = vsel %vm858, %v681, %v915
      %917 = vst [vmem:[%s849 + $0x68] sm:$0x1] %v916
      %v918 = vld [vmem:[%s849 + $0x6c] sm:$0xf]
      %v919 = vsel %vm852, %v688, %v918
      %920 = vst [vmem:[%s849 + $0x6c] sm:$0xf] %v919
      %921 = vst.msk [vmem:[%s849 + $0x70] sm:$0xf] %vm470, %v697
      %v922 = vld [vmem:[%s849 + $0x74] sm:$0x1]
      %v923 = vsel %vm858, %v698, %v922
      %924 = vst [vmem:[%s849 + $0x74] sm:$0x1] %v923
      %v925 = vld [vmem:[%s849 + $0x78] sm:$0xf]
      %v926 = vsel %vm852, %v705, %v925
      %927 = vst [vmem:[%s849 + $0x78] sm:$0xf] %v926
      %928 = vst.msk [vmem:[%s849 + $0x7c] sm:$0xf] %vm470, %v714
      %v929 = vld [vmem:[%s849 + $0x80] sm:$0x1]
      %v930 = vsel %vm858, %v715, %v929
      %931 = vst [vmem:[%s849 + $0x80] sm:$0x1] %v930
      %v932 = vld [vmem:[%s849 + $0x84] sm:$0xf]
      %v933 = vsel %vm852, %v722, %v932
      %934 = vst [vmem:[%s849 + $0x84] sm:$0xf] %v933
      %935 = vst.msk [vmem:[%s849 + $0x88] sm:$0xf] %vm470, %v731
      %v936 = vld [vmem:[%s849 + $0x8c] sm:$0x1]
      %v937 = vsel %vm858, %v732, %v936
      %938 = vst [vmem:[%s849 + $0x8c] sm:$0x1] %v937
      %v939 = vld [vmem:[%s849 + $0x90] sm:$0xf]
      %v940 = vsel %vm852, %v739, %v939
      %941 = vst [vmem:[%s849 + $0x90] sm:$0xf] %v940
      %942 = vst.msk [vmem:[%s849 + $0x94] sm:$0xf] %vm470, %v748
      %v943 = vld [vmem:[%s849 + $0x98] sm:$0x1]
      %v944 = vsel %vm858, %v749, %v943
      %945 = vst [vmem:[%s849 + $0x98] sm:$0x1] %v944
      %v946 = vld [vmem:[%s849 + $0x9c] sm:$0xf]
      %v947 = vsel %vm852, %v756, %v946
      %948 = vst [vmem:[%s849 + $0x9c] sm:$0xf] %v947
      %949 = vst.msk [vmem:[%s849 + $0xa0] sm:$0xf] %vm470, %v765
      %v950 = vld [vmem:[%s849 + $0xa4] sm:$0x1]
      %v951 = vsel %vm858, %v766, %v950
      %952 = vst [vmem:[%s849 + $0xa4] sm:$0x1] %v951
      %v953 = vld [vmem:[%s849 + $0xa8] sm:$0xf]
      %v954 = vsel %vm852, %v773, %v953
      %955 = vst [vmem:[%s849 + $0xa8] sm:$0xf] %v954
      %956 = vst.msk [vmem:[%s849 + $0xac] sm:$0xf] %vm470, %v782
      %v957 = vld [vmem:[%s849 + $0xb0] sm:$0x1]
      %v958 = vsel %vm858, %v783, %v957
      %959 = vst [vmem:[%s849 + $0xb0] sm:$0x1] %v958
      %v960 = vld [vmem:[%s849 + $0xb4] sm:$0xf]
      %v961 = vsel %vm852, %v790, %v960
      %962 = vst [vmem:[%s849 + $0xb4] sm:$0xf] %v961
      %963 = vst.msk [vmem:[%s849 + $0xb8] sm:$0xf] %vm470, %v799
      %v964 = vld [vmem:[%s849 + $0xbc] sm:$0x1]
      %v965 = vsel %vm858, %v800, %v964
      %966 = vst [vmem:[%s849 + $0xbc] sm:$0x1] %v965
      %v967 = vld [vmem:[#allocation2] sm:$0xf]
      %v968 = vld [vmem:[#allocation2 + $0x4] sm:$0xf]
      %v969 = vld [vmem:[#allocation2 + $0xc] sm:$0xf]
      %v970 = vld [vmem:[#allocation2 + $0x10] sm:$0xf]
      %v971 = vld [vmem:[#allocation2 + $0x18] sm:$0xf]
      %v972 = vld [vmem:[#allocation2 + $0x1c] sm:$0xf]
      %v973 = vld [vmem:[#allocation2 + $0x24] sm:$0xf]
      %v974 = vld [vmem:[#allocation2 + $0x28] sm:$0xf]
      %v975 = vld [vmem:[#allocation2 + $0x30] sm:$0xf]
      %v976 = vld [vmem:[#allocation2 + $0x34] sm:$0xf]
      %v977 = vld [vmem:[#allocation2 + $0x3c] sm:$0xf]
      %v978 = vld [vmem:[#allocation2 + $0x40] sm:$0xf]
      %v979 = vld [vmem:[#allocation2 + $0x48] sm:$0xf]
      %v980 = vld [vmem:[#allocation2 + $0x4c] sm:$0xf]
      %v981 = vld [vmem:[#allocation2 + $0x54] sm:$0xf]
      %v982 = vld [vmem:[#allocation2 + $0x58] sm:$0xf]
      %v983 = vld [vmem:[#allocation2 + $0x60] sm:$0xf]
      %v984 = vld [vmem:[#allocation2 + $0x64] sm:$0xf]
      %v985 = vld [vmem:[#allocation2 + $0x6c] sm:$0xf]
      %v986 = vld [vmem:[#allocation2 + $0x70] sm:$0xf]
      %v987 = vld [vmem:[#allocation2 + $0x78] sm:$0xf]
      %v988 = vld [vmem:[#allocation2 + $0x7c] sm:$0xf]
      %v989 = vld [vmem:[#allocation2 + $0x84] sm:$0xf]
      %v990 = vld [vmem:[#allocation2 + $0x88] sm:$0xf]
      %v991 = vld [vmem:[#allocation2 + $0x90] sm:$0xf]
      %v992 = vld [vmem:[#allocation2 + $0x94] sm:$0xf]
      %v993 = vld [vmem:[#allocation2 + $0x9c] sm:$0xf]
      %v994 = vld [vmem:[#allocation2 + $0xa0] sm:$0xf]
      %v995 = vld [vmem:[#allocation2 + $0xa8] sm:$0xf]
      %v996 = vld [vmem:[#allocation2 + $0xac] sm:$0xf]
      %v997 = vld [vmem:[#allocation2 + $0xb4] sm:$0xf]
      %v998 = vld [vmem:[#allocation2 + $0xb8] sm:$0xf]
      %v999 = vld [vmem:[#allocation2 + $0xc0] sm:$0xf]
      %v1000 = vld [vmem:[#allocation2 + $0xc4] sm:$0xf]
      %v1001 = vld [vmem:[#allocation2 + $0xcc] sm:$0xf]
      %v1002 = vld [vmem:[#allocation2 + $0xd0] sm:$0xf]
      %v1003 = vld [vmem:[#allocation2 + $0x8] sm:$0x1]
      %v1004 = vld [vmem:[#allocation2 + $0x14] sm:$0x1]
      %v1005 = vld [vmem:[#allocation2 + $0x20] sm:$0x1]
      %v1006 = vld [vmem:[#allocation2 + $0x2c] sm:$0x1]
      %v1007 = vld [vmem:[#allocation2 + $0x38] sm:$0x1]
      %v1008 = vld [vmem:[#allocation2 + $0x44] sm:$0x1]
      %v1009 = vld [vmem:[#allocation2 + $0x50] sm:$0x1]
      %v1010 = vld [vmem:[#allocation2 + $0x5c] sm:$0x1]
      %v1011 = vld [vmem:[#allocation2 + $0x68] sm:$0x1]
      %v1012 = vld [vmem:[#allocation2 + $0x74] sm:$0x1]
      %v1013 = vld [vmem:[#allocation2 + $0x80] sm:$0x1]
      %v1014 = vld [vmem:[#allocation2 + $0x8c] sm:$0x1]
      %v1015 = vld [vmem:[#allocation2 + $0x98] sm:$0x1]
      %v1016 = vld [vmem:[#allocation2 + $0xa4] sm:$0x1]
      %v1017 = vld [vmem:[#allocation2 + $0xb0] sm:$0x1]
      %v1018 = vld [vmem:[#allocation2 + $0xbc] sm:$0x1]
      %v1019 = vld [vmem:[#allocation2 + $0xc8] sm:$0x1]
      %v1020 = vld [vmem:[#allocation2 + $0xd4] sm:$0x1]
      %v1021 = vld [vmem:[#allocation2] sm:$0xe]
      %v1022 = vld [vmem:[#allocation2 + $0xc] sm:$0xe]
      %v1023 = vld [vmem:[#allocation2 + $0x18] sm:$0xe]
      %v1024 = vld [vmem:[#allocation2 + $0x24] sm:$0xe]
      %v1025 = vld [vmem:[#allocation2 + $0x30] sm:$0xe]
      %v1026 = vld [vmem:[#allocation2 + $0x3c] sm:$0xe]
      %v1027 = vld [vmem:[#allocation2 + $0x48] sm:$0xe]
      %v1028 = vld [vmem:[#allocation2 + $0x54] sm:$0xe]
      %v1029 = vld [vmem:[#allocation2 + $0x60] sm:$0xe]
      %v1030 = vld [vmem:[#allocation2 + $0x6c] sm:$0xe]
      %v1031 = vld [vmem:[#allocation2 + $0x78] sm:$0xe]
      %v1032 = vld [vmem:[#allocation2 + $0x84] sm:$0xe]
      %v1033 = vld [vmem:[#allocation2 + $0x90] sm:$0xe]
      %v1034 = vld [vmem:[#allocation2 + $0x9c] sm:$0xe]
      %v1035 = vld [vmem:[#allocation2 + $0xa8] sm:$0xe]
      %v1036 = vld [vmem:[#allocation2 + $0xb4] sm:$0xe]
      %v1037 = vld [vmem:[#allocation2 + $0xc0] sm:$0xe]
      %v1038 = vld [vmem:[#allocation2 + $0xcc] sm:$0xe]
      %v1039 = vld [vmem:[%s1] sm:$0xf]
      %vm1040 = vsmask.f32 3328
      %vm1041 = vsmask.f32 7440
      %vm1042 = vmor %vm1040, %vm1041
      %v1044 = vshrl.u32 %v967, 16
      %v1046 = vrot.slane %v1044, 4
      %v1047 = vshll.u32 %v967, 16
      %v1049 = vrot.slane %v1047, 5
      %v1050 = vor.u32 %v1046, %v1049
      %v1051 = vrot.slane %v1050, 4
      %v1053 = vshll.u32 %v968, 16
      %v1055 = vrot.slane %v1053, 5
      %v1056 = vsel %vm1042, %v1051, %v1055
      %v1057 = vshrl.u32 %v968, 16
      %v1059 = vrot.slane %v1057, 4
      %v1060 = vor.u32 %v1059, %v1055
      %v1061 = vrot.slane %v1060, 4
      %v1063 = vshll.u32 %v1003, 16
      %v1065 = vrot.slane %v1063, 5
      %v1066 = vsel %vm1042, %v1061, %v1065
      %v1068 = vshrl.u32 %v969, 16
      %v1070 = vrot.slane %v1068, 4
      %v1071 = vshll.u32 %v969, 16
      %v1073 = vrot.slane %v1071, 5
      %v1074 = vor.u32 %v1070, %v1073
      %v1075 = vrot.slane %v1074, 4
      %v1077 = vshll.u32 %v970, 16
      %v1079 = vrot.slane %v1077, 5
      %v1080 = vsel %vm1042, %v1075, %v1079
      %v1081 = vshrl.u32 %v970, 16
      %v1083 = vrot.slane %v1081, 4
      %v1084 = vor.u32 %v1083, %v1079
      %v1085 = vrot.slane %v1084, 4
      %v1087 = vshll.u32 %v1004, 16
      %v1089 = vrot.slane %v1087, 5
      %v1090 = vsel %vm1042, %v1085, %v1089
      %v1092 = vshrl.u32 %v971, 16
      %v1094 = vrot.slane %v1092, 4
      %v1095 = vshll.u32 %v971, 16
      %v1097 = vrot.slane %v1095, 5
      %v1098 = vor.u32 %v1094, %v1097
      %v1099 = vrot.slane %v1098, 4
      %v1101 = vshll.u32 %v972, 16
      %v1103 = vrot.slane %v1101, 5
      %v1104 = vsel %vm1042, %v1099, %v1103
      %v1105 = vshrl.u32 %v972, 16
      %v1107 = vrot.slane %v1105, 4
      %v1108 = vor.u32 %v1107, %v1103
      %v1109 = vrot.slane %v1108, 4
      %v1111 = vshll.u32 %v1005, 16
      %v1113 = vrot.slane %v1111, 5
      %v1114 = vsel %vm1042, %v1109, %v1113
      %v1116 = vshrl.u32 %v973, 16
      %v1118 = vrot.slane %v1116, 4
      %v1119 = vshll.u32 %v973, 16
      %v1121 = vrot.slane %v1119, 5
      %v1122 = vor.u32 %v1118, %v1121
      %v1123 = vrot.slane %v1122, 4
      %v1125 = vshll.u32 %v974, 16
      %v1127 = vrot.slane %v1125, 5
      %v1128 = vsel %vm1042, %v1123, %v1127
      %v1129 = vshrl.u32 %v974, 16
      %v1131 = vrot.slane %v1129, 4
      %v1132 = vor.u32 %v1131, %v1127
      %v1133 = vrot.slane %v1132, 4
      %v1135 = vshll.u32 %v1006, 16
      %v1137 = vrot.slane %v1135, 5
      %v1138 = vsel %vm1042, %v1133, %v1137
      %v1140 = vshrl.u32 %v975, 16
      %v1142 = vrot.slane %v1140, 4
      %v1143 = vshll.u32 %v975, 16
      %v1145 = vrot.slane %v1143, 5
      %v1146 = vor.u32 %v1142, %v1145
      %v1147 = vrot.slane %v1146, 4
      %v1149 = vshll.u32 %v976, 16
      %v1151 = vrot.slane %v1149, 5
      %v1152 = vsel %vm1042, %v1147, %v1151
      %v1153 = vshrl.u32 %v976, 16
      %v1155 = vrot.slane %v1153, 4
      %v1156 = vor.u32 %v1155, %v1151
      %v1157 = vrot.slane %v1156, 4
      %v1159 = vshll.u32 %v1007, 16
      %v1161 = vrot.slane %v1159, 5
      %v1162 = vsel %vm1042, %v1157, %v1161
      %v1164 = vshrl.u32 %v977, 16
      %v1166 = vrot.slane %v1164, 4
      %v1167 = vshll.u32 %v977, 16
      %v1169 = vrot.slane %v1167, 5
      %v1170 = vor.u32 %v1166, %v1169
      %v1171 = vrot.slane %v1170, 4
      %v1173 = vshll.u32 %v978, 16
      %v1175 = vrot.slane %v1173, 5
      %v1176 = vsel %vm1042, %v1171, %v1175
      %v1177 = vshrl.u32 %v978, 16
      %v1179 = vrot.slane %v1177, 4
      %v1180 = vor.u32 %v1179, %v1175
      %v1181 = vrot.slane %v1180, 4
      %v1183 = vshll.u32 %v1008, 16
      %v1185 = vrot.slane %v1183, 5
      %v1186 = vsel %vm1042, %v1181, %v1185
      %v1188 = vshrl.u32 %v979, 16
      %v1190 = vrot.slane %v1188, 4
      %v1191 = vshll.u32 %v979, 16
      %v1193 = vrot.slane %v1191, 5
      %v1194 = vor.u32 %v1190, %v1193
      %v1195 = vrot.slane %v1194, 4
      %v1197 = vshll.u32 %v980, 16
      %v1199 = vrot.slane %v1197, 5
      %v1200 = vsel %vm1042, %v1195, %v1199
      %v1201 = vshrl.u32 %v980, 16
      %v1203 = vrot.slane %v1201, 4
      %v1204 = vor.u32 %v1203, %v1199
      %v1205 = vrot.slane %v1204, 4
      %v1207 = vshll.u32 %v1009, 16
      %v1209 = vrot.slane %v1207, 5
      %v1210 = vsel %vm1042, %v1205, %v1209
      %v1212 = vshrl.u32 %v981, 16
      %v1214 = vrot.slane %v1212, 4
      %v1215 = vshll.u32 %v981, 16
      %v1217 = vrot.slane %v1215, 5
      %v1218 = vor.u32 %v1214, %v1217
      %v1219 = vrot.slane %v1218, 4
      %v1221 = vshll.u32 %v982, 16
      %v1223 = vrot.slane %v1221, 5
      %v1224 = vsel %vm1042, %v1219, %v1223
      %v1225 = vshrl.u32 %v982, 16
      %v1227 = vrot.slane %v1225, 4
      %v1228 = vor.u32 %v1227, %v1223
      %v1229 = vrot.slane %v1228, 4
      %v1231 = vshll.u32 %v1010, 16
      %v1233 = vrot.slane %v1231, 5
      %v1234 = vsel %vm1042, %v1229, %v1233
      %v1236 = vshrl.u32 %v983, 16
      %v1238 = vrot.slane %v1236, 4
      %v1239 = vshll.u32 %v983, 16
      %v1241 = vrot.slane %v1239, 5
      %v1242 = vor.u32 %v1238, %v1241
      %v1243 = vrot.slane %v1242, 4
      %v1245 = vshll.u32 %v984, 16
      %v1247 = vrot.slane %v1245, 5
      %v1248 = vsel %vm1042, %v1243, %v1247
      %v1249 = vshrl.u32 %v984, 16
      %v1251 = vrot.slane %v1249, 4
      %v1252 = vor.u32 %v1251, %v1247
      %v1253 = vrot.slane %v1252, 4
      %v1255 = vshll.u32 %v1011, 16
      %v1257 = vrot.slane %v1255, 5
      %v1258 = vsel %vm1042, %v1253, %v1257
      %v1260 = vshrl.u32 %v985, 16
      %v1262 = vrot.slane %v1260, 4
      %v1263 = vshll.u32 %v985, 16
      %v1265 = vrot.slane %v1263, 5
      %v1266 = vor.u32 %v1262, %v1265
      %v1267 = vrot.slane %v1266, 4
      %v1269 = vshll.u32 %v986, 16
      %v1271 = vrot.slane %v1269, 5
      %v1272 = vsel %vm1042, %v1267, %v1271
      %v1273 = vshrl.u32 %v986, 16
      %v1275 = vrot.slane %v1273, 4
      %v1276 = vor.u32 %v1275, %v1271
      %v1277 = vrot.slane %v1276, 4
      %v1279 = vshll.u32 %v1012, 16
      %v1281 = vrot.slane %v1279, 5
      %v1282 = vsel %vm1042, %v1277, %v1281
      %v1284 = vshrl.u32 %v987, 16
      %v1286 = vrot.slane %v1284, 4
      %v1287 = vshll.u32 %v987, 16
      %v1289 = vrot.slane %v1287, 5
      %v1290 = vor.u32 %v1286, %v1289
      %v1291 = vrot.slane %v1290, 4
      %v1293 = vshll.u32 %v988, 16
      %v1295 = vrot.slane %v1293, 5
      %v1296 = vsel %vm1042, %v1291, %v1295
      %v1297 = vshrl.u32 %v988, 16
      %v1299 = vrot.slane %v1297, 4
      %v1300 = vor.u32 %v1299, %v1295
      %v1301 = vrot.slane %v1300, 4
      %v1303 = vshll.u32 %v1013, 16
      %v1305 = vrot.slane %v1303, 5
      %v1306 = vsel %vm1042, %v1301, %v1305
      %v1308 = vshrl.u32 %v989, 16
      %v1310 = vrot.slane %v1308, 4
      %v1311 = vshll.u32 %v989, 16
      %v1313 = vrot.slane %v1311, 5
      %v1314 = vor.u32 %v1310, %v1313
      %v1315 = vrot.slane %v1314, 4
      %v1317 = vshll.u32 %v990, 16
      %v1319 = vrot.slane %v1317, 5
      %v1320 = vsel %vm1042, %v1315, %v1319
      %v1321 = vshrl.u32 %v990, 16
      %v1323 = vrot.slane %v1321, 4
      %v1324 = vor.u32 %v1323, %v1319
      %v1325 = vrot.slane %v1324, 4
      %v1327 = vshll.u32 %v1014, 16
      %v1329 = vrot.slane %v1327, 5
      %v1330 = vsel %vm1042, %v1325, %v1329
      %v1332 = vshrl.u32 %v991, 16
      %v1334 = vrot.slane %v1332, 4
      %v1335 = vshll.u32 %v991, 16
      %v1337 = vrot.slane %v1335, 5
      %v1338 = vor.u32 %v1334, %v1337
      %v1339 = vrot.slane %v1338, 4
      %v1341 = vshll.u32 %v992, 16
      %v1343 = vrot.slane %v1341, 5
      %v1344 = vsel %vm1042, %v1339, %v1343
      %v1345 = vshrl.u32 %v992, 16
      %v1347 = vrot.slane %v1345, 4
      %v1348 = vor.u32 %v1347, %v1343
      %v1349 = vrot.slane %v1348, 4
      %v1351 = vshll.u32 %v1015, 16
      %v1353 = vrot.slane %v1351, 5
      %v1354 = vsel %vm1042, %v1349, %v1353
      %v1356 = vshrl.u32 %v993, 16
      %v1358 = vrot.slane %v1356, 4
      %v1359 = vshll.u32 %v993, 16
      %v1361 = vrot.slane %v1359, 5
      %v1362 = vor.u32 %v1358, %v1361
      %v1363 = vrot.slane %v1362, 4
      %v1365 = vshll.u32 %v994, 16
      %v1367 = vrot.slane %v1365, 5
      %v1368 = vsel %vm1042, %v1363, %v1367
      %v1369 = vshrl.u32 %v994, 16
      %v1371 = vrot.slane %v1369, 4
      %v1372 = vor.u32 %v1371, %v1367
      %v1373 = vrot.slane %v1372, 4
      %v1375 = vshll.u32 %v1016, 16
      %v1377 = vrot.slane %v1375, 5
      %v1378 = vsel %vm1042, %v1373, %v1377
      %v1380 = vshrl.u32 %v995, 16
      %v1382 = vrot.slane %v1380, 4
      %v1383 = vshll.u32 %v995, 16
      %v1385 = vrot.slane %v1383, 5
      %v1386 = vor.u32 %v1382, %v1385
      %v1387 = vrot.slane %v1386, 4
      %v1389 = vshll.u32 %v996, 16
      %v1391 = vrot.slane %v1389, 5
      %v1392 = vsel %vm1042, %v1387, %v1391
      %v1393 = vshrl.u32 %v996, 16
      %v1395 = vrot.slane %v1393, 4
      %v1396 = vor.u32 %v1395, %v1391
      %v1397 = vrot.slane %v1396, 4
      %v1399 = vshll.u32 %v1017, 16
      %v1401 = vrot.slane %v1399, 5
      %v1402 = vsel %vm1042, %v1397, %v1401
      %v1404 = vshrl.u32 %v997, 16
      %v1406 = vrot.slane %v1404, 4
      %v1407 = vshll.u32 %v997, 16
      %v1409 = vrot.slane %v1407, 5
      %v1410 = vor.u32 %v1406, %v1409
      %v1411 = vrot.slane %v1410, 4
      %v1413 = vshll.u32 %v998, 16
      %v1415 = vrot.slane %v1413, 5
      %v1416 = vsel %vm1042, %v1411, %v1415
      %v1417 = vshrl.u32 %v998, 16
      %v1419 = vrot.slane %v1417, 4
      %v1420 = vor.u32 %v1419, %v1415
      %v1421 = vrot.slane %v1420, 4
      %v1423 = vshll.u32 %v1018, 16
      %v1425 = vrot.slane %v1423, 5
      %v1426 = vsel %vm1042, %v1421, %v1425
      %s1427 = scalar_lea.vmem %s1, 4
      %v1428 = vld [vmem:[%s1427] sm:$0xf]
      %v1429 = vunpack.c.l.b16 %v1056
      %v1430 = vunpack.c.l.b16 %v1066
      %v1431 = vunpack.c.l.b16 %v1080
      %v1432 = vunpack.c.l.b16 %v1090
      %v1433 = vunpack.c.l.b16 %v1104
      %v1434 = vunpack.c.l.b16 %v1114
      %v1435 = vunpack.c.l.b16 %v1128
      %v1436 = vunpack.c.l.b16 %v1138
      %v1437 = vunpack.c.l.b16 %v1152
      %v1438 = vunpack.c.l.b16 %v1162
      %v1439 = vunpack.c.l.b16 %v1176
      %v1440 = vunpack.c.l.b16 %v1186
      %v1441 = vunpack.c.l.b16 %v1200
      %v1442 = vunpack.c.l.b16 %v1210
      %v1443 = vunpack.c.l.b16 %v1224
      %v1444 = vunpack.c.l.b16 %v1234
      %v1445 = vunpack.c.l.b16 %v1248
      %v1446 = vunpack.c.l.b16 %v1258
      %v1447 = vunpack.c.l.b16 %v1272
      %v1448 = vunpack.c.l.b16 %v1282
      %v1449 = vunpack.c.l.b16 %v1296
      %v1450 = vunpack.c.l.b16 %v1306
      %v1451 = vunpack.c.l.b16 %v1320
      %v1452 = vunpack.c.l.b16 %v1330
      %v1453 = vunpack.c.l.b16 %v1344
      %v1454 = vunpack.c.l.b16 %v1354
      %v1455 = vunpack.c.l.b16 %v1368
      %v1456 = vunpack.c.l.b16 %v1378
      %v1457 = vunpack.c.l.b16 %v1392
      %v1458 = vunpack.c.l.b16 %v1402
      %v1459 = vunpack.c.l.b16 %v1416
      %v1460 = vunpack.c.l.b16 %v1426
      %v1461 = vpack.c.b16 %v1430, %v1429
      %v1462 = vpack.c.b16 %v1432, %v1431
      %v1463 = vpack.c.b16 %v1434, %v1433
      %v1464 = vpack.c.b16 %v1436, %v1435
      %v1465 = vpack.c.b16 %v1438, %v1437
      %v1466 = vpack.c.b16 %v1440, %v1439
      %v1467 = vpack.c.b16 %v1442, %v1441
      %v1468 = vpack.c.b16 %v1444, %v1443
      %v1469 = vpack.c.b16 %v1446, %v1445
      %v1470 = vpack.c.b16 %v1448, %v1447
      %v1471 = vpack.c.b16 %v1450, %v1449
      %v1472 = vpack.c.b16 %v1452, %v1451
      %v1473 = vpack.c.b16 %v1454, %v1453
      %v1474 = vpack.c.b16 %v1456, %v1455
      %v1475 = vpack.c.b16 %v1458, %v1457
      %v1476 = vpack.c.b16 %v1460, %v1459
      %vm1477 = vcmask 64512
      %v1479 = vsel %vm1477, %v1461, 0
      %v1482 = vsel %vm1477, %v1462, 0
      %v1485 = vsel %vm1477, %v1463, 0
      %v1488 = vsel %vm1477, %v1464, 0
      %v1491 = vsel %vm1477, %v1465, 0
      %v1494 = vsel %vm1477, %v1466, 0
      %v1497 = vsel %vm1477, %v1467, 0
      %v1500 = vsel %vm1477, %v1468, 0
      %v1503 = vsel %vm1477, %v1469, 0
      %v1506 = vsel %vm1477, %v1470, 0
      %v1509 = vsel %vm1477, %v1471, 0
      %v1512 = vsel %vm1477, %v1472, 0
      %v1515 = vsel %vm1477, %v1473, 0
      %v1518 = vsel %vm1477, %v1474, 0
      %v1521 = vsel %vm1477, %v1475, 0
      %v1524 = vsel %vm1477, %v1476, 0
      %vm1526 = vcmask 1043456
      %v1528 = vsel %vm1526, %v1428, 0
      %1530 = vmatpush.bf16.msra.mxu0 0
      %1531 = vmatpush.bf16.msra.mxu0 0
      %1532 = vmatpush.bf16.msra.mxu0 0
      %1533 = vmatpush.bf16.msra.mxu0 0
      %1534 = vmatpush.bf16.msra.mxu0 0
      %1535 = vmatpush.bf16.msra.mxu0 0
      %1536 = vmatpush.bf16.msra.mxu0 0
      %1537 = vmatpush.bf16.msra.mxu0 %v1528
      %1538 = vmatmul.bf16.gmra.mxu0 %v1479
      %v1539 = vpop.f32.mrf.mxu0
      %v1540 = vadd.f32 0.0, %v1539
      %v1541 = vpop.f32.mrf.mxu0
      %v1542 = vadd.f32 0.0, %v1541
      %1543 = vmatmul.bf16.gmra.mxu0 %v1482
      %v1544 = vpop.f32.mrf.mxu0
      %v1545 = vadd.f32 0.0, %v1544
      %v1546 = vpop.f32.mrf.mxu0
      %v1547 = vadd.f32 0.0, %v1546
      %1548 = vmatmul.bf16.gmra.mxu0 %v1485
      %v1549 = vpop.f32.mrf.mxu0
      %v1550 = vadd.f32 0.0, %v1549
      %v1551 = vpop.f32.mrf.mxu0
      %v1552 = vadd.f32 0.0, %v1551
      %1553 = vmatmul.bf16.gmra.mxu0 %v1488
      %v1554 = vpop.f32.mrf.mxu0
      %v1555 = vadd.f32 0.0, %v1554
      %v1556 = vpop.f32.mrf.mxu0
      %v1557 = vadd.f32 0.0, %v1556
      %1558 = vmatmul.bf16.gmra.mxu0 %v1491
      %v1559 = vpop.f32.mrf.mxu0
      %v1560 = vadd.f32 0.0, %v1559
      %v1561 = vpop.f32.mrf.mxu0
      %v1562 = vadd.f32 0.0, %v1561
      %1563 = vmatmul.bf16.gmra.mxu0 %v1494
      %v1564 = vpop.f32.mrf.mxu0
      %v1565 = vadd.f32 0.0, %v1564
      %v1566 = vpop.f32.mrf.mxu0
      %v1567 = vadd.f32 0.0, %v1566
      %1568 = vmatmul.bf16.gmra.mxu0 %v1497
      %v1569 = vpop.f32.mrf.mxu0
      %v1570 = vadd.f32 0.0, %v1569
      %v1571 = vpop.f32.mrf.mxu0
      %v1572 = vadd.f32 0.0, %v1571
      %1573 = vmatmul.bf16.gmra.mxu0 %v1500
      %v1574 = vpop.f32.mrf.mxu0
      %v1575 = vadd.f32 0.0, %v1574
      %v1576 = vpop.f32.mrf.mxu0
      %v1577 = vadd.f32 0.0, %v1576
      %1578 = vmatmul.bf16.gmra.mxu0 %v1503
      %v1579 = vpop.f32.mrf.mxu0
      %v1580 = vadd.f32 0.0, %v1579
      %v1581 = vpop.f32.mrf.mxu0
      %v1582 = vadd.f32 0.0, %v1581
      %1583 = vmatmul.bf16.gmra.mxu0 %v1506
      %v1584 = vpop.f32.mrf.mxu0
      %v1585 = vadd.f32 0.0, %v1584
      %v1586 = vpop.f32.mrf.mxu0
      %v1587 = vadd.f32 0.0, %v1586
      %1588 = vmatmul.bf16.gmra.mxu0 %v1509
      %v1589 = vpop.f32.mrf.mxu0
      %v1590 = vadd.f32 0.0, %v1589
      %v1591 = vpop.f32.mrf.mxu0
      %v1592 = vadd.f32 0.0, %v1591
      %1593 = vmatmul.bf16.gmra.mxu0 %v1512
      %v1594 = vpop.f32.mrf.mxu0
      %v1595 = vadd.f32 0.0, %v1594
      %v1596 = vpop.f32.mrf.mxu0
      %v1597 = vadd.f32 0.0, %v1596
      %1598 = vmatmul.bf16.gmra.mxu0 %v1515
      %v1599 = vpop.f32.mrf.mxu0
      %v1600 = vadd.f32 0.0, %v1599
      %v1601 = vpop.f32.mrf.mxu0
      %v1602 = vadd.f32 0.0, %v1601
      %1603 = vmatmul.bf16.gmra.mxu0 %v1518
      %v1604 = vpop.f32.mrf.mxu0
      %v1605 = vadd.f32 0.0, %v1604
      %v1606 = vpop.f32.mrf.mxu0
      %v1607 = vadd.f32 0.0, %v1606
      %1608 = vmatmul.bf16.gmra.mxu0 %v1521
      %v1609 = vpop.f32.mrf.mxu0
      %v1610 = vadd.f32 0.0, %v1609
      %v1611 = vpop.f32.mrf.mxu0
      %v1612 = vadd.f32 0.0, %v1611
      %1613 = vmatmul.bf16.gmra.mxu0 %v1524
      %v1614 = vpop.f32.mrf.mxu0
      %v1615 = vadd.f32 0.0, %v1614
      %v1616 = vpop.f32.mrf.mxu0
      %v1617 = vadd.f32 0.0, %v1616
      %1618 = vdwg.mxu0
      %v1651 = vunpack.c.l.b16 %v967
      %v1652 = vunpack.c.l.b16 %v968
      %v1653 = vunpack.c.l.b16 %v969
      %v1654 = vunpack.c.l.b16 %v970
      %v1655 = vunpack.c.l.b16 %v971
      %v1656 = vunpack.c.l.b16 %v972
      %v1657 = vunpack.c.l.b16 %v973
      %v1658 = vunpack.c.l.b16 %v974
      %v1659 = vunpack.c.l.b16 %v975
      %v1660 = vunpack.c.l.b16 %v976
      %v1661 = vunpack.c.l.b16 %v977
      %v1662 = vunpack.c.l.b16 %v978
      %v1663 = vunpack.c.l.b16 %v979
      %v1664 = vunpack.c.l.b16 %v980
      %v1665 = vunpack.c.l.b16 %v981
      %v1666 = vunpack.c.l.b16 %v982
      %v1667 = vunpack.c.l.b16 %v983
      %v1668 = vunpack.c.l.b16 %v984
      %v1669 = vunpack.c.l.b16 %v985
      %v1670 = vunpack.c.l.b16 %v986
      %v1671 = vunpack.c.l.b16 %v987
      %v1672 = vunpack.c.l.b16 %v988
      %v1673 = vunpack.c.l.b16 %v989
      %v1674 = vunpack.c.l.b16 %v990
      %v1675 = vunpack.c.l.b16 %v991
      %v1676 = vunpack.c.l.b16 %v992
      %v1677 = vunpack.c.l.b16 %v993
      %v1678 = vunpack.c.l.b16 %v994
      %v1679 = vunpack.c.l.b16 %v995
      %v1680 = vunpack.c.l.b16 %v996
      %v1681 = vunpack.c.l.b16 %v997
      %v1682 = vunpack.c.l.b16 %v998
      %v1683 = vpack.c.b16 %v1652, %v1651
      %v1684 = vpack.c.b16 %v1654, %v1653
      %v1685 = vpack.c.b16 %v1656, %v1655
      %v1686 = vpack.c.b16 %v1658, %v1657
      %v1687 = vpack.c.b16 %v1660, %v1659
      %v1688 = vpack.c.b16 %v1662, %v1661
      %v1689 = vpack.c.b16 %v1664, %v1663
      %v1690 = vpack.c.b16 %v1666, %v1665
      %v1691 = vpack.c.b16 %v1668, %v1667
      %v1692 = vpack.c.b16 %v1670, %v1669
      %v1693 = vpack.c.b16 %v1672, %v1671
      %v1694 = vpack.c.b16 %v1674, %v1673
      %v1695 = vpack.c.b16 %v1676, %v1675
      %v1696 = vpack.c.b16 %v1678, %v1677
      %v1697 = vpack.c.b16 %v1680, %v1679
      %v1698 = vpack.c.b16 %v1682, %v1681
      %v1700 = vsel %vm1477, %v1683, 0
      %v1703 = vsel %vm1477, %v1684, 0
      %v1706 = vsel %vm1477, %v1685, 0
      %v1709 = vsel %vm1477, %v1686, 0
      %v1712 = vsel %vm1477, %v1687, 0
      %v1715 = vsel %vm1477, %v1688, 0
      %v1718 = vsel %vm1477, %v1689, 0
      %v1721 = vsel %vm1477, %v1690, 0
      %v1724 = vsel %vm1477, %v1691, 0
      %v1727 = vsel %vm1477, %v1692, 0
      %v1730 = vsel %vm1477, %v1693, 0
      %v1733 = vsel %vm1477, %v1694, 0
      %v1736 = vsel %vm1477, %v1695, 0
      %v1739 = vsel %vm1477, %v1696, 0
      %v1742 = vsel %vm1477, %v1697, 0
      %v1745 = vsel %vm1477, %v1698, 0
      %v1748 = vsel %vm1526, %v1039, 0
      %1750 = vmatpush.bf16.msra.mxu0 0
      %1751 = vmatpush.bf16.msra.mxu0 0
      %1752 = vmatpush.bf16.msra.mxu0 0
      %1753 = vmatpush.bf16.msra.mxu0 0
      %1754 = vmatpush.bf16.msra.mxu0 0
      %1755 = vmatpush.bf16.msra.mxu0 0
      %1756 = vmatpush.bf16.msra.mxu0 0
      %1757 = vmatpush.bf16.msra.mxu0 %v1748
      %1758 = vmatmul.bf16.gmra.mxu0 %v1700
      %v1759 = vpop.f32.mrf.mxu0
      %v1760 = vadd.f32 %v1540, %v1759
      %v1761 = vpop.f32.mrf.mxu0
      %v1762 = vadd.f32 %v1542, %v1761
      %1763 = vmatmul.bf16.gmra.mxu0 %v1703
      %v1764 = vpop.f32.mrf.mxu0
      %v1765 = vadd.f32 %v1545, %v1764
      %v1766 = vpop.f32.mrf.mxu0
      %v1767 = vadd.f32 %v1547, %v1766
      %1768 = vmatmul.bf16.gmra.mxu0 %v1706
      %v1769 = vpop.f32.mrf.mxu0
      %v1770 = vadd.f32 %v1550, %v1769
      %v1771 = vpop.f32.mrf.mxu0
      %v1772 = vadd.f32 %v1552, %v1771
      %1773 = vmatmul.bf16.gmra.mxu0 %v1709
      %v1774 = vpop.f32.mrf.mxu0
      %v1775 = vadd.f32 %v1555, %v1774
      %v1776 = vpop.f32.mrf.mxu0
      %v1777 = vadd.f32 %v1557, %v1776
      %1778 = vmatmul.bf16.gmra.mxu0 %v1712
      %v1779 = vpop.f32.mrf.mxu0
      %v1780 = vadd.f32 %v1560, %v1779
      %v1781 = vpop.f32.mrf.mxu0
      %v1782 = vadd.f32 %v1562, %v1781
      %1783 = vmatmul.bf16.gmra.mxu0 %v1715
      %v1784 = vpop.f32.mrf.mxu0
      %v1785 = vadd.f32 %v1565, %v1784
      %v1786 = vpop.f32.mrf.mxu0
      %v1787 = vadd.f32 %v1567, %v1786
      %1788 = vmatmul.bf16.gmra.mxu0 %v1718
      %v1789 = vpop.f32.mrf.mxu0
      %v1790 = vadd.f32 %v1570, %v1789
      %v1791 = vpop.f32.mrf.mxu0
      %v1792 = vadd.f32 %v1572, %v1791
      %1793 = vmatmul.bf16.gmra.mxu0 %v1721
      %v1794 = vpop.f32.mrf.mxu0
      %v1795 = vadd.f32 %v1575, %v1794
      %v1796 = vpop.f32.mrf.mxu0
      %v1797 = vadd.f32 %v1577, %v1796
      %1798 = vmatmul.bf16.gmra.mxu0 %v1724
      %v1799 = vpop.f32.mrf.mxu0
      %v1800 = vadd.f32 %v1580, %v1799
      %v1801 = vpop.f32.mrf.mxu0
      %v1802 = vadd.f32 %v1582, %v1801
      %1803 = vmatmul.bf16.gmra.mxu0 %v1727
      %v1804 = vpop.f32.mrf.mxu0
      %v1805 = vadd.f32 %v1585, %v1804
      %v1806 = vpop.f32.mrf.mxu0
      %v1807 = vadd.f32 %v1587, %v1806
      %1808 = vmatmul.bf16.gmra.mxu0 %v1730
      %v1809 = vpop.f32.mrf.mxu0
      %v1810 = vadd.f32 %v1590, %v1809
      %v1811 = vpop.f32.mrf.mxu0
      %v1812 = vadd.f32 %v1592, %v1811
      %1813 = vmatmul.bf16.gmra.mxu0 %v1733
      %v1814 = vpop.f32.mrf.mxu0
      %v1815 = vadd.f32 %v1595, %v1814
      %v1816 = vpop.f32.mrf.mxu0
      %v1817 = vadd.f32 %v1597, %v1816
      %1818 = vmatmul.bf16.gmra.mxu0 %v1736
      %v1819 = vpop.f32.mrf.mxu0
      %v1820 = vadd.f32 %v1600, %v1819
      %v1821 = vpop.f32.mrf.mxu0
      %v1822 = vadd.f32 %v1602, %v1821
      %1823 = vmatmul.bf16.gmra.mxu0 %v1739
      %v1824 = vpop.f32.mrf.mxu0
      %v1825 = vadd.f32 %v1605, %v1824
      %v1826 = vpop.f32.mrf.mxu0
      %v1827 = vadd.f32 %v1607, %v1826
      %1828 = vmatmul.bf16.gmra.mxu0 %v1742
      %v1829 = vpop.f32.mrf.mxu0
      %v1830 = vadd.f32 %v1610, %v1829
      %v1831 = vpop.f32.mrf.mxu0
      %v1832 = vadd.f32 %v1612, %v1831
      %1833 = vmatmul.bf16.gmra.mxu0 %v1745
      %v1834 = vpop.f32.mrf.mxu0
      %v1835 = vadd.f32 %v1615, %v1834
      %v1836 = vpop.f32.mrf.mxu0
      %v1837 = vadd.f32 %v1617, %v1836
      %1838 = vdwg.mxu0
      %vm1871 = vcmask 1042432
      %vm1872 = vcmask 1046532
      %vm1873 = vmor %vm1871, %vm1872
      %v1874 = vrot.slane %v1021, 5
      %v1875 = vrot.slane %v1874, 4
      %v1876 = vrot.slane %v968, 5
      %v1877 = vsel %vm1873, %v1875, %v1876
      %v1878 = vrot.slane %v1876, 4
      %v1879 = vrot.slane %v1003, 5
      %v1880 = vsel %vm1873, %v1878, %v1879
      %v1881 = vrot.slane %v1022, 5
      %v1882 = vrot.slane %v1881, 4
      %v1883 = vrot.slane %v970, 5
      %v1884 = vsel %vm1873, %v1882, %v1883
      %v1885 = vrot.slane %v1883, 4
      %v1886 = vrot.slane %v1004, 5
      %v1887 = vsel %vm1873, %v1885, %v1886
      %v1888 = vrot.slane %v1023, 5
      %v1889 = vrot.slane %v1888, 4
      %v1890 = vrot.slane %v972, 5
      %v1891 = vsel %vm1873, %v1889, %v1890
      %v1892 = vrot.slane %v1890, 4
      %v1893 = vrot.slane %v1005, 5
      %v1894 = vsel %vm1873, %v1892, %v1893
      %v1895 = vrot.slane %v1024, 5
      %v1896 = vrot.slane %v1895, 4
      %v1897 = vrot.slane %v974, 5
      %v1898 = vsel %vm1873, %v1896, %v1897
      %v1899 = vrot.slane %v1897, 4
      %v1900 = vrot.slane %v1006, 5
      %v1901 = vsel %vm1873, %v1899, %v1900
      %v1902 = vrot.slane %v1025, 5
      %v1903 = vrot.slane %v1902, 4
      %v1904 = vrot.slane %v976, 5
      %v1905 = vsel %vm1873, %v1903, %v1904
      %v1906 = vrot.slane %v1904, 4
      %v1907 = vrot.slane %v1007, 5
      %v1908 = vsel %vm1873, %v1906, %v1907
      %v1909 = vrot.slane %v1026, 5
      %v1910 = vrot.slane %v1909, 4
      %v1911 = vrot.slane %v978, 5
      %v1912 = vsel %vm1873, %v1910, %v1911
      %v1913 = vrot.slane %v1911, 4
      %v1914 = vrot.slane %v1008, 5
      %v1915 = vsel %vm1873, %v1913, %v1914
      %v1916 = vrot.slane %v1027, 5
      %v1917 = vrot.slane %v1916, 4
      %v1918 = vrot.slane %v980, 5
      %v1919 = vsel %vm1873, %v1917, %v1918
      %v1920 = vrot.slane %v1918, 4
      %v1921 = vrot.slane %v1009, 5
      %v1922 = vsel %vm1873, %v1920, %v1921
      %v1923 = vrot.slane %v1028, 5
      %v1924 = vrot.slane %v1923, 4
      %v1925 = vrot.slane %v982, 5
      %v1926 = vsel %vm1873, %v1924, %v1925
      %v1927 = vrot.slane %v1925, 4
      %v1928 = vrot.slane %v1010, 5
      %v1929 = vsel %vm1873, %v1927, %v1928
      %v1930 = vrot.slane %v1029, 5
      %v1931 = vrot.slane %v1930, 4
      %v1932 = vrot.slane %v984, 5
      %v1933 = vsel %vm1873, %v1931, %v1932
      %v1934 = vrot.slane %v1932, 4
      %v1935 = vrot.slane %v1011, 5
      %v1936 = vsel %vm1873, %v1934, %v1935
      %v1937 = vrot.slane %v1030, 5
      %v1938 = vrot.slane %v1937, 4
      %v1939 = vrot.slane %v986, 5
      %v1940 = vsel %vm1873, %v1938, %v1939
      %v1941 = vrot.slane %v1939, 4
      %v1942 = vrot.slane %v1012, 5
      %v1943 = vsel %vm1873, %v1941, %v1942
      %v1944 = vrot.slane %v1031, 5
      %v1945 = vrot.slane %v1944, 4
      %v1946 = vrot.slane %v988, 5
      %v1947 = vsel %vm1873, %v1945, %v1946
      %v1948 = vrot.slane %v1946, 4
      %v1949 = vrot.slane %v1013, 5
      %v1950 = vsel %vm1873, %v1948, %v1949
      %v1951 = vrot.slane %v1032, 5
      %v1952 = vrot.slane %v1951, 4
      %v1953 = vrot.slane %v990, 5
      %v1954 = vsel %vm1873, %v1952, %v1953
      %v1955 = vrot.slane %v1953, 4
      %v1956 = vrot.slane %v1014, 5
      %v1957 = vsel %vm1873, %v1955, %v1956
      %v1958 = vrot.slane %v1033, 5
      %v1959 = vrot.slane %v1958, 4
      %v1960 = vrot.slane %v992, 5
      %v1961 = vsel %vm1873, %v1959, %v1960
      %v1962 = vrot.slane %v1960, 4
      %v1963 = vrot.slane %v1015, 5
      %v1964 = vsel %vm1873, %v1962, %v1963
      %v1965 = vrot.slane %v1034, 5
      %v1966 = vrot.slane %v1965, 4
      %v1967 = vrot.slane %v994, 5
      %v1968 = vsel %vm1873, %v1966, %v1967
      %v1969 = vrot.slane %v1967, 4
      %v1970 = vrot.slane %v1016, 5
      %v1971 = vsel %vm1873, %v1969, %v1970
      %v1972 = vrot.slane %v1035, 5
      %v1973 = vrot.slane %v1972, 4
      %v1974 = vrot.slane %v996, 5
      %v1975 = vsel %vm1873, %v1973, %v1974
      %v1976 = vrot.slane %v1974, 4
      %v1977 = vrot.slane %v1017, 5
      %v1978 = vsel %vm1873, %v1976, %v1977
      %v1979 = vrot.slane %v1036, 5
      %v1980 = vrot.slane %v1979, 4
      %v1981 = vrot.slane %v998, 5
      %v1982 = vsel %vm1873, %v1980, %v1981
      %v1983 = vrot.slane %v1981, 4
      %v1984 = vrot.slane %v1018, 5
      %v1985 = vsel %vm1873, %v1983, %v1984
      %s1986 = scalar_lea.vmem %s1, 8
      %v1987 = vld [vmem:[%s1986] sm:$0xf]
      %v1988 = vunpack.c.l.b16 %v1877
      %v1989 = vunpack.c.l.b16 %v1880
      %v1990 = vunpack.c.l.b16 %v1884
      %v1991 = vunpack.c.l.b16 %v1887
      %v1992 = vunpack.c.l.b16 %v1891
      %v1993 = vunpack.c.l.b16 %v1894
      %v1994 = vunpack.c.l.b16 %v1898
      %v1995 = vunpack.c.l.b16 %v1901
      %v1996 = vunpack.c.l.b16 %v1905
      %v1997 = vunpack.c.l.b16 %v1908
      %v1998 = vunpack.c.l.b16 %v1912
      %v1999 = vunpack.c.l.b16 %v1915
      %v2000 = vunpack.c.l.b16 %v1919
      %v2001 = vunpack.c.l.b16 %v1922
      %v2002 = vunpack.c.l.b16 %v1926
      %v2003 = vunpack.c.l.b16 %v1929
      %v2004 = vunpack.c.l.b16 %v1933
      %v2005 = vunpack.c.l.b16 %v1936
      %v2006 = vunpack.c.l.b16 %v1940
      %v2007 = vunpack.c.l.b16 %v1943
      %v2008 = vunpack.c.l.b16 %v1947
      %v2009 = vunpack.c.l.b16 %v1950
      %v2010 = vunpack.c.l.b16 %v1954
      %v2011 = vunpack.c.l.b16 %v1957
      %v2012 = vunpack.c.l.b16 %v1961
      %v2013 = vunpack.c.l.b16 %v1964
      %v2014 = vunpack.c.l.b16 %v1968
      %v2015 = vunpack.c.l.b16 %v1971
      %v2016 = vunpack.c.l.b16 %v1975
      %v2017 = vunpack.c.l.b16 %v1978
      %v2018 = vunpack.c.l.b16 %v1982
      %v2019 = vunpack.c.l.b16 %v1985
      %v2020 = vpack.c.b16 %v1989, %v1988
      %v2021 = vpack.c.b16 %v1991, %v1990
      %v2022 = vpack.c.b16 %v1993, %v1992
      %v2023 = vpack.c.b16 %v1995, %v1994
      %v2024 = vpack.c.b16 %v1997, %v1996
      %v2025 = vpack.c.b16 %v1999, %v1998
      %v2026 = vpack.c.b16 %v2001, %v2000
      %v2027 = vpack.c.b16 %v2003, %v2002
      %v2028 = vpack.c.b16 %v2005, %v2004
      %v2029 = vpack.c.b16 %v2007, %v2006
      %v2030 = vpack.c.b16 %v2009, %v2008
      %v2031 = vpack.c.b16 %v2011, %v2010
      %v2032 = vpack.c.b16 %v2013, %v2012
      %v2033 = vpack.c.b16 %v2015, %v2014
      %v2034 = vpack.c.b16 %v2017, %v2016
      %v2035 = vpack.c.b16 %v2019, %v2018
      %v2037 = vsel %vm1477, %v2020, 0
      %v2040 = vsel %vm1477, %v2021, 0
      %v2043 = vsel %vm1477, %v2022, 0
      %v2046 = vsel %vm1477, %v2023, 0
      %v2049 = vsel %vm1477, %v2024, 0
      %v2052 = vsel %vm1477, %v2025, 0
      %v2055 = vsel %vm1477, %v2026, 0
      %v2058 = vsel %vm1477, %v2027, 0
      %v2061 = vsel %vm1477, %v2028, 0
      %v2064 = vsel %vm1477, %v2029, 0
      %v2067 = vsel %vm1477, %v2030, 0
      %v2070 = vsel %vm1477, %v2031, 0
      %v2073 = vsel %vm1477, %v2032, 0
      %v2076 = vsel %vm1477, %v2033, 0
      %v2079 = vsel %vm1477, %v2034, 0
      %v2082 = vsel %vm1477, %v2035, 0
      %v2085 = vsel %vm1526, %v1987, 0
      %2087 = vmatpush.bf16.msra.mxu0 0
      %2088 = vmatpush.bf16.msra.mxu0 0
      %2089 = vmatpush.bf16.msra.mxu0 0
      %2090 = vmatpush.bf16.msra.mxu0 0
      %2091 = vmatpush.bf16.msra.mxu0 0
      %2092 = vmatpush.bf16.msra.mxu0 0
      %2093 = vmatpush.bf16.msra.mxu0 0
      %2094 = vmatpush.bf16.msra.mxu0 %v2085
      %2095 = vmatmul.bf16.gmra.mxu0 %v2037
      %v2096 = vpop.f32.mrf.mxu0
      %v2097 = vadd.f32 0.0, %v2096
      %v2098 = vpop.f32.mrf.mxu0
      %v2099 = vadd.f32 0.0, %v2098
      %2100 = vmatmul.bf16.gmra.mxu0 %v2040
      %v2101 = vpop.f32.mrf.mxu0
      %v2102 = vadd.f32 0.0, %v2101
      %v2103 = vpop.f32.mrf.mxu0
      %v2104 = vadd.f32 0.0, %v2103
      %2105 = vmatmul.bf16.gmra.mxu0 %v2043
      %v2106 = vpop.f32.mrf.mxu0
      %v2107 = vadd.f32 0.0, %v2106
      %v2108 = vpop.f32.mrf.mxu0
      %v2109 = vadd.f32 0.0, %v2108
      %2110 = vmatmul.bf16.gmra.mxu0 %v2046
      %v2111 = vpop.f32.mrf.mxu0
      %v2112 = vadd.f32 0.0, %v2111
      %v2113 = vpop.f32.mrf.mxu0
      %v2114 = vadd.f32 0.0, %v2113
      %2115 = vmatmul.bf16.gmra.mxu0 %v2049
      %v2116 = vpop.f32.mrf.mxu0
      %v2117 = vadd.f32 0.0, %v2116
      %v2118 = vpop.f32.mrf.mxu0
      %v2119 = vadd.f32 0.0, %v2118
      %2120 = vmatmul.bf16.gmra.mxu0 %v2052
      %v2121 = vpop.f32.mrf.mxu0
      %v2122 = vadd.f32 0.0, %v2121
      %v2123 = vpop.f32.mrf.mxu0
      %v2124 = vadd.f32 0.0, %v2123
      %2125 = vmatmul.bf16.gmra.mxu0 %v2055
      %v2126 = vpop.f32.mrf.mxu0
      %v2127 = vadd.f32 0.0, %v2126
      %v2128 = vpop.f32.mrf.mxu0
      %v2129 = vadd.f32 0.0, %v2128
      %2130 = vmatmul.bf16.gmra.mxu0 %v2058
      %v2131 = vpop.f32.mrf.mxu0
      %v2132 = vadd.f32 0.0, %v2131
      %v2133 = vpop.f32.mrf.mxu0
      %v2134 = vadd.f32 0.0, %v2133
      %2135 = vmatmul.bf16.gmra.mxu0 %v2061
      %v2136 = vpop.f32.mrf.mxu0
      %v2137 = vadd.f32 0.0, %v2136
      %v2138 = vpop.f32.mrf.mxu0
      %v2139 = vadd.f32 0.0, %v2138
      %2140 = vmatmul.bf16.gmra.mxu0 %v2064
      %v2141 = vpop.f32.mrf.mxu0
      %v2142 = vadd.f32 0.0, %v2141
      %v2143 = vpop.f32.mrf.mxu0
      %v2144 = vadd.f32 0.0, %v2143
      %2145 = vmatmul.bf16.gmra.mxu0 %v2067
      %v2146 = vpop.f32.mrf.mxu0
      %v2147 = vadd.f32 0.0, %v2146
      %v2148 = vpop.f32.mrf.mxu0
      %v2149 = vadd.f32 0.0, %v2148
      %2150 = vmatmul.bf16.gmra.mxu0 %v2070
      %v2151 = vpop.f32.mrf.mxu0
      %v2152 = vadd.f32 0.0, %v2151
      %v2153 = vpop.f32.mrf.mxu0
      %v2154 = vadd.f32 0.0, %v2153
      %2155 = vmatmul.bf16.gmra.mxu0 %v2073
      %v2156 = vpop.f32.mrf.mxu0
      %v2157 = vadd.f32 0.0, %v2156
      %v2158 = vpop.f32.mrf.mxu0
      %v2159 = vadd.f32 0.0, %v2158
      %2160 = vmatmul.bf16.gmra.mxu0 %v2076
      %v2161 = vpop.f32.mrf.mxu0
      %v2162 = vadd.f32 0.0, %v2161
      %v2163 = vpop.f32.mrf.mxu0
      %v2164 = vadd.f32 0.0, %v2163
      %2165 = vmatmul.bf16.gmra.mxu0 %v2079
      %v2166 = vpop.f32.mrf.mxu0
      %v2167 = vadd.f32 0.0, %v2166
      %v2168 = vpop.f32.mrf.mxu0
      %v2169 = vadd.f32 0.0, %v2168
      %2170 = vmatmul.bf16.gmra.mxu0 %v2082
      %v2171 = vpop.f32.mrf.mxu0
      %v2172 = vadd.f32 0.0, %v2171
      %v2173 = vpop.f32.mrf.mxu0
      %v2174 = vadd.f32 0.0, %v2173
      %2175 = vdwg.mxu0
      %v2176 = vadd.f32 %v1760, %v2097
      %v2177 = vadd.f32 %v1762, %v2099
      %v2178 = vadd.f32 %v1765, %v2102
      %v2179 = vadd.f32 %v1767, %v2104
      %v2180 = vadd.f32 %v1770, %v2107
      %v2181 = vadd.f32 %v1772, %v2109
      %v2182 = vadd.f32 %v1775, %v2112
      %v2183 = vadd.f32 %v1777, %v2114
      %v2184 = vadd.f32 %v1780, %v2117
      %v2185 = vadd.f32 %v1782, %v2119
      %v2186 = vadd.f32 %v1785, %v2122
      %v2187 = vadd.f32 %v1787, %v2124
      %v2188 = vadd.f32 %v1790, %v2127
      %v2189 = vadd.f32 %v1792, %v2129
      %v2190 = vadd.f32 %v1795, %v2132
      %v2191 = vadd.f32 %v1797, %v2134
      %v2192 = vadd.f32 %v1800, %v2137
      %v2193 = vadd.f32 %v1802, %v2139
      %v2194 = vadd.f32 %v1805, %v2142
      %v2195 = vadd.f32 %v1807, %v2144
      %v2196 = vadd.f32 %v1810, %v2147
      %v2197 = vadd.f32 %v1812, %v2149
      %v2198 = vadd.f32 %v1815, %v2152
      %v2199 = vadd.f32 %v1817, %v2154
      %v2200 = vadd.f32 %v1820, %v2157
      %v2201 = vadd.f32 %v1822, %v2159
      %v2202 = vadd.f32 %v1825, %v2162
      %v2203 = vadd.f32 %v1827, %v2164
      %v2204 = vadd.f32 %v1830, %v2167
      %v2205 = vadd.f32 %v1832, %v2169
      %v2206 = vadd.f32 %v1835, %v2172
      %v2207 = vadd.f32 %v1837, %v2174
      %s2208 = scalar_lea.vmem %s1, 12
      %v2209 = vld [vmem:[%s2208] sm:$0xf]
      %v2212 = vunpack.c.l.b16 %v999
      %v2213 = vunpack.c.l.b16 %v1000
      %v2214 = vpack.c.b16 %v2213, %v2212
      %v2216 = vsel %vm1477, %v2214, 0
      %v2219 = vsel %vm1526, %v2209, 0
      %2221 = vmatpush.bf16.msra.mxu0 0
      %2222 = vmatpush.bf16.msra.mxu0 0
      %2223 = vmatpush.bf16.msra.mxu0 0
      %2224 = vmatpush.bf16.msra.mxu0 0
      %2225 = vmatpush.bf16.msra.mxu0 0
      %2226 = vmatpush.bf16.msra.mxu0 0
      %2227 = vmatpush.bf16.msra.mxu0 0
      %2228 = vmatpush.bf16.msra.mxu0 %v2219
      %2229 = vmatmul.bf16.gmra.mxu0 %v1703
      %v2230 = vpop.f32.mrf.mxu0
      %v2231 = vadd.f32 0.0, %v2230
      %v2232 = vpop.f32.mrf.mxu0
      %v2233 = vadd.f32 0.0, %v2232
      %2234 = vmatmul.bf16.gmra.mxu0 %v1706
      %v2235 = vpop.f32.mrf.mxu0
      %v2236 = vadd.f32 0.0, %v2235
      %v2237 = vpop.f32.mrf.mxu0
      %v2238 = vadd.f32 0.0, %v2237
      %2239 = vmatmul.bf16.gmra.mxu0 %v1709
      %v2240 = vpop.f32.mrf.mxu0
      %v2241 = vadd.f32 0.0, %v2240
      %v2242 = vpop.f32.mrf.mxu0
      %v2243 = vadd.f32 0.0, %v2242
      %2244 = vmatmul.bf16.gmra.mxu0 %v1712
      %v2245 = vpop.f32.mrf.mxu0
      %v2246 = vadd.f32 0.0, %v2245
      %v2247 = vpop.f32.mrf.mxu0
      %v2248 = vadd.f32 0.0, %v2247
      %2249 = vmatmul.bf16.gmra.mxu0 %v1715
      %v2250 = vpop.f32.mrf.mxu0
      %v2251 = vadd.f32 0.0, %v2250
      %v2252 = vpop.f32.mrf.mxu0
      %v2253 = vadd.f32 0.0, %v2252
      %2254 = vmatmul.bf16.gmra.mxu0 %v1718
      %v2255 = vpop.f32.mrf.mxu0
      %v2256 = vadd.f32 0.0, %v2255
      %v2257 = vpop.f32.mrf.mxu0
      %v2258 = vadd.f32 0.0, %v2257
      %2259 = vmatmul.bf16.gmra.mxu0 %v1721
      %v2260 = vpop.f32.mrf.mxu0
      %v2261 = vadd.f32 0.0, %v2260
      %v2262 = vpop.f32.mrf.mxu0
      %v2263 = vadd.f32 0.0, %v2262
      %2264 = vmatmul.bf16.gmra.mxu0 %v1724
      %v2265 = vpop.f32.mrf.mxu0
      %v2266 = vadd.f32 0.0, %v2265
      %v2267 = vpop.f32.mrf.mxu0
      %v2268 = vadd.f32 0.0, %v2267
      %2269 = vmatmul.bf16.gmra.mxu0 %v1727
      %v2270 = vpop.f32.mrf.mxu0
      %v2271 = vadd.f32 0.0, %v2270
      %v2272 = vpop.f32.mrf.mxu0
      %v2273 = vadd.f32 0.0, %v2272
      %2274 = vmatmul.bf16.gmra.mxu0 %v1730
      %v2275 = vpop.f32.mrf.mxu0
      %v2276 = vadd.f32 0.0, %v2275
      %v2277 = vpop.f32.mrf.mxu0
      %v2278 = vadd.f32 0.0, %v2277
      %2279 = vmatmul.bf16.gmra.mxu0 %v1733
      %v2280 = vpop.f32.mrf.mxu0
      %v2281 = vadd.f32 0.0, %v2280
      %v2282 = vpop.f32.mrf.mxu0
      %v2283 = vadd.f32 0.0, %v2282
      %2284 = vmatmul.bf16.gmra.mxu0 %v1736
      %v2285 = vpop.f32.mrf.mxu0
      %v2286 = vadd.f32 0.0, %v2285
      %v2287 = vpop.f32.mrf.mxu0
      %v2288 = vadd.f32 0.0, %v2287
      %2289 = vmatmul.bf16.gmra.mxu0 %v1739
      %v2290 = vpop.f32.mrf.mxu0
      %v2291 = vadd.f32 0.0, %v2290
      %v2292 = vpop.f32.mrf.mxu0
      %v2293 = vadd.f32 0.0, %v2292
      %2294 = vmatmul.bf16.gmra.mxu0 %v1742
      %v2295 = vpop.f32.mrf.mxu0
      %v2296 = vadd.f32 0.0, %v2295
      %v2297 = vpop.f32.mrf.mxu0
      %v2298 = vadd.f32 0.0, %v2297
      %2299 = vmatmul.bf16.gmra.mxu0 %v1745
      %v2300 = vpop.f32.mrf.mxu0
      %v2301 = vadd.f32 0.0, %v2300
      %v2302 = vpop.f32.mrf.mxu0
      %v2303 = vadd.f32 0.0, %v2302
      %2304 = vmatmul.bf16.gmra.mxu0 %v2216
      %v2305 = vpop.f32.mrf.mxu0
      %v2306 = vadd.f32 0.0, %v2305
      %v2307 = vpop.f32.mrf.mxu0
      %v2308 = vadd.f32 0.0, %v2307
      %2309 = vdwg.mxu0
      %v2310 = vadd.f32 %v2176, %v2231
      %v2311 = vadd.f32 %v2177, %v2233
      %v2312 = vadd.f32 %v2178, %v2236
      %v2313 = vadd.f32 %v2179, %v2238
      %v2314 = vadd.f32 %v2180, %v2241
      %v2315 = vadd.f32 %v2181, %v2243
      %v2316 = vadd.f32 %v2182, %v2246
      %v2317 = vadd.f32 %v2183, %v2248
      %v2318 = vadd.f32 %v2184, %v2251
      %v2319 = vadd.f32 %v2185, %v2253
      %v2320 = vadd.f32 %v2186, %v2256
      %v2321 = vadd.f32 %v2187, %v2258
      %v2322 = vadd.f32 %v2188, %v2261
      %v2323 = vadd.f32 %v2189, %v2263
      %v2324 = vadd.f32 %v2190, %v2266
      %v2325 = vadd.f32 %v2191, %v2268
      %v2326 = vadd.f32 %v2192, %v2271
      %v2327 = vadd.f32 %v2193, %v2273
      %v2328 = vadd.f32 %v2194, %v2276
      %v2329 = vadd.f32 %v2195, %v2278
      %v2330 = vadd.f32 %v2196, %v2281
      %v2331 = vadd.f32 %v2197, %v2283
      %v2332 = vadd.f32 %v2198, %v2286
      %v2333 = vadd.f32 %v2199, %v2288
      %v2334 = vadd.f32 %v2200, %v2291
      %v2335 = vadd.f32 %v2201, %v2293
      %v2336 = vadd.f32 %v2202, %v2296
      %v2337 = vadd.f32 %v2203, %v2298
      %v2338 = vadd.f32 %v2204, %v2301
      %v2339 = vadd.f32 %v2205, %v2303
      %v2340 = vadd.f32 %v2206, %v2306
      %v2341 = vadd.f32 %v2207, %v2308
      %v2343 = vshrl.u32 %v999, 16
      %v2345 = vrot.slane %v2343, 4
      %v2346 = vshll.u32 %v999, 16
      %v2348 = vrot.slane %v2346, 5
      %v2349 = vor.u32 %v2345, %v2348
      %v2350 = vrot.slane %v2349, 4
      %v2352 = vshll.u32 %v1000, 16
      %v2354 = vrot.slane %v2352, 5
      %v2355 = vsel %vm1042, %v2350, %v2354
      %v2356 = vshrl.u32 %v1000, 16
      %v2358 = vrot.slane %v2356, 4
      %v2359 = vor.u32 %v2358, %v2354
      %v2360 = vrot.slane %v2359, 4
      %v2362 = vshll.u32 %v1019, 16
      %v2364 = vrot.slane %v2362, 5
      %v2365 = vsel %vm1042, %v2360, %v2364
      %s2366 = scalar_lea.vmem %s1, 16
      %v2367 = vld [vmem:[%s2366] sm:$0xf]
      %v2368 = vunpack.c.l.b16 %v2355
      %v2369 = vunpack.c.l.b16 %v2365
      %v2370 = vpack.c.b16 %v2369, %v2368
      %v2372 = vsel %vm1477, %v2370, 0
      %v2375 = vsel %vm1526, %v2367, 0
      %2377 = vmatpush.bf16.msra.mxu0 0
      %2378 = vmatpush.bf16.msra.mxu0 0
      %2379 = vmatpush.bf16.msra.mxu0 0
      %2380 = vmatpush.bf16.msra.mxu0 0
      %2381 = vmatpush.bf16.msra.mxu0 0
      %2382 = vmatpush.bf16.msra.mxu0 0
      %2383 = vmatpush.bf16.msra.mxu0 0
      %2384 = vmatpush.bf16.msra.mxu0 %v2375
      %2385 = vmatmul.bf16.gmra.mxu0 %v1482
      %v2386 = vpop.f32.mrf.mxu0
      %v2387 = vadd.f32 0.0, %v2386
      %v2388 = vpop.f32.mrf.mxu0
      %v2389 = vadd.f32 0.0, %v2388
      %2390 = vmatmul.bf16.gmra.mxu0 %v1485
      %v2391 = vpop.f32.mrf.mxu0
      %v2392 = vadd.f32 0.0, %v2391
      %v2393 = vpop.f32.mrf.mxu0
      %v2394 = vadd.f32 0.0, %v2393
      %2395 = vmatmul.bf16.gmra.mxu0 %v1488
      %v2396 = vpop.f32.mrf.mxu0
      %v2397 = vadd.f32 0.0, %v2396
      %v2398 = vpop.f32.mrf.mxu0
      %v2399 = vadd.f32 0.0, %v2398
      %2400 = vmatmul.bf16.gmra.mxu0 %v1491
      %v2401 = vpop.f32.mrf.mxu0
      %v2402 = vadd.f32 0.0, %v2401
      %v2403 = vpop.f32.mrf.mxu0
      %v2404 = vadd.f32 0.0, %v2403
      %2405 = vmatmul.bf16.gmra.mxu0 %v1494
      %v2406 = vpop.f32.mrf.mxu0
      %v2407 = vadd.f32 0.0, %v2406
      %v2408 = vpop.f32.mrf.mxu0
      %v2409 = vadd.f32 0.0, %v2408
      %2410 = vmatmul.bf16.gmra.mxu0 %v1497
      %v2411 = vpop.f32.mrf.mxu0
      %v2412 = vadd.f32 0.0, %v2411
      %v2413 = vpop.f32.mrf.mxu0
      %v2414 = vadd.f32 0.0, %v2413
      %2415 = vmatmul.bf16.gmra.mxu0 %v1500
      %v2416 = vpop.f32.mrf.mxu0
      %v2417 = vadd.f32 0.0, %v2416
      %v2418 = vpop.f32.mrf.mxu0
      %v2419 = vadd.f32 0.0, %v2418
      %2420 = vmatmul.bf16.gmra.mxu0 %v1503
      %v2421 = vpop.f32.mrf.mxu0
      %v2422 = vadd.f32 0.0, %v2421
      %v2423 = vpop.f32.mrf.mxu0
      %v2424 = vadd.f32 0.0, %v2423
      %2425 = vmatmul.bf16.gmra.mxu0 %v1506
      %v2426 = vpop.f32.mrf.mxu0
      %v2427 = vadd.f32 0.0, %v2426
      %v2428 = vpop.f32.mrf.mxu0
      %v2429 = vadd.f32 0.0, %v2428
      %2430 = vmatmul.bf16.gmra.mxu0 %v1509
      %v2431 = vpop.f32.mrf.mxu0
      %v2432 = vadd.f32 0.0, %v2431
      %v2433 = vpop.f32.mrf.mxu0
      %v2434 = vadd.f32 0.0, %v2433
      %2435 = vmatmul.bf16.gmra.mxu0 %v1512
      %v2436 = vpop.f32.mrf.mxu0
      %v2437 = vadd.f32 0.0, %v2436
      %v2438 = vpop.f32.mrf.mxu0
      %v2439 = vadd.f32 0.0, %v2438
      %2440 = vmatmul.bf16.gmra.mxu0 %v1515
      %v2441 = vpop.f32.mrf.mxu0
      %v2442 = vadd.f32 0.0, %v2441
      %v2443 = vpop.f32.mrf.mxu0
      %v2444 = vadd.f32 0.0, %v2443
      %2445 = vmatmul.bf16.gmra.mxu0 %v1518
      %v2446 = vpop.f32.mrf.mxu0
      %v2447 = vadd.f32 0.0, %v2446
      %v2448 = vpop.f32.mrf.mxu0
      %v2449 = vadd.f32 0.0, %v2448
      %2450 = vmatmul.bf16.gmra.mxu0 %v1521
      %v2451 = vpop.f32.mrf.mxu0
      %v2452 = vadd.f32 0.0, %v2451
      %v2453 = vpop.f32.mrf.mxu0
      %v2454 = vadd.f32 0.0, %v2453
      %2455 = vmatmul.bf16.gmra.mxu0 %v1524
      %v2456 = vpop.f32.mrf.mxu0
      %v2457 = vadd.f32 0.0, %v2456
      %v2458 = vpop.f32.mrf.mxu0
      %v2459 = vadd.f32 0.0, %v2458
      %2460 = vmatmul.bf16.gmra.mxu0 %v2372
      %v2461 = vpop.f32.mrf.mxu0
      %v2462 = vadd.f32 0.0, %v2461
      %v2463 = vpop.f32.mrf.mxu0
      %v2464 = vadd.f32 0.0, %v2463
      %2465 = vdwg.mxu0
      %v2466 = vadd.f32 %v2310, %v2387
      %v2467 = vadd.f32 %v2311, %v2389
      %v2468 = vadd.f32 %v2312, %v2392
      %v2469 = vadd.f32 %v2313, %v2394
      %v2470 = vadd.f32 %v2314, %v2397
      %v2471 = vadd.f32 %v2315, %v2399
      %v2472 = vadd.f32 %v2316, %v2402
      %v2473 = vadd.f32 %v2317, %v2404
      %v2474 = vadd.f32 %v2318, %v2407
      %v2475 = vadd.f32 %v2319, %v2409
      %v2476 = vadd.f32 %v2320, %v2412
      %v2477 = vadd.f32 %v2321, %v2414
      %v2478 = vadd.f32 %v2322, %v2417
      %v2479 = vadd.f32 %v2323, %v2419
      %v2480 = vadd.f32 %v2324, %v2422
      %v2481 = vadd.f32 %v2325, %v2424
      %v2482 = vadd.f32 %v2326, %v2427
      %v2483 = vadd.f32 %v2327, %v2429
      %v2484 = vadd.f32 %v2328, %v2432
      %v2485 = vadd.f32 %v2329, %v2434
      %v2486 = vadd.f32 %v2330, %v2437
      %v2487 = vadd.f32 %v2331, %v2439
      %v2488 = vadd.f32 %v2332, %v2442
      %v2489 = vadd.f32 %v2333, %v2444
      %v2490 = vadd.f32 %v2334, %v2447
      %v2491 = vadd.f32 %v2335, %v2449
      %v2492 = vadd.f32 %v2336, %v2452
      %v2493 = vadd.f32 %v2337, %v2454
      %v2494 = vadd.f32 %v2338, %v2457
      %v2495 = vadd.f32 %v2339, %v2459
      %v2496 = vadd.f32 %v2340, %v2462
      %v2497 = vadd.f32 %v2341, %v2464
      %v2500 = vrot.slane %v1037, 5
      %v2501 = vrot.slane %v2500, 4
      %v2502 = vrot.slane %v1000, 5
      %v2503 = vsel %vm1873, %v2501, %v2502
      %v2504 = vrot.slane %v2502, 4
      %v2505 = vrot.slane %v1019, 5
      %v2506 = vsel %vm1873, %v2504, %v2505
      %s2507 = scalar_lea.vmem %s1, 20
      %v2508 = vld [vmem:[%s2507] sm:$0xf]
      %v2509 = vunpack.c.l.b16 %v2503
      %v2510 = vunpack.c.l.b16 %v2506
      %v2511 = vpack.c.b16 %v2510, %v2509
      %v2513 = vsel %vm1477, %v2511, 0
      %v2516 = vsel %vm1526, %v2508, 0
      %2518 = vmatpush.bf16.msra.mxu0 0
      %2519 = vmatpush.bf16.msra.mxu0 0
      %2520 = vmatpush.bf16.msra.mxu0 0
      %2521 = vmatpush.bf16.msra.mxu0 0
      %2522 = vmatpush.bf16.msra.mxu0 0
      %2523 = vmatpush.bf16.msra.mxu0 0
      %2524 = vmatpush.bf16.msra.mxu0 0
      %2525 = vmatpush.bf16.msra.mxu0 %v2516
      %2526 = vmatmul.bf16.gmra.mxu0 %v2040
      %v2527 = vpop.f32.mrf.mxu0
      %v2528 = vadd.f32 0.0, %v2527
      %v2529 = vpop.f32.mrf.mxu0
      %v2530 = vadd.f32 0.0, %v2529
      %2531 = vmatmul.bf16.gmra.mxu0 %v2043
      %v2532 = vpop.f32.mrf.mxu0
      %v2533 = vadd.f32 0.0, %v2532
      %v2534 = vpop.f32.mrf.mxu0
      %v2535 = vadd.f32 0.0, %v2534
      %2536 = vmatmul.bf16.gmra.mxu0 %v2046
      %v2537 = vpop.f32.mrf.mxu0
      %v2538 = vadd.f32 0.0, %v2537
      %v2539 = vpop.f32.mrf.mxu0
      %v2540 = vadd.f32 0.0, %v2539
      %2541 = vmatmul.bf16.gmra.mxu0 %v2049
      %v2542 = vpop.f32.mrf.mxu0
      %v2543 = vadd.f32 0.0, %v2542
      %v2544 = vpop.f32.mrf.mxu0
      %v2545 = vadd.f32 0.0, %v2544
      %2546 = vmatmul.bf16.gmra.mxu0 %v2052
      %v2547 = vpop.f32.mrf.mxu0
      %v2548 = vadd.f32 0.0, %v2547
      %v2549 = vpop.f32.mrf.mxu0
      %v2550 = vadd.f32 0.0, %v2549
      %2551 = vmatmul.bf16.gmra.mxu0 %v2055
      %v2552 = vpop.f32.mrf.mxu0
      %v2553 = vadd.f32 0.0, %v2552
      %v2554 = vpop.f32.mrf.mxu0
      %v2555 = vadd.f32 0.0, %v2554
      %2556 = vmatmul.bf16.gmra.mxu0 %v2058
      %v2557 = vpop.f32.mrf.mxu0
      %v2558 = vadd.f32 0.0, %v2557
      %v2559 = vpop.f32.mrf.mxu0
      %v2560 = vadd.f32 0.0, %v2559
      %2561 = vmatmul.bf16.gmra.mxu0 %v2061
      %v2562 = vpop.f32.mrf.mxu0
      %v2563 = vadd.f32 0.0, %v2562
      %v2564 = vpop.f32.mrf.mxu0
      %v2565 = vadd.f32 0.0, %v2564
      %2566 = vmatmul.bf16.gmra.mxu0 %v2064
      %v2567 = vpop.f32.mrf.mxu0
      %v2568 = vadd.f32 0.0, %v2567
      %v2569 = vpop.f32.mrf.mxu0
      %v2570 = vadd.f32 0.0, %v2569
      %2571 = vmatmul.bf16.gmra.mxu0 %v2067
      %v2572 = vpop.f32.mrf.mxu0
      %v2573 = vadd.f32 0.0, %v2572
      %v2574 = vpop.f32.mrf.mxu0
      %v2575 = vadd.f32 0.0, %v2574
      %2576 = vmatmul.bf16.gmra.mxu0 %v2070
      %v2577 = vpop.f32.mrf.mxu0
      %v2578 = vadd.f32 0.0, %v2577
      %v2579 = vpop.f32.mrf.mxu0
      %v2580 = vadd.f32 0.0, %v2579
      %2581 = vmatmul.bf16.gmra.mxu0 %v2073
      %v2582 = vpop.f32.mrf.mxu0
      %v2583 = vadd.f32 0.0, %v2582
      %v2584 = vpop.f32.mrf.mxu0
      %v2585 = vadd.f32 0.0, %v2584
      %2586 = vmatmul.bf16.gmra.mxu0 %v2076
      %v2587 = vpop.f32.mrf.mxu0
      %v2588 = vadd.f32 0.0, %v2587
      %v2589 = vpop.f32.mrf.mxu0
      %v2590 = vadd.f32 0.0, %v2589
      %2591 = vmatmul.bf16.gmra.mxu0 %v2079
      %v2592 = vpop.f32.mrf.mxu0
      %v2593 = vadd.f32 0.0, %v2592
      %v2594 = vpop.f32.mrf.mxu0
      %v2595 = vadd.f32 0.0, %v2594
      %2596 = vmatmul.bf16.gmra.mxu0 %v2082
      %v2597 = vpop.f32.mrf.mxu0
      %v2598 = vadd.f32 0.0, %v2597
      %v2599 = vpop.f32.mrf.mxu0
      %v2600 = vadd.f32 0.0, %v2599
      %2601 = vmatmul.bf16.gmra.mxu0 %v2513
      %v2602 = vpop.f32.mrf.mxu0
      %v2603 = vadd.f32 0.0, %v2602
      %v2604 = vpop.f32.mrf.mxu0
      %v2605 = vadd.f32 0.0, %v2604
      %2606 = vdwg.mxu0
      %v2607 = vadd.f32 %v2466, %v2528
      %v2608 = vadd.f32 %v2467, %v2530
      %v2609 = vadd.f32 %v2468, %v2533
      %v2610 = vadd.f32 %v2469, %v2535
      %v2611 = vadd.f32 %v2470, %v2538
      %v2612 = vadd.f32 %v2471, %v2540
      %v2613 = vadd.f32 %v2472, %v2543
      %v2614 = vadd.f32 %v2473, %v2545
      %v2615 = vadd.f32 %v2474, %v2548
      %v2616 = vadd.f32 %v2475, %v2550
      %v2617 = vadd.f32 %v2476, %v2553
      %v2618 = vadd.f32 %v2477, %v2555
      %v2619 = vadd.f32 %v2478, %v2558
      %v2620 = vadd.f32 %v2479, %v2560
      %v2621 = vadd.f32 %v2480, %v2563
      %v2622 = vadd.f32 %v2481, %v2565
      %v2623 = vadd.f32 %v2482, %v2568
      %v2624 = vadd.f32 %v2483, %v2570
      %v2625 = vadd.f32 %v2484, %v2573
      %v2626 = vadd.f32 %v2485, %v2575
      %v2627 = vadd.f32 %v2486, %v2578
      %v2628 = vadd.f32 %v2487, %v2580
      %v2629 = vadd.f32 %v2488, %v2583
      %v2630 = vadd.f32 %v2489, %v2585
      %v2631 = vadd.f32 %v2490, %v2588
      %v2632 = vadd.f32 %v2491, %v2590
      %v2633 = vadd.f32 %v2492, %v2593
      %v2634 = vadd.f32 %v2493, %v2595
      %v2635 = vadd.f32 %v2494, %v2598
      %v2636 = vadd.f32 %v2495, %v2600
      %v2637 = vadd.f32 %v2496, %v2603
      %v2638 = vadd.f32 %v2497, %v2605
      %s2639 = scalar_lea.vmem %s1, 24
      %v2640 = vld [vmem:[%s2639] sm:$0xf]
      %v2643 = vunpack.c.l.b16 %v1001
      %v2644 = vunpack.c.l.b16 %v1002
      %v2645 = vpack.c.b16 %v2644, %v2643
      %v2647 = vsel %vm1477, %v2645, 0
      %v2650 = vsel %vm1526, %v2640, 0
      %2652 = vmatpush.bf16.msra.mxu0 0
      %2653 = vmatpush.bf16.msra.mxu0 0
      %2654 = vmatpush.bf16.msra.mxu0 0
      %2655 = vmatpush.bf16.msra.mxu0 0
      %2656 = vmatpush.bf16.msra.mxu0 0
      %2657 = vmatpush.bf16.msra.mxu0 0
      %2658 = vmatpush.bf16.msra.mxu0 0
      %2659 = vmatpush.bf16.msra.mxu0 %v2650
      %2660 = vmatmul.bf16.gmra.mxu0 %v1706
      %v2661 = vpop.f32.mrf.mxu0
      %v2662 = vadd.f32 0.0, %v2661
      %v2663 = vpop.f32.mrf.mxu0
      %v2664 = vadd.f32 0.0, %v2663
      %2665 = vmatmul.bf16.gmra.mxu0 %v1709
      %v2666 = vpop.f32.mrf.mxu0
      %v2667 = vadd.f32 0.0, %v2666
      %v2668 = vpop.f32.mrf.mxu0
      %v2669 = vadd.f32 0.0, %v2668
      %2670 = vmatmul.bf16.gmra.mxu0 %v1712
      %v2671 = vpop.f32.mrf.mxu0
      %v2672 = vadd.f32 0.0, %v2671
      %v2673 = vpop.f32.mrf.mxu0
      %v2674 = vadd.f32 0.0, %v2673
      %2675 = vmatmul.bf16.gmra.mxu0 %v1715
      %v2676 = vpop.f32.mrf.mxu0
      %v2677 = vadd.f32 0.0, %v2676
      %v2678 = vpop.f32.mrf.mxu0
      %v2679 = vadd.f32 0.0, %v2678
      %2680 = vmatmul.bf16.gmra.mxu0 %v1718
      %v2681 = vpop.f32.mrf.mxu0
      %v2682 = vadd.f32 0.0, %v2681
      %v2683 = vpop.f32.mrf.mxu0
      %v2684 = vadd.f32 0.0, %v2683
      %2685 = vmatmul.bf16.gmra.mxu0 %v1721
      %v2686 = vpop.f32.mrf.mxu0
      %v2687 = vadd.f32 0.0, %v2686
      %v2688 = vpop.f32.mrf.mxu0
      %v2689 = vadd.f32 0.0, %v2688
      %2690 = vmatmul.bf16.gmra.mxu0 %v1724
      %v2691 = vpop.f32.mrf.mxu0
      %v2692 = vadd.f32 0.0, %v2691
      %v2693 = vpop.f32.mrf.mxu0
      %v2694 = vadd.f32 0.0, %v2693
      %2695 = vmatmul.bf16.gmra.mxu0 %v1727
      %v2696 = vpop.f32.mrf.mxu0
      %v2697 = vadd.f32 0.0, %v2696
      %v2698 = vpop.f32.mrf.mxu0
      %v2699 = vadd.f32 0.0, %v2698
      %2700 = vmatmul.bf16.gmra.mxu0 %v1730
      %v2701 = vpop.f32.mrf.mxu0
      %v2702 = vadd.f32 0.0, %v2701
      %v2703 = vpop.f32.mrf.mxu0
      %v2704 = vadd.f32 0.0, %v2703
      %2705 = vmatmul.bf16.gmra.mxu0 %v1733
      %v2706 = vpop.f32.mrf.mxu0
      %v2707 = vadd.f32 0.0, %v2706
      %v2708 = vpop.f32.mrf.mxu0
      %v2709 = vadd.f32 0.0, %v2708
      %2710 = vmatmul.bf16.gmra.mxu0 %v1736
      %v2711 = vpop.f32.mrf.mxu0
      %v2712 = vadd.f32 0.0, %v2711
      %v2713 = vpop.f32.mrf.mxu0
      %v2714 = vadd.f32 0.0, %v2713
      %2715 = vmatmul.bf16.gmra.mxu0 %v1739
      %v2716 = vpop.f32.mrf.mxu0
      %v2717 = vadd.f32 0.0, %v2716
      %v2718 = vpop.f32.mrf.mxu0
      %v2719 = vadd.f32 0.0, %v2718
      %2720 = vmatmul.bf16.gmra.mxu0 %v1742
      %v2721 = vpop.f32.mrf.mxu0
      %v2722 = vadd.f32 0.0, %v2721
      %v2723 = vpop.f32.mrf.mxu0
      %v2724 = vadd.f32 0.0, %v2723
      %2725 = vmatmul.bf16.gmra.mxu0 %v1745
      %v2726 = vpop.f32.mrf.mxu0
      %v2727 = vadd.f32 0.0, %v2726
      %v2728 = vpop.f32.mrf.mxu0
      %v2729 = vadd.f32 0.0, %v2728
      %2730 = vmatmul.bf16.gmra.mxu0 %v2216
      %v2731 = vpop.f32.mrf.mxu0
      %v2732 = vadd.f32 0.0, %v2731
      %v2733 = vpop.f32.mrf.mxu0
      %v2734 = vadd.f32 0.0, %v2733
      %2735 = vmatmul.bf16.gmra.mxu0 %v2647
      %v2736 = vpop.f32.mrf.mxu0
      %v2737 = vadd.f32 0.0, %v2736
      %v2738 = vpop.f32.mrf.mxu0
      %v2739 = vadd.f32 0.0, %v2738
      %2740 = vdwg.mxu0
      %v2741 = vadd.f32 %v2607, %v2662
      %v2742 = vadd.f32 %v2608, %v2664
      %v2743 = vadd.f32 %v2609, %v2667
      %v2744 = vadd.f32 %v2610, %v2669
      %v2745 = vadd.f32 %v2611, %v2672
      %v2746 = vadd.f32 %v2612, %v2674
      %v2747 = vadd.f32 %v2613, %v2677
      %v2748 = vadd.f32 %v2614, %v2679
      %v2749 = vadd.f32 %v2615, %v2682
      %v2750 = vadd.f32 %v2616, %v2684
      %v2751 = vadd.f32 %v2617, %v2687
      %v2752 = vadd.f32 %v2618, %v2689
      %v2753 = vadd.f32 %v2619, %v2692
      %v2754 = vadd.f32 %v2620, %v2694
      %v2755 = vadd.f32 %v2621, %v2697
      %v2756 = vadd.f32 %v2622, %v2699
      %v2757 = vadd.f32 %v2623, %v2702
      %v2758 = vadd.f32 %v2624, %v2704
      %v2759 = vadd.f32 %v2625, %v2707
      %v2760 = vadd.f32 %v2626, %v2709
      %v2761 = vadd.f32 %v2627, %v2712
      %v2762 = vadd.f32 %v2628, %v2714
      %v2763 = vadd.f32 %v2629, %v2717
      %v2764 = vadd.f32 %v2630, %v2719
      %v2765 = vadd.f32 %v2631, %v2722
      %v2766 = vadd.f32 %v2632, %v2724
      %v2767 = vadd.f32 %v2633, %v2727
      %v2768 = vadd.f32 %v2634, %v2729
      %v2769 = vadd.f32 %v2635, %v2732
      %v2770 = vadd.f32 %v2636, %v2734
      %v2771 = vadd.f32 %v2637, %v2737
      %v2772 = vadd.f32 %v2638, %v2739
      %v2774 = vshrl.u32 %v1001, 16
      %v2776 = vrot.slane %v2774, 4
      %v2777 = vshll.u32 %v1001, 16
      %v2779 = vrot.slane %v2777, 5
      %v2780 = vor.u32 %v2776, %v2779
      %v2781 = vrot.slane %v2780, 4
      %v2783 = vshll.u32 %v1002, 16
      %v2785 = vrot.slane %v2783, 5
      %v2786 = vsel %vm1042, %v2781, %v2785
      %v2787 = vshrl.u32 %v1002, 16
      %v2789 = vrot.slane %v2787, 4
      %v2790 = vor.u32 %v2789, %v2785
      %v2791 = vrot.slane %v2790, 4
      %v2793 = vshll.u32 %v1020, 16
      %v2795 = vrot.slane %v2793, 5
      %v2796 = vsel %vm1042, %v2791, %v2795
      %s2797 = scalar_lea.vmem %s1, 28
      %v2798 = vld [vmem:[%s2797] sm:$0xf]
      %v2799 = vunpack.c.l.b16 %v2786
      %v2800 = vunpack.c.l.b16 %v2796
      %v2801 = vpack.c.b16 %v2800, %v2799
      %v2803 = vsel %vm1477, %v2801, 0
      %v2806 = vsel %vm1526, %v2798, 0
      %2808 = vmatpush.bf16.msra.mxu0 0
      %2809 = vmatpush.bf16.msra.mxu0 0
      %2810 = vmatpush.bf16.msra.mxu0 0
      %2811 = vmatpush.bf16.msra.mxu0 0
      %2812 = vmatpush.bf16.msra.mxu0 0
      %2813 = vmatpush.bf16.msra.mxu0 0
      %2814 = vmatpush.bf16.msra.mxu0 0
      %2815 = vmatpush.bf16.msra.mxu0 %v2806
      %2816 = vmatmul.bf16.gmra.mxu0 %v1485
      %v2817 = vpop.f32.mrf.mxu0
      %v2818 = vadd.f32 0.0, %v2817
      %v2819 = vpop.f32.mrf.mxu0
      %v2820 = vadd.f32 0.0, %v2819
      %2821 = vmatmul.bf16.gmra.mxu0 %v1488
      %v2822 = vpop.f32.mrf.mxu0
      %v2823 = vadd.f32 0.0, %v2822
      %v2824 = vpop.f32.mrf.mxu0
      %v2825 = vadd.f32 0.0, %v2824
      %2826 = vmatmul.bf16.gmra.mxu0 %v1491
      %v2827 = vpop.f32.mrf.mxu0
      %v2828 = vadd.f32 0.0, %v2827
      %v2829 = vpop.f32.mrf.mxu0
      %v2830 = vadd.f32 0.0, %v2829
      %2831 = vmatmul.bf16.gmra.mxu0 %v1494
      %v2832 = vpop.f32.mrf.mxu0
      %v2833 = vadd.f32 0.0, %v2832
      %v2834 = vpop.f32.mrf.mxu0
      %v2835 = vadd.f32 0.0, %v2834
      %2836 = vmatmul.bf16.gmra.mxu0 %v1497
      %v2837 = vpop.f32.mrf.mxu0
      %v2838 = vadd.f32 0.0, %v2837
      %v2839 = vpop.f32.mrf.mxu0
      %v2840 = vadd.f32 0.0, %v2839
      %2841 = vmatmul.bf16.gmra.mxu0 %v1500
      %v2842 = vpop.f32.mrf.mxu0
      %v2843 = vadd.f32 0.0, %v2842
      %v2844 = vpop.f32.mrf.mxu0
      %v2845 = vadd.f32 0.0, %v2844
      %2846 = vmatmul.bf16.gmra.mxu0 %v1503
      %v2847 = vpop.f32.mrf.mxu0
      %v2848 = vadd.f32 0.0, %v2847
      %v2849 = vpop.f32.mrf.mxu0
      %v2850 = vadd.f32 0.0, %v2849
      %2851 = vmatmul.bf16.gmra.mxu0 %v1506
      %v2852 = vpop.f32.mrf.mxu0
      %v2853 = vadd.f32 0.0, %v2852
      %v2854 = vpop.f32.mrf.mxu0
      %v2855 = vadd.f32 0.0, %v2854
      %2856 = vmatmul.bf16.gmra.mxu0 %v1509
      %v2857 = vpop.f32.mrf.mxu0
      %v2858 = vadd.f32 0.0, %v2857
      %v2859 = vpop.f32.mrf.mxu0
      %v2860 = vadd.f32 0.0, %v2859
      %2861 = vmatmul.bf16.gmra.mxu0 %v1512
      %v2862 = vpop.f32.mrf.mxu0
      %v2863 = vadd.f32 0.0, %v2862
      %v2864 = vpop.f32.mrf.mxu0
      %v2865 = vadd.f32 0.0, %v2864
      %2866 = vmatmul.bf16.gmra.mxu0 %v1515
      %v2867 = vpop.f32.mrf.mxu0
      %v2868 = vadd.f32 0.0, %v2867
      %v2869 = vpop.f32.mrf.mxu0
      %v2870 = vadd.f32 0.0, %v2869
      %2871 = vmatmul.bf16.gmra.mxu0 %v1518
      %v2872 = vpop.f32.mrf.mxu0
      %v2873 = vadd.f32 0.0, %v2872
      %v2874 = vpop.f32.mrf.mxu0
      %v2875 = vadd.f32 0.0, %v2874
      %2876 = vmatmul.bf16.gmra.mxu0 %v1521
      %v2877 = vpop.f32.mrf.mxu0
      %v2878 = vadd.f32 0.0, %v2877
      %v2879 = vpop.f32.mrf.mxu0
      %v2880 = vadd.f32 0.0, %v2879
      %2881 = vmatmul.bf16.gmra.mxu0 %v1524
      %v2882 = vpop.f32.mrf.mxu0
      %v2883 = vadd.f32 0.0, %v2882
      %v2884 = vpop.f32.mrf.mxu0
      %v2885 = vadd.f32 0.0, %v2884
      %2886 = vmatmul.bf16.gmra.mxu0 %v2372
      %v2887 = vpop.f32.mrf.mxu0
      %v2888 = vadd.f32 0.0, %v2887
      %v2889 = vpop.f32.mrf.mxu0
      %v2890 = vadd.f32 0.0, %v2889
      %2891 = vmatmul.bf16.gmra.mxu0 %v2803
      %v2892 = vpop.f32.mrf.mxu0
      %v2893 = vadd.f32 0.0, %v2892
      %v2894 = vpop.f32.mrf.mxu0
      %v2895 = vadd.f32 0.0, %v2894
      %2896 = vdwg.mxu0
      %v2897 = vadd.f32 %v2741, %v2818
      %v2898 = vadd.f32 %v2742, %v2820
      %v2899 = vadd.f32 %v2743, %v2823
      %v2900 = vadd.f32 %v2744, %v2825
      %v2901 = vadd.f32 %v2745, %v2828
      %v2902 = vadd.f32 %v2746, %v2830
      %v2903 = vadd.f32 %v2747, %v2833
      %v2904 = vadd.f32 %v2748, %v2835
      %v2905 = vadd.f32 %v2749, %v2838
      %v2906 = vadd.f32 %v2750, %v2840
      %v2907 = vadd.f32 %v2751, %v2843
      %v2908 = vadd.f32 %v2752, %v2845
      %v2909 = vadd.f32 %v2753, %v2848
      %v2910 = vadd.f32 %v2754, %v2850
      %v2911 = vadd.f32 %v2755, %v2853
      %v2912 = vadd.f32 %v2756, %v2855
      %v2913 = vadd.f32 %v2757, %v2858
      %v2914 = vadd.f32 %v2758, %v2860
      %v2915 = vadd.f32 %v2759, %v2863
      %v2916 = vadd.f32 %v2760, %v2865
      %v2917 = vadd.f32 %v2761, %v2868
      %v2918 = vadd.f32 %v2762, %v2870
      %v2919 = vadd.f32 %v2763, %v2873
      %v2920 = vadd.f32 %v2764, %v2875
      %v2921 = vadd.f32 %v2765, %v2878
      %v2922 = vadd.f32 %v2766, %v2880
      %v2923 = vadd.f32 %v2767, %v2883
      %v2924 = vadd.f32 %v2768, %v2885
      %v2925 = vadd.f32 %v2769, %v2888
      %v2926 = vadd.f32 %v2770, %v2890
      %v2927 = vadd.f32 %v2771, %v2893
      %v2928 = vadd.f32 %v2772, %v2895
      %v2931 = vrot.slane %v1038, 5
      %v2932 = vrot.slane %v2931, 4
      %v2933 = vrot.slane %v1002, 5
      %v2934 = vsel %vm1873, %v2932, %v2933
      %v2935 = vrot.slane %v2933, 4
      %v2936 = vrot.slane %v1020, 5
      %v2937 = vsel %vm1873, %v2935, %v2936
      %s2938 = scalar_lea.vmem %s1, 32
      %v2939 = vld [vmem:[%s2938] sm:$0xf]
      %v2940 = vunpack.c.l.b16 %v2934
      %v2941 = vunpack.c.l.b16 %v2937
      %v2942 = vpack.c.b16 %v2941, %v2940
      %v2944 = vsel %vm1477, %v2942, 0
      %v2947 = vsel %vm1526, %v2939, 0
      %2949 = vmatpush.bf16.msra.mxu0 0
      %2950 = vmatpush.bf16.msra.mxu0 0
      %2951 = vmatpush.bf16.msra.mxu0 0
      %2952 = vmatpush.bf16.msra.mxu0 0
      %2953 = vmatpush.bf16.msra.mxu0 0
      %2954 = vmatpush.bf16.msra.mxu0 0
      %2955 = vmatpush.bf16.msra.mxu0 0
      %2956 = vmatpush.bf16.msra.mxu0 %v2947
      %2957 = vmatmul.bf16.gmra.mxu0 %v2043
      %v2958 = vpop.f32.mrf.mxu0
      %v2959 = vadd.f32 0.0, %v2958
      %v2960 = vpop.f32.mrf.mxu0
      %v2961 = vadd.f32 0.0, %v2960
      %2962 = vmatmul.bf16.gmra.mxu0 %v2046
      %v2963 = vpop.f32.mrf.mxu0
      %v2964 = vadd.f32 0.0, %v2963
      %v2965 = vpop.f32.mrf.mxu0
      %v2966 = vadd.f32 0.0, %v2965
      %2967 = vmatmul.bf16.gmra.mxu0 %v2049
      %v2968 = vpop.f32.mrf.mxu0
      %v2969 = vadd.f32 0.0, %v2968
      %v2970 = vpop.f32.mrf.mxu0
      %v2971 = vadd.f32 0.0, %v2970
      %2972 = vmatmul.bf16.gmra.mxu0 %v2052
      %v2973 = vpop.f32.mrf.mxu0
      %v2974 = vadd.f32 0.0, %v2973
      %v2975 = vpop.f32.mrf.mxu0
      %v2976 = vadd.f32 0.0, %v2975
      %2977 = vmatmul.bf16.gmra.mxu0 %v2055
      %v2978 = vpop.f32.mrf.mxu0
      %v2979 = vadd.f32 0.0, %v2978
      %v2980 = vpop.f32.mrf.mxu0
      %v2981 = vadd.f32 0.0, %v2980
      %2982 = vmatmul.bf16.gmra.mxu0 %v2058
      %v2983 = vpop.f32.mrf.mxu0
      %v2984 = vadd.f32 0.0, %v2983
      %v2985 = vpop.f32.mrf.mxu0
      %v2986 = vadd.f32 0.0, %v2985
      %2987 = vmatmul.bf16.gmra.mxu0 %v2061
      %v2988 = vpop.f32.mrf.mxu0
      %v2989 = vadd.f32 0.0, %v2988
      %v2990 = vpop.f32.mrf.mxu0
      %v2991 = vadd.f32 0.0, %v2990
      %2992 = vmatmul.bf16.gmra.mxu0 %v2064
      %v2993 = vpop.f32.mrf.mxu0
      %v2994 = vadd.f32 0.0, %v2993
      %v2995 = vpop.f32.mrf.mxu0
      %v2996 = vadd.f32 0.0, %v2995
      %2997 = vmatmul.bf16.gmra.mxu0 %v2067
      %v2998 = vpop.f32.mrf.mxu0
      %v2999 = vadd.f32 0.0, %v2998
      %v3000 = vpop.f32.mrf.mxu0
      %v3001 = vadd.f32 0.0, %v3000
      %3002 = vmatmul.bf16.gmra.mxu0 %v2070
      %v3003 = vpop.f32.mrf.mxu0
      %v3004 = vadd.f32 0.0, %v3003
      %v3005 = vpop.f32.mrf.mxu0
      %v3006 = vadd.f32 0.0, %v3005
      %3007 = vmatmul.bf16.gmra.mxu0 %v2073
      %v3008 = vpop.f32.mrf.mxu0
      %v3009 = vadd.f32 0.0, %v3008
      %v3010 = vpop.f32.mrf.mxu0
      %v3011 = vadd.f32 0.0, %v3010
      %3012 = vmatmul.bf16.gmra.mxu0 %v2076
      %v3013 = vpop.f32.mrf.mxu0
      %v3014 = vadd.f32 0.0, %v3013
      %v3015 = vpop.f32.mrf.mxu0
      %v3016 = vadd.f32 0.0, %v3015
      %3017 = vmatmul.bf16.gmra.mxu0 %v2079
      %v3018 = vpop.f32.mrf.mxu0
      %v3019 = vadd.f32 0.0, %v3018
      %v3020 = vpop.f32.mrf.mxu0
      %v3021 = vadd.f32 0.0, %v3020
      %3022 = vmatmul.bf16.gmra.mxu0 %v2082
      %v3023 = vpop.f32.mrf.mxu0
      %v3024 = vadd.f32 0.0, %v3023
      %v3025 = vpop.f32.mrf.mxu0
      %v3026 = vadd.f32 0.0, %v3025
      %3027 = vmatmul.bf16.gmra.mxu0 %v2513
      %v3028 = vpop.f32.mrf.mxu0
      %v3029 = vadd.f32 0.0, %v3028
      %v3030 = vpop.f32.mrf.mxu0
      %v3031 = vadd.f32 0.0, %v3030
      %3032 = vmatmul.bf16.gmra.mxu0 %v2944
      %v3033 = vpop.f32.mrf.mxu0
      %v3034 = vadd.f32 0.0, %v3033
      %v3035 = vpop.f32.mrf.mxu0
      %v3036 = vadd.f32 0.0, %v3035
      %3037 = vdwg.mxu0
      %v3038 = vadd.f32 %v2897, %v2959
      %v3039 = vadd.f32 %v2898, %v2961
      %v3040 = vadd.f32 %v2899, %v2964
      %v3041 = vadd.f32 %v2900, %v2966
      %v3042 = vadd.f32 %v2901, %v2969
      %v3043 = vadd.f32 %v2902, %v2971
      %v3044 = vadd.f32 %v2903, %v2974
      %v3045 = vadd.f32 %v2904, %v2976
      %v3046 = vadd.f32 %v2905, %v2979
      %v3047 = vadd.f32 %v2906, %v2981
      %v3048 = vadd.f32 %v2907, %v2984
      %v3049 = vadd.f32 %v2908, %v2986
      %v3050 = vadd.f32 %v2909, %v2989
      %v3051 = vadd.f32 %v2910, %v2991
      %v3052 = vadd.f32 %v2911, %v2994
      %v3053 = vadd.f32 %v2912, %v2996
      %v3054 = vadd.f32 %v2913, %v2999
      %v3055 = vadd.f32 %v2914, %v3001
      %v3056 = vadd.f32 %v2915, %v3004
      %v3057 = vadd.f32 %v2916, %v3006
      %v3058 = vadd.f32 %v2917, %v3009
      %v3059 = vadd.f32 %v2918, %v3011
      %v3060 = vadd.f32 %v2919, %v3014
      %v3061 = vadd.f32 %v2920, %v3016
      %v3062 = vadd.f32 %v2921, %v3019
      %v3063 = vadd.f32 %v2922, %v3021
      %v3064 = vadd.f32 %v2923, %v3024
      %v3065 = vadd.f32 %v2924, %v3026
      %v3066 = vadd.f32 %v2925, %v3029
      %v3067 = vadd.f32 %v2926, %v3031
      %v3068 = vadd.f32 %v2927, %v3034
      %v3069 = vadd.f32 %v2928, %v3036
      %v3070 = vsel %vm1477, %v3038, 0.0
      %v3071 = vsel %vm1477, %v3039, 0.0
      %v3072 = vadd.f32 %v3070, %v3071
      %v3073 = vsel %vm1477, %v3040, 0.0
      %v3074 = vadd.f32 %v3072, %v3073
      %v3075 = vsel %vm1477, %v3041, 0.0
      %v3076 = vadd.f32 %v3074, %v3075
      %v3077 = vsel %vm1477, %v3042, 0.0
      %v3078 = vadd.f32 %v3076, %v3077
      %v3079 = vsel %vm1477, %v3043, 0.0
      %v3080 = vadd.f32 %v3078, %v3079
      %v3081 = vsel %vm1477, %v3044, 0.0
      %v3082 = vadd.f32 %v3080, %v3081
      %v3083 = vsel %vm1477, %v3045, 0.0
      %v3084 = vadd.f32 %v3082, %v3083
      %v3085 = vsel %vm1477, %v3046, 0.0
      %v3086 = vadd.f32 %v3084, %v3085
      %v3087 = vsel %vm1477, %v3047, 0.0
      %v3088 = vadd.f32 %v3086, %v3087
      %v3089 = vsel %vm1477, %v3048, 0.0
      %v3090 = vadd.f32 %v3088, %v3089
      %v3091 = vsel %vm1477, %v3049, 0.0
      %v3092 = vadd.f32 %v3090, %v3091
      %v3093 = vsel %vm1477, %v3050, 0.0
      %v3094 = vadd.f32 %v3092, %v3093
      %v3095 = vsel %vm1477, %v3051, 0.0
      %v3096 = vadd.f32 %v3094, %v3095
      %v3097 = vsel %vm1477, %v3052, 0.0
      %v3098 = vadd.f32 %v3096, %v3097
      %v3099 = vsel %vm1477, %v3053, 0.0
      %v3100 = vadd.f32 %v3098, %v3099
      %v3101 = vsel %vm1477, %v3054, 0.0
      %v3102 = vadd.f32 %v3100, %v3101
      %v3103 = vsel %vm1477, %v3055, 0.0
      %v3104 = vadd.f32 %v3102, %v3103
      %v3105 = vsel %vm1477, %v3056, 0.0
      %v3106 = vadd.f32 %v3104, %v3105
      %v3107 = vsel %vm1477, %v3057, 0.0
      %v3108 = vadd.f32 %v3106, %v3107
      %v3109 = vsel %vm1477, %v3058, 0.0
      %v3110 = vadd.f32 %v3108, %v3109
      %v3111 = vsel %vm1477, %v3059, 0.0
      %v3112 = vadd.f32 %v3110, %v3111
      %v3113 = vsel %vm1477, %v3060, 0.0
      %v3114 = vadd.f32 %v3112, %v3113
      %v3115 = vsel %vm1477, %v3061, 0.0
      %v3116 = vadd.f32 %v3114, %v3115
      %v3117 = vsel %vm1477, %v3062, 0.0
      %v3118 = vadd.f32 %v3116, %v3117
      %v3119 = vsel %vm1477, %v3063, 0.0
      %v3120 = vadd.f32 %v3118, %v3119
      %v3121 = vsel %vm1477, %v3064, 0.0
      %v3122 = vadd.f32 %v3120, %v3121
      %v3123 = vsel %vm1477, %v3065, 0.0
      %v3124 = vadd.f32 %v3122, %v3123
      %v3125 = vsel %vm1477, %v3066, 0.0
      %v3126 = vadd.f32 %v3124, %v3125
      %v3127 = vsel %vm1477, %v3067, 0.0
      %v3128 = vadd.f32 %v3126, %v3127
      %v3129 = vsel %vm1477, %v3068, 0.0
      %v3130 = vadd.f32 %v3128, %v3129
      %v3131 = vsel %vm1477, %v3069, 0.0
      %v3132 = vadd.f32 %v3130, %v3131
      %v3133 = vrot.slane %v3132, 4
      %v3134 = vadd.f32 %v3132, %v3133
      %v3135 = vrot.slane %v3134, 2
      %v3136 = vadd.f32 %v3134, %v3135
      %v3137 = vrot.slane %v3136, 1
      %v3138 = vadd.f32 %v3136, %v3137
      %3139 = vst.msk [vmem:[%s265] sm:$0x1] %vm473, %v3138
      %v3140 = vmul.f32 %v3038, %v3038
      %v3141 = vmul.f32 %v3039, %v3039
      %v3142 = vmul.f32 %v3040, %v3040
      %v3143 = vmul.f32 %v3041, %v3041
      %v3144 = vmul.f32 %v3042, %v3042
      %v3145 = vmul.f32 %v3043, %v3043
      %v3146 = vmul.f32 %v3044, %v3044
      %v3147 = vmul.f32 %v3045, %v3045
      %v3148 = vmul.f32 %v3046, %v3046
      %v3149 = vmul.f32 %v3047, %v3047
      %v3150 = vmul.f32 %v3048, %v3048
      %v3151 = vmul.f32 %v3049, %v3049
      %v3152 = vmul.f32 %v3050, %v3050
      %v3153 = vmul.f32 %v3051, %v3051
      %v3154 = vmul.f32 %v3052, %v3052
      %v3155 = vmul.f32 %v3053, %v3053
      %v3156 = vmul.f32 %v3054, %v3054
      %v3157 = vmul.f32 %v3055, %v3055
      %v3158 = vmul.f32 %v3056, %v3056
      %v3159 = vmul.f32 %v3057, %v3057
      %v3160 = vmul.f32 %v3058, %v3058
      %v3161 = vmul.f32 %v3059, %v3059
      %v3162 = vmul.f32 %v3060, %v3060
      %v3163 = vmul.f32 %v3061, %v3061
      %v3164 = vmul.f32 %v3062, %v3062
      %v3165 = vmul.f32 %v3063, %v3063
      %v3166 = vmul.f32 %v3064, %v3064
      %v3167 = vmul.f32 %v3065, %v3065
      %v3168 = vmul.f32 %v3066, %v3066
      %v3169 = vmul.f32 %v3067, %v3067
      %v3170 = vmul.f32 %v3068, %v3068
      %v3171 = vmul.f32 %v3069, %v3069
      %v3172 = vsel %vm1477, %v3140, 0.0
      %v3173 = vsel %vm1477, %v3141, 0.0
      %v3174 = vadd.f32 %v3172, %v3173
      %v3175 = vsel %vm1477, %v3142, 0.0
      %v3176 = vadd.f32 %v3174, %v3175
      %v3177 = vsel %vm1477, %v3143, 0.0
      %v3178 = vadd.f32 %v3176, %v3177
      %v3179 = vsel %vm1477, %v3144, 0.0
      %v3180 = vadd.f32 %v3178, %v3179
      %v3181 = vsel %vm1477, %v3145, 0.0
      %v3182 = vadd.f32 %v3180, %v3181
      %v3183 = vsel %vm1477, %v3146, 0.0
      %v3184 = vadd.f32 %v3182, %v3183
      %v3185 = vsel %vm1477, %v3147, 0.0
      %v3186 = vadd.f32 %v3184, %v3185
      %v3187 = vsel %vm1477, %v3148, 0.0
      %v3188 = vadd.f32 %v3186, %v3187
      %v3189 = vsel %vm1477, %v3149, 0.0
      %v3190 = vadd.f32 %v3188, %v3189
      %v3191 = vsel %vm1477, %v3150, 0.0
      %v3192 = vadd.f32 %v3190, %v3191
      %v3193 = vsel %vm1477, %v3151, 0.0
      %v3194 = vadd.f32 %v3192, %v3193
      %v3195 = vsel %vm1477, %v3152, 0.0
      %v3196 = vadd.f32 %v3194, %v3195
      %v3197 = vsel %vm1477, %v3153, 0.0
      %v3198 = vadd.f32 %v3196, %v3197
      %v3199 = vsel %vm1477, %v3154, 0.0
      %v3200 = vadd.f32 %v3198, %v3199
      %v3201 = vsel %vm1477, %v3155, 0.0
      %v3202 = vadd.f32 %v3200, %v3201
      %v3203 = vsel %vm1477, %v3156, 0.0
      %v3204 = vadd.f32 %v3202, %v3203
      %v3205 = vsel %vm1477, %v3157, 0.0
      %v3206 = vadd.f32 %v3204, %v3205
      %v3207 = vsel %vm1477, %v3158, 0.0
      %v3208 = vadd.f32 %v3206, %v3207
      %v3209 = vsel %vm1477, %v3159, 0.0
      %v3210 = vadd.f32 %v3208, %v3209
      %v3211 = vsel %vm1477, %v3160, 0.0
      %v3212 = vadd.f32 %v3210, %v3211
      %v3213 = vsel %vm1477, %v3161, 0.0
      %v3214 = vadd.f32 %v3212, %v3213
      %v3215 = vsel %vm1477, %v3162, 0.0
      %v3216 = vadd.f32 %v3214, %v3215
      %v3217 = vsel %vm1477, %v3163, 0.0
      %v3218 = vadd.f32 %v3216, %v3217
      %v3219 = vsel %vm1477, %v3164, 0.0
      %v3220 = vadd.f32 %v3218, %v3219
      %v3221 = vsel %vm1477, %v3165, 0.0
      %v3222 = vadd.f32 %v3220, %v3221
      %v3223 = vsel %vm1477, %v3166, 0.0
      %v3224 = vadd.f32 %v3222, %v3223
      %v3225 = vsel %vm1477, %v3167, 0.0
      %v3226 = vadd.f32 %v3224, %v3225
      %v3227 = vsel %vm1477, %v3168, 0.0
      %v3228 = vadd.f32 %v3226, %v3227
      %v3229 = vsel %vm1477, %v3169, 0.0
      %v3230 = vadd.f32 %v3228, %v3229
      %v3231 = vsel %vm1477, %v3170, 0.0
      %v3232 = vadd.f32 %v3230, %v3231
      %v3233 = vsel %vm1477, %v3171, 0.0
      %v3234 = vadd.f32 %v3232, %v3233
      %v3235 = vrot.slane %v3234, 4
      %v3236 = vadd.f32 %v3234, %v3235
      %v3237 = vrot.slane %v3236, 2
      %v3238 = vadd.f32 %v3236, %v3237
      %v3239 = vrot.slane %v3238, 1
      %v3240 = vadd.f32 %v3238, %v3239
      %3241 = vst.msk [vmem:[%s268] sm:$0x1] %vm473, %v3240
      %v3242 = vpack.c.bf16 %v3038, %v3038
      %v3243 = vpack.c.bf16 %v3039, %v3039
      %v3244 = vpack.c.bf16 %v3040, %v3040
      %v3245 = vpack.c.bf16 %v3041, %v3041
      %v3246 = vpack.c.bf16 %v3042, %v3042
      %v3247 = vpack.c.bf16 %v3043, %v3043
      %v3248 = vpack.c.bf16 %v3044, %v3044
      %v3249 = vpack.c.bf16 %v3045, %v3045
      %v3250 = vpack.c.bf16 %v3046, %v3046
      %v3251 = vpack.c.bf16 %v3047, %v3047
      %v3252 = vpack.c.bf16 %v3048, %v3048
      %v3253 = vpack.c.bf16 %v3049, %v3049
      %v3254 = vpack.c.bf16 %v3050, %v3050
      %v3255 = vpack.c.bf16 %v3051, %v3051
      %v3256 = vpack.c.bf16 %v3052, %v3052
      %v3257 = vpack.c.bf16 %v3053, %v3053
      %v3258 = vpack.c.bf16 %v3054, %v3054
      %v3259 = vpack.c.bf16 %v3055, %v3055
      %v3260 = vpack.c.bf16 %v3056, %v3056
      %v3261 = vpack.c.bf16 %v3057, %v3057
      %v3262 = vpack.c.bf16 %v3058, %v3058
      %v3263 = vpack.c.bf16 %v3059, %v3059
      %v3264 = vpack.c.bf16 %v3060, %v3060
      %v3265 = vpack.c.bf16 %v3061, %v3061
      %v3266 = vpack.c.bf16 %v3062, %v3062
      %v3267 = vpack.c.bf16 %v3063, %v3063
      %v3268 = vpack.c.bf16 %v3064, %v3064
      %v3269 = vpack.c.bf16 %v3065, %v3065
      %v3270 = vpack.c.bf16 %v3066, %v3066
      %v3271 = vpack.c.bf16 %v3067, %v3067
      %v3272 = vpack.c.bf16 %v3068, %v3068
      %v3273 = vpack.c.bf16 %v3069, %v3069
      %3274 = vst.msk [vmem:[%s262] sm:$0xf] %vm470, %v3242
      %3275 = vst.msk [vmem:[%s262 + $0x4] sm:$0xf] %vm470, %v3243
      %3276 = vst.msk [vmem:[%s262 + $0x8] sm:$0xf] %vm470, %v3244
      %3277 = vst.msk [vmem:[%s262 + $0xc] sm:$0xf] %vm470, %v3245
      %3278 = vst.msk [vmem:[%s262 + $0x10] sm:$0xf] %vm470, %v3246
      %3279 = vst.msk [vmem:[%s262 + $0x14] sm:$0xf] %vm470, %v3247
      %3280 = vst.msk [vmem:[%s262 + $0x18] sm:$0xf] %vm470, %v3248
      %3281 = vst.msk [vmem:[%s262 + $0x1c] sm:$0xf] %vm470, %v3249
      %3282 = vst.msk [vmem:[%s262 + $0x20] sm:$0xf] %vm470, %v3250
      %3283 = vst.msk [vmem:[%s262 + $0x24] sm:$0xf] %vm470, %v3251
      %3284 = vst.msk [vmem:[%s262 + $0x28] sm:$0xf] %vm470, %v3252
      %3285 = vst.msk [vmem:[%s262 + $0x2c] sm:$0xf] %vm470, %v3253
      %3286 = vst.msk [vmem:[%s262 + $0x30] sm:$0xf] %vm470, %v3254
      %3287 = vst.msk [vmem:[%s262 + $0x34] sm:$0xf] %vm470, %v3255
      %3288 = vst.msk [vmem:[%s262 + $0x38] sm:$0xf] %vm470, %v3256
      %3289 = vst.msk [vmem:[%s262 + $0x3c] sm:$0xf] %vm470, %v3257
      %3290 = vst.msk [vmem:[%s262 + $0x40] sm:$0xf] %vm470, %v3258
      %3291 = vst.msk [vmem:[%s262 + $0x44] sm:$0xf] %vm470, %v3259
      %3292 = vst.msk [vmem:[%s262 + $0x48] sm:$0xf] %vm470, %v3260
      %3293 = vst.msk [vmem:[%s262 + $0x4c] sm:$0xf] %vm470, %v3261
      %3294 = vst.msk [vmem:[%s262 + $0x50] sm:$0xf] %vm470, %v3262
      %3295 = vst.msk [vmem:[%s262 + $0x54] sm:$0xf] %vm470, %v3263
      %3296 = vst.msk [vmem:[%s262 + $0x58] sm:$0xf] %vm470, %v3264
      %3297 = vst.msk [vmem:[%s262 + $0x5c] sm:$0xf] %vm470, %v3265
      %3298 = vst.msk [vmem:[%s262 + $0x60] sm:$0xf] %vm470, %v3266
      %3299 = vst.msk [vmem:[%s262 + $0x64] sm:$0xf] %vm470, %v3267
      %3300 = vst.msk [vmem:[%s262 + $0x68] sm:$0xf] %vm470, %v3268
      %3301 = vst.msk [vmem:[%s262 + $0x6c] sm:$0xf] %vm470, %v3269
      %3302 = vst.msk [vmem:[%s262 + $0x70] sm:$0xf] %vm470, %v3270
      %3303 = vst.msk [vmem:[%s262 + $0x74] sm:$0xf] %vm470, %v3271
      %3304 = vst.msk [vmem:[%s262 + $0x78] sm:$0xf] %vm470, %v3272
      %3305 = vst.msk [vmem:[%s262 + $0x7c] sm:$0xf] %vm470, %v3273
      %p3306 = scmp.lt.s32.totalorder %s18, 1
      %s3307 = scalar_select %p3306, %s18, 1
      %s3308 = smul.addr %s3307, 32
      %s3309 = smul.addr %s3308, 4
      %s3310 = scalar_lea.vmem %s4, %s3309
      %p3311 = scmp.lt.s32.totalorder %s18, 1
      %s3312 = scalar_select %p3311, %s18, 1
      %s3313 = scalar_lea.vmem %s5, %s3312
      %p3314 = scmp.lt.s32.totalorder %s18, 1
      %s3315 = scalar_select %p3314, %s18, 1
      %s3316 = scalar_lea.vmem %s6, %s3315
      // Predicated region
      $region37: #{a_call__.4} parent=35 // pred_check
        %p3317 = pneg %p125
      $region38: #{a_call__.4} parent=35 // pred_check_branch
        %3319 = sbr.rel (%p3317) target = $region40
      $region39: #{a_call__.4} parent=35 // pred_region
        _
      $region40: #{a_call__.4} parent=35 // pred_fallthru
        _
      // Predicated region
      $region41: #{a_call__.4} parent=35 // pred_check
        %p3320 = pneg %p151
      $region42: #{a_call__.4} parent=35 // pred_check_branch
        %3322 = sbr.rel (%p3320) target = $region44
      $region43: #{a_call__.4} parent=35 // pred_region
        _
      $region44: #{a_call__.4} parent=35 // pred_fallthru
        _
      // Predicated region
      $region45: #{a_call__.4} parent=35 // pred_check
        %p3323 = pneg %p177
      $region46: #{a_call__.4} parent=35 // pred_check_branch
        %3325 = sbr.rel (%p3323) target = $region48
      $region47: #{a_call__.4} parent=35 // pred_region
        _
      $region48: #{a_call__.4} parent=35 // pred_fallthru
        _
    $region36: #{a_call__.4} parent=5 // pred_fallthru
      _
    %p3326 = scmp.le.s32.totalorder 2, %s13
    // Predicated region
    $region49: #{a_call__.4} parent=5 // pred_check
      %p3327 = pneg %p3326
    $region50: #{a_call__.4} parent=5 // pred_check_branch
      %3329 = sbr.rel (%p3327) target = $region52
    $region51: #{a_call__.4} parent=5 // pred_region
      %s3330 = ssub.s32 %s13, 2
      // Predicated region
      $region53: #{a_call__.4} parent=51 // pred_check
        %p3331 = pneg %p131
      $region54: #{a_call__.4} parent=51 // pred_check_branch
        %3333 = sbr.rel (%p3331) target = $region56
      $region55: #{a_call__.4} parent=51 // pred_region
        %p3334 = scmp.lt.s32.totalorder %s19, 1
        %s3335 = scalar_select %p3334, %s19, 1
        %s3336 = smul.addr %s3335, 32
        %s3337 = smul.addr %s3336, 4
        %s3338 = scalar_lea.vmem %s4, %s3337
      $region56: #{a_call__.4} parent=51 // pred_fallthru
        _
      // Predicated region
      $region57: #{a_call__.4} parent=51 // pred_check
        %p3339 = pneg %p157
      $region58: #{a_call__.4} parent=51 // pred_check_branch
        %3341 = sbr.rel (%p3339) target = $region60
      $region59: #{a_call__.4} parent=51 // pred_region
        %p3342 = scmp.lt.s32.totalorder %s19, 1
        %s3343 = scalar_select %p3342, %s19, 1
        %s3344 = scalar_lea.vmem %s5, %s3343
      $region60: #{a_call__.4} parent=51 // pred_fallthru
        _
      // Predicated region
      $region61: #{a_call__.4} parent=51 // pred_check
        %p3345 = pneg %p183
      $region62: #{a_call__.4} parent=51 // pred_check_branch
        %3347 = sbr.rel (%p3345) target = $region64
      $region63: #{a_call__.4} parent=51 // pred_region
        %p3348 = scmp.lt.s32.totalorder %s19, 1
        %s3349 = scalar_select %p3348, %s19, 1
        %s3350 = scalar_lea.vmem %s6, %s3349
      $region64: #{a_call__.4} parent=51 // pred_fallthru
        _
    $region52: #{a_call__.4} parent=5 // pred_fallthru
      _
  $region6: #{a_call__.4} parent=0 // loop_footer
    %s17 = sadd.s32 1, %s13
  $region7: #{a_call__.4} parent=0 // loop_footer_branch
    %12 = sbr.rel target = $region3
  $region8: #{a_call__.4} parent=0 // loop_exit
    _

</llo_original>
